<compile_context>
chip_gen: v7x
topology: tpu7x:2x2x1
jax: 0.10.0
libtpu: 0.0.40
codegen_flags: <defaults>
</compile_context>

<pallas_src>
import functools

import jax
import jax.numpy as jnp
from jax import lax
from jax.experimental import pallas as pl
from jax.experimental.pallas import tpu as pltpu

HIDDEN = 1024          # hardcoded in FeatureSelector's PFS (Linear(1024, 1024))
LN_EPS = 1e-5          # torch.nn.LayerNorm default


def _round_up(x, m):
    return ((x + m - 1) // m) * m


def _feature_select_kernel(cap_ref, pat_ref, w1_ref, b1_ref, w2_ref, b2_ref,
                           g_ref, beta_ref, out_ref, *, tp, bsz_p, dim):
    """Grid = (split, pattern_block); inner axis is the running-max reduction."""
    k = pl.program_id(1)

    # The output block is resident across the inner ("arbitrary") axis and
    # doubles as the running-max accumulator. Masks are post-ReLU (>= 0),
    # so zero-init is correct.
    @pl.when(k == 0)
    def _():
        out_ref[...] = jnp.zeros_like(out_ref)

    cap = cap_ref[...]                # [bsz_p, dim]  f32
    pats = pat_ref[...]               # [tp,    dim]  f32

    # sim[t, b, :] = |cap[b] - pattern[t]| ; flatten (tp, bsz_p) -> one GEMM M dim.
    sim = jnp.abs(cap[None, :, :] - pats[:, None, :])            # [tp, bsz_p, dim]
    sim2d = sim.reshape(tp * bsz_p, dim).astype(jnp.bfloat16)    # bsz_p % 8 == 0

    # PFS: Linear -> ReLU -> Linear -> LayerNorm -> ReLU (bf16 MXU, f32 accum).
    h = jnp.dot(sim2d, w1_ref[...], preferred_element_type=jnp.float32) + b1_ref[...]
    h = jnp.maximum(h, 0.0).astype(jnp.bfloat16)
    y = jnp.dot(h, w2_ref[...], preferred_element_type=jnp.float32) + b2_ref[...]

    # LayerNorm with biased variance (torch default), single pass over y.
    mean = jnp.mean(y, axis=-1, keepdims=True)
    var = jnp.mean(y * y, axis=-1, keepdims=True) - mean * mean
    ln = (y - mean) * lax.rsqrt(var + LN_EPS) * g_ref[...] + beta_ref[...]
    mask = jnp.maximum(ln, 0.0)                                   # [tp*bsz_p, dim]

    # Fold the elementwise max over this block's tp patterns, then into out_ref.
    blk_max = jnp.max(mask.reshape(tp, bsz_p, dim), axis=0)       # [bsz_p, dim]
    out_ref[...] = jnp.maximum(out_ref[...], blk_max[None, :, :])


@jax.jit
def memory_select_forward(cap_feats, video_patterns, w1, b1, w2, b2, ln_g, ln_b):
    bsz, dim = cap_feats.shape
    n_pat = video_patterns.shape[0]
    assert dim == HIDDEN

    # ---- static tiling decisions (shapes are static under jit) --------------
    bsz_p = _round_up(max(bsz, 8), 8)              # sublane-aligned batch rows
    # TODO(synk): tile bsz with an extra "parallel" grid axis if bsz grows large.
    target_m = 512                                 # GEMM M rows per grid step
    tp = max(8, (target_m // bsz_p) // 8 * 8)      # patterns per step (sublane-aligned)
    tp = min(tp, _round_up(n_pat, 8))

    n_blocks = pl.cdiv(n_pat, tp)
    nsplit = 2 if n_blocks >= 2 else 1             # partial-max split (v7x 2nd TC)
    nblk = pl.cdiv(n_blocks, nsplit)
    np_p = nsplit * nblk * tp

    # ---- pad operands --------------------------------------------------------
    cap_p = jnp.zeros((bsz_p, dim), jnp.float32).at[:bsz].set(cap_feats)
    pad = np_p - n_pat
    if pad:
        # Pad with duplicates of pattern 0: elementwise max is idempotent, so
        # duplicated patterns cannot change the result.
        pat_p = jnp.concatenate(
            [video_patterns,
             jnp.broadcast_to(video_patterns[:1], (pad, dim))], axis=0)
    else:
        pat_p = video_patterns

    w1_bf = w1.astype(jnp.bfloat16)
    w2_bf = w2.astype(jnp.bfloat16)
    b1_2d = b1.reshape(1, dim).astype(jnp.float32)
    b2_2d = b2.reshape(1, dim).astype(jnp.float32)
    g_2d = ln_g.reshape(1, dim).astype(jnp.float32)
    beta_2d = ln_b.reshape(1, dim).astype(jnp.float32)

    const = lambda shape: pl.BlockSpec(shape, lambda s, k: tuple(0 for _ in shape))

    grid_spec = pltpu.PrefetchScalarGridSpec(
        num_scalar_prefetch=0,
        grid=(nsplit, nblk),
        in_specs=[
            const((bsz_p, dim)),                                       # cap_feats (resident)
            pl.BlockSpec((tp, dim), lambda s, k: (s * nblk + k, 0)),   # pattern tile (pipelined)
            const((dim, dim)),                                         # W1 (bf16)
            const((1, dim)),                                           # b1
            const((dim, dim)),                                         # W2 (bf16)
            const((1, dim)),                                           # b2
            const((1, dim)),                                           # LayerNorm gamma
            const((1, dim)),                                           # LayerNorm beta
        ],
        out_specs=pl.BlockSpec((1, bsz_p, dim), lambda s, k: (s, 0, 0)),
    )

    kernel = functools.partial(_feature_select_kernel, tp=tp, bsz_p=bsz_p, dim=dim)

    partial_max = pl.pallas_call(
        kernel,
        out_shape=jax.ShapeDtypeStruct((nsplit, bsz_p, dim), jnp.float32),
        grid_spec=grid_spec,
        compiler_params=pltpu.CompilerParams(
            dimension_semantics=("parallel", "arbitrary"),  # reduction axis last
            vmem_limit_bytes=40 << 20,
        ),
    )(cap_p, pat_p, w1_bf, b1_2d, w2_bf, b2_2d, g_2d, beta_2d)

    # Combine the per-split partial maxima and apply the final mask * cap_feats.
    mask_max = jnp.max(partial_max, axis=0)          # [bsz_p, dim]
    return (mask_max * cap_p)[:bsz]


def _reference(cap_feats, video_patterns, w1, b1, w2, b2, ln_g, ln_b):
    masks = []
    for pattern in video_patterns:
        sim = jnp.abs(cap_feats - pattern[None, :])
        h = jnp.maximum(sim @ w1 + b1, 0.0)
        y = h @ w2 + b2
        mean = jnp.mean(y, axis=-1, keepdims=True)
        var = jnp.mean((y - mean) ** 2, axis=-1, keepdims=True)
        ln = (y - mean) / jnp.sqrt(var + LN_EPS) * ln_g + ln_b
        masks.append(jnp.maximum(ln, 0.0))
    mask_max = jnp.max(jnp.stack(masks, axis=1), axis=1)
    return mask_max * cap_feats


if __name__ == "__main__":
    key = jax.random.PRNGKey(0)
    k_cap, k_pat, k_w1, k_b1, k_w2, k_b2 = jax.random.split(key, 6)

    bsz, n_patterns, dim = 2, 4, HIDDEN

    # Inputs
    cap_feats = jax.random.normal(k_cap, (bsz, dim), dtype=jnp.float32)
    video_patterns = jax.random.normal(k_pat, (n_patterns, dim), dtype=jnp.float32)

    # Deterministic synthetic parameters (nn.Linear weights stored as [in, out]).
    bound = 1.0 / jnp.sqrt(jnp.float32(dim))
    w1 = jax.random.uniform(k_w1, (dim, dim), jnp.float32, -bound, bound)
    b1 = jax.random.uniform(k_b1, (dim,), jnp.float32, -bound, bound)
    w2 = jax.random.uniform(k_w2, (dim, dim), jnp.float32, -bound, bound)
    b2 = jax.random.uniform(k_b2, (dim,), jnp.float32, -bound, bound)
    ln_g = jnp.ones((dim,), jnp.float32)    # torch LayerNorm default affine init
    ln_b = jnp.zeros((dim,), jnp.float32)

    out = memory_select_forward(cap_feats, video_patterns, w1, b1, w2, b2, ln_g, ln_b)
    out = jax.block_until_ready(out)

    ref = _reference(cap_feats, video_patterns, w1, b1, w2, b2, ln_g, ln_b)
    assert out.shape == (bsz, dim)
    # bf16 matmuls inside the kernel -> loosened tolerance vs. the f32 reference.
    assert jnp.allclose(out, ref, atol=1e-1, rtol=2e-2), "mismatch vs JAX reference"

    print("KERNEL_OK")
</pallas_src>

<mosaic_0001>
module attributes {stable_mosaic.version = 11 : i64} {
  func.func @_feature_select_kernel(%arg0: i32, %arg1: i32, %arg2: memref<8x1024xf32, #tpu.memory_space<vmem>>, %arg3: memref<8x1024xf32, #tpu.memory_space<vmem>>, %arg4: memref<1024x1024xbf16, #tpu.memory_space<vmem>>, %arg5: memref<1x1024xf32, #tpu.memory_space<vmem>>, %arg6: memref<1024x1024xbf16, #tpu.memory_space<vmem>>, %arg7: memref<1x1024xf32, #tpu.memory_space<vmem>>, %arg8: memref<1x1024xf32, #tpu.memory_space<vmem>>, %arg9: memref<1x1024xf32, #tpu.memory_space<vmem>>, %arg10: memref<1x8x1024xf32, #tpu.memory_space<vmem>>) attributes {dimension_semantics = [#tpu.dimension_semantics<parallel>, #tpu.dimension_semantics<arbitrary>], iteration_bounds = array<i64: 1, 1>, scalar_prefetch = 0 : i64, scratch_operands = 0 : i64, tpu.core_type = #tpu.core_type<tc>, window_params = [{pipeline_mode = #tpu.pipeline_mode<synchronous>, transform_indices = @transform_0, window_bounds = array<i64: 8, 1024>}, {transform_indices = @transform_1, window_bounds = array<i64: 8, 1024>}, {pipeline_mode = #tpu.pipeline_mode<synchronous>, transform_indices = @transform_2, window_bounds = array<i64: 1024, 1024>}, {pipeline_mode = #tpu.pipeline_mode<synchronous>, transform_indices = @transform_3, window_bounds = array<i64: 1, 1024>}, {pipeline_mode = #tpu.pipeline_mode<synchronous>, transform_indices = @transform_4, window_bounds = array<i64: 1024, 1024>}, {pipeline_mode = #tpu.pipeline_mode<synchronous>, transform_indices = @transform_5, window_bounds = array<i64: 1, 1024>}, {pipeline_mode = #tpu.pipeline_mode<synchronous>, transform_indices = @transform_6, window_bounds = array<i64: 1, 1024>}, {pipeline_mode = #tpu.pipeline_mode<synchronous>, transform_indices = @transform_7, window_bounds = array<i64: 1, 1024>}, {transform_indices = @transform_8, window_bounds = array<i64: 1, 8, 1024>}]} {
    %c0_i32 = arith.constant 0 : i32
    %0 = arith.cmpi eq, %arg1, %c0_i32 : i32
    %1 = arith.extui %0 : i1 to i32
    %c0_i32_0 = arith.constant 0 : i32
    %2 = arith.cmpi ne, %1, %c0_i32_0 : i32
    scf.if %2 {
      %cst_31 = arith.constant 0.000000e+00 : f32
      %58 = vector.broadcast %cst_31 : f32 to vector<1x8x1024xf32>
      %c0_32 = arith.constant 0 : index
      %c0_33 = arith.constant 0 : index
      %c0_34 = arith.constant 0 : index
      %59 = vector.load %arg10[%c0_32, %c0_33, %c0_34] : memref<1x8x1024xf32, #tpu.memory_space<vmem>>, vector<1x8x1024xf32>
      tpu.vector_store %arg10[%c0_32, %c0_33, %c0_34], %58 {strides = array<i32>} : memref<1x8x1024xf32, #tpu.memory_space<vmem>>, vector<1x8x1024xf32>,
    } else {
    }
    %c0 = arith.constant 0 : index
    %c0_1 = arith.constant 0 : index
    %3 = vector.load %arg2[%c0, %c0_1] : memref<8x1024xf32, #tpu.memory_space<vmem>>, vector<8x1024xf32>
    %c0_2 = arith.constant 0 : index
    %c0_3 = arith.constant 0 : index
    %4 = vector.load %arg3[%c0_2, %c0_3] : memref<8x1024xf32, #tpu.memory_space<vmem>>, vector<8x1024xf32>
    %5 = vector.shape_cast %3 : vector<8x1024xf32> to vector<1x8x1024xf32>
    %6 = vector.shape_cast %4 : vector<8x1024xf32> to vector<8x1x1024xf32>
    %7 = vector.broadcast %5 : vector<1x8x1024xf32> to vector<8x8x1024xf32>
    %8 = vector.broadcast %6 : vector<8x1x1024xf32> to vector<8x8x1024xf32>
    %9 = arith.subf %7, %8 : vector<8x8x1024xf32>
    %10 = math.absf %9 : vector<8x8x1024xf32>
    %11 = vector.shape_cast %10 : vector<8x8x1024xf32> to vector<64x1024xf32>
    %12 = arith.truncf %11 : vector<64x1024xf32> to vector<64x1024xbf16>
    %c0_4 = arith.constant 0 : index
    %c0_5 = arith.constant 0 : index
    %13 = vector.load %arg4[%c0_4, %c0_5] : memref<1024x1024xbf16, #tpu.memory_space<vmem>>, vector<1024x1024xbf16>
    %cst = arith.constant dense<0.000000e+00> : vector<64x1024xf32>
    %14 = tpu.matmul %12, %13, %cst {dimension_numbers = #tpu.dot_dimension_numbers<[1], [0], [0], [1], [0, 0, 1, 1], [], []>} : vector<64x1024xbf16>, vector<1024x1024xbf16>, vector<64x1024xf32> -> vector<64x1024xf32>
    %c0_6 = arith.constant 0 : index
    %c0_7 = arith.constant 0 : index
    %15 = vector.load %arg5[%c0_6, %c0_7] : memref<1x1024xf32, #tpu.memory_space<vmem>>, vector<1x1024xf32>
    %16 = vector.broadcast %15 : vector<1x1024xf32> to vector<64x1024xf32>
    %17 = arith.addf %14, %16 : vector<64x1024xf32>
    %cst_8 = arith.constant 0.000000e+00 : f32
    %18 = vector.broadcast %cst_8 : f32 to vector<64x1024xf32>
    %19 = arith.maximumf %17, %18 : vector<64x1024xf32>
    %20 = arith.truncf %19 : vector<64x1024xf32> to vector<64x1024xbf16>
    %c0_9 = arith.constant 0 : index
    %c0_10 = arith.constant 0 : index
    %21 = vector.load %arg6[%c0_9, %c0_10] : memref<1024x1024xbf16, #tpu.memory_space<vmem>>, vector<1024x1024xbf16>
    %cst_11 = arith.constant dense<0.000000e+00> : vector<64x1024xf32>
    %22 = tpu.matmul %20, %21, %cst_11 {dimension_numbers = #tpu.dot_dimension_numbers<[1], [0], [0], [1], [0, 0, 1, 1], [], []>} : vector<64x1024xbf16>, vector<1024x1024xbf16>, vector<64x1024xf32> -> vector<64x1024xf32>
    %c0_12 = arith.constant 0 : index
    %c0_13 = arith.constant 0 : index
    %23 = vector.load %arg7[%c0_12, %c0_13] : memref<1x1024xf32, #tpu.memory_space<vmem>>, vector<1x1024xf32>
    %24 = vector.broadcast %23 : vector<1x1024xf32> to vector<64x1024xf32>
    %25 = arith.addf %22, %24 : vector<64x1024xf32>
    %cst_14 = arith.constant dense<0.000000e+00> : vector<64xf32>
    %26 = vector.multi_reduction <add>, %25, %cst_14 [1] : vector<64x1024xf32> to vector<64xf32>
    %27 = vector.shape_cast %26 : vector<64xf32> to vector<64x1xf32>
    %cst_15 = arith.constant 1.024000e+03 : f32
    %28 = vector.broadcast %cst_15 : f32 to vector<64x1xf32>
    %29 = arith.divf %27, %28 : vector<64x1xf32>
    %30 = arith.mulf %25, %25 : vector<64x1024xf32>
    %cst_16 = arith.constant dense<0.000000e+00> : vector<64xf32>
    %31 = vector.multi_reduction <add>, %30, %cst_16 [1] : vector<64x1024xf32> to vector<64xf32>
    %32 = vector.shape_cast %31 : vector<64xf32> to vector<64x1xf32>
    %cst_17 = arith.constant 1.024000e+03 : f32
    %33 = vector.broadcast %cst_17 : f32 to vector<64x1xf32>
    %34 = arith.divf %32, %33 : vector<64x1xf32>
    %35 = arith.mulf %29, %29 : vector<64x1xf32>
    %36 = arith.subf %34, %35 : vector<64x1xf32>
    %37 = vector.broadcast %29 : vector<64x1xf32> to vector<64x1024xf32>
    %38 = arith.subf %25, %37 : vector<64x1024xf32>
    %cst_18 = arith.constant 9.99999974E-6 : f32
    %39 = vector.broadcast %cst_18 : f32 to vector<64x1xf32>
    %40 = arith.addf %36, %39 : vector<64x1xf32>
    %41 = math.rsqrt %40 : vector<64x1xf32>
    %42 = vector.broadcast %41 : vector<64x1xf32> to vector<64x1024xf32>
    %43 = arith.mulf %38, %42 : vector<64x1024xf32>
    %c0_19 = arith.constant 0 : index
    %c0_20 = arith.constant 0 : index
    %44 = vector.load %arg8[%c0_19, %c0_20] : memref<1x1024xf32, #tpu.memory_space<vmem>>, vector<1x1024xf32>
    %45 = vector.broadcast %44 : vector<1x1024xf32> to vector<64x1024xf32>
    %46 = arith.mulf %43, %45 : vector<64x1024xf32>
    %c0_21 = arith.constant 0 : index
    %c0_22 = arith.constant 0 : index
    %47 = vector.load %arg9[%c0_21, %c0_22] : memref<1x1024xf32, #tpu.memory_space<vmem>>, vector<1x1024xf32>
    %48 = vector.broadcast %47 : vector<1x1024xf32> to vector<64x1024xf32>
    %49 = arith.addf %46, %48 : vector<64x1024xf32>
    %cst_23 = arith.constant 0.000000e+00 : f32
    %50 = vector.broadcast %cst_23 : f32 to vector<64x1024xf32>
    %51 = arith.maximumf %49, %50 : vector<64x1024xf32>
    %52 = vector.shape_cast %51 : vector<64x1024xf32> to vector<8x8x1024xf32>
    %cst_24 = arith.constant dense<0xFF800000> : vector<8x1024xf32>
    %53 = vector.multi_reduction <maximumf>, %52, %cst_24 [0] : vector<8x8x1024xf32> to vector<8x1024xf32>
    %c0_25 = arith.constant 0 : index
    %c0_26 = arith.constant 0 : index
    %c0_27 = arith.constant 0 : index
    %54 = vector.load %arg10[%c0_25, %c0_26, %c0_27] : memref<1x8x1024xf32, #tpu.memory_space<vmem>>, vector<1x8x1024xf32>
    %55 = vector.shape_cast %53 : vector<8x1024xf32> to vector<1x8x1024xf32>
    %56 = arith.maximumf %54, %55 : vector<1x8x1024xf32>
    %c0_28 = arith.constant 0 : index
    %c0_29 = arith.constant 0 : index
    %c0_30 = arith.constant 0 : index
    %57 = vector.load %arg10[%c0_28, %c0_29, %c0_30] : memref<1x8x1024xf32, #tpu.memory_space<vmem>>, vector<1x8x1024xf32>
    tpu.vector_store %arg10[%c0_28, %c0_29, %c0_30], %56 {strides = array<i32>} : memref<1x8x1024xf32, #tpu.memory_space<vmem>>, vector<1x8x1024xf32>,
    return
  }
  func.func @transform_0(%arg0: i32, %arg1: i32) -> (i32, i32) {
    %c0_i32 = arith.constant 0 : i32
    %c0_i32_0 = arith.constant 0 : i32
    %c0_i32_1 = arith.constant 0 : i32
    return %c0_i32, %c0_i32_0 : i32, i32
  }
  func.func @transform_1(%arg0: i32, %arg1: i32) -> (i32, i32) {
    %c1_i32 = arith.constant 1 : i32
    %0 = arith.muli %arg0, %c1_i32 : i32
    %1 = arith.addi %0, %arg1 : i32
    %c0_i32 = arith.constant 0 : i32
    %c0_i32_0 = arith.constant 0 : i32
    return %1, %c0_i32 : i32, i32
  }
  func.func @transform_2(%arg0: i32, %arg1: i32) -> (i32, i32) {
    %c0_i32 = arith.constant 0 : i32
    %c0_i32_0 = arith.constant 0 : i32
    %c0_i32_1 = arith.constant 0 : i32
    return %c0_i32, %c0_i32_0 : i32, i32
  }
  func.func @transform_3(%arg0: i32, %arg1: i32) -> (i32, i32) {
    %c0_i32 = arith.constant 0 : i32
    %c0_i32_0 = arith.constant 0 : i32
    %c0_i32_1 = arith.constant 0 : i32
    return %c0_i32, %c0_i32_0 : i32, i32
  }
  func.func @transform_4(%arg0: i32, %arg1: i32) -> (i32, i32) {
    %c0_i32 = arith.constant 0 : i32
    %c0_i32_0 = arith.constant 0 : i32
    %c0_i32_1 = arith.constant 0 : i32
    return %c0_i32, %c0_i32_0 : i32, i32
  }
  func.func @transform_5(%arg0: i32, %arg1: i32) -> (i32, i32) {
    %c0_i32 = arith.constant 0 : i32
    %c0_i32_0 = arith.constant 0 : i32
    %c0_i32_1 = arith.constant 0 : i32
    return %c0_i32, %c0_i32_0 : i32, i32
  }
  func.func @transform_6(%arg0: i32, %arg1: i32) -> (i32, i32) {
    %c0_i32 = arith.constant 0 : i32
    %c0_i32_0 = arith.constant 0 : i32
    %c0_i32_1 = arith.constant 0 : i32
    return %c0_i32, %c0_i32_0 : i32, i32
  }
  func.func @transform_7(%arg0: i32, %arg1: i32) -> (i32, i32) {
    %c0_i32 = arith.constant 0 : i32
    %c0_i32_0 = arith.constant 0 : i32
    %c0_i32_1 = arith.constant 0 : i32
    return %c0_i32, %c0_i32_0 : i32, i32
  }
  func.func @transform_8(%arg0: i32, %arg1: i32) -> (i32, i32, i32) {
    %c0_i32 = arith.constant 0 : i32
    %c0_i32_0 = arith.constant 0 : i32
    %c0_i32_1 = arith.constant 0 : i32
    return %arg0, %c0_i32, %c0_i32_0 : i32, i32, i32
  }
}

</mosaic_0001>

<llo_original>
// kernel: memory_select_forward.1
$region0: #{memory_select_forward.1}
  #allocation0 [shape = 'u32[]', space=smem, size = 0x4, offset = 0x4, fixed_abs, tag = 'smem constant byte address 0x4 - core index']
  #allocation1 [shape = 'u32[144,128]{1,0:T(1,128)}', space=vmem, size = 0x12000, scoped, tag = 'internal scratch']
  %s0 = inlined_call_operand.vmem [shape: f32[8,1024], index: 0, kind: input, shape index: {}]
  %s1 = inlined_call_operand.vmem [shape: f32[8,1024], index: 1, kind: input, shape index: {}]
  %s2 = inlined_call_operand.vmem [shape: bf16[1024,1024], index: 2, kind: input, shape index: {}]
  %s3 = inlined_call_operand.vmem [shape: f32[1,1024], index: 3, kind: input, shape index: {}]
  %s4 = inlined_call_operand.vmem [shape: bf16[1024,1024], index: 4, kind: input, shape index: {}]
  %s5 = inlined_call_operand.vmem [shape: f32[1,1024], index: 5, kind: input, shape index: {}]
  %s6 = inlined_call_operand.vmem [shape: f32[1,1024], index: 6, kind: input, shape index: {}]
  %s7 = inlined_call_operand.vmem [shape: f32[1,1024], index: 7, kind: input, shape index: {}]
  %s8 = inlined_call_operand.vmem [shape: f32[1,8,1024], index: 8, kind: output, shape index: {}]
  %s9 = sld [smem:[#allocation0]]
  $region46: #{memory_select_forward.1} parent=0
    _
  %s11 = ssub.s32 1, %s9
  %s12 = scalar_select 0, %s11, %s9
  // Predicated region
  $region2: #{memory_select_forward.1} parent=0 // pred_check
    _
  $region3: #{memory_select_forward.1} parent=0 // pred_check_branch
    %14 = sbr.rel (0) target = $region5
  $region4: #{memory_select_forward.1} parent=0 // pred_region
    _
  $region5: #{memory_select_forward.1} parent=0 // pred_fallthru
    _
  // Predicated region
  $region6: #{memory_select_forward.1} parent=0 // pred_check
    _
  $region7: #{memory_select_forward.1} parent=0 // pred_check_branch
    %16 = sbr.rel (0) target = $region9
  $region8: #{memory_select_forward.1} parent=0 // pred_region
    %s17 = sadd.s32 0, 0
    %p18 = scmp.lt.s32.totalorder %s17, 0
    %s19 = scalar_select %p18, %s17, 0
    %s20 = smul.addr %s19, 8
    %s21 = smul.addr %s20, 8
    %s22 = scalar_lea.vmem %s1, %s21
    %s23 = sadd.s32 0, 0
  $region9: #{memory_select_forward.1} parent=0 // pred_fallthru
    _
  // Predicated region
  $region10: #{memory_select_forward.1} parent=0 // pred_check
    _
  $region11: #{memory_select_forward.1} parent=0 // pred_check_branch
    %25 = sbr.rel (0) target = $region13
  $region12: #{memory_select_forward.1} parent=0 // pred_region
    _
  $region13: #{memory_select_forward.1} parent=0 // pred_fallthru
    _
  // Predicated region
  $region14: #{memory_select_forward.1} parent=0 // pred_check
    _
  $region15: #{memory_select_forward.1} parent=0 // pred_check_branch
    %27 = sbr.rel (0) target = $region17
  $region16: #{memory_select_forward.1} parent=0 // pred_region
    _
  $region17: #{memory_select_forward.1} parent=0 // pred_fallthru
    _
  // Predicated region
  $region18: #{memory_select_forward.1} parent=0 // pred_check
    _
  $region19: #{memory_select_forward.1} parent=0 // pred_check_branch
    %29 = sbr.rel (0) target = $region21
  $region20: #{memory_select_forward.1} parent=0 // pred_region
    _
  $region21: #{memory_select_forward.1} parent=0 // pred_fallthru
    _
  // Predicated region
  $region22: #{memory_select_forward.1} parent=0 // pred_check
    _
  $region23: #{memory_select_forward.1} parent=0 // pred_check_branch
    %31 = sbr.rel (0) target = $region25
  $region24: #{memory_select_forward.1} parent=0 // pred_region
    _
  $region25: #{memory_select_forward.1} parent=0 // pred_fallthru
    _
  // Predicated region
  $region26: #{memory_select_forward.1} parent=0 // pred_check
    _
  $region27: #{memory_select_forward.1} parent=0 // pred_check_branch
    %33 = sbr.rel (0) target = $region29
  $region28: #{memory_select_forward.1} parent=0 // pred_region
    _
  $region29: #{memory_select_forward.1} parent=0 // pred_fallthru
    _
  // Predicated region
  $region30: #{memory_select_forward.1} parent=0 // pred_check
    _
  $region31: #{memory_select_forward.1} parent=0 // pred_check_branch
    %35 = sbr.rel (0) target = $region33
  $region32: #{memory_select_forward.1} parent=0 // pred_region
    _
  $region33: #{memory_select_forward.1} parent=0 // pred_fallthru
    _
  %s36 = sadd.s32 0, 0
  %p37 = scmp.lt.s32.totalorder %s36, 0
  %s38 = scalar_select %p37, %s36, 0
  %s39 = smul.addr %s38, 8
  %s40 = smul.addr %s39, 8
  %s41 = scalar_lea.vmem %s1, %s40
  %s42 = sadd.s32 0, 0
  %p43 = scmp.lt.s32.totalorder %s42, 0
  %s44 = scalar_select %p43, %s42, 0
  %s45 = smul.addr %s44, 8
  %s46 = smul.addr %s45, 8
  %s47 = scalar_lea.vmem %s1, %s46
  %s48 = sadd.s32 0, 0
  %p49 = scmp.eq.s32.totalorder 0, 0
  // Predicated region
  $region34: #{memory_select_forward.1} parent=0 // pred_check
    %p50 = pneg %p49
  $region35: #{memory_select_forward.1} parent=0 // pred_check_branch
    %52 = sbr.rel (%p50) target = $region37
  $region36: #{memory_select_forward.1} parent=0 // pred_region
    %53 = vst [vmem:[%s8] sm:$0xff] 0.0
    %54 = vst [vmem:[%s8 + $0x8] sm:$0xff] 0.0
    %55 = vst [vmem:[%s8 + $0x10] sm:$0xff] 0.0
    %56 = vst [vmem:[%s8 + $0x18] sm:$0xff] 0.0
    %57 = vst [vmem:[%s8 + $0x20] sm:$0xff] 0.0
    %58 = vst [vmem:[%s8 + $0x28] sm:$0xff] 0.0
    %59 = vst [vmem:[%s8 + $0x30] sm:$0xff] 0.0
    %60 = vst [vmem:[%s8 + $0x38] sm:$0xff] 0.0
  $region37: #{memory_select_forward.1} parent=0 // pred_fallthru
    _
  %v61 = vld [vmem:[%s0] sm:$0xff]
  %v62 = vld [vmem:[%s0 + $0x8] sm:$0xff]
  %v63 = vld [vmem:[%s0 + $0x10] sm:$0xff]
  %v64 = vld [vmem:[%s0 + $0x18] sm:$0xff]
  %v65 = vld [vmem:[%s0 + $0x20] sm:$0xff]
  %v66 = vld [vmem:[%s0 + $0x28] sm:$0xff]
  %v67 = vld [vmem:[%s0 + $0x30] sm:$0xff]
  %v68 = vld [vmem:[%s0 + $0x38] sm:$0xff]
  %v69 = vld [vmem:[%s47] sm:$0xff]
  %v70 = vld [vmem:[%s47 + $0x8] sm:$0xff]
  %v71 = vld [vmem:[%s47 + $0x10] sm:$0xff]
  %v72 = vld [vmem:[%s47 + $0x18] sm:$0xff]
  %v73 = vld [vmem:[%s47 + $0x20] sm:$0xff]
  %v74 = vld [vmem:[%s47 + $0x28] sm:$0xff]
  %v75 = vld [vmem:[%s47 + $0x30] sm:$0xff]
  %v76 = vld [vmem:[%s47 + $0x38] sm:$0xff]
  %v85 = vcombine.low %v69, %v70
  %v86 = vcombine.high %v69, %v70
  %v87 = vcombine.low %v71, %v72
  %v88 = vcombine.high %v71, %v72
  %v89 = vcombine.low %v73, %v74
  %v90 = vcombine.high %v73, %v74
  %v91 = vcombine.low %v75, %v76
  %v92 = vcombine.high %v75, %v76
  %v94 = vunpack.c.l.s4 1966171168
  %v95 = vunpack.c.0.s8 %v94
  %v96 = vlaneseq
  %v97 = vshrl.u32 %v96, 7
  %v98 = vsub.s32 %v95, %v97
  %v99 = vrot.slane %v85, %v98
  %v101 = vunpack.c.l.s4 1966171168
  %v102 = vunpack.c.0.s8 %v101
  %v103 = vlaneseq
  %v104 = vshrl.u32 %v103, 7
  %v105 = vsub.s32 %v102, %v104
  %v106 = vrot.slane %v86, %v105
  %v108 = vunpack.c.l.s4 1966171168
  %v109 = vunpack.c.0.s8 %v108
  %v110 = vlaneseq
  %v111 = vshrl.u32 %v110, 7
  %v112 = vsub.s32 %v109, %v111
  %v113 = vrot.slane %v87, %v112
  %v115 = vunpack.c.l.s4 1966171168
  %v116 = vunpack.c.0.s8 %v115
  %v117 = vlaneseq
  %v118 = vshrl.u32 %v117, 7
  %v119 = vsub.s32 %v116, %v118
  %v120 = vrot.slane %v88, %v119
  %v122 = vunpack.c.l.s4 1966171168
  %v123 = vunpack.c.0.s8 %v122
  %v124 = vlaneseq
  %v125 = vshrl.u32 %v124, 7
  %v126 = vsub.s32 %v123, %v125
  %v127 = vrot.slane %v89, %v126
  %v129 = vunpack.c.l.s4 1966171168
  %v130 = vunpack.c.0.s8 %v129
  %v131 = vlaneseq
  %v132 = vshrl.u32 %v131, 7
  %v133 = vsub.s32 %v130, %v132
  %v134 = vrot.slane %v90, %v133
  %v136 = vunpack.c.l.s4 1966171168
  %v137 = vunpack.c.0.s8 %v136
  %v138 = vlaneseq
  %v139 = vshrl.u32 %v138, 7
  %v140 = vsub.s32 %v137, %v139
  %v141 = vrot.slane %v91, %v140
  %v143 = vunpack.c.l.s4 1966171168
  %v144 = vunpack.c.0.s8 %v143
  %v145 = vlaneseq
  %v146 = vshrl.u32 %v145, 7
  %v147 = vsub.s32 %v144, %v146
  %v148 = vrot.slane %v92, %v147
  %v149 = vcombine.low %v99, %v113
  %v150 = vcombine.high %v99, %v113
  %v151 = vcombine.low %v106, %v120
  %v152 = vcombine.high %v106, %v120
  %v153 = vcombine.low %v127, %v141
  %v154 = vcombine.high %v127, %v141
  %v155 = vcombine.low %v134, %v148
  %v156 = vcombine.high %v134, %v148
  %v158 = vunpack.c.l.s4 1966171168
  %v159 = vunpack.c.0.s8 %v158
  %v160 = vlaneseq
  %v161 = vshrl.u32 %v160, 7
  %v162 = vsub.s32 %v159, %v161
  %v163 = vrot.slane %v149, %v162
  %v165 = vunpack.c.l.s4 1966171168
  %v166 = vunpack.c.0.s8 %v165
  %v167 = vlaneseq
  %v168 = vshrl.u32 %v167, 7
  %v169 = vsub.s32 %v166, %v168
  %v170 = vrot.slane %v151, %v169
  %v172 = vunpack.c.l.s4 1966171168
  %v173 = vunpack.c.0.s8 %v172
  %v174 = vlaneseq
  %v175 = vshrl.u32 %v174, 7
  %v176 = vsub.s32 %v173, %v175
  %v177 = vrot.slane %v150, %v176
  %v179 = vunpack.c.l.s4 1966171168
  %v180 = vunpack.c.0.s8 %v179
  %v181 = vlaneseq
  %v182 = vshrl.u32 %v181, 7
  %v183 = vsub.s32 %v180, %v182
  %v184 = vrot.slane %v152, %v183
  %v186 = vunpack.c.l.s4 1966171168
  %v187 = vunpack.c.0.s8 %v186
  %v188 = vlaneseq
  %v189 = vshrl.u32 %v188, 7
  %v190 = vsub.s32 %v187, %v189
  %v191 = vrot.slane %v153, %v190
  %v193 = vunpack.c.l.s4 1966171168
  %v194 = vunpack.c.0.s8 %v193
  %v195 = vlaneseq
  %v196 = vshrl.u32 %v195, 7
  %v197 = vsub.s32 %v194, %v196
  %v198 = vrot.slane %v155, %v197
  %v200 = vunpack.c.l.s4 1966171168
  %v201 = vunpack.c.0.s8 %v200
  %v202 = vlaneseq
  %v203 = vshrl.u32 %v202, 7
  %v204 = vsub.s32 %v201, %v203
  %v205 = vrot.slane %v154, %v204
  %v207 = vunpack.c.l.s4 1966171168
  %v208 = vunpack.c.0.s8 %v207
  %v209 = vlaneseq
  %v210 = vshrl.u32 %v209, 7
  %v211 = vsub.s32 %v208, %v210
  %v212 = vrot.slane %v156, %v211
  %v213 = vcombine.low %v163, %v191
  %v214 = vcombine.high %v163, %v191
  %v215 = vcombine.low %v170, %v198
  %v216 = vcombine.high %v170, %v198
  %v217 = vcombine.low %v177, %v205
  %v218 = vcombine.high %v177, %v205
  %v219 = vcombine.low %v184, %v212
  %v220 = vcombine.high %v184, %v212
  %v221 = vlaneseq
  %v222 = vshrl.u32 %v221, 7
  %v223 = vsub.s32 0, %v222
  %v224 = vrot.slane %v213, %v223
  %v225 = vlaneseq
  %v226 = vshrl.u32 %v225, 7
  %v227 = vsub.s32 1, %v226
  %v228 = vrot.slane %v213, %v227
  %v229 = vlaneseq
  %v230 = vshrl.u32 %v229, 7
  %v231 = vsub.s32 2, %v230
  %v232 = vrot.slane %v213, %v231
  %v233 = vlaneseq
  %v234 = vshrl.u32 %v233, 7
  %v235 = vsub.s32 3, %v234
  %v236 = vrot.slane %v213, %v235
  %v237 = vlaneseq
  %v238 = vshrl.u32 %v237, 7
  %v239 = vsub.s32 4, %v238
  %v240 = vrot.slane %v213, %v239
  %v241 = vlaneseq
  %v242 = vshrl.u32 %v241, 7
  %v243 = vsub.s32 5, %v242
  %v244 = vrot.slane %v213, %v243
  %v245 = vlaneseq
  %v246 = vshrl.u32 %v245, 7
  %v247 = vsub.s32 6, %v246
  %v248 = vrot.slane %v213, %v247
  %v249 = vlaneseq
  %v250 = vshrl.u32 %v249, 7
  %v251 = vsub.s32 7, %v250
  %v252 = vrot.slane %v213, %v251
  %v253 = vlaneseq
  %v254 = vshrl.u32 %v253, 7
  %v255 = vsub.s32 0, %v254
  %v256 = vrot.slane %v217, %v255
  %v257 = vlaneseq
  %v258 = vshrl.u32 %v257, 7
  %v259 = vsub.s32 1, %v258
  %v260 = vrot.slane %v217, %v259
  %v261 = vlaneseq
  %v262 = vshrl.u32 %v261, 7
  %v263 = vsub.s32 2, %v262
  %v264 = vrot.slane %v217, %v263
  %v265 = vlaneseq
  %v266 = vshrl.u32 %v265, 7
  %v267 = vsub.s32 3, %v266
  %v268 = vrot.slane %v217, %v267
  %v269 = vlaneseq
  %v270 = vshrl.u32 %v269, 7
  %v271 = vsub.s32 4, %v270
  %v272 = vrot.slane %v217, %v271
  %v273 = vlaneseq
  %v274 = vshrl.u32 %v273, 7
  %v275 = vsub.s32 5, %v274
  %v276 = vrot.slane %v217, %v275
  %v277 = vlaneseq
  %v278 = vshrl.u32 %v277, 7
  %v279 = vsub.s32 6, %v278
  %v280 = vrot.slane %v217, %v279
  %v281 = vlaneseq
  %v282 = vshrl.u32 %v281, 7
  %v283 = vsub.s32 7, %v282
  %v284 = vrot.slane %v217, %v283
  %v285 = vlaneseq
  %v286 = vshrl.u32 %v285, 7
  %v287 = vsub.s32 0, %v286
  %v288 = vrot.slane %v214, %v287
  %v289 = vlaneseq
  %v290 = vshrl.u32 %v289, 7
  %v291 = vsub.s32 1, %v290
  %v292 = vrot.slane %v214, %v291
  %v293 = vlaneseq
  %v294 = vshrl.u32 %v293, 7
  %v295 = vsub.s32 2, %v294
  %v296 = vrot.slane %v214, %v295
  %v297 = vlaneseq
  %v298 = vshrl.u32 %v297, 7
  %v299 = vsub.s32 3, %v298
  %v300 = vrot.slane %v214, %v299
  %v301 = vlaneseq
  %v302 = vshrl.u32 %v301, 7
  %v303 = vsub.s32 4, %v302
  %v304 = vrot.slane %v214, %v303
  %v305 = vlaneseq
  %v306 = vshrl.u32 %v305, 7
  %v307 = vsub.s32 5, %v306
  %v308 = vrot.slane %v214, %v307
  %v309 = vlaneseq
  %v310 = vshrl.u32 %v309, 7
  %v311 = vsub.s32 6, %v310
  %v312 = vrot.slane %v214, %v311
  %v313 = vlaneseq
  %v314 = vshrl.u32 %v313, 7
  %v315 = vsub.s32 7, %v314
  %v316 = vrot.slane %v214, %v315
  %v317 = vlaneseq
  %v318 = vshrl.u32 %v317, 7
  %v319 = vsub.s32 0, %v318
  %v320 = vrot.slane %v218, %v319
  %v321 = vlaneseq
  %v322 = vshrl.u32 %v321, 7
  %v323 = vsub.s32 1, %v322
  %v324 = vrot.slane %v218, %v323
  %v325 = vlaneseq
  %v326 = vshrl.u32 %v325, 7
  %v327 = vsub.s32 2, %v326
  %v328 = vrot.slane %v218, %v327
  %v329 = vlaneseq
  %v330 = vshrl.u32 %v329, 7
  %v331 = vsub.s32 3, %v330
  %v332 = vrot.slane %v218, %v331
  %v333 = vlaneseq
  %v334 = vshrl.u32 %v333, 7
  %v335 = vsub.s32 4, %v334
  %v336 = vrot.slane %v218, %v335
  %v337 = vlaneseq
  %v338 = vshrl.u32 %v337, 7
  %v339 = vsub.s32 5, %v338
  %v340 = vrot.slane %v218, %v339
  %v341 = vlaneseq
  %v342 = vshrl.u32 %v341, 7
  %v343 = vsub.s32 6, %v342
  %v344 = vrot.slane %v218, %v343
  %v345 = vlaneseq
  %v346 = vshrl.u32 %v345, 7
  %v347 = vsub.s32 7, %v346
  %v348 = vrot.slane %v218, %v347
  %v349 = vlaneseq
  %v350 = vshrl.u32 %v349, 7
  %v351 = vsub.s32 0, %v350
  %v352 = vrot.slane %v215, %v351
  %v353 = vlaneseq
  %v354 = vshrl.u32 %v353, 7
  %v355 = vsub.s32 1, %v354
  %v356 = vrot.slane %v215, %v355
  %v357 = vlaneseq
  %v358 = vshrl.u32 %v357, 7
  %v359 = vsub.s32 2, %v358
  %v360 = vrot.slane %v215, %v359
  %v361 = vlaneseq
  %v362 = vshrl.u32 %v361, 7
  %v363 = vsub.s32 3, %v362
  %v364 = vrot.slane %v215, %v363
  %v365 = vlaneseq
  %v366 = vshrl.u32 %v365, 7
  %v367 = vsub.s32 4, %v366
  %v368 = vrot.slane %v215, %v367
  %v369 = vlaneseq
  %v370 = vshrl.u32 %v369, 7
  %v371 = vsub.s32 5, %v370
  %v372 = vrot.slane %v215, %v371
  %v373 = vlaneseq
  %v374 = vshrl.u32 %v373, 7
  %v375 = vsub.s32 6, %v374
  %v376 = vrot.slane %v215, %v375
  %v377 = vlaneseq
  %v378 = vshrl.u32 %v377, 7
  %v379 = vsub.s32 7, %v378
  %v380 = vrot.slane %v215, %v379
  %v381 = vlaneseq
  %v382 = vshrl.u32 %v381, 7
  %v383 = vsub.s32 0, %v382
  %v384 = vrot.slane %v219, %v383
  %v385 = vlaneseq
  %v386 = vshrl.u32 %v385, 7
  %v387 = vsub.s32 1, %v386
  %v388 = vrot.slane %v219, %v387
  %v389 = vlaneseq
  %v390 = vshrl.u32 %v389, 7
  %v391 = vsub.s32 2, %v390
  %v392 = vrot.slane %v219, %v391
  %v393 = vlaneseq
  %v394 = vshrl.u32 %v393, 7
  %v395 = vsub.s32 3, %v394
  %v396 = vrot.slane %v219, %v395
  %v397 = vlaneseq
  %v398 = vshrl.u32 %v397, 7
  %v399 = vsub.s32 4, %v398
  %v400 = vrot.slane %v219, %v399
  %v401 = vlaneseq
  %v402 = vshrl.u32 %v401, 7
  %v403 = vsub.s32 5, %v402
  %v404 = vrot.slane %v219, %v403
  %v405 = vlaneseq
  %v406 = vshrl.u32 %v405, 7
  %v407 = vsub.s32 6, %v406
  %v408 = vrot.slane %v219, %v407
  %v409 = vlaneseq
  %v410 = vshrl.u32 %v409, 7
  %v411 = vsub.s32 7, %v410
  %v412 = vrot.slane %v219, %v411
  %v413 = vlaneseq
  %v414 = vshrl.u32 %v413, 7
  %v415 = vsub.s32 0, %v414
  %v416 = vrot.slane %v216, %v415
  %v417 = vlaneseq
  %v418 = vshrl.u32 %v417, 7
  %v419 = vsub.s32 1, %v418
  %v420 = vrot.slane %v216, %v419
  %v421 = vlaneseq
  %v422 = vshrl.u32 %v421, 7
  %v423 = vsub.s32 2, %v422
  %v424 = vrot.slane %v216, %v423
  %v425 = vlaneseq
  %v426 = vshrl.u32 %v425, 7
  %v427 = vsub.s32 3, %v426
  %v428 = vrot.slane %v216, %v427
  %v429 = vlaneseq
  %v430 = vshrl.u32 %v429, 7
  %v431 = vsub.s32 4, %v430
  %v432 = vrot.slane %v216, %v431
  %v433 = vlaneseq
  %v434 = vshrl.u32 %v433, 7
  %v435 = vsub.s32 5, %v434
  %v436 = vrot.slane %v216, %v435
  %v437 = vlaneseq
  %v438 = vshrl.u32 %v437, 7
  %v439 = vsub.s32 6, %v438
  %v440 = vrot.slane %v216, %v439
  %v441 = vlaneseq
  %v442 = vshrl.u32 %v441, 7
  %v443 = vsub.s32 7, %v442
  %v444 = vrot.slane %v216, %v443
  %v445 = vlaneseq
  %v446 = vshrl.u32 %v445, 7
  %v447 = vsub.s32 0, %v446
  %v448 = vrot.slane %v220, %v447
  %v449 = vlaneseq
  %v450 = vshrl.u32 %v449, 7
  %v451 = vsub.s32 1, %v450
  %v452 = vrot.slane %v220, %v451
  %v453 = vlaneseq
  %v454 = vshrl.u32 %v453, 7
  %v455 = vsub.s32 2, %v454
  %v456 = vrot.slane %v220, %v455
  %v457 = vlaneseq
  %v458 = vshrl.u32 %v457, 7
  %v459 = vsub.s32 3, %v458
  %v460 = vrot.slane %v220, %v459
  %v461 = vlaneseq
  %v462 = vshrl.u32 %v461, 7
  %v463 = vsub.s32 4, %v462
  %v464 = vrot.slane %v220, %v463
  %v465 = vlaneseq
  %v466 = vshrl.u32 %v465, 7
  %v467 = vsub.s32 5, %v466
  %v468 = vrot.slane %v220, %v467
  %v469 = vlaneseq
  %v470 = vshrl.u32 %v469, 7
  %v471 = vsub.s32 6, %v470
  %v472 = vrot.slane %v220, %v471
  %v473 = vlaneseq
  %v474 = vshrl.u32 %v473, 7
  %v475 = vsub.s32 7, %v474
  %v476 = vrot.slane %v220, %v475
  %v541 = vsub.f32 %v61, %v224
  %v542 = vsub.f32 %v62, %v228
  %v543 = vsub.f32 %v63, %v232
  %v544 = vsub.f32 %v64, %v236
  %v545 = vsub.f32 %v65, %v240
  %v546 = vsub.f32 %v66, %v244
  %v547 = vsub.f32 %v67, %v248
  %v548 = vsub.f32 %v68, %v252
  %v549 = vsub.f32 %v61, %v256
  %v550 = vsub.f32 %v62, %v260
  %v551 = vsub.f32 %v63, %v264
  %v552 = vsub.f32 %v64, %v268
  %v553 = vsub.f32 %v65, %v272
  %v554 = vsub.f32 %v66, %v276
  %v555 = vsub.f32 %v67, %v280
  %v556 = vsub.f32 %v68, %v284
  %v557 = vsub.f32 %v61, %v288
  %v558 = vsub.f32 %v62, %v292
  %v559 = vsub.f32 %v63, %v296
  %v560 = vsub.f32 %v64, %v300
  %v561 = vsub.f32 %v65, %v304
  %v562 = vsub.f32 %v66, %v308
  %v563 = vsub.f32 %v67, %v312
  %v564 = vsub.f32 %v68, %v316
  %v565 = vsub.f32 %v61, %v320
  %v566 = vsub.f32 %v62, %v324
  %v567 = vsub.f32 %v63, %v328
  %v568 = vsub.f32 %v64, %v332
  %v569 = vsub.f32 %v65, %v336
  %v570 = vsub.f32 %v66, %v340
  %v571 = vsub.f32 %v67, %v344
  %v572 = vsub.f32 %v68, %v348
  %v573 = vsub.f32 %v61, %v352
  %v574 = vsub.f32 %v62, %v356
  %v575 = vsub.f32 %v63, %v360
  %v576 = vsub.f32 %v64, %v364
  %v577 = vsub.f32 %v65, %v368
  %v578 = vsub.f32 %v66, %v372
  %v579 = vsub.f32 %v67, %v376
  %v580 = vsub.f32 %v68, %v380
  %v581 = vsub.f32 %v61, %v384
  %v582 = vsub.f32 %v62, %v388
  %v583 = vsub.f32 %v63, %v392
  %v584 = vsub.f32 %v64, %v396
  %v585 = vsub.f32 %v65, %v400
  %v586 = vsub.f32 %v66, %v404
  %v587 = vsub.f32 %v67, %v408
  %v588 = vsub.f32 %v68, %v412
  %v589 = vsub.f32 %v61, %v416
  %v590 = vsub.f32 %v62, %v420
  %v591 = vsub.f32 %v63, %v424
  %v592 = vsub.f32 %v64, %v428
  %v593 = vsub.f32 %v65, %v432
  %v594 = vsub.f32 %v66, %v436
  %v595 = vsub.f32 %v67, %v440
  %v596 = vsub.f32 %v68, %v444
  %v597 = vsub.f32 %v61, %v448
  %v598 = vsub.f32 %v62, %v452
  %v599 = vsub.f32 %v63, %v456
  %v600 = vsub.f32 %v64, %v460
  %v601 = vsub.f32 %v65, %v464
  %v602 = vsub.f32 %v66, %v468
  %v603 = vsub.f32 %v67, %v472
  %v604 = vsub.f32 %v68, %v476
  %v605 = vand.u32 2147483647, %v541
  %v606 = vand.u32 2147483647, %v542
  %v607 = vand.u32 2147483647, %v543
  %v608 = vand.u32 2147483647, %v544
  %v609 = vand.u32 2147483647, %v545
  %v610 = vand.u32 2147483647, %v546
  %v611 = vand.u32 2147483647, %v547
  %v612 = vand.u32 2147483647, %v548
  %v613 = vand.u32 2147483647, %v549
  %v614 = vand.u32 2147483647, %v550
  %v615 = vand.u32 2147483647, %v551
  %v616 = vand.u32 2147483647, %v552
  %v617 = vand.u32 2147483647, %v553
  %v618 = vand.u32 2147483647, %v554
  %v619 = vand.u32 2147483647, %v555
  %v620 = vand.u32 2147483647, %v556
  %v621 = vand.u32 2147483647, %v557
  %v622 = vand.u32 2147483647, %v558
  %v623 = vand.u32 2147483647, %v559
  %v624 = vand.u32 2147483647, %v560
  %v625 = vand.u32 2147483647, %v561
  %v626 = vand.u32 2147483647, %v562
  %v627 = vand.u32 2147483647, %v563
  %v628 = vand.u32 2147483647, %v564
  %v629 = vand.u32 2147483647, %v565
  %v630 = vand.u32 2147483647, %v566
  %v631 = vand.u32 2147483647, %v567
  %v632 = vand.u32 2147483647, %v568
  %v633 = vand.u32 2147483647, %v569
  %v634 = vand.u32 2147483647, %v570
  %v635 = vand.u32 2147483647, %v571
  %v636 = vand.u32 2147483647, %v572
  %v637 = vand.u32 2147483647, %v573
  %v638 = vand.u32 2147483647, %v574
  %v639 = vand.u32 2147483647, %v575
  %v640 = vand.u32 2147483647, %v576
  %v641 = vand.u32 2147483647, %v577
  %v642 = vand.u32 2147483647, %v578
  %v643 = vand.u32 2147483647, %v579
  %v644 = vand.u32 2147483647, %v580
  %v645 = vand.u32 2147483647, %v581
  %v646 = vand.u32 2147483647, %v582
  %v647 = vand.u32 2147483647, %v583
  %v648 = vand.u32 2147483647, %v584
  %v649 = vand.u32 2147483647, %v585
  %v650 = vand.u32 2147483647, %v586
  %v651 = vand.u32 2147483647, %v587
  %v652 = vand.u32 2147483647, %v588
  %v653 = vand.u32 2147483647, %v589
  %v654 = vand.u32 2147483647, %v590
  %v655 = vand.u32 2147483647, %v591
  %v656 = vand.u32 2147483647, %v592
  %v657 = vand.u32 2147483647, %v593
  %v658 = vand.u32 2147483647, %v594
  %v659 = vand.u32 2147483647, %v595
  %v660 = vand.u32 2147483647, %v596
  %v661 = vand.u32 2147483647, %v597
  %v662 = vand.u32 2147483647, %v598
  %v663 = vand.u32 2147483647, %v599
  %v664 = vand.u32 2147483647, %v600
  %v665 = vand.u32 2147483647, %v601
  %v666 = vand.u32 2147483647, %v602
  %v667 = vand.u32 2147483647, %v603
  %v668 = vand.u32 2147483647, %v604
  %v669 = vpack.c.bf16 %v613, %v605
  %v670 = vpack.c.bf16 %v614, %v606
  %v671 = vpack.c.bf16 %v615, %v607
  %v672 = vpack.c.bf16 %v616, %v608
  %v673 = vpack.c.bf16 %v617, %v609
  %v674 = vpack.c.bf16 %v618, %v610
  %v675 = vpack.c.bf16 %v619, %v611
  %v676 = vpack.c.bf16 %v620, %v612
  %v677 = vpack.c.bf16 %v629, %v621
  %v678 = vpack.c.bf16 %v630, %v622
  %v679 = vpack.c.bf16 %v631, %v623
  %v680 = vpack.c.bf16 %v632, %v624
  %v681 = vpack.c.bf16 %v633, %v625
  %v682 = vpack.c.bf16 %v634, %v626
  %v683 = vpack.c.bf16 %v635, %v627
  %v684 = vpack.c.bf16 %v636, %v628
  %v685 = vpack.c.bf16 %v645, %v637
  %v686 = vpack.c.bf16 %v646, %v638
  %v687 = vpack.c.bf16 %v647, %v639
  %v688 = vpack.c.bf16 %v648, %v640
  %v689 = vpack.c.bf16 %v649, %v641
  %v690 = vpack.c.bf16 %v650, %v642
  %v691 = vpack.c.bf16 %v651, %v643
  %v692 = vpack.c.bf16 %v652, %v644
  %v693 = vpack.c.bf16 %v661, %v653
  %v694 = vpack.c.bf16 %v662, %v654
  %v695 = vpack.c.bf16 %v663, %v655
  %v696 = vpack.c.bf16 %v664, %v656
  %v697 = vpack.c.bf16 %v665, %v657
  %v698 = vpack.c.bf16 %v666, %v658
  %v699 = vpack.c.bf16 %v667, %v659
  %v700 = vpack.c.bf16 %v668, %v660
  %v701 = vld [vmem:[%s2] sm:$0xff]
  %v702 = vld [vmem:[%s2 + $0x8] sm:$0xff]
  %v703 = vld [vmem:[%s2 + $0x10] sm:$0xff]
  %v704 = vld [vmem:[%s2 + $0x18] sm:$0xff]
  %v705 = vld [vmem:[%s2 + $0x20] sm:$0xff]
  %v706 = vld [vmem:[%s2 + $0x28] sm:$0xff]
  %v707 = vld [vmem:[%s2 + $0x30] sm:$0xff]
  %v708 = vld [vmem:[%s2 + $0x38] sm:$0xff]
  %v709 = vld [vmem:[%s2 + $0x40] sm:$0xff]
  %v710 = vld [vmem:[%s2 + $0x48] sm:$0xff]
  %v711 = vld [vmem:[%s2 + $0x50] sm:$0xff]
  %v712 = vld [vmem:[%s2 + $0x58] sm:$0xff]
  %v713 = vld [vmem:[%s2 + $0x60] sm:$0xff]
  %v714 = vld [vmem:[%s2 + $0x68] sm:$0xff]
  %v715 = vld [vmem:[%s2 + $0x70] sm:$0xff]
  %v716 = vld [vmem:[%s2 + $0x78] sm:$0xff]
  %v717 = vld [vmem:[%s2 + $0x80] sm:$0xff]
  %v718 = vld [vmem:[%s2 + $0x88] sm:$0xff]
  %v719 = vld [vmem:[%s2 + $0x90] sm:$0xff]
  %v720 = vld [vmem:[%s2 + $0x98] sm:$0xff]
  %v721 = vld [vmem:[%s2 + $0xa0] sm:$0xff]
  %v722 = vld [vmem:[%s2 + $0xa8] sm:$0xff]
  %v723 = vld [vmem:[%s2 + $0xb0] sm:$0xff]
  %v724 = vld [vmem:[%s2 + $0xb8] sm:$0xff]
  %v725 = vld [vmem:[%s2 + $0xc0] sm:$0xff]
  %v726 = vld [vmem:[%s2 + $0xc8] sm:$0xff]
  %v727 = vld [vmem:[%s2 + $0xd0] sm:$0xff]
  %v728 = vld [vmem:[%s2 + $0xd8] sm:$0xff]
  %v729 = vld [vmem:[%s2 + $0xe0] sm:$0xff]
  %v730 = vld [vmem:[%s2 + $0xe8] sm:$0xff]
  %v731 = vld [vmem:[%s2 + $0xf0] sm:$0xff]
  %v732 = vld [vmem:[%s2 + $0xf8] sm:$0xff]
  %v733 = vld [vmem:[%s2 + $0x100] sm:$0xff]
  %v734 = vld [vmem:[%s2 + $0x108] sm:$0xff]
  %v735 = vld [vmem:[%s2 + $0x110] sm:$0xff]
  %v736 = vld [vmem:[%s2 + $0x118] sm:$0xff]
  %v737 = vld [vmem:[%s2 + $0x120] sm:$0xff]
  %v738 = vld [vmem:[%s2 + $0x128] sm:$0xff]
  %v739 = vld [vmem:[%s2 + $0x130] sm:$0xff]
  %v740 = vld [vmem:[%s2 + $0x138] sm:$0xff]
  %v741 = vld [vmem:[%s2 + $0x140] sm:$0xff]
  %v742 = vld [vmem:[%s2 + $0x148] sm:$0xff]
  %v743 = vld [vmem:[%s2 + $0x150] sm:$0xff]
  %v744 = vld [vmem:[%s2 + $0x158] sm:$0xff]
  %v745 = vld [vmem:[%s2 + $0x160] sm:$0xff]
  %v746 = vld [vmem:[%s2 + $0x168] sm:$0xff]
  %v747 = vld [vmem:[%s2 + $0x170] sm:$0xff]
  %v748 = vld [vmem:[%s2 + $0x178] sm:$0xff]
  %v749 = vld [vmem:[%s2 + $0x180] sm:$0xff]
  %v750 = vld [vmem:[%s2 + $0x188] sm:$0xff]
  %v751 = vld [vmem:[%s2 + $0x190] sm:$0xff]
  %v752 = vld [vmem:[%s2 + $0x198] sm:$0xff]
  %v753 = vld [vmem:[%s2 + $0x1a0] sm:$0xff]
  %v754 = vld [vmem:[%s2 + $0x1a8] sm:$0xff]
  %v755 = vld [vmem:[%s2 + $0x1b0] sm:$0xff]
  %v756 = vld [vmem:[%s2 + $0x1b8] sm:$0xff]
  %v757 = vld [vmem:[%s2 + $0x1c0] sm:$0xff]
  %v758 = vld [vmem:[%s2 + $0x1c8] sm:$0xff]
  %v759 = vld [vmem:[%s2 + $0x1d0] sm:$0xff]
  %v760 = vld [vmem:[%s2 + $0x1d8] sm:$0xff]
  %v761 = vld [vmem:[%s2 + $0x1e0] sm:$0xff]
  %v762 = vld [vmem:[%s2 + $0x1e8] sm:$0xff]
  %v763 = vld [vmem:[%s2 + $0x1f0] sm:$0xff]
  %v764 = vld [vmem:[%s2 + $0x1f8] sm:$0xff]
  %v765 = vld [vmem:[%s2 + $0x200] sm:$0xff]
  %v766 = vld [vmem:[%s2 + $0x208] sm:$0xff]
  %v767 = vld [vmem:[%s2 + $0x210] sm:$0xff]
  %v768 = vld [vmem:[%s2 + $0x218] sm:$0xff]
  %v769 = vld [vmem:[%s2 + $0x220] sm:$0xff]
  %v770 = vld [vmem:[%s2 + $0x228] sm:$0xff]
  %v771 = vld [vmem:[%s2 + $0x230] sm:$0xff]
  %v772 = vld [vmem:[%s2 + $0x238] sm:$0xff]
  %v773 = vld [vmem:[%s2 + $0x240] sm:$0xff]
  %v774 = vld [vmem:[%s2 + $0x248] sm:$0xff]
  %v775 = vld [vmem:[%s2 + $0x250] sm:$0xff]
  %v776 = vld [vmem:[%s2 + $0x258] sm:$0xff]
  %v777 = vld [vmem:[%s2 + $0x260] sm:$0xff]
  %v778 = vld [vmem:[%s2 + $0x268] sm:$0xff]
  %v779 = vld [vmem:[%s2 + $0x270] sm:$0xff]
  %v780 = vld [vmem:[%s2 + $0x278] sm:$0xff]
  %v781 = vld [vmem:[%s2 + $0x280] sm:$0xff]
  %v782 = vld [vmem:[%s2 + $0x288] sm:$0xff]
  %v783 = vld [vmem:[%s2 + $0x290] sm:$0xff]
  %v784 = vld [vmem:[%s2 + $0x298] sm:$0xff]
  %v785 = vld [vmem:[%s2 + $0x2a0] sm:$0xff]
  %v786 = vld [vmem:[%s2 + $0x2a8] sm:$0xff]
  %v787 = vld [vmem:[%s2 + $0x2b0] sm:$0xff]
  %v788 = vld [vmem:[%s2 + $0x2b8] sm:$0xff]
  %v789 = vld [vmem:[%s2 + $0x2c0] sm:$0xff]
  %v790 = vld [vmem:[%s2 + $0x2c8] sm:$0xff]
  %v791 = vld [vmem:[%s2 + $0x2d0] sm:$0xff]
  %v792 = vld [vmem:[%s2 + $0x2d8] sm:$0xff]
  %v793 = vld [vmem:[%s2 + $0x2e0] sm:$0xff]
  %v794 = vld [vmem:[%s2 + $0x2e8] sm:$0xff]
  %v795 = vld [vmem:[%s2 + $0x2f0] sm:$0xff]
  %v796 = vld [vmem:[%s2 + $0x2f8] sm:$0xff]
  %v797 = vld [vmem:[%s2 + $0x300] sm:$0xff]
  %v798 = vld [vmem:[%s2 + $0x308] sm:$0xff]
  %v799 = vld [vmem:[%s2 + $0x310] sm:$0xff]
  %v800 = vld [vmem:[%s2 + $0x318] sm:$0xff]
  %v801 = vld [vmem:[%s2 + $0x320] sm:$0xff]
  %v802 = vld [vmem:[%s2 + $0x328] sm:$0xff]
  %v803 = vld [vmem:[%s2 + $0x330] sm:$0xff]
  %v804 = vld [vmem:[%s2 + $0x338] sm:$0xff]
  %v805 = vld [vmem:[%s2 + $0x340] sm:$0xff]
  %v806 = vld [vmem:[%s2 + $0x348] sm:$0xff]
  %v807 = vld [vmem:[%s2 + $0x350] sm:$0xff]
  %v808 = vld [vmem:[%s2 + $0x358] sm:$0xff]
  %v809 = vld [vmem:[%s2 + $0x360] sm:$0xff]
  %v810 = vld [vmem:[%s2 + $0x368] sm:$0xff]
  %v811 = vld [vmem:[%s2 + $0x370] sm:$0xff]
  %v812 = vld [vmem:[%s2 + $0x378] sm:$0xff]
  %v813 = vld [vmem:[%s2 + $0x380] sm:$0xff]
  %v814 = vld [vmem:[%s2 + $0x388] sm:$0xff]
  %v815 = vld [vmem:[%s2 + $0x390] sm:$0xff]
  %v816 = vld [vmem:[%s2 + $0x398] sm:$0xff]
  %v817 = vld [vmem:[%s2 + $0x3a0] sm:$0xff]
  %v818 = vld [vmem:[%s2 + $0x3a8] sm:$0xff]
  %v819 = vld [vmem:[%s2 + $0x3b0] sm:$0xff]
  %v820 = vld [vmem:[%s2 + $0x3b8] sm:$0xff]
  %v821 = vld [vmem:[%s2 + $0x3c0] sm:$0xff]
  %v822 = vld [vmem:[%s2 + $0x3c8] sm:$0xff]
  %v823 = vld [vmem:[%s2 + $0x3d0] sm:$0xff]
  %v824 = vld [vmem:[%s2 + $0x3d8] sm:$0xff]
  %v825 = vld [vmem:[%s2 + $0x3e0] sm:$0xff]
  %v826 = vld [vmem:[%s2 + $0x3e8] sm:$0xff]
  %v827 = vld [vmem:[%s2 + $0x3f0] sm:$0xff]
  %v828 = vld [vmem:[%s2 + $0x3f8] sm:$0xff]
  %v829 = vld [vmem:[%s2 + $0x400] sm:$0xff]
  %v830 = vld [vmem:[%s2 + $0x408] sm:$0xff]
  %v831 = vld [vmem:[%s2 + $0x410] sm:$0xff]
  %v832 = vld [vmem:[%s2 + $0x418] sm:$0xff]
  %v833 = vld [vmem:[%s2 + $0x420] sm:$0xff]
  %v834 = vld [vmem:[%s2 + $0x428] sm:$0xff]
  %v835 = vld [vmem:[%s2 + $0x430] sm:$0xff]
  %v836 = vld [vmem:[%s2 + $0x438] sm:$0xff]
  %v837 = vld [vmem:[%s2 + $0x440] sm:$0xff]
  %v838 = vld [vmem:[%s2 + $0x448] sm:$0xff]
  %v839 = vld [vmem:[%s2 + $0x450] sm:$0xff]
  %v840 = vld [vmem:[%s2 + $0x458] sm:$0xff]
  %v841 = vld [vmem:[%s2 + $0x460] sm:$0xff]
  %v842 = vld [vmem:[%s2 + $0x468] sm:$0xff]
  %v843 = vld [vmem:[%s2 + $0x470] sm:$0xff]
  %v844 = vld [vmem:[%s2 + $0x478] sm:$0xff]
  %v845 = vld [vmem:[%s2 + $0x480] sm:$0xff]
  %v846 = vld [vmem:[%s2 + $0x488] sm:$0xff]
  %v847 = vld [vmem:[%s2 + $0x490] sm:$0xff]
  %v848 = vld [vmem:[%s2 + $0x498] sm:$0xff]
  %v849 = vld [vmem:[%s2 + $0x4a0] sm:$0xff]
  %v850 = vld [vmem:[%s2 + $0x4a8] sm:$0xff]
  %v851 = vld [vmem:[%s2 + $0x4b0] sm:$0xff]
  %v852 = vld [vmem:[%s2 + $0x4b8] sm:$0xff]
  %v853 = vld [vmem:[%s2 + $0x4c0] sm:$0xff]
  %v854 = vld [vmem:[%s2 + $0x4c8] sm:$0xff]
  %v855 = vld [vmem:[%s2 + $0x4d0] sm:$0xff]
  %v856 = vld [vmem:[%s2 + $0x4d8] sm:$0xff]
  %v857 = vld [vmem:[%s2 + $0x4e0] sm:$0xff]
  %v858 = vld [vmem:[%s2 + $0x4e8] sm:$0xff]
  %v859 = vld [vmem:[%s2 + $0x4f0] sm:$0xff]
  %v860 = vld [vmem:[%s2 + $0x4f8] sm:$0xff]
  %v861 = vld [vmem:[%s2 + $0x500] sm:$0xff]
  %v862 = vld [vmem:[%s2 + $0x508] sm:$0xff]
  %v863 = vld [vmem:[%s2 + $0x510] sm:$0xff]
  %v864 = vld [vmem:[%s2 + $0x518] sm:$0xff]
  %v865 = vld [vmem:[%s2 + $0x520] sm:$0xff]
  %v866 = vld [vmem:[%s2 + $0x528] sm:$0xff]
  %v867 = vld [vmem:[%s2 + $0x530] sm:$0xff]
  %v868 = vld [vmem:[%s2 + $0x538] sm:$0xff]
  %v869 = vld [vmem:[%s2 + $0x540] sm:$0xff]
  %v870 = vld [vmem:[%s2 + $0x548] sm:$0xff]
  %v871 = vld [vmem:[%s2 + $0x550] sm:$0xff]
  %v872 = vld [vmem:[%s2 + $0x558] sm:$0xff]
  %v873 = vld [vmem:[%s2 + $0x560] sm:$0xff]
  %v874 = vld [vmem:[%s2 + $0x568] sm:$0xff]
  %v875 = vld [vmem:[%s2 + $0x570] sm:$0xff]
  %v876 = vld [vmem:[%s2 + $0x578] sm:$0xff]
  %v877 = vld [vmem:[%s2 + $0x580] sm:$0xff]
  %v878 = vld [vmem:[%s2 + $0x588] sm:$0xff]
  %v879 = vld [vmem:[%s2 + $0x590] sm:$0xff]
  %v880 = vld [vmem:[%s2 + $0x598] sm:$0xff]
  %v881 = vld [vmem:[%s2 + $0x5a0] sm:$0xff]
  %v882 = vld [vmem:[%s2 + $0x5a8] sm:$0xff]
  %v883 = vld [vmem:[%s2 + $0x5b0] sm:$0xff]
  %v884 = vld [vmem:[%s2 + $0x5b8] sm:$0xff]
  %v885 = vld [vmem:[%s2 + $0x5c0] sm:$0xff]
  %v886 = vld [vmem:[%s2 + $0x5c8] sm:$0xff]
  %v887 = vld [vmem:[%s2 + $0x5d0] sm:$0xff]
  %v888 = vld [vmem:[%s2 + $0x5d8] sm:$0xff]
  %v889 = vld [vmem:[%s2 + $0x5e0] sm:$0xff]
  %v890 = vld [vmem:[%s2 + $0x5e8] sm:$0xff]
  %v891 = vld [vmem:[%s2 + $0x5f0] sm:$0xff]
  %v892 = vld [vmem:[%s2 + $0x5f8] sm:$0xff]
  %v893 = vld [vmem:[%s2 + $0x600] sm:$0xff]
  %v894 = vld [vmem:[%s2 + $0x608] sm:$0xff]
  %v895 = vld [vmem:[%s2 + $0x610] sm:$0xff]
  %v896 = vld [vmem:[%s2 + $0x618] sm:$0xff]
  %v897 = vld [vmem:[%s2 + $0x620] sm:$0xff]
  %v898 = vld [vmem:[%s2 + $0x628] sm:$0xff]
  %v899 = vld [vmem:[%s2 + $0x630] sm:$0xff]
  %v900 = vld [vmem:[%s2 + $0x638] sm:$0xff]
  %v901 = vld [vmem:[%s2 + $0x640] sm:$0xff]
  %v902 = vld [vmem:[%s2 + $0x648] sm:$0xff]
  %v903 = vld [vmem:[%s2 + $0x650] sm:$0xff]
  %v904 = vld [vmem:[%s2 + $0x658] sm:$0xff]
  %v905 = vld [vmem:[%s2 + $0x660] sm:$0xff]
  %v906 = vld [vmem:[%s2 + $0x668] sm:$0xff]
  %v907 = vld [vmem:[%s2 + $0x670] sm:$0xff]
  %v908 = vld [vmem:[%s2 + $0x678] sm:$0xff]
  %v909 = vld [vmem:[%s2 + $0x680] sm:$0xff]
  %v910 = vld [vmem:[%s2 + $0x688] sm:$0xff]
  %v911 = vld [vmem:[%s2 + $0x690] sm:$0xff]
  %v912 = vld [vmem:[%s2 + $0x698] sm:$0xff]
  %v913 = vld [vmem:[%s2 + $0x6a0] sm:$0xff]
  %v914 = vld [vmem:[%s2 + $0x6a8] sm:$0xff]
  %v915 = vld [vmem:[%s2 + $0x6b0] sm:$0xff]
  %v916 = vld [vmem:[%s2 + $0x6b8] sm:$0xff]
  %v917 = vld [vmem:[%s2 + $0x6c0] sm:$0xff]
  %v918 = vld [vmem:[%s2 + $0x6c8] sm:$0xff]
  %v919 = vld [vmem:[%s2 + $0x6d0] sm:$0xff]
  %v920 = vld [vmem:[%s2 + $0x6d8] sm:$0xff]
  %v921 = vld [vmem:[%s2 + $0x6e0] sm:$0xff]
  %v922 = vld [vmem:[%s2 + $0x6e8] sm:$0xff]
  %v923 = vld [vmem:[%s2 + $0x6f0] sm:$0xff]
  %v924 = vld [vmem:[%s2 + $0x6f8] sm:$0xff]
  %v925 = vld [vmem:[%s2 + $0x700] sm:$0xff]
  %v926 = vld [vmem:[%s2 + $0x708] sm:$0xff]
  %v927 = vld [vmem:[%s2 + $0x710] sm:$0xff]
  %v928 = vld [vmem:[%s2 + $0x718] sm:$0xff]
  %v929 = vld [vmem:[%s2 + $0x720] sm:$0xff]
  %v930 = vld [vmem:[%s2 + $0x728] sm:$0xff]
  %v931 = vld [vmem:[%s2 + $0x730] sm:$0xff]
  %v932 = vld [vmem:[%s2 + $0x738] sm:$0xff]
  %v933 = vld [vmem:[%s2 + $0x740] sm:$0xff]
  %v934 = vld [vmem:[%s2 + $0x748] sm:$0xff]
  %v935 = vld [vmem:[%s2 + $0x750] sm:$0xff]
  %v936 = vld [vmem:[%s2 + $0x758] sm:$0xff]
  %v937 = vld [vmem:[%s2 + $0x760] sm:$0xff]
  %v938 = vld [vmem:[%s2 + $0x768] sm:$0xff]
  %v939 = vld [vmem:[%s2 + $0x770] sm:$0xff]
  %v940 = vld [vmem:[%s2 + $0x778] sm:$0xff]
  %v941 = vld [vmem:[%s2 + $0x780] sm:$0xff]
  %v942 = vld [vmem:[%s2 + $0x788] sm:$0xff]
  %v943 = vld [vmem:[%s2 + $0x790] sm:$0xff]
  %v944 = vld [vmem:[%s2 + $0x798] sm:$0xff]
  %v945 = vld [vmem:[%s2 + $0x7a0] sm:$0xff]
  %v946 = vld [vmem:[%s2 + $0x7a8] sm:$0xff]
  %v947 = vld [vmem:[%s2 + $0x7b0] sm:$0xff]
  %v948 = vld [vmem:[%s2 + $0x7b8] sm:$0xff]
  %v949 = vld [vmem:[%s2 + $0x7c0] sm:$0xff]
  %v950 = vld [vmem:[%s2 + $0x7c8] sm:$0xff]
  %v951 = vld [vmem:[%s2 + $0x7d0] sm:$0xff]
  %v952 = vld [vmem:[%s2 + $0x7d8] sm:$0xff]
  %v953 = vld [vmem:[%s2 + $0x7e0] sm:$0xff]
  %v954 = vld [vmem:[%s2 + $0x7e8] sm:$0xff]
  %v955 = vld [vmem:[%s2 + $0x7f0] sm:$0xff]
  %v956 = vld [vmem:[%s2 + $0x7f8] sm:$0xff]
  %v957 = vld [vmem:[%s2 + $0x800] sm:$0xff]
  %v958 = vld [vmem:[%s2 + $0x808] sm:$0xff]
  %v959 = vld [vmem:[%s2 + $0x810] sm:$0xff]
  %v960 = vld [vmem:[%s2 + $0x818] sm:$0xff]
  %v961 = vld [vmem:[%s2 + $0x820] sm:$0xff]
  %v962 = vld [vmem:[%s2 + $0x828] sm:$0xff]
  %v963 = vld [vmem:[%s2 + $0x830] sm:$0xff]
  %v964 = vld [vmem:[%s2 + $0x838] sm:$0xff]
  %v965 = vld [vmem:[%s2 + $0x840] sm:$0xff]
  %v966 = vld [vmem:[%s2 + $0x848] sm:$0xff]
  %v967 = vld [vmem:[%s2 + $0x850] sm:$0xff]
  %v968 = vld [vmem:[%s2 + $0x858] sm:$0xff]
  %v969 = vld [vmem:[%s2 + $0x860] sm:$0xff]
  %v970 = vld [vmem:[%s2 + $0x868] sm:$0xff]
  %v971 = vld [vmem:[%s2 + $0x870] sm:$0xff]
  %v972 = vld [vmem:[%s2 + $0x878] sm:$0xff]
  %v973 = vld [vmem:[%s2 + $0x880] sm:$0xff]
  %v974 = vld [vmem:[%s2 + $0x888] sm:$0xff]
  %v975 = vld [vmem:[%s2 + $0x890] sm:$0xff]
  %v976 = vld [vmem:[%s2 + $0x898] sm:$0xff]
  %v977 = vld [vmem:[%s2 + $0x8a0] sm:$0xff]
  %v978 = vld [vmem:[%s2 + $0x8a8] sm:$0xff]
  %v979 = vld [vmem:[%s2 + $0x8b0] sm:$0xff]
  %v980 = vld [vmem:[%s2 + $0x8b8] sm:$0xff]
  %v981 = vld [vmem:[%s2 + $0x8c0] sm:$0xff]
  %v982 = vld [vmem:[%s2 + $0x8c8] sm:$0xff]
  %v983 = vld [vmem:[%s2 + $0x8d0] sm:$0xff]
  %v984 = vld [vmem:[%s2 + $0x8d8] sm:$0xff]
  %v985 = vld [vmem:[%s2 + $0x8e0] sm:$0xff]
  %v986 = vld [vmem:[%s2 + $0x8e8] sm:$0xff]
  %v987 = vld [vmem:[%s2 + $0x8f0] sm:$0xff]
  %v988 = vld [vmem:[%s2 + $0x8f8] sm:$0xff]
  %v989 = vld [vmem:[%s2 + $0x900] sm:$0xff]
  %v990 = vld [vmem:[%s2 + $0x908] sm:$0xff]
  %v991 = vld [vmem:[%s2 + $0x910] sm:$0xff]
  %v992 = vld [vmem:[%s2 + $0x918] sm:$0xff]
  %v993 = vld [vmem:[%s2 + $0x920] sm:$0xff]
  %v994 = vld [vmem:[%s2 + $0x928] sm:$0xff]
  %v995 = vld [vmem:[%s2 + $0x930] sm:$0xff]
  %v996 = vld [vmem:[%s2 + $0x938] sm:$0xff]
  %v997 = vld [vmem:[%s2 + $0x940] sm:$0xff]
  %v998 = vld [vmem:[%s2 + $0x948] sm:$0xff]
  %v999 = vld [vmem:[%s2 + $0x950] sm:$0xff]
  %v1000 = vld [vmem:[%s2 + $0x958] sm:$0xff]
  %v1001 = vld [vmem:[%s2 + $0x960] sm:$0xff]
  %v1002 = vld [vmem:[%s2 + $0x968] sm:$0xff]
  %v1003 = vld [vmem:[%s2 + $0x970] sm:$0xff]
  %v1004 = vld [vmem:[%s2 + $0x978] sm:$0xff]
  %v1005 = vld [vmem:[%s2 + $0x980] sm:$0xff]
  %v1006 = vld [vmem:[%s2 + $0x988] sm:$0xff]
  %v1007 = vld [vmem:[%s2 + $0x990] sm:$0xff]
  %v1008 = vld [vmem:[%s2 + $0x998] sm:$0xff]
  %v1009 = vld [vmem:[%s2 + $0x9a0] sm:$0xff]
  %v1010 = vld [vmem:[%s2 + $0x9a8] sm:$0xff]
  %v1011 = vld [vmem:[%s2 + $0x9b0] sm:$0xff]
  %v1012 = vld [vmem:[%s2 + $0x9b8] sm:$0xff]
  %v1013 = vld [vmem:[%s2 + $0x9c0] sm:$0xff]
  %v1014 = vld [vmem:[%s2 + $0x9c8] sm:$0xff]
  %v1015 = vld [vmem:[%s2 + $0x9d0] sm:$0xff]
  %v1016 = vld [vmem:[%s2 + $0x9d8] sm:$0xff]
  %v1017 = vld [vmem:[%s2 + $0x9e0] sm:$0xff]
  %v1018 = vld [vmem:[%s2 + $0x9e8] sm:$0xff]
  %v1019 = vld [vmem:[%s2 + $0x9f0] sm:$0xff]
  %v1020 = vld [vmem:[%s2 + $0x9f8] sm:$0xff]
  %v1021 = vld [vmem:[%s2 + $0xa00] sm:$0xff]
  %v1022 = vld [vmem:[%s2 + $0xa08] sm:$0xff]
  %v1023 = vld [vmem:[%s2 + $0xa10] sm:$0xff]
  %v1024 = vld [vmem:[%s2 + $0xa18] sm:$0xff]
  %v1025 = vld [vmem:[%s2 + $0xa20] sm:$0xff]
  %v1026 = vld [vmem:[%s2 + $0xa28] sm:$0xff]
  %v1027 = vld [vmem:[%s2 + $0xa30] sm:$0xff]
  %v1028 = vld [vmem:[%s2 + $0xa38] sm:$0xff]
  %v1029 = vld [vmem:[%s2 + $0xa40] sm:$0xff]
  %v1030 = vld [vmem:[%s2 + $0xa48] sm:$0xff]
  %v1031 = vld [vmem:[%s2 + $0xa50] sm:$0xff]
  %v1032 = vld [vmem:[%s2 + $0xa58] sm:$0xff]
  %v1033 = vld [vmem:[%s2 + $0xa60] sm:$0xff]
  %v1034 = vld [vmem:[%s2 + $0xa68] sm:$0xff]
  %v1035 = vld [vmem:[%s2 + $0xa70] sm:$0xff]
  %v1036 = vld [vmem:[%s2 + $0xa78] sm:$0xff]
  %v1037 = vld [vmem:[%s2 + $0xa80] sm:$0xff]
  %v1038 = vld [vmem:[%s2 + $0xa88] sm:$0xff]
  %v1039 = vld [vmem:[%s2 + $0xa90] sm:$0xff]
  %v1040 = vld [vmem:[%s2 + $0xa98] sm:$0xff]
  %v1041 = vld [vmem:[%s2 + $0xaa0] sm:$0xff]
  %v1042 = vld [vmem:[%s2 + $0xaa8] sm:$0xff]
  %v1043 = vld [vmem:[%s2 + $0xab0] sm:$0xff]
  %v1044 = vld [vmem:[%s2 + $0xab8] sm:$0xff]
  %v1045 = vld [vmem:[%s2 + $0xac0] sm:$0xff]
  %v1046 = vld [vmem:[%s2 + $0xac8] sm:$0xff]
  %v1047 = vld [vmem:[%s2 + $0xad0] sm:$0xff]
  %v1048 = vld [vmem:[%s2 + $0xad8] sm:$0xff]
  %v1049 = vld [vmem:[%s2 + $0xae0] sm:$0xff]
  %v1050 = vld [vmem:[%s2 + $0xae8] sm:$0xff]
  %v1051 = vld [vmem:[%s2 + $0xaf0] sm:$0xff]
  %v1052 = vld [vmem:[%s2 + $0xaf8] sm:$0xff]
  %v1053 = vld [vmem:[%s2 + $0xb00] sm:$0xff]
  %v1054 = vld [vmem:[%s2 + $0xb08] sm:$0xff]
  %v1055 = vld [vmem:[%s2 + $0xb10] sm:$0xff]
  %v1056 = vld [vmem:[%s2 + $0xb18] sm:$0xff]
  %v1057 = vld [vmem:[%s2 + $0xb20] sm:$0xff]
  %v1058 = vld [vmem:[%s2 + $0xb28] sm:$0xff]
  %v1059 = vld [vmem:[%s2 + $0xb30] sm:$0xff]
  %v1060 = vld [vmem:[%s2 + $0xb38] sm:$0xff]
  %v1061 = vld [vmem:[%s2 + $0xb40] sm:$0xff]
  %v1062 = vld [vmem:[%s2 + $0xb48] sm:$0xff]
  %v1063 = vld [vmem:[%s2 + $0xb50] sm:$0xff]
  %v1064 = vld [vmem:[%s2 + $0xb58] sm:$0xff]
  %v1065 = vld [vmem:[%s2 + $0xb60] sm:$0xff]
  %v1066 = vld [vmem:[%s2 + $0xb68] sm:$0xff]
  %v1067 = vld [vmem:[%s2 + $0xb70] sm:$0xff]
  %v1068 = vld [vmem:[%s2 + $0xb78] sm:$0xff]
  %v1069 = vld [vmem:[%s2 + $0xb80] sm:$0xff]
  %v1070 = vld [vmem:[%s2 + $0xb88] sm:$0xff]
  %v1071 = vld [vmem:[%s2 + $0xb90] sm:$0xff]
  %v1072 = vld [vmem:[%s2 + $0xb98] sm:$0xff]
  %v1073 = vld [vmem:[%s2 + $0xba0] sm:$0xff]
  %v1074 = vld [vmem:[%s2 + $0xba8] sm:$0xff]
  %v1075 = vld [vmem:[%s2 + $0xbb0] sm:$0xff]
  %v1076 = vld [vmem:[%s2 + $0xbb8] sm:$0xff]
  %v1077 = vld [vmem:[%s2 + $0xbc0] sm:$0xff]
  %v1078 = vld [vmem:[%s2 + $0xbc8] sm:$0xff]
  %v1079 = vld [vmem:[%s2 + $0xbd0] sm:$0xff]
  %v1080 = vld [vmem:[%s2 + $0xbd8] sm:$0xff]
  %v1081 = vld [vmem:[%s2 + $0xbe0] sm:$0xff]
  %v1082 = vld [vmem:[%s2 + $0xbe8] sm:$0xff]
  %v1083 = vld [vmem:[%s2 + $0xbf0] sm:$0xff]
  %v1084 = vld [vmem:[%s2 + $0xbf8] sm:$0xff]
  %v1085 = vld [vmem:[%s2 + $0xc00] sm:$0xff]
  %v1086 = vld [vmem:[%s2 + $0xc08] sm:$0xff]
  %v1087 = vld [vmem:[%s2 + $0xc10] sm:$0xff]
  %v1088 = vld [vmem:[%s2 + $0xc18] sm:$0xff]
  %v1089 = vld [vmem:[%s2 + $0xc20] sm:$0xff]
  %v1090 = vld [vmem:[%s2 + $0xc28] sm:$0xff]
  %v1091 = vld [vmem:[%s2 + $0xc30] sm:$0xff]
  %v1092 = vld [vmem:[%s2 + $0xc38] sm:$0xff]
  %v1093 = vld [vmem:[%s2 + $0xc40] sm:$0xff]
  %v1094 = vld [vmem:[%s2 + $0xc48] sm:$0xff]
  %v1095 = vld [vmem:[%s2 + $0xc50] sm:$0xff]
  %v1096 = vld [vmem:[%s2 + $0xc58] sm:$0xff]
  %v1097 = vld [vmem:[%s2 + $0xc60] sm:$0xff]
  %v1098 = vld [vmem:[%s2 + $0xc68] sm:$0xff]
  %v1099 = vld [vmem:[%s2 + $0xc70] sm:$0xff]
  %v1100 = vld [vmem:[%s2 + $0xc78] sm:$0xff]
  %v1101 = vld [vmem:[%s2 + $0xc80] sm:$0xff]
  %v1102 = vld [vmem:[%s2 + $0xc88] sm:$0xff]
  %v1103 = vld [vmem:[%s2 + $0xc90] sm:$0xff]
  %v1104 = vld [vmem:[%s2 + $0xc98] sm:$0xff]
  %v1105 = vld [vmem:[%s2 + $0xca0] sm:$0xff]
  %v1106 = vld [vmem:[%s2 + $0xca8] sm:$0xff]
  %v1107 = vld [vmem:[%s2 + $0xcb0] sm:$0xff]
  %v1108 = vld [vmem:[%s2 + $0xcb8] sm:$0xff]
  %v1109 = vld [vmem:[%s2 + $0xcc0] sm:$0xff]
  %v1110 = vld [vmem:[%s2 + $0xcc8] sm:$0xff]
  %v1111 = vld [vmem:[%s2 + $0xcd0] sm:$0xff]
  %v1112 = vld [vmem:[%s2 + $0xcd8] sm:$0xff]
  %v1113 = vld [vmem:[%s2 + $0xce0] sm:$0xff]
  %v1114 = vld [vmem:[%s2 + $0xce8] sm:$0xff]
  %v1115 = vld [vmem:[%s2 + $0xcf0] sm:$0xff]
  %v1116 = vld [vmem:[%s2 + $0xcf8] sm:$0xff]
  %v1117 = vld [vmem:[%s2 + $0xd00] sm:$0xff]
  %v1118 = vld [vmem:[%s2 + $0xd08] sm:$0xff]
  %v1119 = vld [vmem:[%s2 + $0xd10] sm:$0xff]
  %v1120 = vld [vmem:[%s2 + $0xd18] sm:$0xff]
  %v1121 = vld [vmem:[%s2 + $0xd20] sm:$0xff]
  %v1122 = vld [vmem:[%s2 + $0xd28] sm:$0xff]
  %v1123 = vld [vmem:[%s2 + $0xd30] sm:$0xff]
  %v1124 = vld [vmem:[%s2 + $0xd38] sm:$0xff]
  %v1125 = vld [vmem:[%s2 + $0xd40] sm:$0xff]
  %v1126 = vld [vmem:[%s2 + $0xd48] sm:$0xff]
  %v1127 = vld [vmem:[%s2 + $0xd50] sm:$0xff]
  %v1128 = vld [vmem:[%s2 + $0xd58] sm:$0xff]
  %v1129 = vld [vmem:[%s2 + $0xd60] sm:$0xff]
  %v1130 = vld [vmem:[%s2 + $0xd68] sm:$0xff]
  %v1131 = vld [vmem:[%s2 + $0xd70] sm:$0xff]
  %v1132 = vld [vmem:[%s2 + $0xd78] sm:$0xff]
  %v1133 = vld [vmem:[%s2 + $0xd80] sm:$0xff]
  %v1134 = vld [vmem:[%s2 + $0xd88] sm:$0xff]
  %v1135 = vld [vmem:[%s2 + $0xd90] sm:$0xff]
  %v1136 = vld [vmem:[%s2 + $0xd98] sm:$0xff]
  %v1137 = vld [vmem:[%s2 + $0xda0] sm:$0xff]
  %v1138 = vld [vmem:[%s2 + $0xda8] sm:$0xff]
  %v1139 = vld [vmem:[%s2 + $0xdb0] sm:$0xff]
  %v1140 = vld [vmem:[%s2 + $0xdb8] sm:$0xff]
  %v1141 = vld [vmem:[%s2 + $0xdc0] sm:$0xff]
  %v1142 = vld [vmem:[%s2 + $0xdc8] sm:$0xff]
  %v1143 = vld [vmem:[%s2 + $0xdd0] sm:$0xff]
  %v1144 = vld [vmem:[%s2 + $0xdd8] sm:$0xff]
  %v1145 = vld [vmem:[%s2 + $0xde0] sm:$0xff]
  %v1146 = vld [vmem:[%s2 + $0xde8] sm:$0xff]
  %v1147 = vld [vmem:[%s2 + $0xdf0] sm:$0xff]
  %v1148 = vld [vmem:[%s2 + $0xdf8] sm:$0xff]
  %v1149 = vld [vmem:[%s2 + $0xe00] sm:$0xff]
  %v1150 = vld [vmem:[%s2 + $0xe08] sm:$0xff]
  %v1151 = vld [vmem:[%s2 + $0xe10] sm:$0xff]
  %v1152 = vld [vmem:[%s2 + $0xe18] sm:$0xff]
  %v1153 = vld [vmem:[%s2 + $0xe20] sm:$0xff]
  %v1154 = vld [vmem:[%s2 + $0xe28] sm:$0xff]
  %v1155 = vld [vmem:[%s2 + $0xe30] sm:$0xff]
  %v1156 = vld [vmem:[%s2 + $0xe38] sm:$0xff]
  %v1157 = vld [vmem:[%s2 + $0xe40] sm:$0xff]
  %v1158 = vld [vmem:[%s2 + $0xe48] sm:$0xff]
  %v1159 = vld [vmem:[%s2 + $0xe50] sm:$0xff]
  %v1160 = vld [vmem:[%s2 + $0xe58] sm:$0xff]
  %v1161 = vld [vmem:[%s2 + $0xe60] sm:$0xff]
  %v1162 = vld [vmem:[%s2 + $0xe68] sm:$0xff]
  %v1163 = vld [vmem:[%s2 + $0xe70] sm:$0xff]
  %v1164 = vld [vmem:[%s2 + $0xe78] sm:$0xff]
  %v1165 = vld [vmem:[%s2 + $0xe80] sm:$0xff]
  %v1166 = vld [vmem:[%s2 + $0xe88] sm:$0xff]
  %v1167 = vld [vmem:[%s2 + $0xe90] sm:$0xff]
  %v1168 = vld [vmem:[%s2 + $0xe98] sm:$0xff]
  %v1169 = vld [vmem:[%s2 + $0xea0] sm:$0xff]
  %v1170 = vld [vmem:[%s2 + $0xea8] sm:$0xff]
  %v1171 = vld [vmem:[%s2 + $0xeb0] sm:$0xff]
  %v1172 = vld [vmem:[%s2 + $0xeb8] sm:$0xff]
  %v1173 = vld [vmem:[%s2 + $0xec0] sm:$0xff]
  %v1174 = vld [vmem:[%s2 + $0xec8] sm:$0xff]
  %v1175 = vld [vmem:[%s2 + $0xed0] sm:$0xff]
  %v1176 = vld [vmem:[%s2 + $0xed8] sm:$0xff]
  %v1177 = vld [vmem:[%s2 + $0xee0] sm:$0xff]
  %v1178 = vld [vmem:[%s2 + $0xee8] sm:$0xff]
  %v1179 = vld [vmem:[%s2 + $0xef0] sm:$0xff]
  %v1180 = vld [vmem:[%s2 + $0xef8] sm:$0xff]
  %v1181 = vld [vmem:[%s2 + $0xf00] sm:$0xff]
  %v1182 = vld [vmem:[%s2 + $0xf08] sm:$0xff]
  %v1183 = vld [vmem:[%s2 + $0xf10] sm:$0xff]
  %v1184 = vld [vmem:[%s2 + $0xf18] sm:$0xff]
  %v1185 = vld [vmem:[%s2 + $0xf20] sm:$0xff]
  %v1186 = vld [vmem:[%s2 + $0xf28] sm:$0xff]
  %v1187 = vld [vmem:[%s2 + $0xf30] sm:$0xff]
  %v1188 = vld [vmem:[%s2 + $0xf38] sm:$0xff]
  %v1189 = vld [vmem:[%s2 + $0xf40] sm:$0xff]
  %v1190 = vld [vmem:[%s2 + $0xf48] sm:$0xff]
  %v1191 = vld [vmem:[%s2 + $0xf50] sm:$0xff]
  %v1192 = vld [vmem:[%s2 + $0xf58] sm:$0xff]
  %v1193 = vld [vmem:[%s2 + $0xf60] sm:$0xff]
  %v1194 = vld [vmem:[%s2 + $0xf68] sm:$0xff]
  %v1195 = vld [vmem:[%s2 + $0xf70] sm:$0xff]
  %v1196 = vld [vmem:[%s2 + $0xf78] sm:$0xff]
  %v1197 = vld [vmem:[%s2 + $0xf80] sm:$0xff]
  %v1198 = vld [vmem:[%s2 + $0xf88] sm:$0xff]
  %v1199 = vld [vmem:[%s2 + $0xf90] sm:$0xff]
  %v1200 = vld [vmem:[%s2 + $0xf98] sm:$0xff]
  %v1201 = vld [vmem:[%s2 + $0xfa0] sm:$0xff]
  %v1202 = vld [vmem:[%s2 + $0xfa8] sm:$0xff]
  %v1203 = vld [vmem:[%s2 + $0xfb0] sm:$0xff]
  %v1204 = vld [vmem:[%s2 + $0xfb8] sm:$0xff]
  %v1205 = vld [vmem:[%s2 + $0xfc0] sm:$0xff]
  %v1206 = vld [vmem:[%s2 + $0xfc8] sm:$0xff]
  %v1207 = vld [vmem:[%s2 + $0xfd0] sm:$0xff]
  %v1208 = vld [vmem:[%s2 + $0xfd8] sm:$0xff]
  %v1209 = vld [vmem:[%s2 + $0xfe0] sm:$0xff]
  %v1210 = vld [vmem:[%s2 + $0xfe8] sm:$0xff]
  %v1211 = vld [vmem:[%s2 + $0xff0] sm:$0xff]
  %v1212 = vld [vmem:[%s2 + $0xff8] sm:$0xff]
  %v1213 = vld [vmem:[%s3] sm:$0xff]
  %v1215 = vlaneseq
  %v1216 = vshrl.u32 %v1215, 7
  %v1217 = vsub.s32 0, %v1216
  %v1218 = vrot.slane %v1213, %v1217
  %v1219 = vlaneseq
  %v1220 = vshrl.u32 %v1219, 7
  %v1221 = vsub.s32 1, %v1220
  %v1222 = vrot.slane %v1213, %v1221
  %v1223 = vlaneseq
  %v1224 = vshrl.u32 %v1223, 7
  %v1225 = vsub.s32 2, %v1224
  %v1226 = vrot.slane %v1213, %v1225
  %v1227 = vlaneseq
  %v1228 = vshrl.u32 %v1227, 7
  %v1229 = vsub.s32 3, %v1228
  %v1230 = vrot.slane %v1213, %v1229
  %v1231 = vlaneseq
  %v1232 = vshrl.u32 %v1231, 7
  %v1233 = vsub.s32 4, %v1232
  %v1234 = vrot.slane %v1213, %v1233
  %v1235 = vlaneseq
  %v1236 = vshrl.u32 %v1235, 7
  %v1237 = vsub.s32 5, %v1236
  %v1238 = vrot.slane %v1213, %v1237
  %v1239 = vlaneseq
  %v1240 = vshrl.u32 %v1239, 7
  %v1241 = vsub.s32 6, %v1240
  %v1242 = vrot.slane %v1213, %v1241
  %v1243 = vlaneseq
  %v1244 = vshrl.u32 %v1243, 7
  %v1245 = vsub.s32 7, %v1244
  %v1246 = vrot.slane %v1213, %v1245
  %v1767 = vunpack.c.l.b16 %v701
  %v1768 = vunpack.c.h.b16 %v701
  %v1769 = vunpack.c.l.b16 %v702
  %v1770 = vunpack.c.h.b16 %v702
  %v1771 = vunpack.c.l.b16 %v703
  %v1772 = vunpack.c.h.b16 %v703
  %v1773 = vunpack.c.l.b16 %v704
  %v1774 = vunpack.c.h.b16 %v704
  %v1775 = vunpack.c.l.b16 %v705
  %v1776 = vunpack.c.h.b16 %v705
  %v1777 = vunpack.c.l.b16 %v706
  %v1778 = vunpack.c.h.b16 %v706
  %v1779 = vunpack.c.l.b16 %v707
  %v1780 = vunpack.c.h.b16 %v707
  %v1781 = vunpack.c.l.b16 %v708
  %v1782 = vunpack.c.h.b16 %v708
  %v1783 = vunpack.c.l.b16 %v709
  %v1784 = vunpack.c.h.b16 %v709
  %v1785 = vunpack.c.l.b16 %v710
  %v1786 = vunpack.c.h.b16 %v710
  %v1787 = vunpack.c.l.b16 %v711
  %v1788 = vunpack.c.h.b16 %v711
  %v1789 = vunpack.c.l.b16 %v712
  %v1790 = vunpack.c.h.b16 %v712
  %v1791 = vunpack.c.l.b16 %v713
  %v1792 = vunpack.c.h.b16 %v713
  %v1793 = vunpack.c.l.b16 %v714
  %v1794 = vunpack.c.h.b16 %v714
  %v1795 = vunpack.c.l.b16 %v715
  %v1796 = vunpack.c.h.b16 %v715
  %v1797 = vunpack.c.l.b16 %v716
  %v1798 = vunpack.c.h.b16 %v716
  %v1799 = vunpack.c.l.b16 %v717
  %v1800 = vunpack.c.h.b16 %v717
  %v1801 = vunpack.c.l.b16 %v718
  %v1802 = vunpack.c.h.b16 %v718
  %v1803 = vunpack.c.l.b16 %v719
  %v1804 = vunpack.c.h.b16 %v719
  %v1805 = vunpack.c.l.b16 %v720
  %v1806 = vunpack.c.h.b16 %v720
  %v1807 = vunpack.c.l.b16 %v721
  %v1808 = vunpack.c.h.b16 %v721
  %v1809 = vunpack.c.l.b16 %v722
  %v1810 = vunpack.c.h.b16 %v722
  %v1811 = vunpack.c.l.b16 %v723
  %v1812 = vunpack.c.h.b16 %v723
  %v1813 = vunpack.c.l.b16 %v724
  %v1814 = vunpack.c.h.b16 %v724
  %v1815 = vunpack.c.l.b16 %v725
  %v1816 = vunpack.c.h.b16 %v725
  %v1817 = vunpack.c.l.b16 %v726
  %v1818 = vunpack.c.h.b16 %v726
  %v1819 = vunpack.c.l.b16 %v727
  %v1820 = vunpack.c.h.b16 %v727
  %v1821 = vunpack.c.l.b16 %v728
  %v1822 = vunpack.c.h.b16 %v728
  %v1823 = vunpack.c.l.b16 %v729
  %v1824 = vunpack.c.h.b16 %v729
  %v1825 = vunpack.c.l.b16 %v730
  %v1826 = vunpack.c.h.b16 %v730
  %v1827 = vunpack.c.l.b16 %v731
  %v1828 = vunpack.c.h.b16 %v731
  %v1829 = vunpack.c.l.b16 %v732
  %v1830 = vunpack.c.h.b16 %v732
  %v1831 = vunpack.c.l.b16 %v733
  %v1832 = vunpack.c.h.b16 %v733
  %v1833 = vunpack.c.l.b16 %v734
  %v1834 = vunpack.c.h.b16 %v734
  %v1835 = vunpack.c.l.b16 %v735
  %v1836 = vunpack.c.h.b16 %v735
  %v1837 = vunpack.c.l.b16 %v736
  %v1838 = vunpack.c.h.b16 %v736
  %v1839 = vunpack.c.l.b16 %v737
  %v1840 = vunpack.c.h.b16 %v737
  %v1841 = vunpack.c.l.b16 %v738
  %v1842 = vunpack.c.h.b16 %v738
  %v1843 = vunpack.c.l.b16 %v739
  %v1844 = vunpack.c.h.b16 %v739
  %v1845 = vunpack.c.l.b16 %v740
  %v1846 = vunpack.c.h.b16 %v740
  %v1847 = vunpack.c.l.b16 %v741
  %v1848 = vunpack.c.h.b16 %v741
  %v1849 = vunpack.c.l.b16 %v742
  %v1850 = vunpack.c.h.b16 %v742
  %v1851 = vunpack.c.l.b16 %v743
  %v1852 = vunpack.c.h.b16 %v743
  %v1853 = vunpack.c.l.b16 %v744
  %v1854 = vunpack.c.h.b16 %v744
  %v1855 = vunpack.c.l.b16 %v745
  %v1856 = vunpack.c.h.b16 %v745
  %v1857 = vunpack.c.l.b16 %v746
  %v1858 = vunpack.c.h.b16 %v746
  %v1859 = vunpack.c.l.b16 %v747
  %v1860 = vunpack.c.h.b16 %v747
  %v1861 = vunpack.c.l.b16 %v748
  %v1862 = vunpack.c.h.b16 %v748
  %v1863 = vunpack.c.l.b16 %v749
  %v1864 = vunpack.c.h.b16 %v749
  %v1865 = vunpack.c.l.b16 %v750
  %v1866 = vunpack.c.h.b16 %v750
  %v1867 = vunpack.c.l.b16 %v751
  %v1868 = vunpack.c.h.b16 %v751
  %v1869 = vunpack.c.l.b16 %v752
  %v1870 = vunpack.c.h.b16 %v752
  %v1871 = vunpack.c.l.b16 %v753
  %v1872 = vunpack.c.h.b16 %v753
  %v1873 = vunpack.c.l.b16 %v754
  %v1874 = vunpack.c.h.b16 %v754
  %v1875 = vunpack.c.l.b16 %v755
  %v1876 = vunpack.c.h.b16 %v755
  %v1877 = vunpack.c.l.b16 %v756
  %v1878 = vunpack.c.h.b16 %v756
  %v1879 = vunpack.c.l.b16 %v757
  %v1880 = vunpack.c.h.b16 %v757
  %v1881 = vunpack.c.l.b16 %v758
  %v1882 = vunpack.c.h.b16 %v758
  %v1883 = vunpack.c.l.b16 %v759
  %v1884 = vunpack.c.h.b16 %v759
  %v1885 = vunpack.c.l.b16 %v760
  %v1886 = vunpack.c.h.b16 %v760
  %v1887 = vunpack.c.l.b16 %v761
  %v1888 = vunpack.c.h.b16 %v761
  %v1889 = vunpack.c.l.b16 %v762
  %v1890 = vunpack.c.h.b16 %v762
  %v1891 = vunpack.c.l.b16 %v763
  %v1892 = vunpack.c.h.b16 %v763
  %v1893 = vunpack.c.l.b16 %v764
  %v1894 = vunpack.c.h.b16 %v764
  %v1895 = vunpack.c.l.b16 %v765
  %v1896 = vunpack.c.h.b16 %v765
  %v1897 = vunpack.c.l.b16 %v766
  %v1898 = vunpack.c.h.b16 %v766
  %v1899 = vunpack.c.l.b16 %v767
  %v1900 = vunpack.c.h.b16 %v767
  %v1901 = vunpack.c.l.b16 %v768
  %v1902 = vunpack.c.h.b16 %v768
  %v1903 = vunpack.c.l.b16 %v769
  %v1904 = vunpack.c.h.b16 %v769
  %v1905 = vunpack.c.l.b16 %v770
  %v1906 = vunpack.c.h.b16 %v770
  %v1907 = vunpack.c.l.b16 %v771
  %v1908 = vunpack.c.h.b16 %v771
  %v1909 = vunpack.c.l.b16 %v772
  %v1910 = vunpack.c.h.b16 %v772
  %v1911 = vunpack.c.l.b16 %v773
  %v1912 = vunpack.c.h.b16 %v773
  %v1913 = vunpack.c.l.b16 %v774
  %v1914 = vunpack.c.h.b16 %v774
  %v1915 = vunpack.c.l.b16 %v775
  %v1916 = vunpack.c.h.b16 %v775
  %v1917 = vunpack.c.l.b16 %v776
  %v1918 = vunpack.c.h.b16 %v776
  %v1919 = vunpack.c.l.b16 %v777
  %v1920 = vunpack.c.h.b16 %v777
  %v1921 = vunpack.c.l.b16 %v778
  %v1922 = vunpack.c.h.b16 %v778
  %v1923 = vunpack.c.l.b16 %v779
  %v1924 = vunpack.c.h.b16 %v779
  %v1925 = vunpack.c.l.b16 %v780
  %v1926 = vunpack.c.h.b16 %v780
  %v1927 = vunpack.c.l.b16 %v781
  %v1928 = vunpack.c.h.b16 %v781
  %v1929 = vunpack.c.l.b16 %v782
  %v1930 = vunpack.c.h.b16 %v782
  %v1931 = vunpack.c.l.b16 %v783
  %v1932 = vunpack.c.h.b16 %v783
  %v1933 = vunpack.c.l.b16 %v784
  %v1934 = vunpack.c.h.b16 %v784
  %v1935 = vunpack.c.l.b16 %v785
  %v1936 = vunpack.c.h.b16 %v785
  %v1937 = vunpack.c.l.b16 %v786
  %v1938 = vunpack.c.h.b16 %v786
  %v1939 = vunpack.c.l.b16 %v787
  %v1940 = vunpack.c.h.b16 %v787
  %v1941 = vunpack.c.l.b16 %v788
  %v1942 = vunpack.c.h.b16 %v788
  %v1943 = vunpack.c.l.b16 %v789
  %v1944 = vunpack.c.h.b16 %v789
  %v1945 = vunpack.c.l.b16 %v790
  %v1946 = vunpack.c.h.b16 %v790
  %v1947 = vunpack.c.l.b16 %v791
  %v1948 = vunpack.c.h.b16 %v791
  %v1949 = vunpack.c.l.b16 %v792
  %v1950 = vunpack.c.h.b16 %v792
  %v1951 = vunpack.c.l.b16 %v793
  %v1952 = vunpack.c.h.b16 %v793
  %v1953 = vunpack.c.l.b16 %v794
  %v1954 = vunpack.c.h.b16 %v794
  %v1955 = vunpack.c.l.b16 %v795
  %v1956 = vunpack.c.h.b16 %v795
  %v1957 = vunpack.c.l.b16 %v796
  %v1958 = vunpack.c.h.b16 %v796
  %v1959 = vunpack.c.l.b16 %v797
  %v1960 = vunpack.c.h.b16 %v797
  %v1961 = vunpack.c.l.b16 %v798
  %v1962 = vunpack.c.h.b16 %v798
  %v1963 = vunpack.c.l.b16 %v799
  %v1964 = vunpack.c.h.b16 %v799
  %v1965 = vunpack.c.l.b16 %v800
  %v1966 = vunpack.c.h.b16 %v800
  %v1967 = vunpack.c.l.b16 %v801
  %v1968 = vunpack.c.h.b16 %v801
  %v1969 = vunpack.c.l.b16 %v802
  %v1970 = vunpack.c.h.b16 %v802
  %v1971 = vunpack.c.l.b16 %v803
  %v1972 = vunpack.c.h.b16 %v803
  %v1973 = vunpack.c.l.b16 %v804
  %v1974 = vunpack.c.h.b16 %v804
  %v1975 = vunpack.c.l.b16 %v805
  %v1976 = vunpack.c.h.b16 %v805
  %v1977 = vunpack.c.l.b16 %v806
  %v1978 = vunpack.c.h.b16 %v806
  %v1979 = vunpack.c.l.b16 %v807
  %v1980 = vunpack.c.h.b16 %v807
  %v1981 = vunpack.c.l.b16 %v808
  %v1982 = vunpack.c.h.b16 %v808
  %v1983 = vunpack.c.l.b16 %v809
  %v1984 = vunpack.c.h.b16 %v809
  %v1985 = vunpack.c.l.b16 %v810
  %v1986 = vunpack.c.h.b16 %v810
  %v1987 = vunpack.c.l.b16 %v811
  %v1988 = vunpack.c.h.b16 %v811
  %v1989 = vunpack.c.l.b16 %v812
  %v1990 = vunpack.c.h.b16 %v812
  %v1991 = vunpack.c.l.b16 %v813
  %v1992 = vunpack.c.h.b16 %v813
  %v1993 = vunpack.c.l.b16 %v814
  %v1994 = vunpack.c.h.b16 %v814
  %v1995 = vunpack.c.l.b16 %v815
  %v1996 = vunpack.c.h.b16 %v815
  %v1997 = vunpack.c.l.b16 %v816
  %v1998 = vunpack.c.h.b16 %v816
  %v1999 = vunpack.c.l.b16 %v817
  %v2000 = vunpack.c.h.b16 %v817
  %v2001 = vunpack.c.l.b16 %v818
  %v2002 = vunpack.c.h.b16 %v818
  %v2003 = vunpack.c.l.b16 %v819
  %v2004 = vunpack.c.h.b16 %v819
  %v2005 = vunpack.c.l.b16 %v820
  %v2006 = vunpack.c.h.b16 %v820
  %v2007 = vunpack.c.l.b16 %v821
  %v2008 = vunpack.c.h.b16 %v821
  %v2009 = vunpack.c.l.b16 %v822
  %v2010 = vunpack.c.h.b16 %v822
  %v2011 = vunpack.c.l.b16 %v823
  %v2012 = vunpack.c.h.b16 %v823
  %v2013 = vunpack.c.l.b16 %v824
  %v2014 = vunpack.c.h.b16 %v824
  %v2015 = vunpack.c.l.b16 %v825
  %v2016 = vunpack.c.h.b16 %v825
  %v2017 = vunpack.c.l.b16 %v826
  %v2018 = vunpack.c.h.b16 %v826
  %v2019 = vunpack.c.l.b16 %v827
  %v2020 = vunpack.c.h.b16 %v827
  %v2021 = vunpack.c.l.b16 %v828
  %v2022 = vunpack.c.h.b16 %v828
  %v2023 = vunpack.c.l.b16 %v829
  %v2024 = vunpack.c.h.b16 %v829
  %v2025 = vunpack.c.l.b16 %v830
  %v2026 = vunpack.c.h.b16 %v830
  %v2027 = vunpack.c.l.b16 %v831
  %v2028 = vunpack.c.h.b16 %v831
  %v2029 = vunpack.c.l.b16 %v832
  %v2030 = vunpack.c.h.b16 %v832
  %v2031 = vunpack.c.l.b16 %v833
  %v2032 = vunpack.c.h.b16 %v833
  %v2033 = vunpack.c.l.b16 %v834
  %v2034 = vunpack.c.h.b16 %v834
  %v2035 = vunpack.c.l.b16 %v835
  %v2036 = vunpack.c.h.b16 %v835
  %v2037 = vunpack.c.l.b16 %v836
  %v2038 = vunpack.c.h.b16 %v836
  %v2039 = vunpack.c.l.b16 %v837
  %v2040 = vunpack.c.h.b16 %v837
  %v2041 = vunpack.c.l.b16 %v838
  %v2042 = vunpack.c.h.b16 %v838
  %v2043 = vunpack.c.l.b16 %v839
  %v2044 = vunpack.c.h.b16 %v839
  %v2045 = vunpack.c.l.b16 %v840
  %v2046 = vunpack.c.h.b16 %v840
  %v2047 = vunpack.c.l.b16 %v841
  %v2048 = vunpack.c.h.b16 %v841
  %v2049 = vunpack.c.l.b16 %v842
  %v2050 = vunpack.c.h.b16 %v842
  %v2051 = vunpack.c.l.b16 %v843
  %v2052 = vunpack.c.h.b16 %v843
  %v2053 = vunpack.c.l.b16 %v844
  %v2054 = vunpack.c.h.b16 %v844
  %v2055 = vunpack.c.l.b16 %v845
  %v2056 = vunpack.c.h.b16 %v845
  %v2057 = vunpack.c.l.b16 %v846
  %v2058 = vunpack.c.h.b16 %v846
  %v2059 = vunpack.c.l.b16 %v847
  %v2060 = vunpack.c.h.b16 %v847
  %v2061 = vunpack.c.l.b16 %v848
  %v2062 = vunpack.c.h.b16 %v848
  %v2063 = vunpack.c.l.b16 %v849
  %v2064 = vunpack.c.h.b16 %v849
  %v2065 = vunpack.c.l.b16 %v850
  %v2066 = vunpack.c.h.b16 %v850
  %v2067 = vunpack.c.l.b16 %v851
  %v2068 = vunpack.c.h.b16 %v851
  %v2069 = vunpack.c.l.b16 %v852
  %v2070 = vunpack.c.h.b16 %v852
  %v2071 = vunpack.c.l.b16 %v853
  %v2072 = vunpack.c.h.b16 %v853
  %v2073 = vunpack.c.l.b16 %v854
  %v2074 = vunpack.c.h.b16 %v854
  %v2075 = vunpack.c.l.b16 %v855
  %v2076 = vunpack.c.h.b16 %v855
  %v2077 = vunpack.c.l.b16 %v856
  %v2078 = vunpack.c.h.b16 %v856
  %v2079 = vunpack.c.l.b16 %v857
  %v2080 = vunpack.c.h.b16 %v857
  %v2081 = vunpack.c.l.b16 %v858
  %v2082 = vunpack.c.h.b16 %v858
  %v2083 = vunpack.c.l.b16 %v859
  %v2084 = vunpack.c.h.b16 %v859
  %v2085 = vunpack.c.l.b16 %v860
  %v2086 = vunpack.c.h.b16 %v860
  %v2087 = vunpack.c.l.b16 %v861
  %v2088 = vunpack.c.h.b16 %v861
  %v2089 = vunpack.c.l.b16 %v862
  %v2090 = vunpack.c.h.b16 %v862
  %v2091 = vunpack.c.l.b16 %v863
  %v2092 = vunpack.c.h.b16 %v863
  %v2093 = vunpack.c.l.b16 %v864
  %v2094 = vunpack.c.h.b16 %v864
  %v2095 = vunpack.c.l.b16 %v865
  %v2096 = vunpack.c.h.b16 %v865
  %v2097 = vunpack.c.l.b16 %v866
  %v2098 = vunpack.c.h.b16 %v866
  %v2099 = vunpack.c.l.b16 %v867
  %v2100 = vunpack.c.h.b16 %v867
  %v2101 = vunpack.c.l.b16 %v868
  %v2102 = vunpack.c.h.b16 %v868
  %v2103 = vunpack.c.l.b16 %v869
  %v2104 = vunpack.c.h.b16 %v869
  %v2105 = vunpack.c.l.b16 %v870
  %v2106 = vunpack.c.h.b16 %v870
  %v2107 = vunpack.c.l.b16 %v871
  %v2108 = vunpack.c.h.b16 %v871
  %v2109 = vunpack.c.l.b16 %v872
  %v2110 = vunpack.c.h.b16 %v872
  %v2111 = vunpack.c.l.b16 %v873
  %v2112 = vunpack.c.h.b16 %v873
  %v2113 = vunpack.c.l.b16 %v874
  %v2114 = vunpack.c.h.b16 %v874
  %v2115 = vunpack.c.l.b16 %v875
  %v2116 = vunpack.c.h.b16 %v875
  %v2117 = vunpack.c.l.b16 %v876
  %v2118 = vunpack.c.h.b16 %v876
  %v2119 = vunpack.c.l.b16 %v877
  %v2120 = vunpack.c.h.b16 %v877
  %v2121 = vunpack.c.l.b16 %v878
  %v2122 = vunpack.c.h.b16 %v878
  %v2123 = vunpack.c.l.b16 %v879
  %v2124 = vunpack.c.h.b16 %v879
  %v2125 = vunpack.c.l.b16 %v880
  %v2126 = vunpack.c.h.b16 %v880
  %v2127 = vunpack.c.l.b16 %v881
  %v2128 = vunpack.c.h.b16 %v881
  %v2129 = vunpack.c.l.b16 %v882
  %v2130 = vunpack.c.h.b16 %v882
  %v2131 = vunpack.c.l.b16 %v883
  %v2132 = vunpack.c.h.b16 %v883
  %v2133 = vunpack.c.l.b16 %v884
  %v2134 = vunpack.c.h.b16 %v884
  %v2135 = vunpack.c.l.b16 %v885
  %v2136 = vunpack.c.h.b16 %v885
  %v2137 = vunpack.c.l.b16 %v886
  %v2138 = vunpack.c.h.b16 %v886
  %v2139 = vunpack.c.l.b16 %v887
  %v2140 = vunpack.c.h.b16 %v887
  %v2141 = vunpack.c.l.b16 %v888
  %v2142 = vunpack.c.h.b16 %v888
  %v2143 = vunpack.c.l.b16 %v889
  %v2144 = vunpack.c.h.b16 %v889
  %v2145 = vunpack.c.l.b16 %v890
  %v2146 = vunpack.c.h.b16 %v890
  %v2147 = vunpack.c.l.b16 %v891
  %v2148 = vunpack.c.h.b16 %v891
  %v2149 = vunpack.c.l.b16 %v892
  %v2150 = vunpack.c.h.b16 %v892
  %v2151 = vunpack.c.l.b16 %v893
  %v2152 = vunpack.c.h.b16 %v893
  %v2153 = vunpack.c.l.b16 %v894
  %v2154 = vunpack.c.h.b16 %v894
  %v2155 = vunpack.c.l.b16 %v895
  %v2156 = vunpack.c.h.b16 %v895
  %v2157 = vunpack.c.l.b16 %v896
  %v2158 = vunpack.c.h.b16 %v896
  %v2159 = vunpack.c.l.b16 %v897
  %v2160 = vunpack.c.h.b16 %v897
  %v2161 = vunpack.c.l.b16 %v898
  %v2162 = vunpack.c.h.b16 %v898
  %v2163 = vunpack.c.l.b16 %v899
  %v2164 = vunpack.c.h.b16 %v899
  %v2165 = vunpack.c.l.b16 %v900
  %v2166 = vunpack.c.h.b16 %v900
  %v2167 = vunpack.c.l.b16 %v901
  %v2168 = vunpack.c.h.b16 %v901
  %v2169 = vunpack.c.l.b16 %v902
  %v2170 = vunpack.c.h.b16 %v902
  %v2171 = vunpack.c.l.b16 %v903
  %v2172 = vunpack.c.h.b16 %v903
  %v2173 = vunpack.c.l.b16 %v904
  %v2174 = vunpack.c.h.b16 %v904
  %v2175 = vunpack.c.l.b16 %v905
  %v2176 = vunpack.c.h.b16 %v905
  %v2177 = vunpack.c.l.b16 %v906
  %v2178 = vunpack.c.h.b16 %v906
  %v2179 = vunpack.c.l.b16 %v907
  %v2180 = vunpack.c.h.b16 %v907
  %v2181 = vunpack.c.l.b16 %v908
  %v2182 = vunpack.c.h.b16 %v908
  %v2183 = vunpack.c.l.b16 %v909
  %v2184 = vunpack.c.h.b16 %v909
  %v2185 = vunpack.c.l.b16 %v910
  %v2186 = vunpack.c.h.b16 %v910
  %v2187 = vunpack.c.l.b16 %v911
  %v2188 = vunpack.c.h.b16 %v911
  %v2189 = vunpack.c.l.b16 %v912
  %v2190 = vunpack.c.h.b16 %v912
  %v2191 = vunpack.c.l.b16 %v913
  %v2192 = vunpack.c.h.b16 %v913
  %v2193 = vunpack.c.l.b16 %v914
  %v2194 = vunpack.c.h.b16 %v914
  %v2195 = vunpack.c.l.b16 %v915
  %v2196 = vunpack.c.h.b16 %v915
  %v2197 = vunpack.c.l.b16 %v916
  %v2198 = vunpack.c.h.b16 %v916
  %v2199 = vunpack.c.l.b16 %v917
  %v2200 = vunpack.c.h.b16 %v917
  %v2201 = vunpack.c.l.b16 %v918
  %v2202 = vunpack.c.h.b16 %v918
  %v2203 = vunpack.c.l.b16 %v919
  %v2204 = vunpack.c.h.b16 %v919
  %v2205 = vunpack.c.l.b16 %v920
  %v2206 = vunpack.c.h.b16 %v920
  %v2207 = vunpack.c.l.b16 %v921
  %v2208 = vunpack.c.h.b16 %v921
  %v2209 = vunpack.c.l.b16 %v922
  %v2210 = vunpack.c.h.b16 %v922
  %v2211 = vunpack.c.l.b16 %v923
  %v2212 = vunpack.c.h.b16 %v923
  %v2213 = vunpack.c.l.b16 %v924
  %v2214 = vunpack.c.h.b16 %v924
  %v2215 = vunpack.c.l.b16 %v925
  %v2216 = vunpack.c.h.b16 %v925
  %v2217 = vunpack.c.l.b16 %v926
  %v2218 = vunpack.c.h.b16 %v926
  %v2219 = vunpack.c.l.b16 %v927
  %v2220 = vunpack.c.h.b16 %v927
  %v2221 = vunpack.c.l.b16 %v928
  %v2222 = vunpack.c.h.b16 %v928
  %v2223 = vunpack.c.l.b16 %v929
  %v2224 = vunpack.c.h.b16 %v929
  %v2225 = vunpack.c.l.b16 %v930
  %v2226 = vunpack.c.h.b16 %v930
  %v2227 = vunpack.c.l.b16 %v931
  %v2228 = vunpack.c.h.b16 %v931
  %v2229 = vunpack.c.l.b16 %v932
  %v2230 = vunpack.c.h.b16 %v932
  %v2231 = vunpack.c.l.b16 %v933
  %v2232 = vunpack.c.h.b16 %v933
  %v2233 = vunpack.c.l.b16 %v934
  %v2234 = vunpack.c.h.b16 %v934
  %v2235 = vunpack.c.l.b16 %v935
  %v2236 = vunpack.c.h.b16 %v935
  %v2237 = vunpack.c.l.b16 %v936
  %v2238 = vunpack.c.h.b16 %v936
  %v2239 = vunpack.c.l.b16 %v937
  %v2240 = vunpack.c.h.b16 %v937
  %v2241 = vunpack.c.l.b16 %v938
  %v2242 = vunpack.c.h.b16 %v938
  %v2243 = vunpack.c.l.b16 %v939
  %v2244 = vunpack.c.h.b16 %v939
  %v2245 = vunpack.c.l.b16 %v940
  %v2246 = vunpack.c.h.b16 %v940
  %v2247 = vunpack.c.l.b16 %v941
  %v2248 = vunpack.c.h.b16 %v941
  %v2249 = vunpack.c.l.b16 %v942
  %v2250 = vunpack.c.h.b16 %v942
  %v2251 = vunpack.c.l.b16 %v943
  %v2252 = vunpack.c.h.b16 %v943
  %v2253 = vunpack.c.l.b16 %v944
  %v2254 = vunpack.c.h.b16 %v944
  %v2255 = vunpack.c.l.b16 %v945
  %v2256 = vunpack.c.h.b16 %v945
  %v2257 = vunpack.c.l.b16 %v946
  %v2258 = vunpack.c.h.b16 %v946
  %v2259 = vunpack.c.l.b16 %v947
  %v2260 = vunpack.c.h.b16 %v947
  %v2261 = vunpack.c.l.b16 %v948
  %v2262 = vunpack.c.h.b16 %v948
  %v2263 = vunpack.c.l.b16 %v949
  %v2264 = vunpack.c.h.b16 %v949
  %v2265 = vunpack.c.l.b16 %v950
  %v2266 = vunpack.c.h.b16 %v950
  %v2267 = vunpack.c.l.b16 %v951
  %v2268 = vunpack.c.h.b16 %v951
  %v2269 = vunpack.c.l.b16 %v952
  %v2270 = vunpack.c.h.b16 %v952
  %v2271 = vunpack.c.l.b16 %v953
  %v2272 = vunpack.c.h.b16 %v953
  %v2273 = vunpack.c.l.b16 %v954
  %v2274 = vunpack.c.h.b16 %v954
  %v2275 = vunpack.c.l.b16 %v955
  %v2276 = vunpack.c.h.b16 %v955
  %v2277 = vunpack.c.l.b16 %v956
  %v2278 = vunpack.c.h.b16 %v956
  %v2279 = vunpack.c.l.b16 %v957
  %v2280 = vunpack.c.h.b16 %v957
  %v2281 = vunpack.c.l.b16 %v958
  %v2282 = vunpack.c.h.b16 %v958
  %v2283 = vunpack.c.l.b16 %v959
  %v2284 = vunpack.c.h.b16 %v959
  %v2285 = vunpack.c.l.b16 %v960
  %v2286 = vunpack.c.h.b16 %v960
  %v2287 = vunpack.c.l.b16 %v961
  %v2288 = vunpack.c.h.b16 %v961
  %v2289 = vunpack.c.l.b16 %v962
  %v2290 = vunpack.c.h.b16 %v962
  %v2291 = vunpack.c.l.b16 %v963
  %v2292 = vunpack.c.h.b16 %v963
  %v2293 = vunpack.c.l.b16 %v964
  %v2294 = vunpack.c.h.b16 %v964
  %v2295 = vunpack.c.l.b16 %v965
  %v2296 = vunpack.c.h.b16 %v965
  %v2297 = vunpack.c.l.b16 %v966
  %v2298 = vunpack.c.h.b16 %v966
  %v2299 = vunpack.c.l.b16 %v967
  %v2300 = vunpack.c.h.b16 %v967
  %v2301 = vunpack.c.l.b16 %v968
  %v2302 = vunpack.c.h.b16 %v968
  %v2303 = vunpack.c.l.b16 %v969
  %v2304 = vunpack.c.h.b16 %v969
  %v2305 = vunpack.c.l.b16 %v970
  %v2306 = vunpack.c.h.b16 %v970
  %v2307 = vunpack.c.l.b16 %v971
  %v2308 = vunpack.c.h.b16 %v971
  %v2309 = vunpack.c.l.b16 %v972
  %v2310 = vunpack.c.h.b16 %v972
  %v2311 = vunpack.c.l.b16 %v973
  %v2312 = vunpack.c.h.b16 %v973
  %v2313 = vunpack.c.l.b16 %v974
  %v2314 = vunpack.c.h.b16 %v974
  %v2315 = vunpack.c.l.b16 %v975
  %v2316 = vunpack.c.h.b16 %v975
  %v2317 = vunpack.c.l.b16 %v976
  %v2318 = vunpack.c.h.b16 %v976
  %v2319 = vunpack.c.l.b16 %v977
  %v2320 = vunpack.c.h.b16 %v977
  %v2321 = vunpack.c.l.b16 %v978
  %v2322 = vunpack.c.h.b16 %v978
  %v2323 = vunpack.c.l.b16 %v979
  %v2324 = vunpack.c.h.b16 %v979
  %v2325 = vunpack.c.l.b16 %v980
  %v2326 = vunpack.c.h.b16 %v980
  %v2327 = vunpack.c.l.b16 %v981
  %v2328 = vunpack.c.h.b16 %v981
  %v2329 = vunpack.c.l.b16 %v982
  %v2330 = vunpack.c.h.b16 %v982
  %v2331 = vunpack.c.l.b16 %v983
  %v2332 = vunpack.c.h.b16 %v983
  %v2333 = vunpack.c.l.b16 %v984
  %v2334 = vunpack.c.h.b16 %v984
  %v2335 = vunpack.c.l.b16 %v985
  %v2336 = vunpack.c.h.b16 %v985
  %v2337 = vunpack.c.l.b16 %v986
  %v2338 = vunpack.c.h.b16 %v986
  %v2339 = vunpack.c.l.b16 %v987
  %v2340 = vunpack.c.h.b16 %v987
  %v2341 = vunpack.c.l.b16 %v988
  %v2342 = vunpack.c.h.b16 %v988
  %v2343 = vunpack.c.l.b16 %v989
  %v2344 = vunpack.c.h.b16 %v989
  %v2345 = vunpack.c.l.b16 %v990
  %v2346 = vunpack.c.h.b16 %v990
  %v2347 = vunpack.c.l.b16 %v991
  %v2348 = vunpack.c.h.b16 %v991
  %v2349 = vunpack.c.l.b16 %v992
  %v2350 = vunpack.c.h.b16 %v992
  %v2351 = vunpack.c.l.b16 %v993
  %v2352 = vunpack.c.h.b16 %v993
  %v2353 = vunpack.c.l.b16 %v994
  %v2354 = vunpack.c.h.b16 %v994
  %v2355 = vunpack.c.l.b16 %v995
  %v2356 = vunpack.c.h.b16 %v995
  %v2357 = vunpack.c.l.b16 %v996
  %v2358 = vunpack.c.h.b16 %v996
  %v2359 = vunpack.c.l.b16 %v997
  %v2360 = vunpack.c.h.b16 %v997
  %v2361 = vunpack.c.l.b16 %v998
  %v2362 = vunpack.c.h.b16 %v998
  %v2363 = vunpack.c.l.b16 %v999
  %v2364 = vunpack.c.h.b16 %v999
  %v2365 = vunpack.c.l.b16 %v1000
  %v2366 = vunpack.c.h.b16 %v1000
  %v2367 = vunpack.c.l.b16 %v1001
  %v2368 = vunpack.c.h.b16 %v1001
  %v2369 = vunpack.c.l.b16 %v1002
  %v2370 = vunpack.c.h.b16 %v1002
  %v2371 = vunpack.c.l.b16 %v1003
  %v2372 = vunpack.c.h.b16 %v1003
  %v2373 = vunpack.c.l.b16 %v1004
  %v2374 = vunpack.c.h.b16 %v1004
  %v2375 = vunpack.c.l.b16 %v1005
  %v2376 = vunpack.c.h.b16 %v1005
  %v2377 = vunpack.c.l.b16 %v1006
  %v2378 = vunpack.c.h.b16 %v1006
  %v2379 = vunpack.c.l.b16 %v1007
  %v2380 = vunpack.c.h.b16 %v1007
  %v2381 = vunpack.c.l.b16 %v1008
  %v2382 = vunpack.c.h.b16 %v1008
  %v2383 = vunpack.c.l.b16 %v1009
  %v2384 = vunpack.c.h.b16 %v1009
  %v2385 = vunpack.c.l.b16 %v1010
  %v2386 = vunpack.c.h.b16 %v1010
  %v2387 = vunpack.c.l.b16 %v1011
  %v2388 = vunpack.c.h.b16 %v1011
  %v2389 = vunpack.c.l.b16 %v1012
  %v2390 = vunpack.c.h.b16 %v1012
  %v2391 = vunpack.c.l.b16 %v1013
  %v2392 = vunpack.c.h.b16 %v1013
  %v2393 = vunpack.c.l.b16 %v1014
  %v2394 = vunpack.c.h.b16 %v1014
  %v2395 = vunpack.c.l.b16 %v1015
  %v2396 = vunpack.c.h.b16 %v1015
  %v2397 = vunpack.c.l.b16 %v1016
  %v2398 = vunpack.c.h.b16 %v1016
  %v2399 = vunpack.c.l.b16 %v1017
  %v2400 = vunpack.c.h.b16 %v1017
  %v2401 = vunpack.c.l.b16 %v1018
  %v2402 = vunpack.c.h.b16 %v1018
  %v2403 = vunpack.c.l.b16 %v1019
  %v2404 = vunpack.c.h.b16 %v1019
  %v2405 = vunpack.c.l.b16 %v1020
  %v2406 = vunpack.c.h.b16 %v1020
  %v2407 = vunpack.c.l.b16 %v1021
  %v2408 = vunpack.c.h.b16 %v1021
  %v2409 = vunpack.c.l.b16 %v1022
  %v2410 = vunpack.c.h.b16 %v1022
  %v2411 = vunpack.c.l.b16 %v1023
  %v2412 = vunpack.c.h.b16 %v1023
  %v2413 = vunpack.c.l.b16 %v1024
  %v2414 = vunpack.c.h.b16 %v1024
  %v2415 = vunpack.c.l.b16 %v1025
  %v2416 = vunpack.c.h.b16 %v1025
  %v2417 = vunpack.c.l.b16 %v1026
  %v2418 = vunpack.c.h.b16 %v1026
  %v2419 = vunpack.c.l.b16 %v1027
  %v2420 = vunpack.c.h.b16 %v1027
  %v2421 = vunpack.c.l.b16 %v1028
  %v2422 = vunpack.c.h.b16 %v1028
  %v2423 = vunpack.c.l.b16 %v1029
  %v2424 = vunpack.c.h.b16 %v1029
  %v2425 = vunpack.c.l.b16 %v1030
  %v2426 = vunpack.c.h.b16 %v1030
  %v2427 = vunpack.c.l.b16 %v1031
  %v2428 = vunpack.c.h.b16 %v1031
  %v2429 = vunpack.c.l.b16 %v1032
  %v2430 = vunpack.c.h.b16 %v1032
  %v2431 = vunpack.c.l.b16 %v1033
  %v2432 = vunpack.c.h.b16 %v1033
  %v2433 = vunpack.c.l.b16 %v1034
  %v2434 = vunpack.c.h.b16 %v1034
  %v2435 = vunpack.c.l.b16 %v1035
  %v2436 = vunpack.c.h.b16 %v1035
  %v2437 = vunpack.c.l.b16 %v1036
  %v2438 = vunpack.c.h.b16 %v1036
  %v2439 = vunpack.c.l.b16 %v1037
  %v2440 = vunpack.c.h.b16 %v1037
  %v2441 = vunpack.c.l.b16 %v1038
  %v2442 = vunpack.c.h.b16 %v1038
  %v2443 = vunpack.c.l.b16 %v1039
  %v2444 = vunpack.c.h.b16 %v1039
  %v2445 = vunpack.c.l.b16 %v1040
  %v2446 = vunpack.c.h.b16 %v1040
  %v2447 = vunpack.c.l.b16 %v1041
  %v2448 = vunpack.c.h.b16 %v1041
  %v2449 = vunpack.c.l.b16 %v1042
  %v2450 = vunpack.c.h.b16 %v1042
  %v2451 = vunpack.c.l.b16 %v1043
  %v2452 = vunpack.c.h.b16 %v1043
  %v2453 = vunpack.c.l.b16 %v1044
  %v2454 = vunpack.c.h.b16 %v1044
  %v2455 = vunpack.c.l.b16 %v1045
  %v2456 = vunpack.c.h.b16 %v1045
  %v2457 = vunpack.c.l.b16 %v1046
  %v2458 = vunpack.c.h.b16 %v1046
  %v2459 = vunpack.c.l.b16 %v1047
  %v2460 = vunpack.c.h.b16 %v1047
  %v2461 = vunpack.c.l.b16 %v1048
  %v2462 = vunpack.c.h.b16 %v1048
  %v2463 = vunpack.c.l.b16 %v1049
  %v2464 = vunpack.c.h.b16 %v1049
  %v2465 = vunpack.c.l.b16 %v1050
  %v2466 = vunpack.c.h.b16 %v1050
  %v2467 = vunpack.c.l.b16 %v1051
  %v2468 = vunpack.c.h.b16 %v1051
  %v2469 = vunpack.c.l.b16 %v1052
  %v2470 = vunpack.c.h.b16 %v1052
  %v2471 = vunpack.c.l.b16 %v1053
  %v2472 = vunpack.c.h.b16 %v1053
  %v2473 = vunpack.c.l.b16 %v1054
  %v2474 = vunpack.c.h.b16 %v1054
  %v2475 = vunpack.c.l.b16 %v1055
  %v2476 = vunpack.c.h.b16 %v1055
  %v2477 = vunpack.c.l.b16 %v1056
  %v2478 = vunpack.c.h.b16 %v1056
  %v2479 = vunpack.c.l.b16 %v1057
  %v2480 = vunpack.c.h.b16 %v1057
  %v2481 = vunpack.c.l.b16 %v1058
  %v2482 = vunpack.c.h.b16 %v1058
  %v2483 = vunpack.c.l.b16 %v1059
  %v2484 = vunpack.c.h.b16 %v1059
  %v2485 = vunpack.c.l.b16 %v1060
  %v2486 = vunpack.c.h.b16 %v1060
  %v2487 = vunpack.c.l.b16 %v1061
  %v2488 = vunpack.c.h.b16 %v1061
  %v2489 = vunpack.c.l.b16 %v1062
  %v2490 = vunpack.c.h.b16 %v1062
  %v2491 = vunpack.c.l.b16 %v1063
  %v2492 = vunpack.c.h.b16 %v1063
  %v2493 = vunpack.c.l.b16 %v1064
  %v2494 = vunpack.c.h.b16 %v1064
  %v2495 = vunpack.c.l.b16 %v1065
  %v2496 = vunpack.c.h.b16 %v1065
  %v2497 = vunpack.c.l.b16 %v1066
  %v2498 = vunpack.c.h.b16 %v1066
  %v2499 = vunpack.c.l.b16 %v1067
  %v2500 = vunpack.c.h.b16 %v1067
  %v2501 = vunpack.c.l.b16 %v1068
  %v2502 = vunpack.c.h.b16 %v1068
  %v2503 = vunpack.c.l.b16 %v1069
  %v2504 = vunpack.c.h.b16 %v1069
  %v2505 = vunpack.c.l.b16 %v1070
  %v2506 = vunpack.c.h.b16 %v1070
  %v2507 = vunpack.c.l.b16 %v1071
  %v2508 = vunpack.c.h.b16 %v1071
  %v2509 = vunpack.c.l.b16 %v1072
  %v2510 = vunpack.c.h.b16 %v1072
  %v2511 = vunpack.c.l.b16 %v1073
  %v2512 = vunpack.c.h.b16 %v1073
  %v2513 = vunpack.c.l.b16 %v1074
  %v2514 = vunpack.c.h.b16 %v1074
  %v2515 = vunpack.c.l.b16 %v1075
  %v2516 = vunpack.c.h.b16 %v1075
  %v2517 = vunpack.c.l.b16 %v1076
  %v2518 = vunpack.c.h.b16 %v1076
  %v2519 = vunpack.c.l.b16 %v1077
  %v2520 = vunpack.c.h.b16 %v1077
  %v2521 = vunpack.c.l.b16 %v1078
  %v2522 = vunpack.c.h.b16 %v1078
  %v2523 = vunpack.c.l.b16 %v1079
  %v2524 = vunpack.c.h.b16 %v1079
  %v2525 = vunpack.c.l.b16 %v1080
  %v2526 = vunpack.c.h.b16 %v1080
  %v2527 = vunpack.c.l.b16 %v1081
  %v2528 = vunpack.c.h.b16 %v1081
  %v2529 = vunpack.c.l.b16 %v1082
  %v2530 = vunpack.c.h.b16 %v1082
  %v2531 = vunpack.c.l.b16 %v1083
  %v2532 = vunpack.c.h.b16 %v1083
  %v2533 = vunpack.c.l.b16 %v1084
  %v2534 = vunpack.c.h.b16 %v1084
  %v2535 = vunpack.c.l.b16 %v1085
  %v2536 = vunpack.c.h.b16 %v1085
  %v2537 = vunpack.c.l.b16 %v1086
  %v2538 = vunpack.c.h.b16 %v1086
  %v2539 = vunpack.c.l.b16 %v1087
  %v2540 = vunpack.c.h.b16 %v1087
  %v2541 = vunpack.c.l.b16 %v1088
  %v2542 = vunpack.c.h.b16 %v1088
  %v2543 = vunpack.c.l.b16 %v1089
  %v2544 = vunpack.c.h.b16 %v1089
  %v2545 = vunpack.c.l.b16 %v1090
  %v2546 = vunpack.c.h.b16 %v1090
  %v2547 = vunpack.c.l.b16 %v1091
  %v2548 = vunpack.c.h.b16 %v1091
  %v2549 = vunpack.c.l.b16 %v1092
  %v2550 = vunpack.c.h.b16 %v1092
  %v2551 = vunpack.c.l.b16 %v1093
  %v2552 = vunpack.c.h.b16 %v1093
  %v2553 = vunpack.c.l.b16 %v1094
  %v2554 = vunpack.c.h.b16 %v1094
  %v2555 = vunpack.c.l.b16 %v1095
  %v2556 = vunpack.c.h.b16 %v1095
  %v2557 = vunpack.c.l.b16 %v1096
  %v2558 = vunpack.c.h.b16 %v1096
  %v2559 = vunpack.c.l.b16 %v1097
  %v2560 = vunpack.c.h.b16 %v1097
  %v2561 = vunpack.c.l.b16 %v1098
  %v2562 = vunpack.c.h.b16 %v1098
  %v2563 = vunpack.c.l.b16 %v1099
  %v2564 = vunpack.c.h.b16 %v1099
  %v2565 = vunpack.c.l.b16 %v1100
  %v2566 = vunpack.c.h.b16 %v1100
  %v2567 = vunpack.c.l.b16 %v1101
  %v2568 = vunpack.c.h.b16 %v1101
  %v2569 = vunpack.c.l.b16 %v1102
  %v2570 = vunpack.c.h.b16 %v1102
  %v2571 = vunpack.c.l.b16 %v1103
  %v2572 = vunpack.c.h.b16 %v1103
  %v2573 = vunpack.c.l.b16 %v1104
  %v2574 = vunpack.c.h.b16 %v1104
  %v2575 = vunpack.c.l.b16 %v1105
  %v2576 = vunpack.c.h.b16 %v1105
  %v2577 = vunpack.c.l.b16 %v1106
  %v2578 = vunpack.c.h.b16 %v1106
  %v2579 = vunpack.c.l.b16 %v1107
  %v2580 = vunpack.c.h.b16 %v1107
  %v2581 = vunpack.c.l.b16 %v1108
  %v2582 = vunpack.c.h.b16 %v1108
  %v2583 = vunpack.c.l.b16 %v1109
  %v2584 = vunpack.c.h.b16 %v1109
  %v2585 = vunpack.c.l.b16 %v1110
  %v2586 = vunpack.c.h.b16 %v1110
  %v2587 = vunpack.c.l.b16 %v1111
  %v2588 = vunpack.c.h.b16 %v1111
  %v2589 = vunpack.c.l.b16 %v1112
  %v2590 = vunpack.c.h.b16 %v1112
  %v2591 = vunpack.c.l.b16 %v1113
  %v2592 = vunpack.c.h.b16 %v1113
  %v2593 = vunpack.c.l.b16 %v1114
  %v2594 = vunpack.c.h.b16 %v1114
  %v2595 = vunpack.c.l.b16 %v1115
  %v2596 = vunpack.c.h.b16 %v1115
  %v2597 = vunpack.c.l.b16 %v1116
  %v2598 = vunpack.c.h.b16 %v1116
  %v2599 = vunpack.c.l.b16 %v1117
  %v2600 = vunpack.c.h.b16 %v1117
  %v2601 = vunpack.c.l.b16 %v1118
  %v2602 = vunpack.c.h.b16 %v1118
  %v2603 = vunpack.c.l.b16 %v1119
  %v2604 = vunpack.c.h.b16 %v1119
  %v2605 = vunpack.c.l.b16 %v1120
  %v2606 = vunpack.c.h.b16 %v1120
  %v2607 = vunpack.c.l.b16 %v1121
  %v2608 = vunpack.c.h.b16 %v1121
  %v2609 = vunpack.c.l.b16 %v1122
  %v2610 = vunpack.c.h.b16 %v1122
  %v2611 = vunpack.c.l.b16 %v1123
  %v2612 = vunpack.c.h.b16 %v1123
  %v2613 = vunpack.c.l.b16 %v1124
  %v2614 = vunpack.c.h.b16 %v1124
  %v2615 = vunpack.c.l.b16 %v1125
  %v2616 = vunpack.c.h.b16 %v1125
  %v2617 = vunpack.c.l.b16 %v1126
  %v2618 = vunpack.c.h.b16 %v1126
  %v2619 = vunpack.c.l.b16 %v1127
  %v2620 = vunpack.c.h.b16 %v1127
  %v2621 = vunpack.c.l.b16 %v1128
  %v2622 = vunpack.c.h.b16 %v1128
  %v2623 = vunpack.c.l.b16 %v1129
  %v2624 = vunpack.c.h.b16 %v1129
  %v2625 = vunpack.c.l.b16 %v1130
  %v2626 = vunpack.c.h.b16 %v1130
  %v2627 = vunpack.c.l.b16 %v1131
  %v2628 = vunpack.c.h.b16 %v1131
  %v2629 = vunpack.c.l.b16 %v1132
  %v2630 = vunpack.c.h.b16 %v1132
  %v2631 = vunpack.c.l.b16 %v1133
  %v2632 = vunpack.c.h.b16 %v1133
  %v2633 = vunpack.c.l.b16 %v1134
  %v2634 = vunpack.c.h.b16 %v1134
  %v2635 = vunpack.c.l.b16 %v1135
  %v2636 = vunpack.c.h.b16 %v1135
  %v2637 = vunpack.c.l.b16 %v1136
  %v2638 = vunpack.c.h.b16 %v1136
  %v2639 = vunpack.c.l.b16 %v1137
  %v2640 = vunpack.c.h.b16 %v1137
  %v2641 = vunpack.c.l.b16 %v1138
  %v2642 = vunpack.c.h.b16 %v1138
  %v2643 = vunpack.c.l.b16 %v1139
  %v2644 = vunpack.c.h.b16 %v1139
  %v2645 = vunpack.c.l.b16 %v1140
  %v2646 = vunpack.c.h.b16 %v1140
  %v2647 = vunpack.c.l.b16 %v1141
  %v2648 = vunpack.c.h.b16 %v1141
  %v2649 = vunpack.c.l.b16 %v1142
  %v2650 = vunpack.c.h.b16 %v1142
  %v2651 = vunpack.c.l.b16 %v1143
  %v2652 = vunpack.c.h.b16 %v1143
  %v2653 = vunpack.c.l.b16 %v1144
  %v2654 = vunpack.c.h.b16 %v1144
  %v2655 = vunpack.c.l.b16 %v1145
  %v2656 = vunpack.c.h.b16 %v1145
  %v2657 = vunpack.c.l.b16 %v1146
  %v2658 = vunpack.c.h.b16 %v1146
  %v2659 = vunpack.c.l.b16 %v1147
  %v2660 = vunpack.c.h.b16 %v1147
  %v2661 = vunpack.c.l.b16 %v1148
  %v2662 = vunpack.c.h.b16 %v1148
  %v2663 = vunpack.c.l.b16 %v1149
  %v2664 = vunpack.c.h.b16 %v1149
  %v2665 = vunpack.c.l.b16 %v1150
  %v2666 = vunpack.c.h.b16 %v1150
  %v2667 = vunpack.c.l.b16 %v1151
  %v2668 = vunpack.c.h.b16 %v1151
  %v2669 = vunpack.c.l.b16 %v1152
  %v2670 = vunpack.c.h.b16 %v1152
  %v2671 = vunpack.c.l.b16 %v1153
  %v2672 = vunpack.c.h.b16 %v1153
  %v2673 = vunpack.c.l.b16 %v1154
  %v2674 = vunpack.c.h.b16 %v1154
  %v2675 = vunpack.c.l.b16 %v1155
  %v2676 = vunpack.c.h.b16 %v1155
  %v2677 = vunpack.c.l.b16 %v1156
  %v2678 = vunpack.c.h.b16 %v1156
  %v2679 = vunpack.c.l.b16 %v1157
  %v2680 = vunpack.c.h.b16 %v1157
  %v2681 = vunpack.c.l.b16 %v1158
  %v2682 = vunpack.c.h.b16 %v1158
  %v2683 = vunpack.c.l.b16 %v1159
  %v2684 = vunpack.c.h.b16 %v1159
  %v2685 = vunpack.c.l.b16 %v1160
  %v2686 = vunpack.c.h.b16 %v1160
  %v2687 = vunpack.c.l.b16 %v1161
  %v2688 = vunpack.c.h.b16 %v1161
  %v2689 = vunpack.c.l.b16 %v1162
  %v2690 = vunpack.c.h.b16 %v1162
  %v2691 = vunpack.c.l.b16 %v1163
  %v2692 = vunpack.c.h.b16 %v1163
  %v2693 = vunpack.c.l.b16 %v1164
  %v2694 = vunpack.c.h.b16 %v1164
  %v2695 = vunpack.c.l.b16 %v1165
  %v2696 = vunpack.c.h.b16 %v1165
  %v2697 = vunpack.c.l.b16 %v1166
  %v2698 = vunpack.c.h.b16 %v1166
  %v2699 = vunpack.c.l.b16 %v1167
  %v2700 = vunpack.c.h.b16 %v1167
  %v2701 = vunpack.c.l.b16 %v1168
  %v2702 = vunpack.c.h.b16 %v1168
  %v2703 = vunpack.c.l.b16 %v1169
  %v2704 = vunpack.c.h.b16 %v1169
  %v2705 = vunpack.c.l.b16 %v1170
  %v2706 = vunpack.c.h.b16 %v1170
  %v2707 = vunpack.c.l.b16 %v1171
  %v2708 = vunpack.c.h.b16 %v1171
  %v2709 = vunpack.c.l.b16 %v1172
  %v2710 = vunpack.c.h.b16 %v1172
  %v2711 = vunpack.c.l.b16 %v1173
  %v2712 = vunpack.c.h.b16 %v1173
  %v2713 = vunpack.c.l.b16 %v1174
  %v2714 = vunpack.c.h.b16 %v1174
  %v2715 = vunpack.c.l.b16 %v1175
  %v2716 = vunpack.c.h.b16 %v1175
  %v2717 = vunpack.c.l.b16 %v1176
  %v2718 = vunpack.c.h.b16 %v1176
  %v2719 = vunpack.c.l.b16 %v1177
  %v2720 = vunpack.c.h.b16 %v1177
  %v2721 = vunpack.c.l.b16 %v1178
  %v2722 = vunpack.c.h.b16 %v1178
  %v2723 = vunpack.c.l.b16 %v1179
  %v2724 = vunpack.c.h.b16 %v1179
  %v2725 = vunpack.c.l.b16 %v1180
  %v2726 = vunpack.c.h.b16 %v1180
  %v2727 = vunpack.c.l.b16 %v1181
  %v2728 = vunpack.c.h.b16 %v1181
  %v2729 = vunpack.c.l.b16 %v1182
  %v2730 = vunpack.c.h.b16 %v1182
  %v2731 = vunpack.c.l.b16 %v1183
  %v2732 = vunpack.c.h.b16 %v1183
  %v2733 = vunpack.c.l.b16 %v1184
  %v2734 = vunpack.c.h.b16 %v1184
  %v2735 = vunpack.c.l.b16 %v1185
  %v2736 = vunpack.c.h.b16 %v1185
  %v2737 = vunpack.c.l.b16 %v1186
  %v2738 = vunpack.c.h.b16 %v1186
  %v2739 = vunpack.c.l.b16 %v1187
  %v2740 = vunpack.c.h.b16 %v1187
  %v2741 = vunpack.c.l.b16 %v1188
  %v2742 = vunpack.c.h.b16 %v1188
  %v2743 = vunpack.c.l.b16 %v1189
  %v2744 = vunpack.c.h.b16 %v1189
  %v2745 = vunpack.c.l.b16 %v1190
  %v2746 = vunpack.c.h.b16 %v1190
  %v2747 = vunpack.c.l.b16 %v1191
  %v2748 = vunpack.c.h.b16 %v1191
  %v2749 = vunpack.c.l.b16 %v1192
  %v2750 = vunpack.c.h.b16 %v1192
  %v2751 = vunpack.c.l.b16 %v1193
  %v2752 = vunpack.c.h.b16 %v1193
  %v2753 = vunpack.c.l.b16 %v1194
  %v2754 = vunpack.c.h.b16 %v1194
  %v2755 = vunpack.c.l.b16 %v1195
  %v2756 = vunpack.c.h.b16 %v1195
  %v2757 = vunpack.c.l.b16 %v1196
  %v2758 = vunpack.c.h.b16 %v1196
  %v2759 = vunpack.c.l.b16 %v1197
  %v2760 = vunpack.c.h.b16 %v1197
  %v2761 = vunpack.c.l.b16 %v1198
  %v2762 = vunpack.c.h.b16 %v1198
  %v2763 = vunpack.c.l.b16 %v1199
  %v2764 = vunpack.c.h.b16 %v1199
  %v2765 = vunpack.c.l.b16 %v1200
  %v2766 = vunpack.c.h.b16 %v1200
  %v2767 = vunpack.c.l.b16 %v1201
  %v2768 = vunpack.c.h.b16 %v1201
  %v2769 = vunpack.c.l.b16 %v1202
  %v2770 = vunpack.c.h.b16 %v1202
  %v2771 = vunpack.c.l.b16 %v1203
  %v2772 = vunpack.c.h.b16 %v1203
  %v2773 = vunpack.c.l.b16 %v1204
  %v2774 = vunpack.c.h.b16 %v1204
  %v2775 = vunpack.c.l.b16 %v1205
  %v2776 = vunpack.c.h.b16 %v1205
  %v2777 = vunpack.c.l.b16 %v1206
  %v2778 = vunpack.c.h.b16 %v1206
  %v2779 = vunpack.c.l.b16 %v1207
  %v2780 = vunpack.c.h.b16 %v1207
  %v2781 = vunpack.c.l.b16 %v1208
  %v2782 = vunpack.c.h.b16 %v1208
  %v2783 = vunpack.c.l.b16 %v1209
  %v2784 = vunpack.c.h.b16 %v1209
  %v2785 = vunpack.c.l.b16 %v1210
  %v2786 = vunpack.c.h.b16 %v1210
  %v2787 = vunpack.c.l.b16 %v1211
  %v2788 = vunpack.c.h.b16 %v1211
  %v2789 = vunpack.c.l.b16 %v1212
  %v2790 = vunpack.c.h.b16 %v1212
  %v2791 = vpack.c.b16 %v1775, %v1767
  %v2792 = vpack.c.b16 %v1776, %v1768
  %v2793 = vpack.c.b16 %v1777, %v1769
  %v2794 = vpack.c.b16 %v1778, %v1770
  %v2795 = vpack.c.b16 %v1779, %v1771
  %v2796 = vpack.c.b16 %v1780, %v1772
  %v2797 = vpack.c.b16 %v1781, %v1773
  %v2798 = vpack.c.b16 %v1782, %v1774
  %v2799 = vpack.c.b16 %v1791, %v1783
  %v2800 = vpack.c.b16 %v1792, %v1784
  %v2801 = vpack.c.b16 %v1793, %v1785
  %v2802 = vpack.c.b16 %v1794, %v1786
  %v2803 = vpack.c.b16 %v1795, %v1787
  %v2804 = vpack.c.b16 %v1796, %v1788
  %v2805 = vpack.c.b16 %v1797, %v1789
  %v2806 = vpack.c.b16 %v1798, %v1790
  %v2807 = vpack.c.b16 %v1807, %v1799
  %v2808 = vpack.c.b16 %v1808, %v1800
  %v2809 = vpack.c.b16 %v1809, %v1801
  %v2810 = vpack.c.b16 %v1810, %v1802
  %v2811 = vpack.c.b16 %v1811, %v1803
  %v2812 = vpack.c.b16 %v1812, %v1804
  %v2813 = vpack.c.b16 %v1813, %v1805
  %v2814 = vpack.c.b16 %v1814, %v1806
  %v2815 = vpack.c.b16 %v1823, %v1815
  %v2816 = vpack.c.b16 %v1824, %v1816
  %v2817 = vpack.c.b16 %v1825, %v1817
  %v2818 = vpack.c.b16 %v1826, %v1818
  %v2819 = vpack.c.b16 %v1827, %v1819
  %v2820 = vpack.c.b16 %v1828, %v1820
  %v2821 = vpack.c.b16 %v1829, %v1821
  %v2822 = vpack.c.b16 %v1830, %v1822
  %v2823 = vpack.c.b16 %v1839, %v1831
  %v2824 = vpack.c.b16 %v1840, %v1832
  %v2825 = vpack.c.b16 %v1841, %v1833
  %v2826 = vpack.c.b16 %v1842, %v1834
  %v2827 = vpack.c.b16 %v1843, %v1835
  %v2828 = vpack.c.b16 %v1844, %v1836
  %v2829 = vpack.c.b16 %v1845, %v1837
  %v2830 = vpack.c.b16 %v1846, %v1838
  %v2831 = vpack.c.b16 %v1855, %v1847
  %v2832 = vpack.c.b16 %v1856, %v1848
  %v2833 = vpack.c.b16 %v1857, %v1849
  %v2834 = vpack.c.b16 %v1858, %v1850
  %v2835 = vpack.c.b16 %v1859, %v1851
  %v2836 = vpack.c.b16 %v1860, %v1852
  %v2837 = vpack.c.b16 %v1861, %v1853
  %v2838 = vpack.c.b16 %v1862, %v1854
  %v2839 = vpack.c.b16 %v1871, %v1863
  %v2840 = vpack.c.b16 %v1872, %v1864
  %v2841 = vpack.c.b16 %v1873, %v1865
  %v2842 = vpack.c.b16 %v1874, %v1866
  %v2843 = vpack.c.b16 %v1875, %v1867
  %v2844 = vpack.c.b16 %v1876, %v1868
  %v2845 = vpack.c.b16 %v1877, %v1869
  %v2846 = vpack.c.b16 %v1878, %v1870
  %v2847 = vpack.c.b16 %v1887, %v1879
  %v2848 = vpack.c.b16 %v1888, %v1880
  %v2849 = vpack.c.b16 %v1889, %v1881
  %v2850 = vpack.c.b16 %v1890, %v1882
  %v2851 = vpack.c.b16 %v1891, %v1883
  %v2852 = vpack.c.b16 %v1892, %v1884
  %v2853 = vpack.c.b16 %v1893, %v1885
  %v2854 = vpack.c.b16 %v1894, %v1886
  %v2855 = vpack.c.b16 %v1903, %v1895
  %v2856 = vpack.c.b16 %v1904, %v1896
  %v2857 = vpack.c.b16 %v1905, %v1897
  %v2858 = vpack.c.b16 %v1906, %v1898
  %v2859 = vpack.c.b16 %v1907, %v1899
  %v2860 = vpack.c.b16 %v1908, %v1900
  %v2861 = vpack.c.b16 %v1909, %v1901
  %v2862 = vpack.c.b16 %v1910, %v1902
  %v2863 = vpack.c.b16 %v1919, %v1911
  %v2864 = vpack.c.b16 %v1920, %v1912
  %v2865 = vpack.c.b16 %v1921, %v1913
  %v2866 = vpack.c.b16 %v1922, %v1914
  %v2867 = vpack.c.b16 %v1923, %v1915
  %v2868 = vpack.c.b16 %v1924, %v1916
  %v2869 = vpack.c.b16 %v1925, %v1917
  %v2870 = vpack.c.b16 %v1926, %v1918
  %v2871 = vpack.c.b16 %v1935, %v1927
  %v2872 = vpack.c.b16 %v1936, %v1928
  %v2873 = vpack.c.b16 %v1937, %v1929
  %v2874 = vpack.c.b16 %v1938, %v1930
  %v2875 = vpack.c.b16 %v1939, %v1931
  %v2876 = vpack.c.b16 %v1940, %v1932
  %v2877 = vpack.c.b16 %v1941, %v1933
  %v2878 = vpack.c.b16 %v1942, %v1934
  %v2879 = vpack.c.b16 %v1951, %v1943
  %v2880 = vpack.c.b16 %v1952, %v1944
  %v2881 = vpack.c.b16 %v1953, %v1945
  %v2882 = vpack.c.b16 %v1954, %v1946
  %v2883 = vpack.c.b16 %v1955, %v1947
  %v2884 = vpack.c.b16 %v1956, %v1948
  %v2885 = vpack.c.b16 %v1957, %v1949
  %v2886 = vpack.c.b16 %v1958, %v1950
  %v2887 = vpack.c.b16 %v1967, %v1959
  %v2888 = vpack.c.b16 %v1968, %v1960
  %v2889 = vpack.c.b16 %v1969, %v1961
  %v2890 = vpack.c.b16 %v1970, %v1962
  %v2891 = vpack.c.b16 %v1971, %v1963
  %v2892 = vpack.c.b16 %v1972, %v1964
  %v2893 = vpack.c.b16 %v1973, %v1965
  %v2894 = vpack.c.b16 %v1974, %v1966
  %v2895 = vpack.c.b16 %v1983, %v1975
  %v2896 = vpack.c.b16 %v1984, %v1976
  %v2897 = vpack.c.b16 %v1985, %v1977
  %v2898 = vpack.c.b16 %v1986, %v1978
  %v2899 = vpack.c.b16 %v1987, %v1979
  %v2900 = vpack.c.b16 %v1988, %v1980
  %v2901 = vpack.c.b16 %v1989, %v1981
  %v2902 = vpack.c.b16 %v1990, %v1982
  %v2903 = vpack.c.b16 %v1999, %v1991
  %v2904 = vpack.c.b16 %v2000, %v1992
  %v2905 = vpack.c.b16 %v2001, %v1993
  %v2906 = vpack.c.b16 %v2002, %v1994
  %v2907 = vpack.c.b16 %v2003, %v1995
  %v2908 = vpack.c.b16 %v2004, %v1996
  %v2909 = vpack.c.b16 %v2005, %v1997
  %v2910 = vpack.c.b16 %v2006, %v1998
  %v2911 = vpack.c.b16 %v2015, %v2007
  %v2912 = vpack.c.b16 %v2016, %v2008
  %v2913 = vpack.c.b16 %v2017, %v2009
  %v2914 = vpack.c.b16 %v2018, %v2010
  %v2915 = vpack.c.b16 %v2019, %v2011
  %v2916 = vpack.c.b16 %v2020, %v2012
  %v2917 = vpack.c.b16 %v2021, %v2013
  %v2918 = vpack.c.b16 %v2022, %v2014
  %v2919 = vpack.c.b16 %v2031, %v2023
  %v2920 = vpack.c.b16 %v2032, %v2024
  %v2921 = vpack.c.b16 %v2033, %v2025
  %v2922 = vpack.c.b16 %v2034, %v2026
  %v2923 = vpack.c.b16 %v2035, %v2027
  %v2924 = vpack.c.b16 %v2036, %v2028
  %v2925 = vpack.c.b16 %v2037, %v2029
  %v2926 = vpack.c.b16 %v2038, %v2030
  %v2927 = vpack.c.b16 %v2047, %v2039
  %v2928 = vpack.c.b16 %v2048, %v2040
  %v2929 = vpack.c.b16 %v2049, %v2041
  %v2930 = vpack.c.b16 %v2050, %v2042
  %v2931 = vpack.c.b16 %v2051, %v2043
  %v2932 = vpack.c.b16 %v2052, %v2044
  %v2933 = vpack.c.b16 %v2053, %v2045
  %v2934 = vpack.c.b16 %v2054, %v2046
  %v2935 = vpack.c.b16 %v2063, %v2055
  %v2936 = vpack.c.b16 %v2064, %v2056
  %v2937 = vpack.c.b16 %v2065, %v2057
  %v2938 = vpack.c.b16 %v2066, %v2058
  %v2939 = vpack.c.b16 %v2067, %v2059
  %v2940 = vpack.c.b16 %v2068, %v2060
  %v2941 = vpack.c.b16 %v2069, %v2061
  %v2942 = vpack.c.b16 %v2070, %v2062
  %v2943 = vpack.c.b16 %v2079, %v2071
  %v2944 = vpack.c.b16 %v2080, %v2072
  %v2945 = vpack.c.b16 %v2081, %v2073
  %v2946 = vpack.c.b16 %v2082, %v2074
  %v2947 = vpack.c.b16 %v2083, %v2075
  %v2948 = vpack.c.b16 %v2084, %v2076
  %v2949 = vpack.c.b16 %v2085, %v2077
  %v2950 = vpack.c.b16 %v2086, %v2078
  %v2951 = vpack.c.b16 %v2095, %v2087
  %v2952 = vpack.c.b16 %v2096, %v2088
  %v2953 = vpack.c.b16 %v2097, %v2089
  %v2954 = vpack.c.b16 %v2098, %v2090
  %v2955 = vpack.c.b16 %v2099, %v2091
  %v2956 = vpack.c.b16 %v2100, %v2092
  %v2957 = vpack.c.b16 %v2101, %v2093
  %v2958 = vpack.c.b16 %v2102, %v2094
  %v2959 = vpack.c.b16 %v2111, %v2103
  %v2960 = vpack.c.b16 %v2112, %v2104
  %v2961 = vpack.c.b16 %v2113, %v2105
  %v2962 = vpack.c.b16 %v2114, %v2106
  %v2963 = vpack.c.b16 %v2115, %v2107
  %v2964 = vpack.c.b16 %v2116, %v2108
  %v2965 = vpack.c.b16 %v2117, %v2109
  %v2966 = vpack.c.b16 %v2118, %v2110
  %v2967 = vpack.c.b16 %v2127, %v2119
  %v2968 = vpack.c.b16 %v2128, %v2120
  %v2969 = vpack.c.b16 %v2129, %v2121
  %v2970 = vpack.c.b16 %v2130, %v2122
  %v2971 = vpack.c.b16 %v2131, %v2123
  %v2972 = vpack.c.b16 %v2132, %v2124
  %v2973 = vpack.c.b16 %v2133, %v2125
  %v2974 = vpack.c.b16 %v2134, %v2126
  %v2975 = vpack.c.b16 %v2143, %v2135
  %v2976 = vpack.c.b16 %v2144, %v2136
  %v2977 = vpack.c.b16 %v2145, %v2137
  %v2978 = vpack.c.b16 %v2146, %v2138
  %v2979 = vpack.c.b16 %v2147, %v2139
  %v2980 = vpack.c.b16 %v2148, %v2140
  %v2981 = vpack.c.b16 %v2149, %v2141
  %v2982 = vpack.c.b16 %v2150, %v2142
  %v2983 = vpack.c.b16 %v2159, %v2151
  %v2984 = vpack.c.b16 %v2160, %v2152
  %v2985 = vpack.c.b16 %v2161, %v2153
  %v2986 = vpack.c.b16 %v2162, %v2154
  %v2987 = vpack.c.b16 %v2163, %v2155
  %v2988 = vpack.c.b16 %v2164, %v2156
  %v2989 = vpack.c.b16 %v2165, %v2157
  %v2990 = vpack.c.b16 %v2166, %v2158
  %v2991 = vpack.c.b16 %v2175, %v2167
  %v2992 = vpack.c.b16 %v2176, %v2168
  %v2993 = vpack.c.b16 %v2177, %v2169
  %v2994 = vpack.c.b16 %v2178, %v2170
  %v2995 = vpack.c.b16 %v2179, %v2171
  %v2996 = vpack.c.b16 %v2180, %v2172
  %v2997 = vpack.c.b16 %v2181, %v2173
  %v2998 = vpack.c.b16 %v2182, %v2174
  %v2999 = vpack.c.b16 %v2191, %v2183
  %v3000 = vpack.c.b16 %v2192, %v2184
  %v3001 = vpack.c.b16 %v2193, %v2185
  %v3002 = vpack.c.b16 %v2194, %v2186
  %v3003 = vpack.c.b16 %v2195, %v2187
  %v3004 = vpack.c.b16 %v2196, %v2188
  %v3005 = vpack.c.b16 %v2197, %v2189
  %v3006 = vpack.c.b16 %v2198, %v2190
  %v3007 = vpack.c.b16 %v2207, %v2199
  %v3008 = vpack.c.b16 %v2208, %v2200
  %v3009 = vpack.c.b16 %v2209, %v2201
  %v3010 = vpack.c.b16 %v2210, %v2202
  %v3011 = vpack.c.b16 %v2211, %v2203
  %v3012 = vpack.c.b16 %v2212, %v2204
  %v3013 = vpack.c.b16 %v2213, %v2205
  %v3014 = vpack.c.b16 %v2214, %v2206
  %v3015 = vpack.c.b16 %v2223, %v2215
  %v3016 = vpack.c.b16 %v2224, %v2216
  %v3017 = vpack.c.b16 %v2225, %v2217
  %v3018 = vpack.c.b16 %v2226, %v2218
  %v3019 = vpack.c.b16 %v2227, %v2219
  %v3020 = vpack.c.b16 %v2228, %v2220
  %v3021 = vpack.c.b16 %v2229, %v2221
  %v3022 = vpack.c.b16 %v2230, %v2222
  %v3023 = vpack.c.b16 %v2239, %v2231
  %v3024 = vpack.c.b16 %v2240, %v2232
  %v3025 = vpack.c.b16 %v2241, %v2233
  %v3026 = vpack.c.b16 %v2242, %v2234
  %v3027 = vpack.c.b16 %v2243, %v2235
  %v3028 = vpack.c.b16 %v2244, %v2236
  %v3029 = vpack.c.b16 %v2245, %v2237
  %v3030 = vpack.c.b16 %v2246, %v2238
  %v3031 = vpack.c.b16 %v2255, %v2247
  %v3032 = vpack.c.b16 %v2256, %v2248
  %v3033 = vpack.c.b16 %v2257, %v2249
  %v3034 = vpack.c.b16 %v2258, %v2250
  %v3035 = vpack.c.b16 %v2259, %v2251
  %v3036 = vpack.c.b16 %v2260, %v2252
  %v3037 = vpack.c.b16 %v2261, %v2253
  %v3038 = vpack.c.b16 %v2262, %v2254
  %v3039 = vpack.c.b16 %v2271, %v2263
  %v3040 = vpack.c.b16 %v2272, %v2264
  %v3041 = vpack.c.b16 %v2273, %v2265
  %v3042 = vpack.c.b16 %v2274, %v2266
  %v3043 = vpack.c.b16 %v2275, %v2267
  %v3044 = vpack.c.b16 %v2276, %v2268
  %v3045 = vpack.c.b16 %v2277, %v2269
  %v3046 = vpack.c.b16 %v2278, %v2270
  %v3047 = vpack.c.b16 %v2287, %v2279
  %v3048 = vpack.c.b16 %v2288, %v2280
  %v3049 = vpack.c.b16 %v2289, %v2281
  %v3050 = vpack.c.b16 %v2290, %v2282
  %v3051 = vpack.c.b16 %v2291, %v2283
  %v3052 = vpack.c.b16 %v2292, %v2284
  %v3053 = vpack.c.b16 %v2293, %v2285
  %v3054 = vpack.c.b16 %v2294, %v2286
  %v3055 = vpack.c.b16 %v2303, %v2295
  %v3056 = vpack.c.b16 %v2304, %v2296
  %v3057 = vpack.c.b16 %v2305, %v2297
  %v3058 = vpack.c.b16 %v2306, %v2298
  %v3059 = vpack.c.b16 %v2307, %v2299
  %v3060 = vpack.c.b16 %v2308, %v2300
  %v3061 = vpack.c.b16 %v2309, %v2301
  %v3062 = vpack.c.b16 %v2310, %v2302
  %v3063 = vpack.c.b16 %v2319, %v2311
  %v3064 = vpack.c.b16 %v2320, %v2312
  %v3065 = vpack.c.b16 %v2321, %v2313
  %v3066 = vpack.c.b16 %v2322, %v2314
  %v3067 = vpack.c.b16 %v2323, %v2315
  %v3068 = vpack.c.b16 %v2324, %v2316
  %v3069 = vpack.c.b16 %v2325, %v2317
  %v3070 = vpack.c.b16 %v2326, %v2318
  %v3071 = vpack.c.b16 %v2335, %v2327
  %v3072 = vpack.c.b16 %v2336, %v2328
  %v3073 = vpack.c.b16 %v2337, %v2329
  %v3074 = vpack.c.b16 %v2338, %v2330
  %v3075 = vpack.c.b16 %v2339, %v2331
  %v3076 = vpack.c.b16 %v2340, %v2332
  %v3077 = vpack.c.b16 %v2341, %v2333
  %v3078 = vpack.c.b16 %v2342, %v2334
  %v3079 = vpack.c.b16 %v2351, %v2343
  %v3080 = vpack.c.b16 %v2352, %v2344
  %v3081 = vpack.c.b16 %v2353, %v2345
  %v3082 = vpack.c.b16 %v2354, %v2346
  %v3083 = vpack.c.b16 %v2355, %v2347
  %v3084 = vpack.c.b16 %v2356, %v2348
  %v3085 = vpack.c.b16 %v2357, %v2349
  %v3086 = vpack.c.b16 %v2358, %v2350
  %v3087 = vpack.c.b16 %v2367, %v2359
  %v3088 = vpack.c.b16 %v2368, %v2360
  %v3089 = vpack.c.b16 %v2369, %v2361
  %v3090 = vpack.c.b16 %v2370, %v2362
  %v3091 = vpack.c.b16 %v2371, %v2363
  %v3092 = vpack.c.b16 %v2372, %v2364
  %v3093 = vpack.c.b16 %v2373, %v2365
  %v3094 = vpack.c.b16 %v2374, %v2366
  %v3095 = vpack.c.b16 %v2383, %v2375
  %v3096 = vpack.c.b16 %v2384, %v2376
  %v3097 = vpack.c.b16 %v2385, %v2377
  %v3098 = vpack.c.b16 %v2386, %v2378
  %v3099 = vpack.c.b16 %v2387, %v2379
  %v3100 = vpack.c.b16 %v2388, %v2380
  %v3101 = vpack.c.b16 %v2389, %v2381
  %v3102 = vpack.c.b16 %v2390, %v2382
  %v3103 = vpack.c.b16 %v2399, %v2391
  %v3104 = vpack.c.b16 %v2400, %v2392
  %v3105 = vpack.c.b16 %v2401, %v2393
  %v3106 = vpack.c.b16 %v2402, %v2394
  %v3107 = vpack.c.b16 %v2403, %v2395
  %v3108 = vpack.c.b16 %v2404, %v2396
  %v3109 = vpack.c.b16 %v2405, %v2397
  %v3110 = vpack.c.b16 %v2406, %v2398
  %v3111 = vpack.c.b16 %v2415, %v2407
  %v3112 = vpack.c.b16 %v2416, %v2408
  %v3113 = vpack.c.b16 %v2417, %v2409
  %v3114 = vpack.c.b16 %v2418, %v2410
  %v3115 = vpack.c.b16 %v2419, %v2411
  %v3116 = vpack.c.b16 %v2420, %v2412
  %v3117 = vpack.c.b16 %v2421, %v2413
  %v3118 = vpack.c.b16 %v2422, %v2414
  %v3119 = vpack.c.b16 %v2431, %v2423
  %v3120 = vpack.c.b16 %v2432, %v2424
  %v3121 = vpack.c.b16 %v2433, %v2425
  %v3122 = vpack.c.b16 %v2434, %v2426
  %v3123 = vpack.c.b16 %v2435, %v2427
  %v3124 = vpack.c.b16 %v2436, %v2428
  %v3125 = vpack.c.b16 %v2437, %v2429
  %v3126 = vpack.c.b16 %v2438, %v2430
  %v3127 = vpack.c.b16 %v2447, %v2439
  %v3128 = vpack.c.b16 %v2448, %v2440
  %v3129 = vpack.c.b16 %v2449, %v2441
  %v3130 = vpack.c.b16 %v2450, %v2442
  %v3131 = vpack.c.b16 %v2451, %v2443
  %v3132 = vpack.c.b16 %v2452, %v2444
  %v3133 = vpack.c.b16 %v2453, %v2445
  %v3134 = vpack.c.b16 %v2454, %v2446
  %v3135 = vpack.c.b16 %v2463, %v2455
  %v3136 = vpack.c.b16 %v2464, %v2456
  %v3137 = vpack.c.b16 %v2465, %v2457
  %v3138 = vpack.c.b16 %v2466, %v2458
  %v3139 = vpack.c.b16 %v2467, %v2459
  %v3140 = vpack.c.b16 %v2468, %v2460
  %v3141 = vpack.c.b16 %v2469, %v2461
  %v3142 = vpack.c.b16 %v2470, %v2462
  %v3143 = vpack.c.b16 %v2479, %v2471
  %v3144 = vpack.c.b16 %v2480, %v2472
  %v3145 = vpack.c.b16 %v2481, %v2473
  %v3146 = vpack.c.b16 %v2482, %v2474
  %v3147 = vpack.c.b16 %v2483, %v2475
  %v3148 = vpack.c.b16 %v2484, %v2476
  %v3149 = vpack.c.b16 %v2485, %v2477
  %v3150 = vpack.c.b16 %v2486, %v2478
  %v3151 = vpack.c.b16 %v2495, %v2487
  %v3152 = vpack.c.b16 %v2496, %v2488
  %v3153 = vpack.c.b16 %v2497, %v2489
  %v3154 = vpack.c.b16 %v2498, %v2490
  %v3155 = vpack.c.b16 %v2499, %v2491
  %v3156 = vpack.c.b16 %v2500, %v2492
  %v3157 = vpack.c.b16 %v2501, %v2493
  %v3158 = vpack.c.b16 %v2502, %v2494
  %v3159 = vpack.c.b16 %v2511, %v2503
  %v3160 = vpack.c.b16 %v2512, %v2504
  %v3161 = vpack.c.b16 %v2513, %v2505
  %v3162 = vpack.c.b16 %v2514, %v2506
  %v3163 = vpack.c.b16 %v2515, %v2507
  %v3164 = vpack.c.b16 %v2516, %v2508
  %v3165 = vpack.c.b16 %v2517, %v2509
  %v3166 = vpack.c.b16 %v2518, %v2510
  %v3167 = vpack.c.b16 %v2527, %v2519
  %v3168 = vpack.c.b16 %v2528, %v2520
  %v3169 = vpack.c.b16 %v2529, %v2521
  %v3170 = vpack.c.b16 %v2530, %v2522
  %v3171 = vpack.c.b16 %v2531, %v2523
  %v3172 = vpack.c.b16 %v2532, %v2524
  %v3173 = vpack.c.b16 %v2533, %v2525
  %v3174 = vpack.c.b16 %v2534, %v2526
  %v3175 = vpack.c.b16 %v2543, %v2535
  %v3176 = vpack.c.b16 %v2544, %v2536
  %v3177 = vpack.c.b16 %v2545, %v2537
  %v3178 = vpack.c.b16 %v2546, %v2538
  %v3179 = vpack.c.b16 %v2547, %v2539
  %v3180 = vpack.c.b16 %v2548, %v2540
  %v3181 = vpack.c.b16 %v2549, %v2541
  %v3182 = vpack.c.b16 %v2550, %v2542
  %v3183 = vpack.c.b16 %v2559, %v2551
  %v3184 = vpack.c.b16 %v2560, %v2552
  %v3185 = vpack.c.b16 %v2561, %v2553
  %v3186 = vpack.c.b16 %v2562, %v2554
  %v3187 = vpack.c.b16 %v2563, %v2555
  %v3188 = vpack.c.b16 %v2564, %v2556
  %v3189 = vpack.c.b16 %v2565, %v2557
  %v3190 = vpack.c.b16 %v2566, %v2558
  %v3191 = vpack.c.b16 %v2575, %v2567
  %v3192 = vpack.c.b16 %v2576, %v2568
  %v3193 = vpack.c.b16 %v2577, %v2569
  %v3194 = vpack.c.b16 %v2578, %v2570
  %v3195 = vpack.c.b16 %v2579, %v2571
  %v3196 = vpack.c.b16 %v2580, %v2572
  %v3197 = vpack.c.b16 %v2581, %v2573
  %v3198 = vpack.c.b16 %v2582, %v2574
  %v3199 = vpack.c.b16 %v2591, %v2583
  %v3200 = vpack.c.b16 %v2592, %v2584
  %v3201 = vpack.c.b16 %v2593, %v2585
  %v3202 = vpack.c.b16 %v2594, %v2586
  %v3203 = vpack.c.b16 %v2595, %v2587
  %v3204 = vpack.c.b16 %v2596, %v2588
  %v3205 = vpack.c.b16 %v2597, %v2589
  %v3206 = vpack.c.b16 %v2598, %v2590
  %v3207 = vpack.c.b16 %v2607, %v2599
  %v3208 = vpack.c.b16 %v2608, %v2600
  %v3209 = vpack.c.b16 %v2609, %v2601
  %v3210 = vpack.c.b16 %v2610, %v2602
  %v3211 = vpack.c.b16 %v2611, %v2603
  %v3212 = vpack.c.b16 %v2612, %v2604
  %v3213 = vpack.c.b16 %v2613, %v2605
  %v3214 = vpack.c.b16 %v2614, %v2606
  %v3215 = vpack.c.b16 %v2623, %v2615
  %v3216 = vpack.c.b16 %v2624, %v2616
  %v3217 = vpack.c.b16 %v2625, %v2617
  %v3218 = vpack.c.b16 %v2626, %v2618
  %v3219 = vpack.c.b16 %v2627, %v2619
  %v3220 = vpack.c.b16 %v2628, %v2620
  %v3221 = vpack.c.b16 %v2629, %v2621
  %v3222 = vpack.c.b16 %v2630, %v2622
  %v3223 = vpack.c.b16 %v2639, %v2631
  %v3224 = vpack.c.b16 %v2640, %v2632
  %v3225 = vpack.c.b16 %v2641, %v2633
  %v3226 = vpack.c.b16 %v2642, %v2634
  %v3227 = vpack.c.b16 %v2643, %v2635
  %v3228 = vpack.c.b16 %v2644, %v2636
  %v3229 = vpack.c.b16 %v2645, %v2637
  %v3230 = vpack.c.b16 %v2646, %v2638
  %v3231 = vpack.c.b16 %v2655, %v2647
  %v3232 = vpack.c.b16 %v2656, %v2648
  %v3233 = vpack.c.b16 %v2657, %v2649
  %v3234 = vpack.c.b16 %v2658, %v2650
  %v3235 = vpack.c.b16 %v2659, %v2651
  %v3236 = vpack.c.b16 %v2660, %v2652
  %v3237 = vpack.c.b16 %v2661, %v2653
  %v3238 = vpack.c.b16 %v2662, %v2654
  %v3239 = vpack.c.b16 %v2671, %v2663
  %v3240 = vpack.c.b16 %v2672, %v2664
  %v3241 = vpack.c.b16 %v2673, %v2665
  %v3242 = vpack.c.b16 %v2674, %v2666
  %v3243 = vpack.c.b16 %v2675, %v2667
  %v3244 = vpack.c.b16 %v2676, %v2668
  %v3245 = vpack.c.b16 %v2677, %v2669
  %v3246 = vpack.c.b16 %v2678, %v2670
  %v3247 = vpack.c.b16 %v2687, %v2679
  %v3248 = vpack.c.b16 %v2688, %v2680
  %v3249 = vpack.c.b16 %v2689, %v2681
  %v3250 = vpack.c.b16 %v2690, %v2682
  %v3251 = vpack.c.b16 %v2691, %v2683
  %v3252 = vpack.c.b16 %v2692, %v2684
  %v3253 = vpack.c.b16 %v2693, %v2685
  %v3254 = vpack.c.b16 %v2694, %v2686
  %v3255 = vpack.c.b16 %v2703, %v2695
  %v3256 = vpack.c.b16 %v2704, %v2696
  %v3257 = vpack.c.b16 %v2705, %v2697
  %v3258 = vpack.c.b16 %v2706, %v2698
  %v3259 = vpack.c.b16 %v2707, %v2699
  %v3260 = vpack.c.b16 %v2708, %v2700
  %v3261 = vpack.c.b16 %v2709, %v2701
  %v3262 = vpack.c.b16 %v2710, %v2702
  %v3263 = vpack.c.b16 %v2719, %v2711
  %v3264 = vpack.c.b16 %v2720, %v2712
  %v3265 = vpack.c.b16 %v2721, %v2713
  %v3266 = vpack.c.b16 %v2722, %v2714
  %v3267 = vpack.c.b16 %v2723, %v2715
  %v3268 = vpack.c.b16 %v2724, %v2716
  %v3269 = vpack.c.b16 %v2725, %v2717
  %v3270 = vpack.c.b16 %v2726, %v2718
  %v3271 = vpack.c.b16 %v2735, %v2727
  %v3272 = vpack.c.b16 %v2736, %v2728
  %v3273 = vpack.c.b16 %v2737, %v2729
  %v3274 = vpack.c.b16 %v2738, %v2730
  %v3275 = vpack.c.b16 %v2739, %v2731
  %v3276 = vpack.c.b16 %v2740, %v2732
  %v3277 = vpack.c.b16 %v2741, %v2733
  %v3278 = vpack.c.b16 %v2742, %v2734
  %v3279 = vpack.c.b16 %v2751, %v2743
  %v3280 = vpack.c.b16 %v2752, %v2744
  %v3281 = vpack.c.b16 %v2753, %v2745
  %v3282 = vpack.c.b16 %v2754, %v2746
  %v3283 = vpack.c.b16 %v2755, %v2747
  %v3284 = vpack.c.b16 %v2756, %v2748
  %v3285 = vpack.c.b16 %v2757, %v2749
  %v3286 = vpack.c.b16 %v2758, %v2750
  %v3287 = vpack.c.b16 %v2767, %v2759
  %v3288 = vpack.c.b16 %v2768, %v2760
  %v3289 = vpack.c.b16 %v2769, %v2761
  %v3290 = vpack.c.b16 %v2770, %v2762
  %v3291 = vpack.c.b16 %v2771, %v2763
  %v3292 = vpack.c.b16 %v2772, %v2764
  %v3293 = vpack.c.b16 %v2773, %v2765
  %v3294 = vpack.c.b16 %v2774, %v2766
  %v3295 = vpack.c.b16 %v2783, %v2775
  %v3296 = vpack.c.b16 %v2784, %v2776
  %v3297 = vpack.c.b16 %v2785, %v2777
  %v3298 = vpack.c.b16 %v2786, %v2778
  %v3299 = vpack.c.b16 %v2787, %v2779
  %v3300 = vpack.c.b16 %v2788, %v2780
  %v3301 = vpack.c.b16 %v2789, %v2781
  %v3302 = vpack.c.b16 %v2790, %v2782
  %3815 = vmatprep.subr.bf16.mxu0 %v2792
  %3816 = vmatpush1.bf16.msra.mxu0 %v2791
  %3817 = vmatprep.subr.bf16.mxu0 %v2800
  %3818 = vmatpush1.bf16.msra.mxu0 %v2799
  %3819 = vmatprep.subr.bf16.mxu0 %v2808
  %3820 = vmatpush1.bf16.msra.mxu0 %v2807
  %3821 = vmatprep.subr.bf16.mxu0 %v2816
  %3822 = vmatpush1.bf16.msra.mxu0 %v2815
  %3823 = vmatprep.subr.bf16.mxu0 %v2824
  %3824 = vmatpush1.bf16.msra.mxu0 %v2823
  %3825 = vmatprep.subr.bf16.mxu0 %v2832
  %3826 = vmatpush1.bf16.msra.mxu0 %v2831
  %3827 = vmatprep.subr.bf16.mxu0 %v2840
  %3828 = vmatpush1.bf16.msra.mxu0 %v2839
  %3829 = vmatprep.subr.bf16.mxu0 %v2848
  %3830 = vmatpush1.bf16.msra.mxu0 %v2847
  %3831 = vmatprep.subr.bf16.mxu0 %v2856
  %3832 = vmatpush1.bf16.msra.mxu0 %v2855
  %3833 = vmatprep.subr.bf16.mxu0 %v2864
  %3834 = vmatpush1.bf16.msra.mxu0 %v2863
  %3835 = vmatprep.subr.bf16.mxu0 %v2872
  %3836 = vmatpush1.bf16.msra.mxu0 %v2871
  %3837 = vmatprep.subr.bf16.mxu0 %v2880
  %3838 = vmatpush1.bf16.msra.mxu0 %v2879
  %3839 = vmatprep.subr.bf16.mxu0 %v2888
  %3840 = vmatpush1.bf16.msra.mxu0 %v2887
  %3841 = vmatprep.subr.bf16.mxu0 %v2896
  %3842 = vmatpush1.bf16.msra.mxu0 %v2895
  %3843 = vmatprep.subr.bf16.mxu0 %v2904
  %3844 = vmatpush1.bf16.msra.mxu0 %v2903
  %3845 = vmatprep.subr.bf16.mxu0 %v2912
  %3846 = vmatpush1.bf16.msra.mxu0 %v2911
  %3847 = vmatprep.mubr.bf16.mxu0 %v670
  %3848 = vmatmul.mubr.bf16.gmra.mrb[0].mxu0 %v669
  %v3849 = vpop.f32.mrb[0].mxu0
  %v3850 = vadd.f32 %v1218, %v3849
  %v3851 = vpop.f32.mrb[0].mxu0
  %v3852 = vadd.f32 %v1222, %v3851
  %v3853 = vpop.f32.mrb[0].mxu0
  %v3854 = vadd.f32 %v1218, %v3853
  %v3855 = vpop.f32.mrb[0].mxu0
  %v3856 = vadd.f32 %v1222, %v3855
  %3857 = vmatprep.mubr.bf16.mxu0 %v678
  %3858 = vmatmul.mubr.bf16.gmra.mrb[0].mxu0 %v677
  %v3859 = vpop.f32.mrb[0].mxu0
  %v3860 = vadd.f32 %v1218, %v3859
  %v3861 = vpop.f32.mrb[0].mxu0
  %v3862 = vadd.f32 %v1222, %v3861
  %v3863 = vpop.f32.mrb[0].mxu0
  %v3864 = vadd.f32 %v1218, %v3863
  %v3865 = vpop.f32.mrb[0].mxu0
  %v3866 = vadd.f32 %v1222, %v3865
  %3867 = vmatprep.mubr.bf16.mxu0 %v686
  %3868 = vmatmul.mubr.bf16.gmra.mrb[0].mxu0 %v685
  %v3869 = vpop.f32.mrb[0].mxu0
  %v3870 = vadd.f32 %v1218, %v3869
  %v3871 = vpop.f32.mrb[0].mxu0
  %v3872 = vadd.f32 %v1222, %v3871
  %v3873 = vpop.f32.mrb[0].mxu0
  %v3874 = vadd.f32 %v1218, %v3873
  %v3875 = vpop.f32.mrb[0].mxu0
  %v3876 = vadd.f32 %v1222, %v3875
  %3877 = vmatprep.mubr.bf16.mxu0 %v694
  %3878 = vmatmul.mubr.bf16.gmra.mrb[0].mxu0 %v693
  %v3879 = vpop.f32.mrb[0].mxu0
  %v3880 = vadd.f32 %v1218, %v3879
  %v3881 = vpop.f32.mrb[0].mxu0
  %v3882 = vadd.f32 %v1222, %v3881
  %v3883 = vpop.f32.mrb[0].mxu0
  %v3884 = vadd.f32 %v1218, %v3883
  %v3885 = vpop.f32.mrb[0].mxu0
  %v3886 = vadd.f32 %v1222, %v3885
  %3887 = vdwg.mxu0
  %3888 = vmatprep.subr.bf16.mxu0 %v2920
  %3889 = vmatpush1.bf16.msra.mxu0 %v2919
  %3890 = vmatprep.subr.bf16.mxu0 %v2928
  %3891 = vmatpush1.bf16.msra.mxu0 %v2927
  %3892 = vmatprep.subr.bf16.mxu0 %v2936
  %3893 = vmatpush1.bf16.msra.mxu0 %v2935
  %3894 = vmatprep.subr.bf16.mxu0 %v2944
  %3895 = vmatpush1.bf16.msra.mxu0 %v2943
  %3896 = vmatprep.subr.bf16.mxu0 %v2952
  %3897 = vmatpush1.bf16.msra.mxu0 %v2951
  %3898 = vmatprep.subr.bf16.mxu0 %v2960
  %3899 = vmatpush1.bf16.msra.mxu0 %v2959
  %3900 = vmatprep.subr.bf16.mxu0 %v2968
  %3901 = vmatpush1.bf16.msra.mxu0 %v2967
  %3902 = vmatprep.subr.bf16.mxu0 %v2976
  %3903 = vmatpush1.bf16.msra.mxu0 %v2975
  %3904 = vmatprep.subr.bf16.mxu0 %v2984
  %3905 = vmatpush1.bf16.msra.mxu0 %v2983
  %3906 = vmatprep.subr.bf16.mxu0 %v2992
  %3907 = vmatpush1.bf16.msra.mxu0 %v2991
  %3908 = vmatprep.subr.bf16.mxu0 %v3000
  %3909 = vmatpush1.bf16.msra.mxu0 %v2999
  %3910 = vmatprep.subr.bf16.mxu0 %v3008
  %3911 = vmatpush1.bf16.msra.mxu0 %v3007
  %3912 = vmatprep.subr.bf16.mxu0 %v3016
  %3913 = vmatpush1.bf16.msra.mxu0 %v3015
  %3914 = vmatprep.subr.bf16.mxu0 %v3024
  %3915 = vmatpush1.bf16.msra.mxu0 %v3023
  %3916 = vmatprep.subr.bf16.mxu0 %v3032
  %3917 = vmatpush1.bf16.msra.mxu0 %v3031
  %3918 = vmatprep.subr.bf16.mxu0 %v3040
  %3919 = vmatpush1.bf16.msra.mxu0 %v3039
  %3920 = vmatprep.mubr.bf16.mxu0 %v672
  %3921 = vmatmul.mubr.bf16.gmra.mrb[0].mxu0 %v671
  %v3922 = vpop.f32.mrb[0].mxu0
  %v3923 = vadd.f32 %v3850, %v3922
  %v3924 = vpop.f32.mrb[0].mxu0
  %v3925 = vadd.f32 %v3852, %v3924
  %v3926 = vpop.f32.mrb[0].mxu0
  %v3927 = vadd.f32 %v3854, %v3926
  %v3928 = vpop.f32.mrb[0].mxu0
  %v3929 = vadd.f32 %v3856, %v3928
  %3930 = vmatprep.mubr.bf16.mxu0 %v680
  %3931 = vmatmul.mubr.bf16.gmra.mrb[0].mxu0 %v679
  %v3932 = vpop.f32.mrb[0].mxu0
  %v3933 = vadd.f32 %v3860, %v3932
  %v3934 = vpop.f32.mrb[0].mxu0
  %v3935 = vadd.f32 %v3862, %v3934
  %v3936 = vpop.f32.mrb[0].mxu0
  %v3937 = vadd.f32 %v3864, %v3936
  %v3938 = vpop.f32.mrb[0].mxu0
  %v3939 = vadd.f32 %v3866, %v3938
  %3940 = vmatprep.mubr.bf16.mxu0 %v688
  %3941 = vmatmul.mubr.bf16.gmra.mrb[0].mxu0 %v687
  %v3942 = vpop.f32.mrb[0].mxu0
  %v3943 = vadd.f32 %v3870, %v3942
  %v3944 = vpop.f32.mrb[0].mxu0
  %v3945 = vadd.f32 %v3872, %v3944
  %v3946 = vpop.f32.mrb[0].mxu0
  %v3947 = vadd.f32 %v3874, %v3946
  %v3948 = vpop.f32.mrb[0].mxu0
  %v3949 = vadd.f32 %v3876, %v3948
  %3950 = vmatprep.mubr.bf16.mxu0 %v696
  %3951 = vmatmul.mubr.bf16.gmra.mrb[0].mxu0 %v695
  %v3952 = vpop.f32.mrb[0].mxu0
  %v3953 = vadd.f32 %v3880, %v3952
  %v3954 = vpop.f32.mrb[0].mxu0
  %v3955 = vadd.f32 %v3882, %v3954
  %v3956 = vpop.f32.mrb[0].mxu0
  %v3957 = vadd.f32 %v3884, %v3956
  %v3958 = vpop.f32.mrb[0].mxu0
  %v3959 = vadd.f32 %v3886, %v3958
  %3960 = vdwg.mxu0
  %3961 = vmatprep.subr.bf16.mxu0 %v3048
  %3962 = vmatpush1.bf16.msra.mxu0 %v3047
  %3963 = vmatprep.subr.bf16.mxu0 %v3056
  %3964 = vmatpush1.bf16.msra.mxu0 %v3055
  %3965 = vmatprep.subr.bf16.mxu0 %v3064
  %3966 = vmatpush1.bf16.msra.mxu0 %v3063
  %3967 = vmatprep.subr.bf16.mxu0 %v3072
  %3968 = vmatpush1.bf16.msra.mxu0 %v3071
  %3969 = vmatprep.subr.bf16.mxu0 %v3080
  %3970 = vmatpush1.bf16.msra.mxu0 %v3079
  %3971 = vmatprep.subr.bf16.mxu0 %v3088
  %3972 = vmatpush1.bf16.msra.mxu0 %v3087
  %3973 = vmatprep.subr.bf16.mxu0 %v3096
  %3974 = vmatpush1.bf16.msra.mxu0 %v3095
  %3975 = vmatprep.subr.bf16.mxu0 %v3104
  %3976 = vmatpush1.bf16.msra.mxu0 %v3103
  %3977 = vmatprep.subr.bf16.mxu0 %v3112
  %3978 = vmatpush1.bf16.msra.mxu0 %v3111
  %3979 = vmatprep.subr.bf16.mxu0 %v3120
  %3980 = vmatpush1.bf16.msra.mxu0 %v3119
  %3981 = vmatprep.subr.bf16.mxu0 %v3128
  %3982 = vmatpush1.bf16.msra.mxu0 %v3127
  %3983 = vmatprep.subr.bf16.mxu0 %v3136
  %3984 = vmatpush1.bf16.msra.mxu0 %v3135
  %3985 = vmatprep.subr.bf16.mxu0 %v3144
  %3986 = vmatpush1.bf16.msra.mxu0 %v3143
  %3987 = vmatprep.subr.bf16.mxu0 %v3152
  %3988 = vmatpush1.bf16.msra.mxu0 %v3151
  %3989 = vmatprep.subr.bf16.mxu0 %v3160
  %3990 = vmatpush1.bf16.msra.mxu0 %v3159
  %3991 = vmatprep.subr.bf16.mxu0 %v3168
  %3992 = vmatpush1.bf16.msra.mxu0 %v3167
  %3993 = vmatprep.mubr.bf16.mxu0 %v674
  %3994 = vmatmul.mubr.bf16.gmra.mrb[0].mxu0 %v673
  %v3995 = vpop.f32.mrb[0].mxu0
  %v3996 = vadd.f32 %v3923, %v3995
  %v3997 = vpop.f32.mrb[0].mxu0
  %v3998 = vadd.f32 %v3925, %v3997
  %v3999 = vpop.f32.mrb[0].mxu0
  %v4000 = vadd.f32 %v3927, %v3999
  %v4001 = vpop.f32.mrb[0].mxu0
  %v4002 = vadd.f32 %v3929, %v4001
  %4003 = vmatprep.mubr.bf16.mxu0 %v682
  %4004 = vmatmul.mubr.bf16.gmra.mrb[0].mxu0 %v681
  %v4005 = vpop.f32.mrb[0].mxu0
  %v4006 = vadd.f32 %v3933, %v4005
  %v4007 = vpop.f32.mrb[0].mxu0
  %v4008 = vadd.f32 %v3935, %v4007
  %v4009 = vpop.f32.mrb[0].mxu0
  %v4010 = vadd.f32 %v3937, %v4009
  %v4011 = vpop.f32.mrb[0].mxu0
  %v4012 = vadd.f32 %v3939, %v4011
  %4013 = vmatprep.mubr.bf16.mxu0 %v690
  %4014 = vmatmul.mubr.bf16.gmra.mrb[0].mxu0 %v689
  %v4015 = vpop.f32.mrb[0].mxu0
  %v4016 = vadd.f32 %v3943, %v4015
  %v4017 = vpop.f32.mrb[0].mxu0
  %v4018 = vadd.f32 %v3945, %v4017
  %v4019 = vpop.f32.mrb[0].mxu0
  %v4020 = vadd.f32 %v3947, %v4019
  %v4021 = vpop.f32.mrb[0].mxu0
  %v4022 = vadd.f32 %v3949, %v4021
  %4023 = vmatprep.mubr.bf16.mxu0 %v698
  %4024 = vmatmul.mubr.bf16.gmra.mrb[0].mxu0 %v697
  %v4025 = vpop.f32.mrb[0].mxu0
  %v4026 = vadd.f32 %v3953, %v4025
  %v4027 = vpop.f32.mrb[0].mxu0
  %v4028 = vadd.f32 %v3955, %v4027
  %v4029 = vpop.f32.mrb[0].mxu0
  %v4030 = vadd.f32 %v3957, %v4029
  %v4031 = vpop.f32.mrb[0].mxu0
  %v4032 = vadd.f32 %v3959, %v4031
  %4033 = vdwg.mxu0
  %4034 = vmatprep.subr.bf16.mxu0 %v3176
  %4035 = vmatpush1.bf16.msra.mxu0 %v3175
  %4036 = vmatprep.subr.bf16.mxu0 %v3184
  %4037 = vmatpush1.bf16.msra.mxu0 %v3183
  %4038 = vmatprep.subr.bf16.mxu0 %v3192
  %4039 = vmatpush1.bf16.msra.mxu0 %v3191
  %4040 = vmatprep.subr.bf16.mxu0 %v3200
  %4041 = vmatpush1.bf16.msra.mxu0 %v3199
  %4042 = vmatprep.subr.bf16.mxu0 %v3208
  %4043 = vmatpush1.bf16.msra.mxu0 %v3207
  %4044 = vmatprep.subr.bf16.mxu0 %v3216
  %4045 = vmatpush1.bf16.msra.mxu0 %v3215
  %4046 = vmatprep.subr.bf16.mxu0 %v3224
  %4047 = vmatpush1.bf16.msra.mxu0 %v3223
  %4048 = vmatprep.subr.bf16.mxu0 %v3232
  %4049 = vmatpush1.bf16.msra.mxu0 %v3231
  %4050 = vmatprep.subr.bf16.mxu0 %v3240
  %4051 = vmatpush1.bf16.msra.mxu0 %v3239
  %4052 = vmatprep.subr.bf16.mxu0 %v3248
  %4053 = vmatpush1.bf16.msra.mxu0 %v3247
  %4054 = vmatprep.subr.bf16.mxu0 %v3256
  %4055 = vmatpush1.bf16.msra.mxu0 %v3255
  %4056 = vmatprep.subr.bf16.mxu0 %v3264
  %4057 = vmatpush1.bf16.msra.mxu0 %v3263
  %4058 = vmatprep.subr.bf16.mxu0 %v3272
  %4059 = vmatpush1.bf16.msra.mxu0 %v3271
  %4060 = vmatprep.subr.bf16.mxu0 %v3280
  %4061 = vmatpush1.bf16.msra.mxu0 %v3279
  %4062 = vmatprep.subr.bf16.mxu0 %v3288
  %4063 = vmatpush1.bf16.msra.mxu0 %v3287
  %4064 = vmatprep.subr.bf16.mxu0 %v3296
  %4065 = vmatpush1.bf16.msra.mxu0 %v3295
  %4066 = vmatprep.mubr.bf16.mxu0 %v676
  %4067 = vmatmul.mubr.bf16.gmra.mrb[0].mxu0 %v675
  %v4068 = vpop.f32.mrb[0].mxu0
  %v4069 = vadd.f32 %v3996, %v4068
  %v4070 = vpop.f32.mrb[0].mxu0
  %v4071 = vadd.f32 %v3998, %v4070
  %v4072 = vpop.f32.mrb[0].mxu0
  %v4073 = vadd.f32 %v4000, %v4072
  %v4074 = vpop.f32.mrb[0].mxu0
  %v4075 = vadd.f32 %v4002, %v4074
  %4076 = vmatprep.mubr.bf16.mxu0 %v684
  %4077 = vmatmul.mubr.bf16.gmra.mrb[0].mxu0 %v683
  %v4078 = vpop.f32.mrb[0].mxu0
  %v4079 = vadd.f32 %v4006, %v4078
  %v4080 = vpop.f32.mrb[0].mxu0
  %v4081 = vadd.f32 %v4008, %v4080
  %v4082 = vpop.f32.mrb[0].mxu0
  %v4083 = vadd.f32 %v4010, %v4082
  %v4084 = vpop.f32.mrb[0].mxu0
  %v4085 = vadd.f32 %v4012, %v4084
  %4086 = vmatprep.mubr.bf16.mxu0 %v692
  %4087 = vmatmul.mubr.bf16.gmra.mrb[0].mxu0 %v691
  %v4088 = vpop.f32.mrb[0].mxu0
  %v4089 = vadd.f32 %v4016, %v4088
  %v4090 = vpop.f32.mrb[0].mxu0
  %v4091 = vadd.f32 %v4018, %v4090
  %v4092 = vpop.f32.mrb[0].mxu0
  %v4093 = vadd.f32 %v4020, %v4092
  %v4094 = vpop.f32.mrb[0].mxu0
  %v4095 = vadd.f32 %v4022, %v4094
  %4096 = vmatprep.mubr.bf16.mxu0 %v700
  %4097 = vmatmul.mubr.bf16.gmra.mrb[0].mxu0 %v699
  %v4098 = vpop.f32.mrb[0].mxu0
  %v4099 = vadd.f32 %v4026, %v4098
  %v4100 = vpop.f32.mrb[0].mxu0
  %v4101 = vadd.f32 %v4028, %v4100
  %v4102 = vpop.f32.mrb[0].mxu0
  %v4103 = vadd.f32 %v4030, %v4102
  %v4104 = vpop.f32.mrb[0].mxu0
  %v4105 = vadd.f32 %v4032, %v4104
  %4106 = vdwg.mxu0
  %4107 = vmatprep.subr.bf16.mxu0 %v2794
  %4108 = vmatpush1.bf16.msra.mxu0 %v2793
  %4109 = vmatprep.subr.bf16.mxu0 %v2802
  %4110 = vmatpush1.bf16.msra.mxu0 %v2801
  %4111 = vmatprep.subr.bf16.mxu0 %v2810
  %4112 = vmatpush1.bf16.msra.mxu0 %v2809
  %4113 = vmatprep.subr.bf16.mxu0 %v2818
  %4114 = vmatpush1.bf16.msra.mxu0 %v2817
  %4115 = vmatprep.subr.bf16.mxu0 %v2826
  %4116 = vmatpush1.bf16.msra.mxu0 %v2825
  %4117 = vmatprep.subr.bf16.mxu0 %v2834
  %4118 = vmatpush1.bf16.msra.mxu0 %v2833
  %4119 = vmatprep.subr.bf16.mxu0 %v2842
  %4120 = vmatpush1.bf16.msra.mxu0 %v2841
  %4121 = vmatprep.subr.bf16.mxu0 %v2850
  %4122 = vmatpush1.bf16.msra.mxu0 %v2849
  %4123 = vmatprep.subr.bf16.mxu0 %v2858
  %4124 = vmatpush1.bf16.msra.mxu0 %v2857
  %4125 = vmatprep.subr.bf16.mxu0 %v2866
  %4126 = vmatpush1.bf16.msra.mxu0 %v2865
  %4127 = vmatprep.subr.bf16.mxu0 %v2874
  %4128 = vmatpush1.bf16.msra.mxu0 %v2873
  %4129 = vmatprep.subr.bf16.mxu0 %v2882
  %4130 = vmatpush1.bf16.msra.mxu0 %v2881
  %4131 = vmatprep.subr.bf16.mxu0 %v2890
  %4132 = vmatpush1.bf16.msra.mxu0 %v2889
  %4133 = vmatprep.subr.bf16.mxu0 %v2898
  %4134 = vmatpush1.bf16.msra.mxu0 %v2897
  %4135 = vmatprep.subr.bf16.mxu0 %v2906
  %4136 = vmatpush1.bf16.msra.mxu0 %v2905
  %4137 = vmatprep.subr.bf16.mxu0 %v2914
  %4138 = vmatpush1.bf16.msra.mxu0 %v2913
  %4139 = vmatprep.mubr.bf16.mxu0 %v670
  %4140 = vmatmul.mubr.bf16.gmra.mrb[0].mxu0 %v669
  %v4141 = vpop.f32.mrb[0].mxu0
  %v4142 = vadd.f32 %v1226, %v4141
  %v4143 = vpop.f32.mrb[0].mxu0
  %v4144 = vadd.f32 %v1230, %v4143
  %v4145 = vpop.f32.mrb[0].mxu0
  %v4146 = vadd.f32 %v1226, %v4145
  %v4147 = vpop.f32.mrb[0].mxu0
  %v4148 = vadd.f32 %v1230, %v4147
  %4149 = vmatprep.mubr.bf16.mxu0 %v678
  %4150 = vmatmul.mubr.bf16.gmra.mrb[0].mxu0 %v677
  %v4151 = vpop.f32.mrb[0].mxu0
  %v4152 = vadd.f32 %v1226, %v4151
  %v4153 = vpop.f32.mrb[0].mxu0
  %v4154 = vadd.f32 %v1230, %v4153
  %v4155 = vpop.f32.mrb[0].mxu0
  %v4156 = vadd.f32 %v1226, %v4155
  %v4157 = vpop.f32.mrb[0].mxu0
  %v4158 = vadd.f32 %v1230, %v4157
  %4159 = vmatprep.mubr.bf16.mxu0 %v686
  %4160 = vmatmul.mubr.bf16.gmra.mrb[0].mxu0 %v685
  %v4161 = vpop.f32.mrb[0].mxu0
  %v4162 = vadd.f32 %v1226, %v4161
  %v4163 = vpop.f32.mrb[0].mxu0
  %v4164 = vadd.f32 %v1230, %v4163
  %v4165 = vpop.f32.mrb[0].mxu0
  %v4166 = vadd.f32 %v1226, %v4165
  %v4167 = vpop.f32.mrb[0].mxu0
  %v4168 = vadd.f32 %v1230, %v4167
  %4169 = vmatprep.mubr.bf16.mxu0 %v694
  %4170 = vmatmul.mubr.bf16.gmra.mrb[0].mxu0 %v693
  %v4171 = vpop.f32.mrb[0].mxu0
  %v4172 = vadd.f32 %v1226, %v4171
  %v4173 = vpop.f32.mrb[0].mxu0
  %v4174 = vadd.f32 %v1230, %v4173
  %v4175 = vpop.f32.mrb[0].mxu0
  %v4176 = vadd.f32 %v1226, %v4175
  %v4177 = vpop.f32.mrb[0].mxu0
  %v4178 = vadd.f32 %v1230, %v4177
  %4179 = vdwg.mxu0
  %4180 = vmatprep.subr.bf16.mxu0 %v2922
  %4181 = vmatpush1.bf16.msra.mxu0 %v2921
  %4182 = vmatprep.subr.bf16.mxu0 %v2930
  %4183 = vmatpush1.bf16.msra.mxu0 %v2929
  %4184 = vmatprep.subr.bf16.mxu0 %v2938
  %4185 = vmatpush1.bf16.msra.mxu0 %v2937
  %4186 = vmatprep.subr.bf16.mxu0 %v2946
  %4187 = vmatpush1.bf16.msra.mxu0 %v2945
  %4188 = vmatprep.subr.bf16.mxu0 %v2954
  %4189 = vmatpush1.bf16.msra.mxu0 %v2953
  %4190 = vmatprep.subr.bf16.mxu0 %v2962
  %4191 = vmatpush1.bf16.msra.mxu0 %v2961
  %4192 = vmatprep.subr.bf16.mxu0 %v2970
  %4193 = vmatpush1.bf16.msra.mxu0 %v2969
  %4194 = vmatprep.subr.bf16.mxu0 %v2978
  %4195 = vmatpush1.bf16.msra.mxu0 %v2977
  %4196 = vmatprep.subr.bf16.mxu0 %v2986
  %4197 = vmatpush1.bf16.msra.mxu0 %v2985
  %4198 = vmatprep.subr.bf16.mxu0 %v2994
  %4199 = vmatpush1.bf16.msra.mxu0 %v2993
  %4200 = vmatprep.subr.bf16.mxu0 %v3002
  %4201 = vmatpush1.bf16.msra.mxu0 %v3001
  %4202 = vmatprep.subr.bf16.mxu0 %v3010
  %4203 = vmatpush1.bf16.msra.mxu0 %v3009
  %4204 = vmatprep.subr.bf16.mxu0 %v3018
  %4205 = vmatpush1.bf16.msra.mxu0 %v3017
  %4206 = vmatprep.subr.bf16.mxu0 %v3026
  %4207 = vmatpush1.bf16.msra.mxu0 %v3025
  %4208 = vmatprep.subr.bf16.mxu0 %v3034
  %4209 = vmatpush1.bf16.msra.mxu0 %v3033
  %4210 = vmatprep.subr.bf16.mxu0 %v3042
  %4211 = vmatpush1.bf16.msra.mxu0 %v3041
  %4212 = vmatprep.mubr.bf16.mxu0 %v672
  %4213 = vmatmul.mubr.bf16.gmra.mrb[0].mxu0 %v671
  %v4214 = vpop.f32.mrb[0].mxu0
  %v4215 = vadd.f32 %v4142, %v4214
  %v4216 = vpop.f32.mrb[0].mxu0
  %v4217 = vadd.f32 %v4144, %v4216
  %v4218 = vpop.f32.mrb[0].mxu0
  %v4219 = vadd.f32 %v4146, %v4218
  %v4220 = vpop.f32.mrb[0].mxu0
  %v4221 = vadd.f32 %v4148, %v4220
  %4222 = vmatprep.mubr.bf16.mxu0 %v680
  %4223 = vmatmul.mubr.bf16.gmra.mrb[0].mxu0 %v679
  %v4224 = vpop.f32.mrb[0].mxu0
  %v4225 = vadd.f32 %v4152, %v4224
  %v4226 = vpop.f32.mrb[0].mxu0
  %v4227 = vadd.f32 %v4154, %v4226
  %v4228 = vpop.f32.mrb[0].mxu0
  %v4229 = vadd.f32 %v4156, %v4228
  %v4230 = vpop.f32.mrb[0].mxu0
  %v4231 = vadd.f32 %v4158, %v4230
  %4232 = vmatprep.mubr.bf16.mxu0 %v688
  %4233 = vmatmul.mubr.bf16.gmra.mrb[0].mxu0 %v687
  %v4234 = vpop.f32.mrb[0].mxu0
  %v4235 = vadd.f32 %v4162, %v4234
  %v4236 = vpop.f32.mrb[0].mxu0
  %v4237 = vadd.f32 %v4164, %v4236
  %v4238 = vpop.f32.mrb[0].mxu0
  %v4239 = vadd.f32 %v4166, %v4238
  %v4240 = vpop.f32.mrb[0].mxu0
  %v4241 = vadd.f32 %v4168, %v4240
  %4242 = vmatprep.mubr.bf16.mxu0 %v696
  %4243 = vmatmul.mubr.bf16.gmra.mrb[0].mxu0 %v695
  %v4244 = vpop.f32.mrb[0].mxu0
  %v4245 = vadd.f32 %v4172, %v4244
  %v4246 = vpop.f32.mrb[0].mxu0
  %v4247 = vadd.f32 %v4174, %v4246
  %v4248 = vpop.f32.mrb[0].mxu0
  %v4249 = vadd.f32 %v4176, %v4248
  %v4250 = vpop.f32.mrb[0].mxu0
  %v4251 = vadd.f32 %v4178, %v4250
  %4252 = vdwg.mxu0
  %4253 = vmatprep.subr.bf16.mxu0 %v3050
  %4254 = vmatpush1.bf16.msra.mxu0 %v3049
  %4255 = vmatprep.subr.bf16.mxu0 %v3058
  %4256 = vmatpush1.bf16.msra.mxu0 %v3057
  %4257 = vmatprep.subr.bf16.mxu0 %v3066
  %4258 = vmatpush1.bf16.msra.mxu0 %v3065
  %4259 = vmatprep.subr.bf16.mxu0 %v3074
  %4260 = vmatpush1.bf16.msra.mxu0 %v3073
  %4261 = vmatprep.subr.bf16.mxu0 %v3082
  %4262 = vmatpush1.bf16.msra.mxu0 %v3081
  %4263 = vmatprep.subr.bf16.mxu0 %v3090
  %4264 = vmatpush1.bf16.msra.mxu0 %v3089
  %4265 = vmatprep.subr.bf16.mxu0 %v3098
  %4266 = vmatpush1.bf16.msra.mxu0 %v3097
  %4267 = vmatprep.subr.bf16.mxu0 %v3106
  %4268 = vmatpush1.bf16.msra.mxu0 %v3105
  %4269 = vmatprep.subr.bf16.mxu0 %v3114
  %4270 = vmatpush1.bf16.msra.mxu0 %v3113
  %4271 = vmatprep.subr.bf16.mxu0 %v3122
  %4272 = vmatpush1.bf16.msra.mxu0 %v3121
  %4273 = vmatprep.subr.bf16.mxu0 %v3130
  %4274 = vmatpush1.bf16.msra.mxu0 %v3129
  %4275 = vmatprep.subr.bf16.mxu0 %v3138
  %4276 = vmatpush1.bf16.msra.mxu0 %v3137
  %4277 = vmatprep.subr.bf16.mxu0 %v3146
  %4278 = vmatpush1.bf16.msra.mxu0 %v3145
  %4279 = vmatprep.subr.bf16.mxu0 %v3154
  %4280 = vmatpush1.bf16.msra.mxu0 %v3153
  %4281 = vmatprep.subr.bf16.mxu0 %v3162
  %4282 = vmatpush1.bf16.msra.mxu0 %v3161
  %4283 = vmatprep.subr.bf16.mxu0 %v3170
  %4284 = vmatpush1.bf16.msra.mxu0 %v3169
  %4285 = vmatprep.mubr.bf16.mxu0 %v674
  %4286 = vmatmul.mubr.bf16.gmra.mrb[0].mxu0 %v673
  %v4287 = vpop.f32.mrb[0].mxu0
  %v4288 = vadd.f32 %v4215, %v4287
  %v4289 = vpop.f32.mrb[0].mxu0
  %v4290 = vadd.f32 %v4217, %v4289
  %v4291 = vpop.f32.mrb[0].mxu0
  %v4292 = vadd.f32 %v4219, %v4291
  %v4293 = vpop.f32.mrb[0].mxu0
  %v4294 = vadd.f32 %v4221, %v4293
  %4295 = vmatprep.mubr.bf16.mxu0 %v682
  %4296 = vmatmul.mubr.bf16.gmra.mrb[0].mxu0 %v681
  %v4297 = vpop.f32.mrb[0].mxu0
  %v4298 = vadd.f32 %v4225, %v4297
  %v4299 = vpop.f32.mrb[0].mxu0
  %v4300 = vadd.f32 %v4227, %v4299
  %v4301 = vpop.f32.mrb[0].mxu0
  %v4302 = vadd.f32 %v4229, %v4301
  %v4303 = vpop.f32.mrb[0].mxu0
  %v4304 = vadd.f32 %v4231, %v4303
  %4305 = vmatprep.mubr.bf16.mxu0 %v690
  %4306 = vmatmul.mubr.bf16.gmra.mrb[0].mxu0 %v689
  %v4307 = vpop.f32.mrb[0].mxu0
  %v4308 = vadd.f32 %v4235, %v4307
  %v4309 = vpop.f32.mrb[0].mxu0
  %v4310 = vadd.f32 %v4237, %v4309
  %v4311 = vpop.f32.mrb[0].mxu0
  %v4312 = vadd.f32 %v4239, %v4311
  %v4313 = vpop.f32.mrb[0].mxu0
  %v4314 = vadd.f32 %v4241, %v4313
  %4315 = vmatprep.mubr.bf16.mxu0 %v698
  %4316 = vmatmul.mubr.bf16.gmra.mrb[0].mxu0 %v697
  %v4317 = vpop.f32.mrb[0].mxu0
  %v4318 = vadd.f32 %v4245, %v4317
  %v4319 = vpop.f32.mrb[0].mxu0
  %v4320 = vadd.f32 %v4247, %v4319
  %v4321 = vpop.f32.mrb[0].mxu0
  %v4322 = vadd.f32 %v4249, %v4321
  %v4323 = vpop.f32.mrb[0].mxu0
  %v4324 = vadd.f32 %v4251, %v4323
  %4325 = vdwg.mxu0
  %4326 = vmatprep.subr.bf16.mxu0 %v3178
  %4327 = vmatpush1.bf16.msra.mxu0 %v3177
  %4328 = vmatprep.subr.bf16.mxu0 %v3186
  %4329 = vmatpush1.bf16.msra.mxu0 %v3185
  %4330 = vmatprep.subr.bf16.mxu0 %v3194
  %4331 = vmatpush1.bf16.msra.mxu0 %v3193
  %4332 = vmatprep.subr.bf16.mxu0 %v3202
  %4333 = vmatpush1.bf16.msra.mxu0 %v3201
  %4334 = vmatprep.subr.bf16.mxu0 %v3210
  %4335 = vmatpush1.bf16.msra.mxu0 %v3209
  %4336 = vmatprep.subr.bf16.mxu0 %v3218
  %4337 = vmatpush1.bf16.msra.mxu0 %v3217
  %4338 = vmatprep.subr.bf16.mxu0 %v3226
  %4339 = vmatpush1.bf16.msra.mxu0 %v3225
  %4340 = vmatprep.subr.bf16.mxu0 %v3234
  %4341 = vmatpush1.bf16.msra.mxu0 %v3233
  %4342 = vmatprep.subr.bf16.mxu0 %v3242
  %4343 = vmatpush1.bf16.msra.mxu0 %v3241
  %4344 = vmatprep.subr.bf16.mxu0 %v3250
  %4345 = vmatpush1.bf16.msra.mxu0 %v3249
  %4346 = vmatprep.subr.bf16.mxu0 %v3258
  %4347 = vmatpush1.bf16.msra.mxu0 %v3257
  %4348 = vmatprep.subr.bf16.mxu0 %v3266
  %4349 = vmatpush1.bf16.msra.mxu0 %v3265
  %4350 = vmatprep.subr.bf16.mxu0 %v3274
  %4351 = vmatpush1.bf16.msra.mxu0 %v3273
  %4352 = vmatprep.subr.bf16.mxu0 %v3282
  %4353 = vmatpush1.bf16.msra.mxu0 %v3281
  %4354 = vmatprep.subr.bf16.mxu0 %v3290
  %4355 = vmatpush1.bf16.msra.mxu0 %v3289
  %4356 = vmatprep.subr.bf16.mxu0 %v3298
  %4357 = vmatpush1.bf16.msra.mxu0 %v3297
  %4358 = vmatprep.mubr.bf16.mxu0 %v676
  %4359 = vmatmul.mubr.bf16.gmra.mrb[0].mxu0 %v675
  %v4360 = vpop.f32.mrb[0].mxu0
  %v4361 = vadd.f32 %v4288, %v4360
  %v4362 = vpop.f32.mrb[0].mxu0
  %v4363 = vadd.f32 %v4290, %v4362
  %v4364 = vpop.f32.mrb[0].mxu0
  %v4365 = vadd.f32 %v4292, %v4364
  %v4366 = vpop.f32.mrb[0].mxu0
  %v4367 = vadd.f32 %v4294, %v4366
  %4368 = vmatprep.mubr.bf16.mxu0 %v684
  %4369 = vmatmul.mubr.bf16.gmra.mrb[0].mxu0 %v683
  %v4370 = vpop.f32.mrb[0].mxu0
  %v4371 = vadd.f32 %v4298, %v4370
  %v4372 = vpop.f32.mrb[0].mxu0
  %v4373 = vadd.f32 %v4300, %v4372
  %v4374 = vpop.f32.mrb[0].mxu0
  %v4375 = vadd.f32 %v4302, %v4374
  %v4376 = vpop.f32.mrb[0].mxu0
  %v4377 = vadd.f32 %v4304, %v4376
  %4378 = vmatprep.mubr.bf16.mxu0 %v692
  %4379 = vmatmul.mubr.bf16.gmra.mrb[0].mxu0 %v691
  %v4380 = vpop.f32.mrb[0].mxu0
  %v4381 = vadd.f32 %v4308, %v4380
  %v4382 = vpop.f32.mrb[0].mxu0
  %v4383 = vadd.f32 %v4310, %v4382
  %v4384 = vpop.f32.mrb[0].mxu0
  %v4385 = vadd.f32 %v4312, %v4384
  %v4386 = vpop.f32.mrb[0].mxu0
  %v4387 = vadd.f32 %v4314, %v4386
  %4388 = vmatprep.mubr.bf16.mxu0 %v700
  %4389 = vmatmul.mubr.bf16.gmra.mrb[0].mxu0 %v699
  %v4390 = vpop.f32.mrb[0].mxu0
  %v4391 = vadd.f32 %v4318, %v4390
  %v4392 = vpop.f32.mrb[0].mxu0
  %v4393 = vadd.f32 %v4320, %v4392
  %v4394 = vpop.f32.mrb[0].mxu0
  %v4395 = vadd.f32 %v4322, %v4394
  %v4396 = vpop.f32.mrb[0].mxu0
  %v4397 = vadd.f32 %v4324, %v4396
  %4398 = vdwg.mxu0
  %4399 = vmatprep.subr.bf16.mxu0 %v2796
  %4400 = vmatpush1.bf16.msra.mxu0 %v2795
  %4401 = vmatprep.subr.bf16.mxu0 %v2804
  %4402 = vmatpush1.bf16.msra.mxu0 %v2803
  %4403 = vmatprep.subr.bf16.mxu0 %v2812
  %4404 = vmatpush1.bf16.msra.mxu0 %v2811
  %4405 = vmatprep.subr.bf16.mxu0 %v2820
  %4406 = vmatpush1.bf16.msra.mxu0 %v2819
  %4407 = vmatprep.subr.bf16.mxu0 %v2828
  %4408 = vmatpush1.bf16.msra.mxu0 %v2827
  %4409 = vmatprep.subr.bf16.mxu0 %v2836
  %4410 = vmatpush1.bf16.msra.mxu0 %v2835
  %4411 = vmatprep.subr.bf16.mxu0 %v2844
  %4412 = vmatpush1.bf16.msra.mxu0 %v2843
  %4413 = vmatprep.subr.bf16.mxu0 %v2852
  %4414 = vmatpush1.bf16.msra.mxu0 %v2851
  %4415 = vmatprep.subr.bf16.mxu0 %v2860
  %4416 = vmatpush1.bf16.msra.mxu0 %v2859
  %4417 = vmatprep.subr.bf16.mxu0 %v2868
  %4418 = vmatpush1.bf16.msra.mxu0 %v2867
  %4419 = vmatprep.subr.bf16.mxu0 %v2876
  %4420 = vmatpush1.bf16.msra.mxu0 %v2875
  %4421 = vmatprep.subr.bf16.mxu0 %v2884
  %4422 = vmatpush1.bf16.msra.mxu0 %v2883
  %4423 = vmatprep.subr.bf16.mxu0 %v2892
  %4424 = vmatpush1.bf16.msra.mxu0 %v2891
  %4425 = vmatprep.subr.bf16.mxu0 %v2900
  %4426 = vmatpush1.bf16.msra.mxu0 %v2899
  %4427 = vmatprep.subr.bf16.mxu0 %v2908
  %4428 = vmatpush1.bf16.msra.mxu0 %v2907
  %4429 = vmatprep.subr.bf16.mxu0 %v2916
  %4430 = vmatpush1.bf16.msra.mxu0 %v2915
  %4431 = vmatprep.mubr.bf16.mxu0 %v670
  %4432 = vmatmul.mubr.bf16.gmra.mrb[0].mxu0 %v669
  %v4433 = vpop.f32.mrb[0].mxu0
  %v4434 = vadd.f32 %v1234, %v4433
  %v4435 = vpop.f32.mrb[0].mxu0
  %v4436 = vadd.f32 %v1238, %v4435
  %v4437 = vpop.f32.mrb[0].mxu0
  %v4438 = vadd.f32 %v1234, %v4437
  %v4439 = vpop.f32.mrb[0].mxu0
  %v4440 = vadd.f32 %v1238, %v4439
  %4441 = vmatprep.mubr.bf16.mxu0 %v678
  %4442 = vmatmul.mubr.bf16.gmra.mrb[0].mxu0 %v677
  %v4443 = vpop.f32.mrb[0].mxu0
  %v4444 = vadd.f32 %v1234, %v4443
  %v4445 = vpop.f32.mrb[0].mxu0
  %v4446 = vadd.f32 %v1238, %v4445
  %v4447 = vpop.f32.mrb[0].mxu0
  %v4448 = vadd.f32 %v1234, %v4447
  %v4449 = vpop.f32.mrb[0].mxu0
  %v4450 = vadd.f32 %v1238, %v4449
  %4451 = vmatprep.mubr.bf16.mxu0 %v686
  %4452 = vmatmul.mubr.bf16.gmra.mrb[0].mxu0 %v685
  %v4453 = vpop.f32.mrb[0].mxu0
  %v4454 = vadd.f32 %v1234, %v4453
  %v4455 = vpop.f32.mrb[0].mxu0
  %v4456 = vadd.f32 %v1238, %v4455
  %v4457 = vpop.f32.mrb[0].mxu0
  %v4458 = vadd.f32 %v1234, %v4457
  %v4459 = vpop.f32.mrb[0].mxu0
  %v4460 = vadd.f32 %v1238, %v4459
  %4461 = vmatprep.mubr.bf16.mxu0 %v694
  %4462 = vmatmul.mubr.bf16.gmra.mrb[0].mxu0 %v693
  %v4463 = vpop.f32.mrb[0].mxu0
  %v4464 = vadd.f32 %v1234, %v4463
  %v4465 = vpop.f32.mrb[0].mxu0
  %v4466 = vadd.f32 %v1238, %v4465
  %v4467 = vpop.f32.mrb[0].mxu0
  %v4468 = vadd.f32 %v1234, %v4467
  %v4469 = vpop.f32.mrb[0].mxu0
  %v4470 = vadd.f32 %v1238, %v4469
  %4471 = vdwg.mxu0
  %4472 = vmatprep.subr.bf16.mxu0 %v2924
  %4473 = vmatpush1.bf16.msra.mxu0 %v2923
  %4474 = vmatprep.subr.bf16.mxu0 %v2932
  %4475 = vmatpush1.bf16.msra.mxu0 %v2931
  %4476 = vmatprep.subr.bf16.mxu0 %v2940
  %4477 = vmatpush1.bf16.msra.mxu0 %v2939
  %4478 = vmatprep.subr.bf16.mxu0 %v2948
  %4479 = vmatpush1.bf16.msra.mxu0 %v2947
  %4480 = vmatprep.subr.bf16.mxu0 %v2956
  %4481 = vmatpush1.bf16.msra.mxu0 %v2955
  %4482 = vmatprep.subr.bf16.mxu0 %v2964
  %4483 = vmatpush1.bf16.msra.mxu0 %v2963
  %4484 = vmatprep.subr.bf16.mxu0 %v2972
  %4485 = vmatpush1.bf16.msra.mxu0 %v2971
  %4486 = vmatprep.subr.bf16.mxu0 %v2980
  %4487 = vmatpush1.bf16.msra.mxu0 %v2979
  %4488 = vmatprep.subr.bf16.mxu0 %v2988
  %4489 = vmatpush1.bf16.msra.mxu0 %v2987
  %4490 = vmatprep.subr.bf16.mxu0 %v2996
  %4491 = vmatpush1.bf16.msra.mxu0 %v2995
  %4492 = vmatprep.subr.bf16.mxu0 %v3004
  %4493 = vmatpush1.bf16.msra.mxu0 %v3003
  %4494 = vmatprep.subr.bf16.mxu0 %v3012
  %4495 = vmatpush1.bf16.msra.mxu0 %v3011
  %4496 = vmatprep.subr.bf16.mxu0 %v3020
  %4497 = vmatpush1.bf16.msra.mxu0 %v3019
  %4498 = vmatprep.subr.bf16.mxu0 %v3028
  %4499 = vmatpush1.bf16.msra.mxu0 %v3027
  %4500 = vmatprep.subr.bf16.mxu0 %v3036
  %4501 = vmatpush1.bf16.msra.mxu0 %v3035
  %4502 = vmatprep.subr.bf16.mxu0 %v3044
  %4503 = vmatpush1.bf16.msra.mxu0 %v3043
  %4504 = vmatprep.mubr.bf16.mxu0 %v672
  %4505 = vmatmul.mubr.bf16.gmra.mrb[0].mxu0 %v671
  %v4506 = vpop.f32.mrb[0].mxu0
  %v4507 = vadd.f32 %v4434, %v4506
  %v4508 = vpop.f32.mrb[0].mxu0
  %v4509 = vadd.f32 %v4436, %v4508
  %v4510 = vpop.f32.mrb[0].mxu0
  %v4511 = vadd.f32 %v4438, %v4510
  %v4512 = vpop.f32.mrb[0].mxu0
  %v4513 = vadd.f32 %v4440, %v4512
  %4514 = vmatprep.mubr.bf16.mxu0 %v680
  %4515 = vmatmul.mubr.bf16.gmra.mrb[0].mxu0 %v679
  %v4516 = vpop.f32.mrb[0].mxu0
  %v4517 = vadd.f32 %v4444, %v4516
  %v4518 = vpop.f32.mrb[0].mxu0
  %v4519 = vadd.f32 %v4446, %v4518
  %v4520 = vpop.f32.mrb[0].mxu0
  %v4521 = vadd.f32 %v4448, %v4520
  %v4522 = vpop.f32.mrb[0].mxu0
  %v4523 = vadd.f32 %v4450, %v4522
  %4524 = vmatprep.mubr.bf16.mxu0 %v688
  %4525 = vmatmul.mubr.bf16.gmra.mrb[0].mxu0 %v687
  %v4526 = vpop.f32.mrb[0].mxu0
  %v4527 = vadd.f32 %v4454, %v4526
  %v4528 = vpop.f32.mrb[0].mxu0
  %v4529 = vadd.f32 %v4456, %v4528
  %v4530 = vpop.f32.mrb[0].mxu0
  %v4531 = vadd.f32 %v4458, %v4530
  %v4532 = vpop.f32.mrb[0].mxu0
  %v4533 = vadd.f32 %v4460, %v4532
  %4534 = vmatprep.mubr.bf16.mxu0 %v696
  %4535 = vmatmul.mubr.bf16.gmra.mrb[0].mxu0 %v695
  %v4536 = vpop.f32.mrb[0].mxu0
  %v4537 = vadd.f32 %v4464, %v4536
  %v4538 = vpop.f32.mrb[0].mxu0
  %v4539 = vadd.f32 %v4466, %v4538
  %v4540 = vpop.f32.mrb[0].mxu0
  %v4541 = vadd.f32 %v4468, %v4540
  %v4542 = vpop.f32.mrb[0].mxu0
  %v4543 = vadd.f32 %v4470, %v4542
  %4544 = vdwg.mxu0
  %4545 = vmatprep.subr.bf16.mxu0 %v3052
  %4546 = vmatpush1.bf16.msra.mxu0 %v3051
  %4547 = vmatprep.subr.bf16.mxu0 %v3060
  %4548 = vmatpush1.bf16.msra.mxu0 %v3059
  %4549 = vmatprep.subr.bf16.mxu0 %v3068
  %4550 = vmatpush1.bf16.msra.mxu0 %v3067
  %4551 = vmatprep.subr.bf16.mxu0 %v3076
  %4552 = vmatpush1.bf16.msra.mxu0 %v3075
  %4553 = vmatprep.subr.bf16.mxu0 %v3084
  %4554 = vmatpush1.bf16.msra.mxu0 %v3083
  %4555 = vmatprep.subr.bf16.mxu0 %v3092
  %4556 = vmatpush1.bf16.msra.mxu0 %v3091
  %4557 = vmatprep.subr.bf16.mxu0 %v3100
  %4558 = vmatpush1.bf16.msra.mxu0 %v3099
  %4559 = vmatprep.subr.bf16.mxu0 %v3108
  %4560 = vmatpush1.bf16.msra.mxu0 %v3107
  %4561 = vmatprep.subr.bf16.mxu0 %v3116
  %4562 = vmatpush1.bf16.msra.mxu0 %v3115
  %4563 = vmatprep.subr.bf16.mxu0 %v3124
  %4564 = vmatpush1.bf16.msra.mxu0 %v3123
  %4565 = vmatprep.subr.bf16.mxu0 %v3132
  %4566 = vmatpush1.bf16.msra.mxu0 %v3131
  %4567 = vmatprep.subr.bf16.mxu0 %v3140
  %4568 = vmatpush1.bf16.msra.mxu0 %v3139
  %4569 = vmatprep.subr.bf16.mxu0 %v3148
  %4570 = vmatpush1.bf16.msra.mxu0 %v3147
  %4571 = vmatprep.subr.bf16.mxu0 %v3156
  %4572 = vmatpush1.bf16.msra.mxu0 %v3155
  %4573 = vmatprep.subr.bf16.mxu0 %v3164
  %4574 = vmatpush1.bf16.msra.mxu0 %v3163
  %4575 = vmatprep.subr.bf16.mxu0 %v3172
  %4576 = vmatpush1.bf16.msra.mxu0 %v3171
  %4577 = vmatprep.mubr.bf16.mxu0 %v674
  %4578 = vmatmul.mubr.bf16.gmra.mrb[0].mxu0 %v673
  %v4579 = vpop.f32.mrb[0].mxu0
  %v4580 = vadd.f32 %v4507, %v4579
  %v4581 = vpop.f32.mrb[0].mxu0
  %v4582 = vadd.f32 %v4509, %v4581
  %v4583 = vpop.f32.mrb[0].mxu0
  %v4584 = vadd.f32 %v4511, %v4583
  %v4585 = vpop.f32.mrb[0].mxu0
  %v4586 = vadd.f32 %v4513, %v4585
  %4587 = vmatprep.mubr.bf16.mxu0 %v682
  %4588 = vmatmul.mubr.bf16.gmra.mrb[0].mxu0 %v681
  %v4589 = vpop.f32.mrb[0].mxu0
  %v4590 = vadd.f32 %v4517, %v4589
  %v4591 = vpop.f32.mrb[0].mxu0
  %v4592 = vadd.f32 %v4519, %v4591
  %v4593 = vpop.f32.mrb[0].mxu0
  %v4594 = vadd.f32 %v4521, %v4593
  %v4595 = vpop.f32.mrb[0].mxu0
  %v4596 = vadd.f32 %v4523, %v4595
  %4597 = vmatprep.mubr.bf16.mxu0 %v690
  %4598 = vmatmul.mubr.bf16.gmra.mrb[0].mxu0 %v689
  %v4599 = vpop.f32.mrb[0].mxu0
  %v4600 = vadd.f32 %v4527, %v4599
  %v4601 = vpop.f32.mrb[0].mxu0
  %v4602 = vadd.f32 %v4529, %v4601
  %v4603 = vpop.f32.mrb[0].mxu0
  %v4604 = vadd.f32 %v4531, %v4603
  %v4605 = vpop.f32.mrb[0].mxu0
  %v4606 = vadd.f32 %v4533, %v4605
  %4607 = vmatprep.mubr.bf16.mxu0 %v698
  %4608 = vmatmul.mubr.bf16.gmra.mrb[0].mxu0 %v697
  %v4609 = vpop.f32.mrb[0].mxu0
  %v4610 = vadd.f32 %v4537, %v4609
  %v4611 = vpop.f32.mrb[0].mxu0
  %v4612 = vadd.f32 %v4539, %v4611
  %v4613 = vpop.f32.mrb[0].mxu0
  %v4614 = vadd.f32 %v4541, %v4613
  %v4615 = vpop.f32.mrb[0].mxu0
  %v4616 = vadd.f32 %v4543, %v4615
  %4617 = vdwg.mxu0
  %4618 = vmatprep.subr.bf16.mxu0 %v3180
  %4619 = vmatpush1.bf16.msra.mxu0 %v3179
  %4620 = vmatprep.subr.bf16.mxu0 %v3188
  %4621 = vmatpush1.bf16.msra.mxu0 %v3187
  %4622 = vmatprep.subr.bf16.mxu0 %v3196
  %4623 = vmatpush1.bf16.msra.mxu0 %v3195
  %4624 = vmatprep.subr.bf16.mxu0 %v3204
  %4625 = vmatpush1.bf16.msra.mxu0 %v3203
  %4626 = vmatprep.subr.bf16.mxu0 %v3212
  %4627 = vmatpush1.bf16.msra.mxu0 %v3211
  %4628 = vmatprep.subr.bf16.mxu0 %v3220
  %4629 = vmatpush1.bf16.msra.mxu0 %v3219
  %4630 = vmatprep.subr.bf16.mxu0 %v3228
  %4631 = vmatpush1.bf16.msra.mxu0 %v3227
  %4632 = vmatprep.subr.bf16.mxu0 %v3236
  %4633 = vmatpush1.bf16.msra.mxu0 %v3235
  %4634 = vmatprep.subr.bf16.mxu0 %v3244
  %4635 = vmatpush1.bf16.msra.mxu0 %v3243
  %4636 = vmatprep.subr.bf16.mxu0 %v3252
  %4637 = vmatpush1.bf16.msra.mxu0 %v3251
  %4638 = vmatprep.subr.bf16.mxu0 %v3260
  %4639 = vmatpush1.bf16.msra.mxu0 %v3259
  %4640 = vmatprep.subr.bf16.mxu0 %v3268
  %4641 = vmatpush1.bf16.msra.mxu0 %v3267
  %4642 = vmatprep.subr.bf16.mxu0 %v3276
  %4643 = vmatpush1.bf16.msra.mxu0 %v3275
  %4644 = vmatprep.subr.bf16.mxu0 %v3284
  %4645 = vmatpush1.bf16.msra.mxu0 %v3283
  %4646 = vmatprep.subr.bf16.mxu0 %v3292
  %4647 = vmatpush1.bf16.msra.mxu0 %v3291
  %4648 = vmatprep.subr.bf16.mxu0 %v3300
  %4649 = vmatpush1.bf16.msra.mxu0 %v3299
  %4650 = vmatprep.mubr.bf16.mxu0 %v676
  %4651 = vmatmul.mubr.bf16.gmra.mrb[0].mxu0 %v675
  %v4652 = vpop.f32.mrb[0].mxu0
  %v4653 = vadd.f32 %v4580, %v4652
  %v4654 = vpop.f32.mrb[0].mxu0
  %v4655 = vadd.f32 %v4582, %v4654
  %v4656 = vpop.f32.mrb[0].mxu0
  %v4657 = vadd.f32 %v4584, %v4656
  %v4658 = vpop.f32.mrb[0].mxu0
  %v4659 = vadd.f32 %v4586, %v4658
  %4660 = vmatprep.mubr.bf16.mxu0 %v684
  %4661 = vmatmul.mubr.bf16.gmra.mrb[0].mxu0 %v683
  %v4662 = vpop.f32.mrb[0].mxu0
  %v4663 = vadd.f32 %v4590, %v4662
  %v4664 = vpop.f32.mrb[0].mxu0
  %v4665 = vadd.f32 %v4592, %v4664
  %v4666 = vpop.f32.mrb[0].mxu0
  %v4667 = vadd.f32 %v4594, %v4666
  %v4668 = vpop.f32.mrb[0].mxu0
  %v4669 = vadd.f32 %v4596, %v4668
  %4670 = vmatprep.mubr.bf16.mxu0 %v692
  %4671 = vmatmul.mubr.bf16.gmra.mrb[0].mxu0 %v691
  %v4672 = vpop.f32.mrb[0].mxu0
  %v4673 = vadd.f32 %v4600, %v4672
  %v4674 = vpop.f32.mrb[0].mxu0
  %v4675 = vadd.f32 %v4602, %v4674
  %v4676 = vpop.f32.mrb[0].mxu0
  %v4677 = vadd.f32 %v4604, %v4676
  %v4678 = vpop.f32.mrb[0].mxu0
  %v4679 = vadd.f32 %v4606, %v4678
  %4680 = vmatprep.mubr.bf16.mxu0 %v700
  %4681 = vmatmul.mubr.bf16.gmra.mrb[0].mxu0 %v699
  %v4682 = vpop.f32.mrb[0].mxu0
  %v4683 = vadd.f32 %v4610, %v4682
  %v4684 = vpop.f32.mrb[0].mxu0
  %v4685 = vadd.f32 %v4612, %v4684
  %v4686 = vpop.f32.mrb[0].mxu0
  %v4687 = vadd.f32 %v4614, %v4686
  %v4688 = vpop.f32.mrb[0].mxu0
  %v4689 = vadd.f32 %v4616, %v4688
  %4690 = vdwg.mxu0
  %4691 = vmatprep.subr.bf16.mxu0 %v2798
  %4692 = vmatpush1.bf16.msra.mxu0 %v2797
  %4693 = vmatprep.subr.bf16.mxu0 %v2806
  %4694 = vmatpush1.bf16.msra.mxu0 %v2805
  %4695 = vmatprep.subr.bf16.mxu0 %v2814
  %4696 = vmatpush1.bf16.msra.mxu0 %v2813
  %4697 = vmatprep.subr.bf16.mxu0 %v2822
  %4698 = vmatpush1.bf16.msra.mxu0 %v2821
  %4699 = vmatprep.subr.bf16.mxu0 %v2830
  %4700 = vmatpush1.bf16.msra.mxu0 %v2829
  %4701 = vmatprep.subr.bf16.mxu0 %v2838
  %4702 = vmatpush1.bf16.msra.mxu0 %v2837
  %4703 = vmatprep.subr.bf16.mxu0 %v2846
  %4704 = vmatpush1.bf16.msra.mxu0 %v2845
  %4705 = vmatprep.subr.bf16.mxu0 %v2854
  %4706 = vmatpush1.bf16.msra.mxu0 %v2853
  %4707 = vmatprep.subr.bf16.mxu0 %v2862
  %4708 = vmatpush1.bf16.msra.mxu0 %v2861
  %4709 = vmatprep.subr.bf16.mxu0 %v2870
  %4710 = vmatpush1.bf16.msra.mxu0 %v2869
  %4711 = vmatprep.subr.bf16.mxu0 %v2878
  %4712 = vmatpush1.bf16.msra.mxu0 %v2877
  %4713 = vmatprep.subr.bf16.mxu0 %v2886
  %4714 = vmatpush1.bf16.msra.mxu0 %v2885
  %4715 = vmatprep.subr.bf16.mxu0 %v2894
  %4716 = vmatpush1.bf16.msra.mxu0 %v2893
  %4717 = vmatprep.subr.bf16.mxu0 %v2902
  %4718 = vmatpush1.bf16.msra.mxu0 %v2901
  %4719 = vmatprep.subr.bf16.mxu0 %v2910
  %4720 = vmatpush1.bf16.msra.mxu0 %v2909
  %4721 = vmatprep.subr.bf16.mxu0 %v2918
  %4722 = vmatpush1.bf16.msra.mxu0 %v2917
  %4723 = vmatprep.mubr.bf16.mxu0 %v670
  %4724 = vmatmul.mubr.bf16.gmra.mrb[0].mxu0 %v669
  %v4725 = vpop.f32.mrb[0].mxu0
  %v4726 = vadd.f32 %v1242, %v4725
  %v4727 = vpop.f32.mrb[0].mxu0
  %v4728 = vadd.f32 %v1246, %v4727
  %v4729 = vpop.f32.mrb[0].mxu0
  %v4730 = vadd.f32 %v1242, %v4729
  %v4731 = vpop.f32.mrb[0].mxu0
  %v4732 = vadd.f32 %v1246, %v4731
  %4733 = vmatprep.mubr.bf16.mxu0 %v678
  %4734 = vmatmul.mubr.bf16.gmra.mrb[0].mxu0 %v677
  %v4735 = vpop.f32.mrb[0].mxu0
  %v4736 = vadd.f32 %v1242, %v4735
  %v4737 = vpop.f32.mrb[0].mxu0
  %v4738 = vadd.f32 %v1246, %v4737
  %v4739 = vpop.f32.mrb[0].mxu0
  %v4740 = vadd.f32 %v1242, %v4739
  %v4741 = vpop.f32.mrb[0].mxu0
  %v4742 = vadd.f32 %v1246, %v4741
  %4743 = vmatprep.mubr.bf16.mxu0 %v686
  %4744 = vmatmul.mubr.bf16.gmra.mrb[0].mxu0 %v685
  %v4745 = vpop.f32.mrb[0].mxu0
  %v4746 = vadd.f32 %v1242, %v4745
  %v4747 = vpop.f32.mrb[0].mxu0
  %v4748 = vadd.f32 %v1246, %v4747
  %v4749 = vpop.f32.mrb[0].mxu0
  %v4750 = vadd.f32 %v1242, %v4749
  %v4751 = vpop.f32.mrb[0].mxu0
  %v4752 = vadd.f32 %v1246, %v4751
  %4753 = vmatprep.mubr.bf16.mxu0 %v694
  %4754 = vmatmul.mubr.bf16.gmra.mrb[0].mxu0 %v693
  %v4755 = vpop.f32.mrb[0].mxu0
  %v4756 = vadd.f32 %v1242, %v4755
  %v4757 = vpop.f32.mrb[0].mxu0
  %v4758 = vadd.f32 %v1246, %v4757
  %v4759 = vpop.f32.mrb[0].mxu0
  %v4760 = vadd.f32 %v1242, %v4759
  %v4761 = vpop.f32.mrb[0].mxu0
  %v4762 = vadd.f32 %v1246, %v4761
  %4763 = vdwg.mxu0
  %4764 = vmatprep.subr.bf16.mxu0 %v2926
  %4765 = vmatpush1.bf16.msra.mxu0 %v2925
  %4766 = vmatprep.subr.bf16.mxu0 %v2934
  %4767 = vmatpush1.bf16.msra.mxu0 %v2933
  %4768 = vmatprep.subr.bf16.mxu0 %v2942
  %4769 = vmatpush1.bf16.msra.mxu0 %v2941
  %4770 = vmatprep.subr.bf16.mxu0 %v2950
  %4771 = vmatpush1.bf16.msra.mxu0 %v2949
  %4772 = vmatprep.subr.bf16.mxu0 %v2958
  %4773 = vmatpush1.bf16.msra.mxu0 %v2957
  %4774 = vmatprep.subr.bf16.mxu0 %v2966
  %4775 = vmatpush1.bf16.msra.mxu0 %v2965
  %4776 = vmatprep.subr.bf16.mxu0 %v2974
  %4777 = vmatpush1.bf16.msra.mxu0 %v2973
  %4778 = vmatprep.subr.bf16.mxu0 %v2982
  %4779 = vmatpush1.bf16.msra.mxu0 %v2981
  %4780 = vmatprep.subr.bf16.mxu0 %v2990
  %4781 = vmatpush1.bf16.msra.mxu0 %v2989
  %4782 = vmatprep.subr.bf16.mxu0 %v2998
  %4783 = vmatpush1.bf16.msra.mxu0 %v2997
  %4784 = vmatprep.subr.bf16.mxu0 %v3006
  %4785 = vmatpush1.bf16.msra.mxu0 %v3005
  %4786 = vmatprep.subr.bf16.mxu0 %v3014
  %4787 = vmatpush1.bf16.msra.mxu0 %v3013
  %4788 = vmatprep.subr.bf16.mxu0 %v3022
  %4789 = vmatpush1.bf16.msra.mxu0 %v3021
  %4790 = vmatprep.subr.bf16.mxu0 %v3030
  %4791 = vmatpush1.bf16.msra.mxu0 %v3029
  %4792 = vmatprep.subr.bf16.mxu0 %v3038
  %4793 = vmatpush1.bf16.msra.mxu0 %v3037
  %4794 = vmatprep.subr.bf16.mxu0 %v3046
  %4795 = vmatpush1.bf16.msra.mxu0 %v3045
  %4796 = vmatprep.mubr.bf16.mxu0 %v672
  %4797 = vmatmul.mubr.bf16.gmra.mrb[0].mxu0 %v671
  %v4798 = vpop.f32.mrb[0].mxu0
  %v4799 = vadd.f32 %v4726, %v4798
  %v4800 = vpop.f32.mrb[0].mxu0
  %v4801 = vadd.f32 %v4728, %v4800
  %v4802 = vpop.f32.mrb[0].mxu0
  %v4803 = vadd.f32 %v4730, %v4802
  %v4804 = vpop.f32.mrb[0].mxu0
  %v4805 = vadd.f32 %v4732, %v4804
  %4806 = vmatprep.mubr.bf16.mxu0 %v680
  %4807 = vmatmul.mubr.bf16.gmra.mrb[0].mxu0 %v679
  %v4808 = vpop.f32.mrb[0].mxu0
  %v4809 = vadd.f32 %v4736, %v4808
  %v4810 = vpop.f32.mrb[0].mxu0
  %v4811 = vadd.f32 %v4738, %v4810
  %v4812 = vpop.f32.mrb[0].mxu0
  %v4813 = vadd.f32 %v4740, %v4812
  %v4814 = vpop.f32.mrb[0].mxu0
  %v4815 = vadd.f32 %v4742, %v4814
  %4816 = vmatprep.mubr.bf16.mxu0 %v688
  %4817 = vmatmul.mubr.bf16.gmra.mrb[0].mxu0 %v687
  %v4818 = vpop.f32.mrb[0].mxu0
  %v4819 = vadd.f32 %v4746, %v4818
  %v4820 = vpop.f32.mrb[0].mxu0
  %v4821 = vadd.f32 %v4748, %v4820
  %v4822 = vpop.f32.mrb[0].mxu0
  %v4823 = vadd.f32 %v4750, %v4822
  %v4824 = vpop.f32.mrb[0].mxu0
  %v4825 = vadd.f32 %v4752, %v4824
  %4826 = vmatprep.mubr.bf16.mxu0 %v696
  %4827 = vmatmul.mubr.bf16.gmra.mrb[0].mxu0 %v695
  %v4828 = vpop.f32.mrb[0].mxu0
  %v4829 = vadd.f32 %v4756, %v4828
  %v4830 = vpop.f32.mrb[0].mxu0
  %v4831 = vadd.f32 %v4758, %v4830
  %v4832 = vpop.f32.mrb[0].mxu0
  %v4833 = vadd.f32 %v4760, %v4832
  %v4834 = vpop.f32.mrb[0].mxu0
  %v4835 = vadd.f32 %v4762, %v4834
  %4836 = vdwg.mxu0
  %4837 = vmatprep.subr.bf16.mxu0 %v3054
  %4838 = vmatpush1.bf16.msra.mxu0 %v3053
  %4839 = vmatprep.subr.bf16.mxu0 %v3062
  %4840 = vmatpush1.bf16.msra.mxu0 %v3061
  %4841 = vmatprep.subr.bf16.mxu0 %v3070
  %4842 = vmatpush1.bf16.msra.mxu0 %v3069
  %4843 = vmatprep.subr.bf16.mxu0 %v3078
  %4844 = vmatpush1.bf16.msra.mxu0 %v3077
  %4845 = vmatprep.subr.bf16.mxu0 %v3086
  %4846 = vmatpush1.bf16.msra.mxu0 %v3085
  %4847 = vmatprep.subr.bf16.mxu0 %v3094
  %4848 = vmatpush1.bf16.msra.mxu0 %v3093
  %4849 = vmatprep.subr.bf16.mxu0 %v3102
  %4850 = vmatpush1.bf16.msra.mxu0 %v3101
  %4851 = vmatprep.subr.bf16.mxu0 %v3110
  %4852 = vmatpush1.bf16.msra.mxu0 %v3109
  %4853 = vmatprep.subr.bf16.mxu0 %v3118
  %4854 = vmatpush1.bf16.msra.mxu0 %v3117
  %4855 = vmatprep.subr.bf16.mxu0 %v3126
  %4856 = vmatpush1.bf16.msra.mxu0 %v3125
  %4857 = vmatprep.subr.bf16.mxu0 %v3134
  %4858 = vmatpush1.bf16.msra.mxu0 %v3133
  %4859 = vmatprep.subr.bf16.mxu0 %v3142
  %4860 = vmatpush1.bf16.msra.mxu0 %v3141
  %4861 = vmatprep.subr.bf16.mxu0 %v3150
  %4862 = vmatpush1.bf16.msra.mxu0 %v3149
  %4863 = vmatprep.subr.bf16.mxu0 %v3158
  %4864 = vmatpush1.bf16.msra.mxu0 %v3157
  %4865 = vmatprep.subr.bf16.mxu0 %v3166
  %4866 = vmatpush1.bf16.msra.mxu0 %v3165
  %4867 = vmatprep.subr.bf16.mxu0 %v3174
  %4868 = vmatpush1.bf16.msra.mxu0 %v3173
  %4869 = vmatprep.mubr.bf16.mxu0 %v674
  %4870 = vmatmul.mubr.bf16.gmra.mrb[0].mxu0 %v673
  %v4871 = vpop.f32.mrb[0].mxu0
  %v4872 = vadd.f32 %v4799, %v4871
  %v4873 = vpop.f32.mrb[0].mxu0
  %v4874 = vadd.f32 %v4801, %v4873
  %v4875 = vpop.f32.mrb[0].mxu0
  %v4876 = vadd.f32 %v4803, %v4875
  %v4877 = vpop.f32.mrb[0].mxu0
  %v4878 = vadd.f32 %v4805, %v4877
  %4879 = vmatprep.mubr.bf16.mxu0 %v682
  %4880 = vmatmul.mubr.bf16.gmra.mrb[0].mxu0 %v681
  %v4881 = vpop.f32.mrb[0].mxu0
  %v4882 = vadd.f32 %v4809, %v4881
  %v4883 = vpop.f32.mrb[0].mxu0
  %v4884 = vadd.f32 %v4811, %v4883
  %v4885 = vpop.f32.mrb[0].mxu0
  %v4886 = vadd.f32 %v4813, %v4885
  %v4887 = vpop.f32.mrb[0].mxu0
  %v4888 = vadd.f32 %v4815, %v4887
  %4889 = vmatprep.mubr.bf16.mxu0 %v690
  %4890 = vmatmul.mubr.bf16.gmra.mrb[0].mxu0 %v689
  %v4891 = vpop.f32.mrb[0].mxu0
  %v4892 = vadd.f32 %v4819, %v4891
  %v4893 = vpop.f32.mrb[0].mxu0
  %v4894 = vadd.f32 %v4821, %v4893
  %v4895 = vpop.f32.mrb[0].mxu0
  %v4896 = vadd.f32 %v4823, %v4895
  %v4897 = vpop.f32.mrb[0].mxu0
  %v4898 = vadd.f32 %v4825, %v4897
  %4899 = vmatprep.mubr.bf16.mxu0 %v698
  %4900 = vmatmul.mubr.bf16.gmra.mrb[0].mxu0 %v697
  %v4901 = vpop.f32.mrb[0].mxu0
  %v4902 = vadd.f32 %v4829, %v4901
  %v4903 = vpop.f32.mrb[0].mxu0
  %v4904 = vadd.f32 %v4831, %v4903
  %v4905 = vpop.f32.mrb[0].mxu0
  %v4906 = vadd.f32 %v4833, %v4905
  %v4907 = vpop.f32.mrb[0].mxu0
  %v4908 = vadd.f32 %v4835, %v4907
  %4909 = vdwg.mxu0
  %4910 = vmatprep.subr.bf16.mxu0 %v3182
  %4911 = vmatpush1.bf16.msra.mxu0 %v3181
  %4912 = vmatprep.subr.bf16.mxu0 %v3190
  %4913 = vmatpush1.bf16.msra.mxu0 %v3189
  %4914 = vmatprep.subr.bf16.mxu0 %v3198
  %4915 = vmatpush1.bf16.msra.mxu0 %v3197
  %4916 = vmatprep.subr.bf16.mxu0 %v3206
  %4917 = vmatpush1.bf16.msra.mxu0 %v3205
  %4918 = vmatprep.subr.bf16.mxu0 %v3214
  %4919 = vmatpush1.bf16.msra.mxu0 %v3213
  %4920 = vmatprep.subr.bf16.mxu0 %v3222
  %4921 = vmatpush1.bf16.msra.mxu0 %v3221
  %4922 = vmatprep.subr.bf16.mxu0 %v3230
  %4923 = vmatpush1.bf16.msra.mxu0 %v3229
  %4924 = vmatprep.subr.bf16.mxu0 %v3238
  %4925 = vmatpush1.bf16.msra.mxu0 %v3237
  %4926 = vmatprep.subr.bf16.mxu0 %v3246
  %4927 = vmatpush1.bf16.msra.mxu0 %v3245
  %4928 = vmatprep.subr.bf16.mxu0 %v3254
  %4929 = vmatpush1.bf16.msra.mxu0 %v3253
  %4930 = vmatprep.subr.bf16.mxu0 %v3262
  %4931 = vmatpush1.bf16.msra.mxu0 %v3261
  %4932 = vmatprep.subr.bf16.mxu0 %v3270
  %4933 = vmatpush1.bf16.msra.mxu0 %v3269
  %4934 = vmatprep.subr.bf16.mxu0 %v3278
  %4935 = vmatpush1.bf16.msra.mxu0 %v3277
  %4936 = vmatprep.subr.bf16.mxu0 %v3286
  %4937 = vmatpush1.bf16.msra.mxu0 %v3285
  %4938 = vmatprep.subr.bf16.mxu0 %v3294
  %4939 = vmatpush1.bf16.msra.mxu0 %v3293
  %4940 = vmatprep.subr.bf16.mxu0 %v3302
  %4941 = vmatpush1.bf16.msra.mxu0 %v3301
  %4942 = vmatprep.mubr.bf16.mxu0 %v676
  %4943 = vmatmul.mubr.bf16.gmra.mrb[0].mxu0 %v675
  %v4944 = vpop.f32.mrb[0].mxu0
  %v4945 = vadd.f32 %v4872, %v4944
  %v4946 = vpop.f32.mrb[0].mxu0
  %v4947 = vadd.f32 %v4874, %v4946
  %v4948 = vpop.f32.mrb[0].mxu0
  %v4949 = vadd.f32 %v4876, %v4948
  %v4950 = vpop.f32.mrb[0].mxu0
  %v4951 = vadd.f32 %v4878, %v4950
  %4952 = vmatprep.mubr.bf16.mxu0 %v684
  %4953 = vmatmul.mubr.bf16.gmra.mrb[0].mxu0 %v683
  %v4954 = vpop.f32.mrb[0].mxu0
  %v4955 = vadd.f32 %v4882, %v4954
  %v4956 = vpop.f32.mrb[0].mxu0
  %v4957 = vadd.f32 %v4884, %v4956
  %v4958 = vpop.f32.mrb[0].mxu0
  %v4959 = vadd.f32 %v4886, %v4958
  %v4960 = vpop.f32.mrb[0].mxu0
  %v4961 = vadd.f32 %v4888, %v4960
  %4962 = vmatprep.mubr.bf16.mxu0 %v692
  %4963 = vmatmul.mubr.bf16.gmra.mrb[0].mxu0 %v691
  %v4964 = vpop.f32.mrb[0].mxu0
  %v4965 = vadd.f32 %v4892, %v4964
  %v4966 = vpop.f32.mrb[0].mxu0
  %v4967 = vadd.f32 %v4894, %v4966
  %v4968 = vpop.f32.mrb[0].mxu0
  %v4969 = vadd.f32 %v4896, %v4968
  %v4970 = vpop.f32.mrb[0].mxu0
  %v4971 = vadd.f32 %v4898, %v4970
  %4972 = vmatprep.mubr.bf16.mxu0 %v700
  %4973 = vmatmul.mubr.bf16.gmra.mrb[0].mxu0 %v699
  %v4974 = vpop.f32.mrb[0].mxu0
  %v4975 = vadd.f32 %v4902, %v4974
  %v4976 = vpop.f32.mrb[0].mxu0
  %v4977 = vadd.f32 %v4904, %v4976
  %v4978 = vpop.f32.mrb[0].mxu0
  %v4979 = vadd.f32 %v4906, %v4978
  %v4980 = vpop.f32.mrb[0].mxu0
  %v4981 = vadd.f32 %v4908, %v4980
  %4982 = vdwg.mxu0
  %v4983 = vmax.f32 %v4069, 0.0
  %v4984 = vmax.f32 %v4071, 0.0
  %v4985 = vmax.f32 %v4361, 0.0
  %v4986 = vmax.f32 %v4363, 0.0
  %v4987 = vmax.f32 %v4653, 0.0
  %v4988 = vmax.f32 %v4655, 0.0
  %v4989 = vmax.f32 %v4945, 0.0
  %v4990 = vmax.f32 %v4947, 0.0
  %v4991 = vmax.f32 %v4073, 0.0
  %v4992 = vmax.f32 %v4075, 0.0
  %v4993 = vmax.f32 %v4365, 0.0
  %v4994 = vmax.f32 %v4367, 0.0
  %v4995 = vmax.f32 %v4657, 0.0
  %v4996 = vmax.f32 %v4659, 0.0
  %v4997 = vmax.f32 %v4949, 0.0
  %v4998 = vmax.f32 %v4951, 0.0
  %v4999 = vmax.f32 %v4079, 0.0
  %v5000 = vmax.f32 %v4081, 0.0
  %v5001 = vmax.f32 %v4371, 0.0
  %v5002 = vmax.f32 %v4373, 0.0
  %v5003 = vmax.f32 %v4663, 0.0
  %v5004 = vmax.f32 %v4665, 0.0
  %v5005 = vmax.f32 %v4955, 0.0
  %v5006 = vmax.f32 %v4957, 0.0
  %v5007 = vmax.f32 %v4083, 0.0
  %v5008 = vmax.f32 %v4085, 0.0
  %v5009 = vmax.f32 %v4375, 0.0
  %v5010 = vmax.f32 %v4377, 0.0
  %v5011 = vmax.f32 %v4667, 0.0
  %v5012 = vmax.f32 %v4669, 0.0
  %v5013 = vmax.f32 %v4959, 0.0
  %v5014 = vmax.f32 %v4961, 0.0
  %v5015 = vmax.f32 %v4089, 0.0
  %v5016 = vmax.f32 %v4091, 0.0
  %v5017 = vmax.f32 %v4381, 0.0
  %v5018 = vmax.f32 %v4383, 0.0
  %v5019 = vmax.f32 %v4673, 0.0
  %v5020 = vmax.f32 %v4675, 0.0
  %v5021 = vmax.f32 %v4965, 0.0
  %v5022 = vmax.f32 %v4967, 0.0
  %v5023 = vmax.f32 %v4093, 0.0
  %v5024 = vmax.f32 %v4095, 0.0
  %v5025 = vmax.f32 %v4385, 0.0
  %v5026 = vmax.f32 %v4387, 0.0
  %v5027 = vmax.f32 %v4677, 0.0
  %v5028 = vmax.f32 %v4679, 0.0
  %v5029 = vmax.f32 %v4969, 0.0
  %v5030 = vmax.f32 %v4971, 0.0
  %v5031 = vmax.f32 %v4099, 0.0
  %v5032 = vmax.f32 %v4101, 0.0
  %v5033 = vmax.f32 %v4391, 0.0
  %v5034 = vmax.f32 %v4393, 0.0
  %v5035 = vmax.f32 %v4683, 0.0
  %v5036 = vmax.f32 %v4685, 0.0
  %v5037 = vmax.f32 %v4975, 0.0
  %v5038 = vmax.f32 %v4977, 0.0
  %v5039 = vmax.f32 %v4103, 0.0
  %v5040 = vmax.f32 %v4105, 0.0
  %v5041 = vmax.f32 %v4395, 0.0
  %v5042 = vmax.f32 %v4397, 0.0
  %v5043 = vmax.f32 %v4687, 0.0
  %v5044 = vmax.f32 %v4689, 0.0
  %v5045 = vmax.f32 %v4979, 0.0
  %v5046 = vmax.f32 %v4981, 0.0
  %v5047 = vpack.c.bf16 %v4991, %v4983
  %v5048 = vpack.c.bf16 %v4992, %v4984
  %v5049 = vpack.c.bf16 %v4993, %v4985
  %v5050 = vpack.c.bf16 %v4994, %v4986
  %v5051 = vpack.c.bf16 %v4995, %v4987
  %v5052 = vpack.c.bf16 %v4996, %v4988
  %v5053 = vpack.c.bf16 %v4997, %v4989
  %v5054 = vpack.c.bf16 %v4998, %v4990
  %v5055 = vpack.c.bf16 %v5007, %v4999
  %v5056 = vpack.c.bf16 %v5008, %v5000
  %v5057 = vpack.c.bf16 %v5009, %v5001
  %v5058 = vpack.c.bf16 %v5010, %v5002
  %v5059 = vpack.c.bf16 %v5011, %v5003
  %v5060 = vpack.c.bf16 %v5012, %v5004
  %v5061 = vpack.c.bf16 %v5013, %v5005
  %v5062 = vpack.c.bf16 %v5014, %v5006
  %v5063 = vpack.c.bf16 %v5023, %v5015
  %v5064 = vpack.c.bf16 %v5024, %v5016
  %v5065 = vpack.c.bf16 %v5025, %v5017
  %v5066 = vpack.c.bf16 %v5026, %v5018
  %v5067 = vpack.c.bf16 %v5027, %v5019
  %v5068 = vpack.c.bf16 %v5028, %v5020
  %v5069 = vpack.c.bf16 %v5029, %v5021
  %v5070 = vpack.c.bf16 %v5030, %v5022
  %v5071 = vpack.c.bf16 %v5039, %v5031
  %v5072 = vpack.c.bf16 %v5040, %v5032
  %v5073 = vpack.c.bf16 %v5041, %v5033
  %v5074 = vpack.c.bf16 %v5042, %v5034
  %v5075 = vpack.c.bf16 %v5043, %v5035
  %v5076 = vpack.c.bf16 %v5044, %v5036
  %v5077 = vpack.c.bf16 %v5045, %v5037
  %v5078 = vpack.c.bf16 %v5046, %v5038
  %v5079 = vld [vmem:[%s4] sm:$0xff]
  %v5080 = vld [vmem:[%s4 + $0x8] sm:$0xff]
  %v5081 = vld [vmem:[%s4 + $0x10] sm:$0xff]
  %v5082 = vld [vmem:[%s4 + $0x18] sm:$0xff]
  %v5083 = vld [vmem:[%s4 + $0x20] sm:$0xff]
  %v5084 = vld [vmem:[%s4 + $0x28] sm:$0xff]
  %v5085 = vld [vmem:[%s4 + $0x30] sm:$0xff]
  %v5086 = vld [vmem:[%s4 + $0x38] sm:$0xff]
  %v5087 = vld [vmem:[%s4 + $0x40] sm:$0xff]
  %v5088 = vld [vmem:[%s4 + $0x48] sm:$0xff]
  %v5089 = vld [vmem:[%s4 + $0x50] sm:$0xff]
  %v5090 = vld [vmem:[%s4 + $0x58] sm:$0xff]
  %v5091 = vld [vmem:[%s4 + $0x60] sm:$0xff]
  %v5092 = vld [vmem:[%s4 + $0x68] sm:$0xff]
  %v5093 = vld [vmem:[%s4 + $0x70] sm:$0xff]
  %v5094 = vld [vmem:[%s4 + $0x78] sm:$0xff]
  %v5095 = vld [vmem:[%s4 + $0x80] sm:$0xff]
  %v5096 = vld [vmem:[%s4 + $0x88] sm:$0xff]
  %v5097 = vld [vmem:[%s4 + $0x90] sm:$0xff]
  %v5098 = vld [vmem:[%s4 + $0x98] sm:$0xff]
  %v5099 = vld [vmem:[%s4 + $0xa0] sm:$0xff]
  %v5100 = vld [vmem:[%s4 + $0xa8] sm:$0xff]
  %v5101 = vld [vmem:[%s4 + $0xb0] sm:$0xff]
  %v5102 = vld [vmem:[%s4 + $0xb8] sm:$0xff]
  %v5103 = vld [vmem:[%s4 + $0xc0] sm:$0xff]
  %v5104 = vld [vmem:[%s4 + $0xc8] sm:$0xff]
  %v5105 = vld [vmem:[%s4 + $0xd0] sm:$0xff]
  %v5106 = vld [vmem:[%s4 + $0xd8] sm:$0xff]
  %v5107 = vld [vmem:[%s4 + $0xe0] sm:$0xff]
  %v5108 = vld [vmem:[%s4 + $0xe8] sm:$0xff]
  %v5109 = vld [vmem:[%s4 + $0xf0] sm:$0xff]
  %v5110 = vld [vmem:[%s4 + $0xf8] sm:$0xff]
  %v5111 = vld [vmem:[%s4 + $0x100] sm:$0xff]
  %v5112 = vld [vmem:[%s4 + $0x108] sm:$0xff]
  %v5113 = vld [vmem:[%s4 + $0x110] sm:$0xff]
  %v5114 = vld [vmem:[%s4 + $0x118] sm:$0xff]
  %v5115 = vld [vmem:[%s4 + $0x120] sm:$0xff]
  %v5116 = vld [vmem:[%s4 + $0x128] sm:$0xff]
  %v5117 = vld [vmem:[%s4 + $0x130] sm:$0xff]
  %v5118 = vld [vmem:[%s4 + $0x138] sm:$0xff]
  %v5119 = vld [vmem:[%s4 + $0x140] sm:$0xff]
  %v5120 = vld [vmem:[%s4 + $0x148] sm:$0xff]
  %v5121 = vld [vmem:[%s4 + $0x150] sm:$0xff]
  %v5122 = vld [vmem:[%s4 + $0x158] sm:$0xff]
  %v5123 = vld [vmem:[%s4 + $0x160] sm:$0xff]
  %v5124 = vld [vmem:[%s4 + $0x168] sm:$0xff]
  %v5125 = vld [vmem:[%s4 + $0x170] sm:$0xff]
  %v5126 = vld [vmem:[%s4 + $0x178] sm:$0xff]
  %v5127 = vld [vmem:[%s4 + $0x180] sm:$0xff]
  %v5128 = vld [vmem:[%s4 + $0x188] sm:$0xff]
  %v5129 = vld [vmem:[%s4 + $0x190] sm:$0xff]
  %v5130 = vld [vmem:[%s4 + $0x198] sm:$0xff]
  %v5131 = vld [vmem:[%s4 + $0x1a0] sm:$0xff]
  %v5132 = vld [vmem:[%s4 + $0x1a8] sm:$0xff]
  %v5133 = vld [vmem:[%s4 + $0x1b0] sm:$0xff]
  %v5134 = vld [vmem:[%s4 + $0x1b8] sm:$0xff]
  %v5135 = vld [vmem:[%s4 + $0x1c0] sm:$0xff]
  %v5136 = vld [vmem:[%s4 + $0x1c8] sm:$0xff]
  %v5137 = vld [vmem:[%s4 + $0x1d0] sm:$0xff]
  %v5138 = vld [vmem:[%s4 + $0x1d8] sm:$0xff]
  %v5139 = vld [vmem:[%s4 + $0x1e0] sm:$0xff]
  %v5140 = vld [vmem:[%s4 + $0x1e8] sm:$0xff]
  %v5141 = vld [vmem:[%s4 + $0x1f0] sm:$0xff]
  %v5142 = vld [vmem:[%s4 + $0x1f8] sm:$0xff]
  %v5143 = vld [vmem:[%s4 + $0x200] sm:$0xff]
  %v5144 = vld [vmem:[%s4 + $0x208] sm:$0xff]
  %v5145 = vld [vmem:[%s4 + $0x210] sm:$0xff]
  %v5146 = vld [vmem:[%s4 + $0x218] sm:$0xff]
  %v5147 = vld [vmem:[%s4 + $0x220] sm:$0xff]
  %v5148 = vld [vmem:[%s4 + $0x228] sm:$0xff]
  %v5149 = vld [vmem:[%s4 + $0x230] sm:$0xff]
  %v5150 = vld [vmem:[%s4 + $0x238] sm:$0xff]
  %v5151 = vld [vmem:[%s4 + $0x240] sm:$0xff]
  %v5152 = vld [vmem:[%s4 + $0x248] sm:$0xff]
  %v5153 = vld [vmem:[%s4 + $0x250] sm:$0xff]
  %v5154 = vld [vmem:[%s4 + $0x258] sm:$0xff]
  %v5155 = vld [vmem:[%s4 + $0x260] sm:$0xff]
  %v5156 = vld [vmem:[%s4 + $0x268] sm:$0xff]
  %v5157 = vld [vmem:[%s4 + $0x270] sm:$0xff]
  %v5158 = vld [vmem:[%s4 + $0x278] sm:$0xff]
  %v5159 = vld [vmem:[%s4 + $0x280] sm:$0xff]
  %v5160 = vld [vmem:[%s4 + $0x288] sm:$0xff]
  %v5161 = vld [vmem:[%s4 + $0x290] sm:$0xff]
  %v5162 = vld [vmem:[%s4 + $0x298] sm:$0xff]
  %v5163 = vld [vmem:[%s4 + $0x2a0] sm:$0xff]
  %v5164 = vld [vmem:[%s4 + $0x2a8] sm:$0xff]
  %v5165 = vld [vmem:[%s4 + $0x2b0] sm:$0xff]
  %v5166 = vld [vmem:[%s4 + $0x2b8] sm:$0xff]
  %v5167 = vld [vmem:[%s4 + $0x2c0] sm:$0xff]
  %v5168 = vld [vmem:[%s4 + $0x2c8] sm:$0xff]
  %v5169 = vld [vmem:[%s4 + $0x2d0] sm:$0xff]
  %v5170 = vld [vmem:[%s4 + $0x2d8] sm:$0xff]
  %v5171 = vld [vmem:[%s4 + $0x2e0] sm:$0xff]
  %v5172 = vld [vmem:[%s4 + $0x2e8] sm:$0xff]
  %v5173 = vld [vmem:[%s4 + $0x2f0] sm:$0xff]
  %v5174 = vld [vmem:[%s4 + $0x2f8] sm:$0xff]
  %v5175 = vld [vmem:[%s4 + $0x300] sm:$0xff]
  %v5176 = vld [vmem:[%s4 + $0x308] sm:$0xff]
  %v5177 = vld [vmem:[%s4 + $0x310] sm:$0xff]
  %v5178 = vld [vmem:[%s4 + $0x318] sm:$0xff]
  %v5179 = vld [vmem:[%s4 + $0x320] sm:$0xff]
  %v5180 = vld [vmem:[%s4 + $0x328] sm:$0xff]
  %v5181 = vld [vmem:[%s4 + $0x330] sm:$0xff]
  %v5182 = vld [vmem:[%s4 + $0x338] sm:$0xff]
  %v5183 = vld [vmem:[%s4 + $0x340] sm:$0xff]
  %v5184 = vld [vmem:[%s4 + $0x348] sm:$0xff]
  %v5185 = vld [vmem:[%s4 + $0x350] sm:$0xff]
  %v5186 = vld [vmem:[%s4 + $0x358] sm:$0xff]
  %v5187 = vld [vmem:[%s4 + $0x360] sm:$0xff]
  %v5188 = vld [vmem:[%s4 + $0x368] sm:$0xff]
  %v5189 = vld [vmem:[%s4 + $0x370] sm:$0xff]
  %v5190 = vld [vmem:[%s4 + $0x378] sm:$0xff]
  %v5191 = vld [vmem:[%s4 + $0x380] sm:$0xff]
  %v5192 = vld [vmem:[%s4 + $0x388] sm:$0xff]
  %v5193 = vld [vmem:[%s4 + $0x390] sm:$0xff]
  %v5194 = vld [vmem:[%s4 + $0x398] sm:$0xff]
  %v5195 = vld [vmem:[%s4 + $0x3a0] sm:$0xff]
  %v5196 = vld [vmem:[%s4 + $0x3a8] sm:$0xff]
  %v5197 = vld [vmem:[%s4 + $0x3b0] sm:$0xff]
  %v5198 = vld [vmem:[%s4 + $0x3b8] sm:$0xff]
  %v5199 = vld [vmem:[%s4 + $0x3c0] sm:$0xff]
  %v5200 = vld [vmem:[%s4 + $0x3c8] sm:$0xff]
  %v5201 = vld [vmem:[%s4 + $0x3d0] sm:$0xff]
  %v5202 = vld [vmem:[%s4 + $0x3d8] sm:$0xff]
  %v5203 = vld [vmem:[%s4 + $0x3e0] sm:$0xff]
  %v5204 = vld [vmem:[%s4 + $0x3e8] sm:$0xff]
  %v5205 = vld [vmem:[%s4 + $0x3f0] sm:$0xff]
  %v5206 = vld [vmem:[%s4 + $0x3f8] sm:$0xff]
  %v5207 = vld [vmem:[%s4 + $0x400] sm:$0xff]
  %v5208 = vld [vmem:[%s4 + $0x408] sm:$0xff]
  %v5209 = vld [vmem:[%s4 + $0x410] sm:$0xff]
  %v5210 = vld [vmem:[%s4 + $0x418] sm:$0xff]
  %v5211 = vld [vmem:[%s4 + $0x420] sm:$0xff]
  %v5212 = vld [vmem:[%s4 + $0x428] sm:$0xff]
  %v5213 = vld [vmem:[%s4 + $0x430] sm:$0xff]
  %v5214 = vld [vmem:[%s4 + $0x438] sm:$0xff]
  %v5215 = vld [vmem:[%s4 + $0x440] sm:$0xff]
  %v5216 = vld [vmem:[%s4 + $0x448] sm:$0xff]
  %v5217 = vld [vmem:[%s4 + $0x450] sm:$0xff]
  %v5218 = vld [vmem:[%s4 + $0x458] sm:$0xff]
  %v5219 = vld [vmem:[%s4 + $0x460] sm:$0xff]
  %v5220 = vld [vmem:[%s4 + $0x468] sm:$0xff]
  %v5221 = vld [vmem:[%s4 + $0x470] sm:$0xff]
  %v5222 = vld [vmem:[%s4 + $0x478] sm:$0xff]
  %v5223 = vld [vmem:[%s4 + $0x480] sm:$0xff]
  %v5224 = vld [vmem:[%s4 + $0x488] sm:$0xff]
  %v5225 = vld [vmem:[%s4 + $0x490] sm:$0xff]
  %v5226 = vld [vmem:[%s4 + $0x498] sm:$0xff]
  %v5227 = vld [vmem:[%s4 + $0x4a0] sm:$0xff]
  %v5228 = vld [vmem:[%s4 + $0x4a8] sm:$0xff]
  %v5229 = vld [vmem:[%s4 + $0x4b0] sm:$0xff]
  %v5230 = vld [vmem:[%s4 + $0x4b8] sm:$0xff]
  %v5231 = vld [vmem:[%s4 + $0x4c0] sm:$0xff]
  %v5232 = vld [vmem:[%s4 + $0x4c8] sm:$0xff]
  %v5233 = vld [vmem:[%s4 + $0x4d0] sm:$0xff]
  %v5234 = vld [vmem:[%s4 + $0x4d8] sm:$0xff]
  %v5235 = vld [vmem:[%s4 + $0x4e0] sm:$0xff]
  %v5236 = vld [vmem:[%s4 + $0x4e8] sm:$0xff]
  %v5237 = vld [vmem:[%s4 + $0x4f0] sm:$0xff]
  %v5238 = vld [vmem:[%s4 + $0x4f8] sm:$0xff]
  %v5239 = vld [vmem:[%s4 + $0x500] sm:$0xff]
  %v5240 = vld [vmem:[%s4 + $0x508] sm:$0xff]
  %v5241 = vld [vmem:[%s4 + $0x510] sm:$0xff]
  %v5242 = vld [vmem:[%s4 + $0x518] sm:$0xff]
  %v5243 = vld [vmem:[%s4 + $0x520] sm:$0xff]
  %v5244 = vld [vmem:[%s4 + $0x528] sm:$0xff]
  %v5245 = vld [vmem:[%s4 + $0x530] sm:$0xff]
  %v5246 = vld [vmem:[%s4 + $0x538] sm:$0xff]
  %v5247 = vld [vmem:[%s4 + $0x540] sm:$0xff]
  %v5248 = vld [vmem:[%s4 + $0x548] sm:$0xff]
  %v5249 = vld [vmem:[%s4 + $0x550] sm:$0xff]
  %v5250 = vld [vmem:[%s4 + $0x558] sm:$0xff]
  %v5251 = vld [vmem:[%s4 + $0x560] sm:$0xff]
  %v5252 = vld [vmem:[%s4 + $0x568] sm:$0xff]
  %v5253 = vld [vmem:[%s4 + $0x570] sm:$0xff]
  %v5254 = vld [vmem:[%s4 + $0x578] sm:$0xff]
  %v5255 = vld [vmem:[%s4 + $0x580] sm:$0xff]
  %v5256 = vld [vmem:[%s4 + $0x588] sm:$0xff]
  %v5257 = vld [vmem:[%s4 + $0x590] sm:$0xff]
  %v5258 = vld [vmem:[%s4 + $0x598] sm:$0xff]
  %v5259 = vld [vmem:[%s4 + $0x5a0] sm:$0xff]
  %v5260 = vld [vmem:[%s4 + $0x5a8] sm:$0xff]
  %v5261 = vld [vmem:[%s4 + $0x5b0] sm:$0xff]
  %v5262 = vld [vmem:[%s4 + $0x5b8] sm:$0xff]
  %v5263 = vld [vmem:[%s4 + $0x5c0] sm:$0xff]
  %v5264 = vld [vmem:[%s4 + $0x5c8] sm:$0xff]
  %v5265 = vld [vmem:[%s4 + $0x5d0] sm:$0xff]
  %v5266 = vld [vmem:[%s4 + $0x5d8] sm:$0xff]
  %v5267 = vld [vmem:[%s4 + $0x5e0] sm:$0xff]
  %v5268 = vld [vmem:[%s4 + $0x5e8] sm:$0xff]
  %v5269 = vld [vmem:[%s4 + $0x5f0] sm:$0xff]
  %v5270 = vld [vmem:[%s4 + $0x5f8] sm:$0xff]
  %v5271 = vld [vmem:[%s4 + $0x600] sm:$0xff]
  %v5272 = vld [vmem:[%s4 + $0x608] sm:$0xff]
  %v5273 = vld [vmem:[%s4 + $0x610] sm:$0xff]
  %v5274 = vld [vmem:[%s4 + $0x618] sm:$0xff]
  %v5275 = vld [vmem:[%s4 + $0x620] sm:$0xff]
  %v5276 = vld [vmem:[%s4 + $0x628] sm:$0xff]
  %v5277 = vld [vmem:[%s4 + $0x630] sm:$0xff]
  %v5278 = vld [vmem:[%s4 + $0x638] sm:$0xff]
  %v5279 = vld [vmem:[%s4 + $0x640] sm:$0xff]
  %v5280 = vld [vmem:[%s4 + $0x648] sm:$0xff]
  %v5281 = vld [vmem:[%s4 + $0x650] sm:$0xff]
  %v5282 = vld [vmem:[%s4 + $0x658] sm:$0xff]
  %v5283 = vld [vmem:[%s4 + $0x660] sm:$0xff]
  %v5284 = vld [vmem:[%s4 + $0x668] sm:$0xff]
  %v5285 = vld [vmem:[%s4 + $0x670] sm:$0xff]
  %v5286 = vld [vmem:[%s4 + $0x678] sm:$0xff]
  %v5287 = vld [vmem:[%s4 + $0x680] sm:$0xff]
  %v5288 = vld [vmem:[%s4 + $0x688] sm:$0xff]
  %v5289 = vld [vmem:[%s4 + $0x690] sm:$0xff]
  %v5290 = vld [vmem:[%s4 + $0x698] sm:$0xff]
  %v5291 = vld [vmem:[%s4 + $0x6a0] sm:$0xff]
  %v5292 = vld [vmem:[%s4 + $0x6a8] sm:$0xff]
  %v5293 = vld [vmem:[%s4 + $0x6b0] sm:$0xff]
  %v5294 = vld [vmem:[%s4 + $0x6b8] sm:$0xff]
  %v5295 = vld [vmem:[%s4 + $0x6c0] sm:$0xff]
  %v5296 = vld [vmem:[%s4 + $0x6c8] sm:$0xff]
  %v5297 = vld [vmem:[%s4 + $0x6d0] sm:$0xff]
  %v5298 = vld [vmem:[%s4 + $0x6d8] sm:$0xff]
  %v5299 = vld [vmem:[%s4 + $0x6e0] sm:$0xff]
  %v5300 = vld [vmem:[%s4 + $0x6e8] sm:$0xff]
  %v5301 = vld [vmem:[%s4 + $0x6f0] sm:$0xff]
  %v5302 = vld [vmem:[%s4 + $0x6f8] sm:$0xff]
  %v5303 = vld [vmem:[%s4 + $0x700] sm:$0xff]
  %v5304 = vld [vmem:[%s4 + $0x708] sm:$0xff]
  %v5305 = vld [vmem:[%s4 + $0x710] sm:$0xff]
  %v5306 = vld [vmem:[%s4 + $0x718] sm:$0xff]
  %v5307 = vld [vmem:[%s4 + $0x720] sm:$0xff]
  %v5308 = vld [vmem:[%s4 + $0x728] sm:$0xff]
  %v5309 = vld [vmem:[%s4 + $0x730] sm:$0xff]
  %v5310 = vld [vmem:[%s4 + $0x738] sm:$0xff]
  %v5311 = vld [vmem:[%s4 + $0x740] sm:$0xff]
  %v5312 = vld [vmem:[%s4 + $0x748] sm:$0xff]
  %v5313 = vld [vmem:[%s4 + $0x750] sm:$0xff]
  %v5314 = vld [vmem:[%s4 + $0x758] sm:$0xff]
  %v5315 = vld [vmem:[%s4 + $0x760] sm:$0xff]
  %v5316 = vld [vmem:[%s4 + $0x768] sm:$0xff]
  %v5317 = vld [vmem:[%s4 + $0x770] sm:$0xff]
  %v5318 = vld [vmem:[%s4 + $0x778] sm:$0xff]
  %v5319 = vld [vmem:[%s4 + $0x780] sm:$0xff]
  %v5320 = vld [vmem:[%s4 + $0x788] sm:$0xff]
  %v5321 = vld [vmem:[%s4 + $0x790] sm:$0xff]
  %v5322 = vld [vmem:[%s4 + $0x798] sm:$0xff]
  %v5323 = vld [vmem:[%s4 + $0x7a0] sm:$0xff]
  %v5324 = vld [vmem:[%s4 + $0x7a8] sm:$0xff]
  %v5325 = vld [vmem:[%s4 + $0x7b0] sm:$0xff]
  %v5326 = vld [vmem:[%s4 + $0x7b8] sm:$0xff]
  %v5327 = vld [vmem:[%s4 + $0x7c0] sm:$0xff]
  %v5328 = vld [vmem:[%s4 + $0x7c8] sm:$0xff]
  %v5329 = vld [vmem:[%s4 + $0x7d0] sm:$0xff]
  %v5330 = vld [vmem:[%s4 + $0x7d8] sm:$0xff]
  %v5331 = vld [vmem:[%s4 + $0x7e0] sm:$0xff]
  %v5332 = vld [vmem:[%s4 + $0x7e8] sm:$0xff]
  %v5333 = vld [vmem:[%s4 + $0x7f0] sm:$0xff]
  %v5334 = vld [vmem:[%s4 + $0x7f8] sm:$0xff]
  %v5335 = vld [vmem:[%s4 + $0x800] sm:$0xff]
  %v5336 = vld [vmem:[%s4 + $0x808] sm:$0xff]
  %v5337 = vld [vmem:[%s4 + $0x810] sm:$0xff]
  %v5338 = vld [vmem:[%s4 + $0x818] sm:$0xff]
  %v5339 = vld [vmem:[%s4 + $0x820] sm:$0xff]
  %v5340 = vld [vmem:[%s4 + $0x828] sm:$0xff]
  %v5341 = vld [vmem:[%s4 + $0x830] sm:$0xff]
  %v5342 = vld [vmem:[%s4 + $0x838] sm:$0xff]
  %v5343 = vld [vmem:[%s4 + $0x840] sm:$0xff]
  %v5344 = vld [vmem:[%s4 + $0x848] sm:$0xff]
  %v5345 = vld [vmem:[%s4 + $0x850] sm:$0xff]
  %v5346 = vld [vmem:[%s4 + $0x858] sm:$0xff]
  %v5347 = vld [vmem:[%s4 + $0x860] sm:$0xff]
  %v5348 = vld [vmem:[%s4 + $0x868] sm:$0xff]
  %v5349 = vld [vmem:[%s4 + $0x870] sm:$0xff]
  %v5350 = vld [vmem:[%s4 + $0x878] sm:$0xff]
  %v5351 = vld [vmem:[%s4 + $0x880] sm:$0xff]
  %v5352 = vld [vmem:[%s4 + $0x888] sm:$0xff]
  %v5353 = vld [vmem:[%s4 + $0x890] sm:$0xff]
  %v5354 = vld [vmem:[%s4 + $0x898] sm:$0xff]
  %v5355 = vld [vmem:[%s4 + $0x8a0] sm:$0xff]
  %v5356 = vld [vmem:[%s4 + $0x8a8] sm:$0xff]
  %v5357 = vld [vmem:[%s4 + $0x8b0] sm:$0xff]
  %v5358 = vld [vmem:[%s4 + $0x8b8] sm:$0xff]
  %v5359 = vld [vmem:[%s4 + $0x8c0] sm:$0xff]
  %v5360 = vld [vmem:[%s4 + $0x8c8] sm:$0xff]
  %v5361 = vld [vmem:[%s4 + $0x8d0] sm:$0xff]
  %v5362 = vld [vmem:[%s4 + $0x8d8] sm:$0xff]
  %v5363 = vld [vmem:[%s4 + $0x8e0] sm:$0xff]
  %v5364 = vld [vmem:[%s4 + $0x8e8] sm:$0xff]
  %v5365 = vld [vmem:[%s4 + $0x8f0] sm:$0xff]
  %v5366 = vld [vmem:[%s4 + $0x8f8] sm:$0xff]
  %v5367 = vld [vmem:[%s4 + $0x900] sm:$0xff]
  %v5368 = vld [vmem:[%s4 + $0x908] sm:$0xff]
  %v5369 = vld [vmem:[%s4 + $0x910] sm:$0xff]
  %v5370 = vld [vmem:[%s4 + $0x918] sm:$0xff]
  %v5371 = vld [vmem:[%s4 + $0x920] sm:$0xff]
  %v5372 = vld [vmem:[%s4 + $0x928] sm:$0xff]
  %v5373 = vld [vmem:[%s4 + $0x930] sm:$0xff]
  %v5374 = vld [vmem:[%s4 + $0x938] sm:$0xff]
  %v5375 = vld [vmem:[%s4 + $0x940] sm:$0xff]
  %v5376 = vld [vmem:[%s4 + $0x948] sm:$0xff]
  %v5377 = vld [vmem:[%s4 + $0x950] sm:$0xff]
  %v5378 = vld [vmem:[%s4 + $0x958] sm:$0xff]
  %v5379 = vld [vmem:[%s4 + $0x960] sm:$0xff]
  %v5380 = vld [vmem:[%s4 + $0x968] sm:$0xff]
  %v5381 = vld [vmem:[%s4 + $0x970] sm:$0xff]
  %v5382 = vld [vmem:[%s4 + $0x978] sm:$0xff]
  %v5383 = vld [vmem:[%s4 + $0x980] sm:$0xff]
  %v5384 = vld [vmem:[%s4 + $0x988] sm:$0xff]
  %v5385 = vld [vmem:[%s4 + $0x990] sm:$0xff]
  %v5386 = vld [vmem:[%s4 + $0x998] sm:$0xff]
  %v5387 = vld [vmem:[%s4 + $0x9a0] sm:$0xff]
  %v5388 = vld [vmem:[%s4 + $0x9a8] sm:$0xff]
  %v5389 = vld [vmem:[%s4 + $0x9b0] sm:$0xff]
  %v5390 = vld [vmem:[%s4 + $0x9b8] sm:$0xff]
  %v5391 = vld [vmem:[%s4 + $0x9c0] sm:$0xff]
  %v5392 = vld [vmem:[%s4 + $0x9c8] sm:$0xff]
  %v5393 = vld [vmem:[%s4 + $0x9d0] sm:$0xff]
  %v5394 = vld [vmem:[%s4 + $0x9d8] sm:$0xff]
  %v5395 = vld [vmem:[%s4 + $0x9e0] sm:$0xff]
  %v5396 = vld [vmem:[%s4 + $0x9e8] sm:$0xff]
  %v5397 = vld [vmem:[%s4 + $0x9f0] sm:$0xff]
  %v5398 = vld [vmem:[%s4 + $0x9f8] sm:$0xff]
  %v5399 = vld [vmem:[%s4 + $0xa00] sm:$0xff]
  %v5400 = vld [vmem:[%s4 + $0xa08] sm:$0xff]
  %v5401 = vld [vmem:[%s4 + $0xa10] sm:$0xff]
  %v5402 = vld [vmem:[%s4 + $0xa18] sm:$0xff]
  %v5403 = vld [vmem:[%s4 + $0xa20] sm:$0xff]
  %v5404 = vld [vmem:[%s4 + $0xa28] sm:$0xff]
  %v5405 = vld [vmem:[%s4 + $0xa30] sm:$0xff]
  %v5406 = vld [vmem:[%s4 + $0xa38] sm:$0xff]
  %v5407 = vld [vmem:[%s4 + $0xa40] sm:$0xff]
  %v5408 = vld [vmem:[%s4 + $0xa48] sm:$0xff]
  %v5409 = vld [vmem:[%s4 + $0xa50] sm:$0xff]
  %v5410 = vld [vmem:[%s4 + $0xa58] sm:$0xff]
  %v5411 = vld [vmem:[%s4 + $0xa60] sm:$0xff]
  %v5412 = vld [vmem:[%s4 + $0xa68] sm:$0xff]
  %v5413 = vld [vmem:[%s4 + $0xa70] sm:$0xff]
  %v5414 = vld [vmem:[%s4 + $0xa78] sm:$0xff]
  %v5415 = vld [vmem:[%s4 + $0xa80] sm:$0xff]
  %v5416 = vld [vmem:[%s4 + $0xa88] sm:$0xff]
  %v5417 = vld [vmem:[%s4 + $0xa90] sm:$0xff]
  %v5418 = vld [vmem:[%s4 + $0xa98] sm:$0xff]
  %v5419 = vld [vmem:[%s4 + $0xaa0] sm:$0xff]
  %v5420 = vld [vmem:[%s4 + $0xaa8] sm:$0xff]
  %v5421 = vld [vmem:[%s4 + $0xab0] sm:$0xff]
  %v5422 = vld [vmem:[%s4 + $0xab8] sm:$0xff]
  %v5423 = vld [vmem:[%s4 + $0xac0] sm:$0xff]
  %v5424 = vld [vmem:[%s4 + $0xac8] sm:$0xff]
  %v5425 = vld [vmem:[%s4 + $0xad0] sm:$0xff]
  %v5426 = vld [vmem:[%s4 + $0xad8] sm:$0xff]
  %v5427 = vld [vmem:[%s4 + $0xae0] sm:$0xff]
  %v5428 = vld [vmem:[%s4 + $0xae8] sm:$0xff]
  %v5429 = vld [vmem:[%s4 + $0xaf0] sm:$0xff]
  %v5430 = vld [vmem:[%s4 + $0xaf8] sm:$0xff]
  %v5431 = vld [vmem:[%s4 + $0xb00] sm:$0xff]
  %v5432 = vld [vmem:[%s4 + $0xb08] sm:$0xff]
  %v5433 = vld [vmem:[%s4 + $0xb10] sm:$0xff]
  %v5434 = vld [vmem:[%s4 + $0xb18] sm:$0xff]
  %v5435 = vld [vmem:[%s4 + $0xb20] sm:$0xff]
  %v5436 = vld [vmem:[%s4 + $0xb28] sm:$0xff]
  %v5437 = vld [vmem:[%s4 + $0xb30] sm:$0xff]
  %v5438 = vld [vmem:[%s4 + $0xb38] sm:$0xff]
  %v5439 = vld [vmem:[%s4 + $0xb40] sm:$0xff]
  %v5440 = vld [vmem:[%s4 + $0xb48] sm:$0xff]
  %v5441 = vld [vmem:[%s4 + $0xb50] sm:$0xff]
  %v5442 = vld [vmem:[%s4 + $0xb58] sm:$0xff]
  %v5443 = vld [vmem:[%s4 + $0xb60] sm:$0xff]
  %v5444 = vld [vmem:[%s4 + $0xb68] sm:$0xff]
  %v5445 = vld [vmem:[%s4 + $0xb70] sm:$0xff]
  %v5446 = vld [vmem:[%s4 + $0xb78] sm:$0xff]
  %v5447 = vld [vmem:[%s4 + $0xb80] sm:$0xff]
  %v5448 = vld [vmem:[%s4 + $0xb88] sm:$0xff]
  %v5449 = vld [vmem:[%s4 + $0xb90] sm:$0xff]
  %v5450 = vld [vmem:[%s4 + $0xb98] sm:$0xff]
  %v5451 = vld [vmem:[%s4 + $0xba0] sm:$0xff]
  %v5452 = vld [vmem:[%s4 + $0xba8] sm:$0xff]
  %v5453 = vld [vmem:[%s4 + $0xbb0] sm:$0xff]
  %v5454 = vld [vmem:[%s4 + $0xbb8] sm:$0xff]
  %v5455 = vld [vmem:[%s4 + $0xbc0] sm:$0xff]
  %v5456 = vld [vmem:[%s4 + $0xbc8] sm:$0xff]
  %v5457 = vld [vmem:[%s4 + $0xbd0] sm:$0xff]
  %v5458 = vld [vmem:[%s4 + $0xbd8] sm:$0xff]
  %v5459 = vld [vmem:[%s4 + $0xbe0] sm:$0xff]
  %v5460 = vld [vmem:[%s4 + $0xbe8] sm:$0xff]
  %v5461 = vld [vmem:[%s4 + $0xbf0] sm:$0xff]
  %v5462 = vld [vmem:[%s4 + $0xbf8] sm:$0xff]
  %v5463 = vld [vmem:[%s4 + $0xc00] sm:$0xff]
  %v5464 = vld [vmem:[%s4 + $0xc08] sm:$0xff]
  %v5465 = vld [vmem:[%s4 + $0xc10] sm:$0xff]
  %v5466 = vld [vmem:[%s4 + $0xc18] sm:$0xff]
  %v5467 = vld [vmem:[%s4 + $0xc20] sm:$0xff]
  %v5468 = vld [vmem:[%s4 + $0xc28] sm:$0xff]
  %v5469 = vld [vmem:[%s4 + $0xc30] sm:$0xff]
  %v5470 = vld [vmem:[%s4 + $0xc38] sm:$0xff]
  %v5471 = vld [vmem:[%s4 + $0xc40] sm:$0xff]
  %v5472 = vld [vmem:[%s4 + $0xc48] sm:$0xff]
  %v5473 = vld [vmem:[%s4 + $0xc50] sm:$0xff]
  %v5474 = vld [vmem:[%s4 + $0xc58] sm:$0xff]
  %v5475 = vld [vmem:[%s4 + $0xc60] sm:$0xff]
  %v5476 = vld [vmem:[%s4 + $0xc68] sm:$0xff]
  %v5477 = vld [vmem:[%s4 + $0xc70] sm:$0xff]
  %v5478 = vld [vmem:[%s4 + $0xc78] sm:$0xff]
  %v5479 = vld [vmem:[%s4 + $0xc80] sm:$0xff]
  %v5480 = vld [vmem:[%s4 + $0xc88] sm:$0xff]
  %v5481 = vld [vmem:[%s4 + $0xc90] sm:$0xff]
  %v5482 = vld [vmem:[%s4 + $0xc98] sm:$0xff]
  %v5483 = vld [vmem:[%s4 + $0xca0] sm:$0xff]
  %v5484 = vld [vmem:[%s4 + $0xca8] sm:$0xff]
  %v5485 = vld [vmem:[%s4 + $0xcb0] sm:$0xff]
  %v5486 = vld [vmem:[%s4 + $0xcb8] sm:$0xff]
  %v5487 = vld [vmem:[%s4 + $0xcc0] sm:$0xff]
  %v5488 = vld [vmem:[%s4 + $0xcc8] sm:$0xff]
  %v5489 = vld [vmem:[%s4 + $0xcd0] sm:$0xff]
  %v5490 = vld [vmem:[%s4 + $0xcd8] sm:$0xff]
  %v5491 = vld [vmem:[%s4 + $0xce0] sm:$0xff]
  %v5492 = vld [vmem:[%s4 + $0xce8] sm:$0xff]
  %v5493 = vld [vmem:[%s4 + $0xcf0] sm:$0xff]
  %v5494 = vld [vmem:[%s4 + $0xcf8] sm:$0xff]
  %v5495 = vld [vmem:[%s4 + $0xd00] sm:$0xff]
  %v5496 = vld [vmem:[%s4 + $0xd08] sm:$0xff]
  %v5497 = vld [vmem:[%s4 + $0xd10] sm:$0xff]
  %v5498 = vld [vmem:[%s4 + $0xd18] sm:$0xff]
  %v5499 = vld [vmem:[%s4 + $0xd20] sm:$0xff]
  %v5500 = vld [vmem:[%s4 + $0xd28] sm:$0xff]
  %v5501 = vld [vmem:[%s4 + $0xd30] sm:$0xff]
  %v5502 = vld [vmem:[%s4 + $0xd38] sm:$0xff]
  %v5503 = vld [vmem:[%s4 + $0xd40] sm:$0xff]
  %v5504 = vld [vmem:[%s4 + $0xd48] sm:$0xff]
  %v5505 = vld [vmem:[%s4 + $0xd50] sm:$0xff]
  %v5506 = vld [vmem:[%s4 + $0xd58] sm:$0xff]
  %v5507 = vld [vmem:[%s4 + $0xd60] sm:$0xff]
  %v5508 = vld [vmem:[%s4 + $0xd68] sm:$0xff]
  %v5509 = vld [vmem:[%s4 + $0xd70] sm:$0xff]
  %v5510 = vld [vmem:[%s4 + $0xd78] sm:$0xff]
  %v5511 = vld [vmem:[%s4 + $0xd80] sm:$0xff]
  %v5512 = vld [vmem:[%s4 + $0xd88] sm:$0xff]
  %v5513 = vld [vmem:[%s4 + $0xd90] sm:$0xff]
  %v5514 = vld [vmem:[%s4 + $0xd98] sm:$0xff]
  %v5515 = vld [vmem:[%s4 + $0xda0] sm:$0xff]
  %v5516 = vld [vmem:[%s4 + $0xda8] sm:$0xff]
  %v5517 = vld [vmem:[%s4 + $0xdb0] sm:$0xff]
  %v5518 = vld [vmem:[%s4 + $0xdb8] sm:$0xff]
  %v5519 = vld [vmem:[%s4 + $0xdc0] sm:$0xff]
  %v5520 = vld [vmem:[%s4 + $0xdc8] sm:$0xff]
  %v5521 = vld [vmem:[%s4 + $0xdd0] sm:$0xff]
  %v5522 = vld [vmem:[%s4 + $0xdd8] sm:$0xff]
  %v5523 = vld [vmem:[%s4 + $0xde0] sm:$0xff]
  %v5524 = vld [vmem:[%s4 + $0xde8] sm:$0xff]
  %v5525 = vld [vmem:[%s4 + $0xdf0] sm:$0xff]
  %v5526 = vld [vmem:[%s4 + $0xdf8] sm:$0xff]
  %v5527 = vld [vmem:[%s4 + $0xe00] sm:$0xff]
  %v5528 = vld [vmem:[%s4 + $0xe08] sm:$0xff]
  %v5529 = vld [vmem:[%s4 + $0xe10] sm:$0xff]
  %v5530 = vld [vmem:[%s4 + $0xe18] sm:$0xff]
  %v5531 = vld [vmem:[%s4 + $0xe20] sm:$0xff]
  %v5532 = vld [vmem:[%s4 + $0xe28] sm:$0xff]
  %v5533 = vld [vmem:[%s4 + $0xe30] sm:$0xff]
  %v5534 = vld [vmem:[%s4 + $0xe38] sm:$0xff]
  %v5535 = vld [vmem:[%s4 + $0xe40] sm:$0xff]
  %v5536 = vld [vmem:[%s4 + $0xe48] sm:$0xff]
  %v5537 = vld [vmem:[%s4 + $0xe50] sm:$0xff]
  %v5538 = vld [vmem:[%s4 + $0xe58] sm:$0xff]
  %v5539 = vld [vmem:[%s4 + $0xe60] sm:$0xff]
  %v5540 = vld [vmem:[%s4 + $0xe68] sm:$0xff]
  %v5541 = vld [vmem:[%s4 + $0xe70] sm:$0xff]
  %v5542 = vld [vmem:[%s4 + $0xe78] sm:$0xff]
  %v5543 = vld [vmem:[%s4 + $0xe80] sm:$0xff]
  %v5544 = vld [vmem:[%s4 + $0xe88] sm:$0xff]
  %v5545 = vld [vmem:[%s4 + $0xe90] sm:$0xff]
  %v5546 = vld [vmem:[%s4 + $0xe98] sm:$0xff]
  %v5547 = vld [vmem:[%s4 + $0xea0] sm:$0xff]
  %v5548 = vld [vmem:[%s4 + $0xea8] sm:$0xff]
  %v5549 = vld [vmem:[%s4 + $0xeb0] sm:$0xff]
  %v5550 = vld [vmem:[%s4 + $0xeb8] sm:$0xff]
  %v5551 = vld [vmem:[%s4 + $0xec0] sm:$0xff]
  %v5552 = vld [vmem:[%s4 + $0xec8] sm:$0xff]
  %v5553 = vld [vmem:[%s4 + $0xed0] sm:$0xff]
  %v5554 = vld [vmem:[%s4 + $0xed8] sm:$0xff]
  %v5555 = vld [vmem:[%s4 + $0xee0] sm:$0xff]
  %v5556 = vld [vmem:[%s4 + $0xee8] sm:$0xff]
  %v5557 = vld [vmem:[%s4 + $0xef0] sm:$0xff]
  %v5558 = vld [vmem:[%s4 + $0xef8] sm:$0xff]
  %v5559 = vld [vmem:[%s4 + $0xf00] sm:$0xff]
  %v5560 = vld [vmem:[%s4 + $0xf08] sm:$0xff]
  %v5561 = vld [vmem:[%s4 + $0xf10] sm:$0xff]
  %v5562 = vld [vmem:[%s4 + $0xf18] sm:$0xff]
  %v5563 = vld [vmem:[%s4 + $0xf20] sm:$0xff]
  %v5564 = vld [vmem:[%s4 + $0xf28] sm:$0xff]
  %v5565 = vld [vmem:[%s4 + $0xf30] sm:$0xff]
  %v5566 = vld [vmem:[%s4 + $0xf38] sm:$0xff]
  %v5567 = vld [vmem:[%s4 + $0xf40] sm:$0xff]
  %v5568 = vld [vmem:[%s4 + $0xf48] sm:$0xff]
  %v5569 = vld [vmem:[%s4 + $0xf50] sm:$0xff]
  %v5570 = vld [vmem:[%s4 + $0xf58] sm:$0xff]
  %v5571 = vld [vmem:[%s4 + $0xf60] sm:$0xff]
  %v5572 = vld [vmem:[%s4 + $0xf68] sm:$0xff]
  %v5573 = vld [vmem:[%s4 + $0xf70] sm:$0xff]
  %v5574 = vld [vmem:[%s4 + $0xf78] sm:$0xff]
  %v5575 = vld [vmem:[%s4 + $0xf80] sm:$0xff]
  %v5576 = vld [vmem:[%s4 + $0xf88] sm:$0xff]
  %v5577 = vld [vmem:[%s4 + $0xf90] sm:$0xff]
  %v5578 = vld [vmem:[%s4 + $0xf98] sm:$0xff]
  %v5579 = vld [vmem:[%s4 + $0xfa0] sm:$0xff]
  %v5580 = vld [vmem:[%s4 + $0xfa8] sm:$0xff]
  %v5581 = vld [vmem:[%s4 + $0xfb0] sm:$0xff]
  %v5582 = vld [vmem:[%s4 + $0xfb8] sm:$0xff]
  %v5583 = vld [vmem:[%s4 + $0xfc0] sm:$0xff]
  %v5584 = vld [vmem:[%s4 + $0xfc8] sm:$0xff]
  %v5585 = vld [vmem:[%s4 + $0xfd0] sm:$0xff]
  %v5586 = vld [vmem:[%s4 + $0xfd8] sm:$0xff]
  %v5587 = vld [vmem:[%s4 + $0xfe0] sm:$0xff]
  %v5588 = vld [vmem:[%s4 + $0xfe8] sm:$0xff]
  %v5589 = vld [vmem:[%s4 + $0xff0] sm:$0xff]
  %v5590 = vld [vmem:[%s4 + $0xff8] sm:$0xff]
  %v5591 = vld [vmem:[%s5] sm:$0xff]
  %v5593 = vlaneseq
  %v5594 = vshrl.u32 %v5593, 7
  %v5595 = vsub.s32 0, %v5594
  %v5596 = vrot.slane %v5591, %v5595
  %v5597 = vlaneseq
  %v5598 = vshrl.u32 %v5597, 7
  %v5599 = vsub.s32 1, %v5598
  %v5600 = vrot.slane %v5591, %v5599
  %v5601 = vlaneseq
  %v5602 = vshrl.u32 %v5601, 7
  %v5603 = vsub.s32 2, %v5602
  %v5604 = vrot.slane %v5591, %v5603
  %v5605 = vlaneseq
  %v5606 = vshrl.u32 %v5605, 7
  %v5607 = vsub.s32 3, %v5606
  %v5608 = vrot.slane %v5591, %v5607
  %v5609 = vlaneseq
  %v5610 = vshrl.u32 %v5609, 7
  %v5611 = vsub.s32 4, %v5610
  %v5612 = vrot.slane %v5591, %v5611
  %v5613 = vlaneseq
  %v5614 = vshrl.u32 %v5613, 7
  %v5615 = vsub.s32 5, %v5614
  %v5616 = vrot.slane %v5591, %v5615
  %v5617 = vlaneseq
  %v5618 = vshrl.u32 %v5617, 7
  %v5619 = vsub.s32 6, %v5618
  %v5620 = vrot.slane %v5591, %v5619
  %v5621 = vlaneseq
  %v5622 = vshrl.u32 %v5621, 7
  %v5623 = vsub.s32 7, %v5622
  %v5624 = vrot.slane %v5591, %v5623
  %v6145 = vunpack.c.l.b16 %v5079
  %v6146 = vunpack.c.h.b16 %v5079
  %v6147 = vunpack.c.l.b16 %v5080
  %v6148 = vunpack.c.h.b16 %v5080
  %v6149 = vunpack.c.l.b16 %v5081
  %v6150 = vunpack.c.h.b16 %v5081
  %v6151 = vunpack.c.l.b16 %v5082
  %v6152 = vunpack.c.h.b16 %v5082
  %v6153 = vunpack.c.l.b16 %v5083
  %v6154 = vunpack.c.h.b16 %v5083
  %v6155 = vunpack.c.l.b16 %v5084
  %v6156 = vunpack.c.h.b16 %v5084
  %v6157 = vunpack.c.l.b16 %v5085
  %v6158 = vunpack.c.h.b16 %v5085
  %v6159 = vunpack.c.l.b16 %v5086
  %v6160 = vunpack.c.h.b16 %v5086
  %v6161 = vunpack.c.l.b16 %v5087
  %v6162 = vunpack.c.h.b16 %v5087
  %v6163 = vunpack.c.l.b16 %v5088
  %v6164 = vunpack.c.h.b16 %v5088
  %v6165 = vunpack.c.l.b16 %v5089
  %v6166 = vunpack.c.h.b16 %v5089
  %v6167 = vunpack.c.l.b16 %v5090
  %v6168 = vunpack.c.h.b16 %v5090
  %v6169 = vunpack.c.l.b16 %v5091
  %v6170 = vunpack.c.h.b16 %v5091
  %v6171 = vunpack.c.l.b16 %v5092
  %v6172 = vunpack.c.h.b16 %v5092
  %v6173 = vunpack.c.l.b16 %v5093
  %v6174 = vunpack.c.h.b16 %v5093
  %v6175 = vunpack.c.l.b16 %v5094
  %v6176 = vunpack.c.h.b16 %v5094
  %v6177 = vunpack.c.l.b16 %v5095
  %v6178 = vunpack.c.h.b16 %v5095
  %v6179 = vunpack.c.l.b16 %v5096
  %v6180 = vunpack.c.h.b16 %v5096
  %v6181 = vunpack.c.l.b16 %v5097
  %v6182 = vunpack.c.h.b16 %v5097
  %v6183 = vunpack.c.l.b16 %v5098
  %v6184 = vunpack.c.h.b16 %v5098
  %v6185 = vunpack.c.l.b16 %v5099
  %v6186 = vunpack.c.h.b16 %v5099
  %v6187 = vunpack.c.l.b16 %v5100
  %v6188 = vunpack.c.h.b16 %v5100
  %v6189 = vunpack.c.l.b16 %v5101
  %v6190 = vunpack.c.h.b16 %v5101
  %v6191 = vunpack.c.l.b16 %v5102
  %v6192 = vunpack.c.h.b16 %v5102
  %v6193 = vunpack.c.l.b16 %v5103
  %v6194 = vunpack.c.h.b16 %v5103
  %v6195 = vunpack.c.l.b16 %v5104
  %v6196 = vunpack.c.h.b16 %v5104
  %v6197 = vunpack.c.l.b16 %v5105
  %v6198 = vunpack.c.h.b16 %v5105
  %v6199 = vunpack.c.l.b16 %v5106
  %v6200 = vunpack.c.h.b16 %v5106
  %v6201 = vunpack.c.l.b16 %v5107
  %v6202 = vunpack.c.h.b16 %v5107
  %v6203 = vunpack.c.l.b16 %v5108
  %v6204 = vunpack.c.h.b16 %v5108
  %v6205 = vunpack.c.l.b16 %v5109
  %v6206 = vunpack.c.h.b16 %v5109
  %v6207 = vunpack.c.l.b16 %v5110
  %v6208 = vunpack.c.h.b16 %v5110
  %v6209 = vunpack.c.l.b16 %v5111
  %v6210 = vunpack.c.h.b16 %v5111
  %v6211 = vunpack.c.l.b16 %v5112
  %v6212 = vunpack.c.h.b16 %v5112
  %v6213 = vunpack.c.l.b16 %v5113
  %v6214 = vunpack.c.h.b16 %v5113
  %v6215 = vunpack.c.l.b16 %v5114
  %v6216 = vunpack.c.h.b16 %v5114
  %v6217 = vunpack.c.l.b16 %v5115
  %v6218 = vunpack.c.h.b16 %v5115
  %v6219 = vunpack.c.l.b16 %v5116
  %v6220 = vunpack.c.h.b16 %v5116
  %v6221 = vunpack.c.l.b16 %v5117
  %v6222 = vunpack.c.h.b16 %v5117
  %v6223 = vunpack.c.l.b16 %v5118
  %v6224 = vunpack.c.h.b16 %v5118
  %v6225 = vunpack.c.l.b16 %v5119
  %v6226 = vunpack.c.h.b16 %v5119
  %v6227 = vunpack.c.l.b16 %v5120
  %v6228 = vunpack.c.h.b16 %v5120
  %v6229 = vunpack.c.l.b16 %v5121
  %v6230 = vunpack.c.h.b16 %v5121
  %v6231 = vunpack.c.l.b16 %v5122
  %v6232 = vunpack.c.h.b16 %v5122
  %v6233 = vunpack.c.l.b16 %v5123
  %v6234 = vunpack.c.h.b16 %v5123
  %v6235 = vunpack.c.l.b16 %v5124
  %v6236 = vunpack.c.h.b16 %v5124
  %v6237 = vunpack.c.l.b16 %v5125
  %v6238 = vunpack.c.h.b16 %v5125
  %v6239 = vunpack.c.l.b16 %v5126
  %v6240 = vunpack.c.h.b16 %v5126
  %v6241 = vunpack.c.l.b16 %v5127
  %v6242 = vunpack.c.h.b16 %v5127
  %v6243 = vunpack.c.l.b16 %v5128
  %v6244 = vunpack.c.h.b16 %v5128
  %v6245 = vunpack.c.l.b16 %v5129
  %v6246 = vunpack.c.h.b16 %v5129
  %v6247 = vunpack.c.l.b16 %v5130
  %v6248 = vunpack.c.h.b16 %v5130
  %v6249 = vunpack.c.l.b16 %v5131
  %v6250 = vunpack.c.h.b16 %v5131
  %v6251 = vunpack.c.l.b16 %v5132
  %v6252 = vunpack.c.h.b16 %v5132
  %v6253 = vunpack.c.l.b16 %v5133
  %v6254 = vunpack.c.h.b16 %v5133
  %v6255 = vunpack.c.l.b16 %v5134
  %v6256 = vunpack.c.h.b16 %v5134
  %v6257 = vunpack.c.l.b16 %v5135
  %v6258 = vunpack.c.h.b16 %v5135
  %v6259 = vunpack.c.l.b16 %v5136
  %v6260 = vunpack.c.h.b16 %v5136
  %v6261 = vunpack.c.l.b16 %v5137
  %v6262 = vunpack.c.h.b16 %v5137
  %v6263 = vunpack.c.l.b16 %v5138
  %v6264 = vunpack.c.h.b16 %v5138
  %v6265 = vunpack.c.l.b16 %v5139
  %v6266 = vunpack.c.h.b16 %v5139
  %v6267 = vunpack.c.l.b16 %v5140
  %v6268 = vunpack.c.h.b16 %v5140
  %v6269 = vunpack.c.l.b16 %v5141
  %v6270 = vunpack.c.h.b16 %v5141
  %v6271 = vunpack.c.l.b16 %v5142
  %v6272 = vunpack.c.h.b16 %v5142
  %v6273 = vunpack.c.l.b16 %v5143
  %v6274 = vunpack.c.h.b16 %v5143
  %v6275 = vunpack.c.l.b16 %v5144
  %v6276 = vunpack.c.h.b16 %v5144
  %v6277 = vunpack.c.l.b16 %v5145
  %v6278 = vunpack.c.h.b16 %v5145
  %v6279 = vunpack.c.l.b16 %v5146
  %v6280 = vunpack.c.h.b16 %v5146
  %v6281 = vunpack.c.l.b16 %v5147
  %v6282 = vunpack.c.h.b16 %v5147
  %v6283 = vunpack.c.l.b16 %v5148
  %v6284 = vunpack.c.h.b16 %v5148
  %v6285 = vunpack.c.l.b16 %v5149
  %v6286 = vunpack.c.h.b16 %v5149
  %v6287 = vunpack.c.l.b16 %v5150
  %v6288 = vunpack.c.h.b16 %v5150
  %v6289 = vunpack.c.l.b16 %v5151
  %v6290 = vunpack.c.h.b16 %v5151
  %v6291 = vunpack.c.l.b16 %v5152
  %v6292 = vunpack.c.h.b16 %v5152
  %v6293 = vunpack.c.l.b16 %v5153
  %v6294 = vunpack.c.h.b16 %v5153
  %v6295 = vunpack.c.l.b16 %v5154
  %v6296 = vunpack.c.h.b16 %v5154
  %v6297 = vunpack.c.l.b16 %v5155
  %v6298 = vunpack.c.h.b16 %v5155
  %v6299 = vunpack.c.l.b16 %v5156
  %v6300 = vunpack.c.h.b16 %v5156
  %v6301 = vunpack.c.l.b16 %v5157
  %v6302 = vunpack.c.h.b16 %v5157
  %v6303 = vunpack.c.l.b16 %v5158
  %v6304 = vunpack.c.h.b16 %v5158
  %v6305 = vunpack.c.l.b16 %v5159
  %v6306 = vunpack.c.h.b16 %v5159
  %v6307 = vunpack.c.l.b16 %v5160
  %v6308 = vunpack.c.h.b16 %v5160
  %v6309 = vunpack.c.l.b16 %v5161
  %v6310 = vunpack.c.h.b16 %v5161
  %v6311 = vunpack.c.l.b16 %v5162
  %v6312 = vunpack.c.h.b16 %v5162
  %v6313 = vunpack.c.l.b16 %v5163
  %v6314 = vunpack.c.h.b16 %v5163
  %v6315 = vunpack.c.l.b16 %v5164
  %v6316 = vunpack.c.h.b16 %v5164
  %v6317 = vunpack.c.l.b16 %v5165
  %v6318 = vunpack.c.h.b16 %v5165
  %v6319 = vunpack.c.l.b16 %v5166
  %v6320 = vunpack.c.h.b16 %v5166
  %v6321 = vunpack.c.l.b16 %v5167
  %v6322 = vunpack.c.h.b16 %v5167
  %v6323 = vunpack.c.l.b16 %v5168
  %v6324 = vunpack.c.h.b16 %v5168
  %v6325 = vunpack.c.l.b16 %v5169
  %v6326 = vunpack.c.h.b16 %v5169
  %v6327 = vunpack.c.l.b16 %v5170
  %v6328 = vunpack.c.h.b16 %v5170
  %v6329 = vunpack.c.l.b16 %v5171
  %v6330 = vunpack.c.h.b16 %v5171
  %v6331 = vunpack.c.l.b16 %v5172
  %v6332 = vunpack.c.h.b16 %v5172
  %v6333 = vunpack.c.l.b16 %v5173
  %v6334 = vunpack.c.h.b16 %v5173
  %v6335 = vunpack.c.l.b16 %v5174
  %v6336 = vunpack.c.h.b16 %v5174
  %v6337 = vunpack.c.l.b16 %v5175
  %v6338 = vunpack.c.h.b16 %v5175
  %v6339 = vunpack.c.l.b16 %v5176
  %v6340 = vunpack.c.h.b16 %v5176
  %v6341 = vunpack.c.l.b16 %v5177
  %v6342 = vunpack.c.h.b16 %v5177
  %v6343 = vunpack.c.l.b16 %v5178
  %v6344 = vunpack.c.h.b16 %v5178
  %v6345 = vunpack.c.l.b16 %v5179
  %v6346 = vunpack.c.h.b16 %v5179
  %v6347 = vunpack.c.l.b16 %v5180
  %v6348 = vunpack.c.h.b16 %v5180
  %v6349 = vunpack.c.l.b16 %v5181
  %v6350 = vunpack.c.h.b16 %v5181
  %v6351 = vunpack.c.l.b16 %v5182
  %v6352 = vunpack.c.h.b16 %v5182
  %v6353 = vunpack.c.l.b16 %v5183
  %v6354 = vunpack.c.h.b16 %v5183
  %v6355 = vunpack.c.l.b16 %v5184
  %v6356 = vunpack.c.h.b16 %v5184
  %v6357 = vunpack.c.l.b16 %v5185
  %v6358 = vunpack.c.h.b16 %v5185
  %v6359 = vunpack.c.l.b16 %v5186
  %v6360 = vunpack.c.h.b16 %v5186
  %v6361 = vunpack.c.l.b16 %v5187
  %v6362 = vunpack.c.h.b16 %v5187
  %v6363 = vunpack.c.l.b16 %v5188
  %v6364 = vunpack.c.h.b16 %v5188
  %v6365 = vunpack.c.l.b16 %v5189
  %v6366 = vunpack.c.h.b16 %v5189
  %v6367 = vunpack.c.l.b16 %v5190
  %v6368 = vunpack.c.h.b16 %v5190
  %v6369 = vunpack.c.l.b16 %v5191
  %v6370 = vunpack.c.h.b16 %v5191
  %v6371 = vunpack.c.l.b16 %v5192
  %v6372 = vunpack.c.h.b16 %v5192
  %v6373 = vunpack.c.l.b16 %v5193
  %v6374 = vunpack.c.h.b16 %v5193
  %v6375 = vunpack.c.l.b16 %v5194
  %v6376 = vunpack.c.h.b16 %v5194
  %v6377 = vunpack.c.l.b16 %v5195
  %v6378 = vunpack.c.h.b16 %v5195
  %v6379 = vunpack.c.l.b16 %v5196
  %v6380 = vunpack.c.h.b16 %v5196
  %v6381 = vunpack.c.l.b16 %v5197
  %v6382 = vunpack.c.h.b16 %v5197
  %v6383 = vunpack.c.l.b16 %v5198
  %v6384 = vunpack.c.h.b16 %v5198
  %v6385 = vunpack.c.l.b16 %v5199
  %v6386 = vunpack.c.h.b16 %v5199
  %v6387 = vunpack.c.l.b16 %v5200
  %v6388 = vunpack.c.h.b16 %v5200
  %v6389 = vunpack.c.l.b16 %v5201
  %v6390 = vunpack.c.h.b16 %v5201
  %v6391 = vunpack.c.l.b16 %v5202
  %v6392 = vunpack.c.h.b16 %v5202
  %v6393 = vunpack.c.l.b16 %v5203
  %v6394 = vunpack.c.h.b16 %v5203
  %v6395 = vunpack.c.l.b16 %v5204
  %v6396 = vunpack.c.h.b16 %v5204
  %v6397 = vunpack.c.l.b16 %v5205
  %v6398 = vunpack.c.h.b16 %v5205
  %v6399 = vunpack.c.l.b16 %v5206
  %v6400 = vunpack.c.h.b16 %v5206
  %v6401 = vunpack.c.l.b16 %v5207
  %v6402 = vunpack.c.h.b16 %v5207
  %v6403 = vunpack.c.l.b16 %v5208
  %v6404 = vunpack.c.h.b16 %v5208
  %v6405 = vunpack.c.l.b16 %v5209
  %v6406 = vunpack.c.h.b16 %v5209
  %v6407 = vunpack.c.l.b16 %v5210
  %v6408 = vunpack.c.h.b16 %v5210
  %v6409 = vunpack.c.l.b16 %v5211
  %v6410 = vunpack.c.h.b16 %v5211
  %v6411 = vunpack.c.l.b16 %v5212
  %v6412 = vunpack.c.h.b16 %v5212
  %v6413 = vunpack.c.l.b16 %v5213
  %v6414 = vunpack.c.h.b16 %v5213
  %v6415 = vunpack.c.l.b16 %v5214
  %v6416 = vunpack.c.h.b16 %v5214
  %v6417 = vunpack.c.l.b16 %v5215
  %v6418 = vunpack.c.h.b16 %v5215
  %v6419 = vunpack.c.l.b16 %v5216
  %v6420 = vunpack.c.h.b16 %v5216
  %v6421 = vunpack.c.l.b16 %v5217
  %v6422 = vunpack.c.h.b16 %v5217
  %v6423 = vunpack.c.l.b16 %v5218
  %v6424 = vunpack.c.h.b16 %v5218
  %v6425 = vunpack.c.l.b16 %v5219
  %v6426 = vunpack.c.h.b16 %v5219
  %v6427 = vunpack.c.l.b16 %v5220
  %v6428 = vunpack.c.h.b16 %v5220
  %v6429 = vunpack.c.l.b16 %v5221
  %v6430 = vunpack.c.h.b16 %v5221
  %v6431 = vunpack.c.l.b16 %v5222
  %v6432 = vunpack.c.h.b16 %v5222
  %v6433 = vunpack.c.l.b16 %v5223
  %v6434 = vunpack.c.h.b16 %v5223
  %v6435 = vunpack.c.l.b16 %v5224
  %v6436 = vunpack.c.h.b16 %v5224
  %v6437 = vunpack.c.l.b16 %v5225
  %v6438 = vunpack.c.h.b16 %v5225
  %v6439 = vunpack.c.l.b16 %v5226
  %v6440 = vunpack.c.h.b16 %v5226
  %v6441 = vunpack.c.l.b16 %v5227
  %v6442 = vunpack.c.h.b16 %v5227
  %v6443 = vunpack.c.l.b16 %v5228
  %v6444 = vunpack.c.h.b16 %v5228
  %v6445 = vunpack.c.l.b16 %v5229
  %v6446 = vunpack.c.h.b16 %v5229
  %v6447 = vunpack.c.l.b16 %v5230
  %v6448 = vunpack.c.h.b16 %v5230
  %v6449 = vunpack.c.l.b16 %v5231
  %v6450 = vunpack.c.h.b16 %v5231
  %v6451 = vunpack.c.l.b16 %v5232
  %v6452 = vunpack.c.h.b16 %v5232
  %v6453 = vunpack.c.l.b16 %v5233
  %v6454 = vunpack.c.h.b16 %v5233
  %v6455 = vunpack.c.l.b16 %v5234
  %v6456 = vunpack.c.h.b16 %v5234
  %v6457 = vunpack.c.l.b16 %v5235
  %v6458 = vunpack.c.h.b16 %v5235
  %v6459 = vunpack.c.l.b16 %v5236
  %v6460 = vunpack.c.h.b16 %v5236
  %v6461 = vunpack.c.l.b16 %v5237
  %v6462 = vunpack.c.h.b16 %v5237
  %v6463 = vunpack.c.l.b16 %v5238
  %v6464 = vunpack.c.h.b16 %v5238
  %v6465 = vunpack.c.l.b16 %v5239
  %v6466 = vunpack.c.h.b16 %v5239
  %v6467 = vunpack.c.l.b16 %v5240
  %v6468 = vunpack.c.h.b16 %v5240
  %v6469 = vunpack.c.l.b16 %v5241
  %v6470 = vunpack.c.h.b16 %v5241
  %v6471 = vunpack.c.l.b16 %v5242
  %v6472 = vunpack.c.h.b16 %v5242
  %v6473 = vunpack.c.l.b16 %v5243
  %v6474 = vunpack.c.h.b16 %v5243
  %v6475 = vunpack.c.l.b16 %v5244
  %v6476 = vunpack.c.h.b16 %v5244
  %v6477 = vunpack.c.l.b16 %v5245
  %v6478 = vunpack.c.h.b16 %v5245
  %v6479 = vunpack.c.l.b16 %v5246
  %v6480 = vunpack.c.h.b16 %v5246
  %v6481 = vunpack.c.l.b16 %v5247
  %v6482 = vunpack.c.h.b16 %v5247
  %v6483 = vunpack.c.l.b16 %v5248
  %v6484 = vunpack.c.h.b16 %v5248
  %v6485 = vunpack.c.l.b16 %v5249
  %v6486 = vunpack.c.h.b16 %v5249
  %v6487 = vunpack.c.l.b16 %v5250
  %v6488 = vunpack.c.h.b16 %v5250
  %v6489 = vunpack.c.l.b16 %v5251
  %v6490 = vunpack.c.h.b16 %v5251
  %v6491 = vunpack.c.l.b16 %v5252
  %v6492 = vunpack.c.h.b16 %v5252
  %v6493 = vunpack.c.l.b16 %v5253
  %v6494 = vunpack.c.h.b16 %v5253
  %v6495 = vunpack.c.l.b16 %v5254
  %v6496 = vunpack.c.h.b16 %v5254
  %v6497 = vunpack.c.l.b16 %v5255
  %v6498 = vunpack.c.h.b16 %v5255
  %v6499 = vunpack.c.l.b16 %v5256
  %v6500 = vunpack.c.h.b16 %v5256
  %v6501 = vunpack.c.l.b16 %v5257
  %v6502 = vunpack.c.h.b16 %v5257
  %v6503 = vunpack.c.l.b16 %v5258
  %v6504 = vunpack.c.h.b16 %v5258
  %v6505 = vunpack.c.l.b16 %v5259
  %v6506 = vunpack.c.h.b16 %v5259
  %v6507 = vunpack.c.l.b16 %v5260
  %v6508 = vunpack.c.h.b16 %v5260
  %v6509 = vunpack.c.l.b16 %v5261
  %v6510 = vunpack.c.h.b16 %v5261
  %v6511 = vunpack.c.l.b16 %v5262
  %v6512 = vunpack.c.h.b16 %v5262
  %v6513 = vunpack.c.l.b16 %v5263
  %v6514 = vunpack.c.h.b16 %v5263
  %v6515 = vunpack.c.l.b16 %v5264
  %v6516 = vunpack.c.h.b16 %v5264
  %v6517 = vunpack.c.l.b16 %v5265
  %v6518 = vunpack.c.h.b16 %v5265
  %v6519 = vunpack.c.l.b16 %v5266
  %v6520 = vunpack.c.h.b16 %v5266
  %v6521 = vunpack.c.l.b16 %v5267
  %v6522 = vunpack.c.h.b16 %v5267
  %v6523 = vunpack.c.l.b16 %v5268
  %v6524 = vunpack.c.h.b16 %v5268
  %v6525 = vunpack.c.l.b16 %v5269
  %v6526 = vunpack.c.h.b16 %v5269
  %v6527 = vunpack.c.l.b16 %v5270
  %v6528 = vunpack.c.h.b16 %v5270
  %v6529 = vunpack.c.l.b16 %v5271
  %v6530 = vunpack.c.h.b16 %v5271
  %v6531 = vunpack.c.l.b16 %v5272
  %v6532 = vunpack.c.h.b16 %v5272
  %v6533 = vunpack.c.l.b16 %v5273
  %v6534 = vunpack.c.h.b16 %v5273
  %v6535 = vunpack.c.l.b16 %v5274
  %v6536 = vunpack.c.h.b16 %v5274
  %v6537 = vunpack.c.l.b16 %v5275
  %v6538 = vunpack.c.h.b16 %v5275
  %v6539 = vunpack.c.l.b16 %v5276
  %v6540 = vunpack.c.h.b16 %v5276
  %v6541 = vunpack.c.l.b16 %v5277
  %v6542 = vunpack.c.h.b16 %v5277
  %v6543 = vunpack.c.l.b16 %v5278
  %v6544 = vunpack.c.h.b16 %v5278
  %v6545 = vunpack.c.l.b16 %v5279
  %v6546 = vunpack.c.h.b16 %v5279
  %v6547 = vunpack.c.l.b16 %v5280
  %v6548 = vunpack.c.h.b16 %v5280
  %v6549 = vunpack.c.l.b16 %v5281
  %v6550 = vunpack.c.h.b16 %v5281
  %v6551 = vunpack.c.l.b16 %v5282
  %v6552 = vunpack.c.h.b16 %v5282
  %v6553 = vunpack.c.l.b16 %v5283
  %v6554 = vunpack.c.h.b16 %v5283
  %v6555 = vunpack.c.l.b16 %v5284
  %v6556 = vunpack.c.h.b16 %v5284
  %v6557 = vunpack.c.l.b16 %v5285
  %v6558 = vunpack.c.h.b16 %v5285
  %v6559 = vunpack.c.l.b16 %v5286
  %v6560 = vunpack.c.h.b16 %v5286
  %v6561 = vunpack.c.l.b16 %v5287
  %v6562 = vunpack.c.h.b16 %v5287
  %v6563 = vunpack.c.l.b16 %v5288
  %v6564 = vunpack.c.h.b16 %v5288
  %v6565 = vunpack.c.l.b16 %v5289
  %v6566 = vunpack.c.h.b16 %v5289
  %v6567 = vunpack.c.l.b16 %v5290
  %v6568 = vunpack.c.h.b16 %v5290
  %v6569 = vunpack.c.l.b16 %v5291
  %v6570 = vunpack.c.h.b16 %v5291
  %v6571 = vunpack.c.l.b16 %v5292
  %v6572 = vunpack.c.h.b16 %v5292
  %v6573 = vunpack.c.l.b16 %v5293
  %v6574 = vunpack.c.h.b16 %v5293
  %v6575 = vunpack.c.l.b16 %v5294
  %v6576 = vunpack.c.h.b16 %v5294
  %v6577 = vunpack.c.l.b16 %v5295
  %v6578 = vunpack.c.h.b16 %v5295
  %v6579 = vunpack.c.l.b16 %v5296
  %v6580 = vunpack.c.h.b16 %v5296
  %v6581 = vunpack.c.l.b16 %v5297
  %v6582 = vunpack.c.h.b16 %v5297
  %v6583 = vunpack.c.l.b16 %v5298
  %v6584 = vunpack.c.h.b16 %v5298
  %v6585 = vunpack.c.l.b16 %v5299
  %v6586 = vunpack.c.h.b16 %v5299
  %v6587 = vunpack.c.l.b16 %v5300
  %v6588 = vunpack.c.h.b16 %v5300
  %v6589 = vunpack.c.l.b16 %v5301
  %v6590 = vunpack.c.h.b16 %v5301
  %v6591 = vunpack.c.l.b16 %v5302
  %v6592 = vunpack.c.h.b16 %v5302
  %v6593 = vunpack.c.l.b16 %v5303
  %v6594 = vunpack.c.h.b16 %v5303
  %v6595 = vunpack.c.l.b16 %v5304
  %v6596 = vunpack.c.h.b16 %v5304
  %v6597 = vunpack.c.l.b16 %v5305
  %v6598 = vunpack.c.h.b16 %v5305
  %v6599 = vunpack.c.l.b16 %v5306
  %v6600 = vunpack.c.h.b16 %v5306
  %v6601 = vunpack.c.l.b16 %v5307
  %v6602 = vunpack.c.h.b16 %v5307
  %v6603 = vunpack.c.l.b16 %v5308
  %v6604 = vunpack.c.h.b16 %v5308
  %v6605 = vunpack.c.l.b16 %v5309
  %v6606 = vunpack.c.h.b16 %v5309
  %v6607 = vunpack.c.l.b16 %v5310
  %v6608 = vunpack.c.h.b16 %v5310
  %v6609 = vunpack.c.l.b16 %v5311
  %v6610 = vunpack.c.h.b16 %v5311
  %v6611 = vunpack.c.l.b16 %v5312
  %v6612 = vunpack.c.h.b16 %v5312
  %v6613 = vunpack.c.l.b16 %v5313
  %v6614 = vunpack.c.h.b16 %v5313
  %v6615 = vunpack.c.l.b16 %v5314
  %v6616 = vunpack.c.h.b16 %v5314
  %v6617 = vunpack.c.l.b16 %v5315
  %v6618 = vunpack.c.h.b16 %v5315
  %v6619 = vunpack.c.l.b16 %v5316
  %v6620 = vunpack.c.h.b16 %v5316
  %v6621 = vunpack.c.l.b16 %v5317
  %v6622 = vunpack.c.h.b16 %v5317
  %v6623 = vunpack.c.l.b16 %v5318
  %v6624 = vunpack.c.h.b16 %v5318
  %v6625 = vunpack.c.l.b16 %v5319
  %v6626 = vunpack.c.h.b16 %v5319
  %v6627 = vunpack.c.l.b16 %v5320
  %v6628 = vunpack.c.h.b16 %v5320
  %v6629 = vunpack.c.l.b16 %v5321
  %v6630 = vunpack.c.h.b16 %v5321
  %v6631 = vunpack.c.l.b16 %v5322
  %v6632 = vunpack.c.h.b16 %v5322
  %v6633 = vunpack.c.l.b16 %v5323
  %v6634 = vunpack.c.h.b16 %v5323
  %v6635 = vunpack.c.l.b16 %v5324
  %v6636 = vunpack.c.h.b16 %v5324
  %v6637 = vunpack.c.l.b16 %v5325
  %v6638 = vunpack.c.h.b16 %v5325
  %v6639 = vunpack.c.l.b16 %v5326
  %v6640 = vunpack.c.h.b16 %v5326
  %v6641 = vunpack.c.l.b16 %v5327
  %v6642 = vunpack.c.h.b16 %v5327
  %v6643 = vunpack.c.l.b16 %v5328
  %v6644 = vunpack.c.h.b16 %v5328
  %v6645 = vunpack.c.l.b16 %v5329
  %v6646 = vunpack.c.h.b16 %v5329
  %v6647 = vunpack.c.l.b16 %v5330
  %v6648 = vunpack.c.h.b16 %v5330
  %v6649 = vunpack.c.l.b16 %v5331
  %v6650 = vunpack.c.h.b16 %v5331
  %v6651 = vunpack.c.l.b16 %v5332
  %v6652 = vunpack.c.h.b16 %v5332
  %v6653 = vunpack.c.l.b16 %v5333
  %v6654 = vunpack.c.h.b16 %v5333
  %v6655 = vunpack.c.l.b16 %v5334
  %v6656 = vunpack.c.h.b16 %v5334
  %v6657 = vunpack.c.l.b16 %v5335
  %v6658 = vunpack.c.h.b16 %v5335
  %v6659 = vunpack.c.l.b16 %v5336
  %v6660 = vunpack.c.h.b16 %v5336
  %v6661 = vunpack.c.l.b16 %v5337
  %v6662 = vunpack.c.h.b16 %v5337
  %v6663 = vunpack.c.l.b16 %v5338
  %v6664 = vunpack.c.h.b16 %v5338
  %v6665 = vunpack.c.l.b16 %v5339
  %v6666 = vunpack.c.h.b16 %v5339
  %v6667 = vunpack.c.l.b16 %v5340
  %v6668 = vunpack.c.h.b16 %v5340
  %v6669 = vunpack.c.l.b16 %v5341
  %v6670 = vunpack.c.h.b16 %v5341
  %v6671 = vunpack.c.l.b16 %v5342
  %v6672 = vunpack.c.h.b16 %v5342
  %v6673 = vunpack.c.l.b16 %v5343
  %v6674 = vunpack.c.h.b16 %v5343
  %v6675 = vunpack.c.l.b16 %v5344
  %v6676 = vunpack.c.h.b16 %v5344
  %v6677 = vunpack.c.l.b16 %v5345
  %v6678 = vunpack.c.h.b16 %v5345
  %v6679 = vunpack.c.l.b16 %v5346
  %v6680 = vunpack.c.h.b16 %v5346
  %v6681 = vunpack.c.l.b16 %v5347
  %v6682 = vunpack.c.h.b16 %v5347
  %v6683 = vunpack.c.l.b16 %v5348
  %v6684 = vunpack.c.h.b16 %v5348
  %v6685 = vunpack.c.l.b16 %v5349
  %v6686 = vunpack.c.h.b16 %v5349
  %v6687 = vunpack.c.l.b16 %v5350
  %v6688 = vunpack.c.h.b16 %v5350
  %v6689 = vunpack.c.l.b16 %v5351
  %v6690 = vunpack.c.h.b16 %v5351
  %v6691 = vunpack.c.l.b16 %v5352
  %v6692 = vunpack.c.h.b16 %v5352
  %v6693 = vunpack.c.l.b16 %v5353
  %v6694 = vunpack.c.h.b16 %v5353
  %v6695 = vunpack.c.l.b16 %v5354
  %v6696 = vunpack.c.h.b16 %v5354
  %v6697 = vunpack.c.l.b16 %v5355
  %v6698 = vunpack.c.h.b16 %v5355
  %v6699 = vunpack.c.l.b16 %v5356
  %v6700 = vunpack.c.h.b16 %v5356
  %v6701 = vunpack.c.l.b16 %v5357
  %v6702 = vunpack.c.h.b16 %v5357
  %v6703 = vunpack.c.l.b16 %v5358
  %v6704 = vunpack.c.h.b16 %v5358
  %v6705 = vunpack.c.l.b16 %v5359
  %v6706 = vunpack.c.h.b16 %v5359
  %v6707 = vunpack.c.l.b16 %v5360
  %v6708 = vunpack.c.h.b16 %v5360
  %v6709 = vunpack.c.l.b16 %v5361
  %v6710 = vunpack.c.h.b16 %v5361
  %v6711 = vunpack.c.l.b16 %v5362
  %v6712 = vunpack.c.h.b16 %v5362
  %v6713 = vunpack.c.l.b16 %v5363
  %v6714 = vunpack.c.h.b16 %v5363
  %v6715 = vunpack.c.l.b16 %v5364
  %v6716 = vunpack.c.h.b16 %v5364
  %v6717 = vunpack.c.l.b16 %v5365
  %v6718 = vunpack.c.h.b16 %v5365
  %v6719 = vunpack.c.l.b16 %v5366
  %v6720 = vunpack.c.h.b16 %v5366
  %v6721 = vunpack.c.l.b16 %v5367
  %v6722 = vunpack.c.h.b16 %v5367
  %v6723 = vunpack.c.l.b16 %v5368
  %v6724 = vunpack.c.h.b16 %v5368
  %v6725 = vunpack.c.l.b16 %v5369
  %v6726 = vunpack.c.h.b16 %v5369
  %v6727 = vunpack.c.l.b16 %v5370
  %v6728 = vunpack.c.h.b16 %v5370
  %v6729 = vunpack.c.l.b16 %v5371
  %v6730 = vunpack.c.h.b16 %v5371
  %v6731 = vunpack.c.l.b16 %v5372
  %v6732 = vunpack.c.h.b16 %v5372
  %v6733 = vunpack.c.l.b16 %v5373
  %v6734 = vunpack.c.h.b16 %v5373
  %v6735 = vunpack.c.l.b16 %v5374
  %v6736 = vunpack.c.h.b16 %v5374
  %v6737 = vunpack.c.l.b16 %v5375
  %v6738 = vunpack.c.h.b16 %v5375
  %v6739 = vunpack.c.l.b16 %v5376
  %v6740 = vunpack.c.h.b16 %v5376
  %v6741 = vunpack.c.l.b16 %v5377
  %v6742 = vunpack.c.h.b16 %v5377
  %v6743 = vunpack.c.l.b16 %v5378
  %v6744 = vunpack.c.h.b16 %v5378
  %v6745 = vunpack.c.l.b16 %v5379
  %v6746 = vunpack.c.h.b16 %v5379
  %v6747 = vunpack.c.l.b16 %v5380
  %v6748 = vunpack.c.h.b16 %v5380
  %v6749 = vunpack.c.l.b16 %v5381
  %v6750 = vunpack.c.h.b16 %v5381
  %v6751 = vunpack.c.l.b16 %v5382
  %v6752 = vunpack.c.h.b16 %v5382
  %v6753 = vunpack.c.l.b16 %v5383
  %v6754 = vunpack.c.h.b16 %v5383
  %v6755 = vunpack.c.l.b16 %v5384
  %v6756 = vunpack.c.h.b16 %v5384
  %v6757 = vunpack.c.l.b16 %v5385
  %v6758 = vunpack.c.h.b16 %v5385
  %v6759 = vunpack.c.l.b16 %v5386
  %v6760 = vunpack.c.h.b16 %v5386
  %v6761 = vunpack.c.l.b16 %v5387
  %v6762 = vunpack.c.h.b16 %v5387
  %v6763 = vunpack.c.l.b16 %v5388
  %v6764 = vunpack.c.h.b16 %v5388
  %v6765 = vunpack.c.l.b16 %v5389
  %v6766 = vunpack.c.h.b16 %v5389
  %v6767 = vunpack.c.l.b16 %v5390
  %v6768 = vunpack.c.h.b16 %v5390
  %v6769 = vunpack.c.l.b16 %v5391
  %v6770 = vunpack.c.h.b16 %v5391
  %v6771 = vunpack.c.l.b16 %v5392
  %v6772 = vunpack.c.h.b16 %v5392
  %v6773 = vunpack.c.l.b16 %v5393
  %v6774 = vunpack.c.h.b16 %v5393
  %v6775 = vunpack.c.l.b16 %v5394
  %v6776 = vunpack.c.h.b16 %v5394
  %v6777 = vunpack.c.l.b16 %v5395
  %v6778 = vunpack.c.h.b16 %v5395
  %v6779 = vunpack.c.l.b16 %v5396
  %v6780 = vunpack.c.h.b16 %v5396
  %v6781 = vunpack.c.l.b16 %v5397
  %v6782 = vunpack.c.h.b16 %v5397
  %v6783 = vunpack.c.l.b16 %v5398
  %v6784 = vunpack.c.h.b16 %v5398
  %v6785 = vunpack.c.l.b16 %v5399
  %v6786 = vunpack.c.h.b16 %v5399
  %v6787 = vunpack.c.l.b16 %v5400
  %v6788 = vunpack.c.h.b16 %v5400
  %v6789 = vunpack.c.l.b16 %v5401
  %v6790 = vunpack.c.h.b16 %v5401
  %v6791 = vunpack.c.l.b16 %v5402
  %v6792 = vunpack.c.h.b16 %v5402
  %v6793 = vunpack.c.l.b16 %v5403
  %v6794 = vunpack.c.h.b16 %v5403
  %v6795 = vunpack.c.l.b16 %v5404
  %v6796 = vunpack.c.h.b16 %v5404
  %v6797 = vunpack.c.l.b16 %v5405
  %v6798 = vunpack.c.h.b16 %v5405
  %v6799 = vunpack.c.l.b16 %v5406
  %v6800 = vunpack.c.h.b16 %v5406
  %v6801 = vunpack.c.l.b16 %v5407
  %v6802 = vunpack.c.h.b16 %v5407
  %v6803 = vunpack.c.l.b16 %v5408
  %v6804 = vunpack.c.h.b16 %v5408
  %v6805 = vunpack.c.l.b16 %v5409
  %v6806 = vunpack.c.h.b16 %v5409
  %v6807 = vunpack.c.l.b16 %v5410
  %v6808 = vunpack.c.h.b16 %v5410
  %v6809 = vunpack.c.l.b16 %v5411
  %v6810 = vunpack.c.h.b16 %v5411
  %v6811 = vunpack.c.l.b16 %v5412
  %v6812 = vunpack.c.h.b16 %v5412
  %v6813 = vunpack.c.l.b16 %v5413
  %v6814 = vunpack.c.h.b16 %v5413
  %v6815 = vunpack.c.l.b16 %v5414
  %v6816 = vunpack.c.h.b16 %v5414
  %v6817 = vunpack.c.l.b16 %v5415
  %v6818 = vunpack.c.h.b16 %v5415
  %v6819 = vunpack.c.l.b16 %v5416
  %v6820 = vunpack.c.h.b16 %v5416
  %v6821 = vunpack.c.l.b16 %v5417
  %v6822 = vunpack.c.h.b16 %v5417
  %v6823 = vunpack.c.l.b16 %v5418
  %v6824 = vunpack.c.h.b16 %v5418
  %v6825 = vunpack.c.l.b16 %v5419
  %v6826 = vunpack.c.h.b16 %v5419
  %v6827 = vunpack.c.l.b16 %v5420
  %v6828 = vunpack.c.h.b16 %v5420
  %v6829 = vunpack.c.l.b16 %v5421
  %v6830 = vunpack.c.h.b16 %v5421
  %v6831 = vunpack.c.l.b16 %v5422
  %v6832 = vunpack.c.h.b16 %v5422
  %v6833 = vunpack.c.l.b16 %v5423
  %v6834 = vunpack.c.h.b16 %v5423
  %v6835 = vunpack.c.l.b16 %v5424
  %v6836 = vunpack.c.h.b16 %v5424
  %v6837 = vunpack.c.l.b16 %v5425
  %v6838 = vunpack.c.h.b16 %v5425
  %v6839 = vunpack.c.l.b16 %v5426
  %v6840 = vunpack.c.h.b16 %v5426
  %v6841 = vunpack.c.l.b16 %v5427
  %v6842 = vunpack.c.h.b16 %v5427
  %v6843 = vunpack.c.l.b16 %v5428
  %v6844 = vunpack.c.h.b16 %v5428
  %v6845 = vunpack.c.l.b16 %v5429
  %v6846 = vunpack.c.h.b16 %v5429
  %v6847 = vunpack.c.l.b16 %v5430
  %v6848 = vunpack.c.h.b16 %v5430
  %v6849 = vunpack.c.l.b16 %v5431
  %v6850 = vunpack.c.h.b16 %v5431
  %v6851 = vunpack.c.l.b16 %v5432
  %v6852 = vunpack.c.h.b16 %v5432
  %v6853 = vunpack.c.l.b16 %v5433
  %v6854 = vunpack.c.h.b16 %v5433
  %v6855 = vunpack.c.l.b16 %v5434
  %v6856 = vunpack.c.h.b16 %v5434
  %v6857 = vunpack.c.l.b16 %v5435
  %v6858 = vunpack.c.h.b16 %v5435
  %v6859 = vunpack.c.l.b16 %v5436
  %v6860 = vunpack.c.h.b16 %v5436
  %v6861 = vunpack.c.l.b16 %v5437
  %v6862 = vunpack.c.h.b16 %v5437
  %v6863 = vunpack.c.l.b16 %v5438
  %v6864 = vunpack.c.h.b16 %v5438
  %v6865 = vunpack.c.l.b16 %v5439
  %v6866 = vunpack.c.h.b16 %v5439
  %v6867 = vunpack.c.l.b16 %v5440
  %v6868 = vunpack.c.h.b16 %v5440
  %v6869 = vunpack.c.l.b16 %v5441
  %v6870 = vunpack.c.h.b16 %v5441
  %v6871 = vunpack.c.l.b16 %v5442
  %v6872 = vunpack.c.h.b16 %v5442
  %v6873 = vunpack.c.l.b16 %v5443
  %v6874 = vunpack.c.h.b16 %v5443
  %v6875 = vunpack.c.l.b16 %v5444
  %v6876 = vunpack.c.h.b16 %v5444
  %v6877 = vunpack.c.l.b16 %v5445
  %v6878 = vunpack.c.h.b16 %v5445
  %v6879 = vunpack.c.l.b16 %v5446
  %v6880 = vunpack.c.h.b16 %v5446
  %v6881 = vunpack.c.l.b16 %v5447
  %v6882 = vunpack.c.h.b16 %v5447
  %v6883 = vunpack.c.l.b16 %v5448
  %v6884 = vunpack.c.h.b16 %v5448
  %v6885 = vunpack.c.l.b16 %v5449
  %v6886 = vunpack.c.h.b16 %v5449
  %v6887 = vunpack.c.l.b16 %v5450
  %v6888 = vunpack.c.h.b16 %v5450
  %v6889 = vunpack.c.l.b16 %v5451
  %v6890 = vunpack.c.h.b16 %v5451
  %v6891 = vunpack.c.l.b16 %v5452
  %v6892 = vunpack.c.h.b16 %v5452
  %v6893 = vunpack.c.l.b16 %v5453
  %v6894 = vunpack.c.h.b16 %v5453
  %v6895 = vunpack.c.l.b16 %v5454
  %v6896 = vunpack.c.h.b16 %v5454
  %v6897 = vunpack.c.l.b16 %v5455
  %v6898 = vunpack.c.h.b16 %v5455
  %v6899 = vunpack.c.l.b16 %v5456
  %v6900 = vunpack.c.h.b16 %v5456
  %v6901 = vunpack.c.l.b16 %v5457
  %v6902 = vunpack.c.h.b16 %v5457
  %v6903 = vunpack.c.l.b16 %v5458
  %v6904 = vunpack.c.h.b16 %v5458
  %v6905 = vunpack.c.l.b16 %v5459
  %v6906 = vunpack.c.h.b16 %v5459
  %v6907 = vunpack.c.l.b16 %v5460
  %v6908 = vunpack.c.h.b16 %v5460
  %v6909 = vunpack.c.l.b16 %v5461
  %v6910 = vunpack.c.h.b16 %v5461
  %v6911 = vunpack.c.l.b16 %v5462
  %v6912 = vunpack.c.h.b16 %v5462
  %v6913 = vunpack.c.l.b16 %v5463
  %v6914 = vunpack.c.h.b16 %v5463
  %v6915 = vunpack.c.l.b16 %v5464
  %v6916 = vunpack.c.h.b16 %v5464
  %v6917 = vunpack.c.l.b16 %v5465
  %v6918 = vunpack.c.h.b16 %v5465
  %v6919 = vunpack.c.l.b16 %v5466
  %v6920 = vunpack.c.h.b16 %v5466
  %v6921 = vunpack.c.l.b16 %v5467
  %v6922 = vunpack.c.h.b16 %v5467
  %v6923 = vunpack.c.l.b16 %v5468
  %v6924 = vunpack.c.h.b16 %v5468
  %v6925 = vunpack.c.l.b16 %v5469
  %v6926 = vunpack.c.h.b16 %v5469
  %v6927 = vunpack.c.l.b16 %v5470
  %v6928 = vunpack.c.h.b16 %v5470
  %v6929 = vunpack.c.l.b16 %v5471
  %v6930 = vunpack.c.h.b16 %v5471
  %v6931 = vunpack.c.l.b16 %v5472
  %v6932 = vunpack.c.h.b16 %v5472
  %v6933 = vunpack.c.l.b16 %v5473
  %v6934 = vunpack.c.h.b16 %v5473
  %v6935 = vunpack.c.l.b16 %v5474
  %v6936 = vunpack.c.h.b16 %v5474
  %v6937 = vunpack.c.l.b16 %v5475
  %v6938 = vunpack.c.h.b16 %v5475
  %v6939 = vunpack.c.l.b16 %v5476
  %v6940 = vunpack.c.h.b16 %v5476
  %v6941 = vunpack.c.l.b16 %v5477
  %v6942 = vunpack.c.h.b16 %v5477
  %v6943 = vunpack.c.l.b16 %v5478
  %v6944 = vunpack.c.h.b16 %v5478
  %v6945 = vunpack.c.l.b16 %v5479
  %v6946 = vunpack.c.h.b16 %v5479
  %v6947 = vunpack.c.l.b16 %v5480
  %v6948 = vunpack.c.h.b16 %v5480
  %v6949 = vunpack.c.l.b16 %v5481
  %v6950 = vunpack.c.h.b16 %v5481
  %v6951 = vunpack.c.l.b16 %v5482
  %v6952 = vunpack.c.h.b16 %v5482
  %v6953 = vunpack.c.l.b16 %v5483
  %v6954 = vunpack.c.h.b16 %v5483
  %v6955 = vunpack.c.l.b16 %v5484
  %v6956 = vunpack.c.h.b16 %v5484
  %v6957 = vunpack.c.l.b16 %v5485
  %v6958 = vunpack.c.h.b16 %v5485
  %v6959 = vunpack.c.l.b16 %v5486
  %v6960 = vunpack.c.h.b16 %v5486
  %v6961 = vunpack.c.l.b16 %v5487
  %v6962 = vunpack.c.h.b16 %v5487
  %v6963 = vunpack.c.l.b16 %v5488
  %v6964 = vunpack.c.h.b16 %v5488
  %v6965 = vunpack.c.l.b16 %v5489
  %v6966 = vunpack.c.h.b16 %v5489
  %v6967 = vunpack.c.l.b16 %v5490
  %v6968 = vunpack.c.h.b16 %v5490
  %v6969 = vunpack.c.l.b16 %v5491
  %v6970 = vunpack.c.h.b16 %v5491
  %v6971 = vunpack.c.l.b16 %v5492
  %v6972 = vunpack.c.h.b16 %v5492
  %v6973 = vunpack.c.l.b16 %v5493
  %v6974 = vunpack.c.h.b16 %v5493
  %v6975 = vunpack.c.l.b16 %v5494
  %v6976 = vunpack.c.h.b16 %v5494
  %v6977 = vunpack.c.l.b16 %v5495
  %v6978 = vunpack.c.h.b16 %v5495
  %v6979 = vunpack.c.l.b16 %v5496
  %v6980 = vunpack.c.h.b16 %v5496
  %v6981 = vunpack.c.l.b16 %v5497
  %v6982 = vunpack.c.h.b16 %v5497
  %v6983 = vunpack.c.l.b16 %v5498
  %v6984 = vunpack.c.h.b16 %v5498
  %v6985 = vunpack.c.l.b16 %v5499
  %v6986 = vunpack.c.h.b16 %v5499
  %v6987 = vunpack.c.l.b16 %v5500
  %v6988 = vunpack.c.h.b16 %v5500
  %v6989 = vunpack.c.l.b16 %v5501
  %v6990 = vunpack.c.h.b16 %v5501
  %v6991 = vunpack.c.l.b16 %v5502
  %v6992 = vunpack.c.h.b16 %v5502
  %v6993 = vunpack.c.l.b16 %v5503
  %v6994 = vunpack.c.h.b16 %v5503
  %v6995 = vunpack.c.l.b16 %v5504
  %v6996 = vunpack.c.h.b16 %v5504
  %v6997 = vunpack.c.l.b16 %v5505
  %v6998 = vunpack.c.h.b16 %v5505
  %v6999 = vunpack.c.l.b16 %v5506
  %v7000 = vunpack.c.h.b16 %v5506
  %v7001 = vunpack.c.l.b16 %v5507
  %v7002 = vunpack.c.h.b16 %v5507
  %v7003 = vunpack.c.l.b16 %v5508
  %v7004 = vunpack.c.h.b16 %v5508
  %v7005 = vunpack.c.l.b16 %v5509
  %v7006 = vunpack.c.h.b16 %v5509
  %v7007 = vunpack.c.l.b16 %v5510
  %v7008 = vunpack.c.h.b16 %v5510
  %v7009 = vunpack.c.l.b16 %v5511
  %v7010 = vunpack.c.h.b16 %v5511
  %v7011 = vunpack.c.l.b16 %v5512
  %v7012 = vunpack.c.h.b16 %v5512
  %v7013 = vunpack.c.l.b16 %v5513
  %v7014 = vunpack.c.h.b16 %v5513
  %v7015 = vunpack.c.l.b16 %v5514
  %v7016 = vunpack.c.h.b16 %v5514
  %v7017 = vunpack.c.l.b16 %v5515
  %v7018 = vunpack.c.h.b16 %v5515
  %v7019 = vunpack.c.l.b16 %v5516
  %v7020 = vunpack.c.h.b16 %v5516
  %v7021 = vunpack.c.l.b16 %v5517
  %v7022 = vunpack.c.h.b16 %v5517
  %v7023 = vunpack.c.l.b16 %v5518
  %v7024 = vunpack.c.h.b16 %v5518
  %v7025 = vunpack.c.l.b16 %v5519
  %v7026 = vunpack.c.h.b16 %v5519
  %v7027 = vunpack.c.l.b16 %v5520
  %v7028 = vunpack.c.h.b16 %v5520
  %v7029 = vunpack.c.l.b16 %v5521
  %v7030 = vunpack.c.h.b16 %v5521
  %v7031 = vunpack.c.l.b16 %v5522
  %v7032 = vunpack.c.h.b16 %v5522
  %v7033 = vunpack.c.l.b16 %v5523
  %v7034 = vunpack.c.h.b16 %v5523
  %v7035 = vunpack.c.l.b16 %v5524
  %v7036 = vunpack.c.h.b16 %v5524
  %v7037 = vunpack.c.l.b16 %v5525
  %v7038 = vunpack.c.h.b16 %v5525
  %v7039 = vunpack.c.l.b16 %v5526
  %v7040 = vunpack.c.h.b16 %v5526
  %v7041 = vunpack.c.l.b16 %v5527
  %v7042 = vunpack.c.h.b16 %v5527
  %v7043 = vunpack.c.l.b16 %v5528
  %v7044 = vunpack.c.h.b16 %v5528
  %v7045 = vunpack.c.l.b16 %v5529
  %v7046 = vunpack.c.h.b16 %v5529
  %v7047 = vunpack.c.l.b16 %v5530
  %v7048 = vunpack.c.h.b16 %v5530
  %v7049 = vunpack.c.l.b16 %v5531
  %v7050 = vunpack.c.h.b16 %v5531
  %v7051 = vunpack.c.l.b16 %v5532
  %v7052 = vunpack.c.h.b16 %v5532
  %v7053 = vunpack.c.l.b16 %v5533
  %v7054 = vunpack.c.h.b16 %v5533
  %v7055 = vunpack.c.l.b16 %v5534
  %v7056 = vunpack.c.h.b16 %v5534
  %v7057 = vunpack.c.l.b16 %v5535
  %v7058 = vunpack.c.h.b16 %v5535
  %v7059 = vunpack.c.l.b16 %v5536
  %v7060 = vunpack.c.h.b16 %v5536
  %v7061 = vunpack.c.l.b16 %v5537
  %v7062 = vunpack.c.h.b16 %v5537
  %v7063 = vunpack.c.l.b16 %v5538
  %v7064 = vunpack.c.h.b16 %v5538
  %v7065 = vunpack.c.l.b16 %v5539
  %v7066 = vunpack.c.h.b16 %v5539
  %v7067 = vunpack.c.l.b16 %v5540
  %v7068 = vunpack.c.h.b16 %v5540
  %v7069 = vunpack.c.l.b16 %v5541
  %v7070 = vunpack.c.h.b16 %v5541
  %v7071 = vunpack.c.l.b16 %v5542
  %v7072 = vunpack.c.h.b16 %v5542
  %v7073 = vunpack.c.l.b16 %v5543
  %v7074 = vunpack.c.h.b16 %v5543
  %v7075 = vunpack.c.l.b16 %v5544
  %v7076 = vunpack.c.h.b16 %v5544
  %v7077 = vunpack.c.l.b16 %v5545
  %v7078 = vunpack.c.h.b16 %v5545
  %v7079 = vunpack.c.l.b16 %v5546
  %v7080 = vunpack.c.h.b16 %v5546
  %v7081 = vunpack.c.l.b16 %v5547
  %v7082 = vunpack.c.h.b16 %v5547
  %v7083 = vunpack.c.l.b16 %v5548
  %v7084 = vunpack.c.h.b16 %v5548
  %v7085 = vunpack.c.l.b16 %v5549
  %v7086 = vunpack.c.h.b16 %v5549
  %v7087 = vunpack.c.l.b16 %v5550
  %v7088 = vunpack.c.h.b16 %v5550
  %v7089 = vunpack.c.l.b16 %v5551
  %v7090 = vunpack.c.h.b16 %v5551
  %v7091 = vunpack.c.l.b16 %v5552
  %v7092 = vunpack.c.h.b16 %v5552
  %v7093 = vunpack.c.l.b16 %v5553
  %v7094 = vunpack.c.h.b16 %v5553
  %v7095 = vunpack.c.l.b16 %v5554
  %v7096 = vunpack.c.h.b16 %v5554
  %v7097 = vunpack.c.l.b16 %v5555
  %v7098 = vunpack.c.h.b16 %v5555
  %v7099 = vunpack.c.l.b16 %v5556
  %v7100 = vunpack.c.h.b16 %v5556
  %v7101 = vunpack.c.l.b16 %v5557
  %v7102 = vunpack.c.h.b16 %v5557
  %v7103 = vunpack.c.l.b16 %v5558
  %v7104 = vunpack.c.h.b16 %v5558
  %v7105 = vunpack.c.l.b16 %v5559
  %v7106 = vunpack.c.h.b16 %v5559
  %v7107 = vunpack.c.l.b16 %v5560
  %v7108 = vunpack.c.h.b16 %v5560
  %v7109 = vunpack.c.l.b16 %v5561
  %v7110 = vunpack.c.h.b16 %v5561
  %v7111 = vunpack.c.l.b16 %v5562
  %v7112 = vunpack.c.h.b16 %v5562
  %v7113 = vunpack.c.l.b16 %v5563
  %v7114 = vunpack.c.h.b16 %v5563
  %v7115 = vunpack.c.l.b16 %v5564
  %v7116 = vunpack.c.h.b16 %v5564
  %v7117 = vunpack.c.l.b16 %v5565
  %v7118 = vunpack.c.h.b16 %v5565
  %v7119 = vunpack.c.l.b16 %v5566
  %v7120 = vunpack.c.h.b16 %v5566
  %v7121 = vunpack.c.l.b16 %v5567
  %v7122 = vunpack.c.h.b16 %v5567
  %v7123 = vunpack.c.l.b16 %v5568
  %v7124 = vunpack.c.h.b16 %v5568
  %v7125 = vunpack.c.l.b16 %v5569
  %v7126 = vunpack.c.h.b16 %v5569
  %v7127 = vunpack.c.l.b16 %v5570
  %v7128 = vunpack.c.h.b16 %v5570
  %v7129 = vunpack.c.l.b16 %v5571
  %v7130 = vunpack.c.h.b16 %v5571
  %v7131 = vunpack.c.l.b16 %v5572
  %v7132 = vunpack.c.h.b16 %v5572
  %v7133 = vunpack.c.l.b16 %v5573
  %v7134 = vunpack.c.h.b16 %v5573
  %v7135 = vunpack.c.l.b16 %v5574
  %v7136 = vunpack.c.h.b16 %v5574
  %v7137 = vunpack.c.l.b16 %v5575
  %v7138 = vunpack.c.h.b16 %v5575
  %v7139 = vunpack.c.l.b16 %v5576
  %v7140 = vunpack.c.h.b16 %v5576
  %v7141 = vunpack.c.l.b16 %v5577
  %v7142 = vunpack.c.h.b16 %v5577
  %v7143 = vunpack.c.l.b16 %v5578
  %v7144 = vunpack.c.h.b16 %v5578
  %v7145 = vunpack.c.l.b16 %v5579
  %v7146 = vunpack.c.h.b16 %v5579
  %v7147 = vunpack.c.l.b16 %v5580
  %v7148 = vunpack.c.h.b16 %v5580
  %v7149 = vunpack.c.l.b16 %v5581
  %v7150 = vunpack.c.h.b16 %v5581
  %v7151 = vunpack.c.l.b16 %v5582
  %v7152 = vunpack.c.h.b16 %v5582
  %v7153 = vunpack.c.l.b16 %v5583
  %v7154 = vunpack.c.h.b16 %v5583
  %v7155 = vunpack.c.l.b16 %v5584
  %v7156 = vunpack.c.h.b16 %v5584
  %v7157 = vunpack.c.l.b16 %v5585
  %v7158 = vunpack.c.h.b16 %v5585
  %v7159 = vunpack.c.l.b16 %v5586
  %v7160 = vunpack.c.h.b16 %v5586
  %v7161 = vunpack.c.l.b16 %v5587
  %v7162 = vunpack.c.h.b16 %v5587
  %v7163 = vunpack.c.l.b16 %v5588
  %v7164 = vunpack.c.h.b16 %v5588
  %v7165 = vunpack.c.l.b16 %v5589
  %v7166 = vunpack.c.h.b16 %v5589
  %v7167 = vunpack.c.l.b16 %v5590
  %v7168 = vunpack.c.h.b16 %v5590
  %v7169 = vpack.c.b16 %v6153, %v6145
  %v7170 = vpack.c.b16 %v6154, %v6146
  %v7171 = vpack.c.b16 %v6155, %v6147
  %v7172 = vpack.c.b16 %v6156, %v6148
  %v7173 = vpack.c.b16 %v6157, %v6149
  %v7174 = vpack.c.b16 %v6158, %v6150
  %v7175 = vpack.c.b16 %v6159, %v6151
  %v7176 = vpack.c.b16 %v6160, %v6152
  %v7177 = vpack.c.b16 %v6169, %v6161
  %v7178 = vpack.c.b16 %v6170, %v6162
  %v7179 = vpack.c.b16 %v6171, %v6163
  %v7180 = vpack.c.b16 %v6172, %v6164
  %v7181 = vpack.c.b16 %v6173, %v6165
  %v7182 = vpack.c.b16 %v6174, %v6166
  %v7183 = vpack.c.b16 %v6175, %v6167
  %v7184 = vpack.c.b16 %v6176, %v6168
  %v7185 = vpack.c.b16 %v6185, %v6177
  %v7186 = vpack.c.b16 %v6186, %v6178
  %v7187 = vpack.c.b16 %v6187, %v6179
  %v7188 = vpack.c.b16 %v6188, %v6180
  %v7189 = vpack.c.b16 %v6189, %v6181
  %v7190 = vpack.c.b16 %v6190, %v6182
  %v7191 = vpack.c.b16 %v6191, %v6183
  %v7192 = vpack.c.b16 %v6192, %v6184
  %v7193 = vpack.c.b16 %v6201, %v6193
  %v7194 = vpack.c.b16 %v6202, %v6194
  %v7195 = vpack.c.b16 %v6203, %v6195
  %v7196 = vpack.c.b16 %v6204, %v6196
  %v7197 = vpack.c.b16 %v6205, %v6197
  %v7198 = vpack.c.b16 %v6206, %v6198
  %v7199 = vpack.c.b16 %v6207, %v6199
  %v7200 = vpack.c.b16 %v6208, %v6200
  %v7201 = vpack.c.b16 %v6217, %v6209
  %v7202 = vpack.c.b16 %v6218, %v6210
  %v7203 = vpack.c.b16 %v6219, %v6211
  %v7204 = vpack.c.b16 %v6220, %v6212
  %v7205 = vpack.c.b16 %v6221, %v6213
  %v7206 = vpack.c.b16 %v6222, %v6214
  %v7207 = vpack.c.b16 %v6223, %v6215
  %v7208 = vpack.c.b16 %v6224, %v6216
  %v7209 = vpack.c.b16 %v6233, %v6225
  %v7210 = vpack.c.b16 %v6234, %v6226
  %v7211 = vpack.c.b16 %v6235, %v6227
  %v7212 = vpack.c.b16 %v6236, %v6228
  %v7213 = vpack.c.b16 %v6237, %v6229
  %v7214 = vpack.c.b16 %v6238, %v6230
  %v7215 = vpack.c.b16 %v6239, %v6231
  %v7216 = vpack.c.b16 %v6240, %v6232
  %v7217 = vpack.c.b16 %v6249, %v6241
  %v7218 = vpack.c.b16 %v6250, %v6242
  %v7219 = vpack.c.b16 %v6251, %v6243
  %v7220 = vpack.c.b16 %v6252, %v6244
  %v7221 = vpack.c.b16 %v6253, %v6245
  %v7222 = vpack.c.b16 %v6254, %v6246
  %v7223 = vpack.c.b16 %v6255, %v6247
  %v7224 = vpack.c.b16 %v6256, %v6248
  %v7225 = vpack.c.b16 %v6265, %v6257
  %v7226 = vpack.c.b16 %v6266, %v6258
  %v7227 = vpack.c.b16 %v6267, %v6259
  %v7228 = vpack.c.b16 %v6268, %v6260
  %v7229 = vpack.c.b16 %v6269, %v6261
  %v7230 = vpack.c.b16 %v6270, %v6262
  %v7231 = vpack.c.b16 %v6271, %v6263
  %v7232 = vpack.c.b16 %v6272, %v6264
  %v7233 = vpack.c.b16 %v6281, %v6273
  %v7234 = vpack.c.b16 %v6282, %v6274
  %v7235 = vpack.c.b16 %v6283, %v6275
  %v7236 = vpack.c.b16 %v6284, %v6276
  %v7237 = vpack.c.b16 %v6285, %v6277
  %v7238 = vpack.c.b16 %v6286, %v6278
  %v7239 = vpack.c.b16 %v6287, %v6279
  %v7240 = vpack.c.b16 %v6288, %v6280
  %v7241 = vpack.c.b16 %v6297, %v6289
  %v7242 = vpack.c.b16 %v6298, %v6290
  %v7243 = vpack.c.b16 %v6299, %v6291
  %v7244 = vpack.c.b16 %v6300, %v6292
  %v7245 = vpack.c.b16 %v6301, %v6293
  %v7246 = vpack.c.b16 %v6302, %v6294
  %v7247 = vpack.c.b16 %v6303, %v6295
  %v7248 = vpack.c.b16 %v6304, %v6296
  %v7249 = vpack.c.b16 %v6313, %v6305
  %v7250 = vpack.c.b16 %v6314, %v6306
  %v7251 = vpack.c.b16 %v6315, %v6307
  %v7252 = vpack.c.b16 %v6316, %v6308
  %v7253 = vpack.c.b16 %v6317, %v6309
  %v7254 = vpack.c.b16 %v6318, %v6310
  %v7255 = vpack.c.b16 %v6319, %v6311
  %v7256 = vpack.c.b16 %v6320, %v6312
  %v7257 = vpack.c.b16 %v6329, %v6321
  %v7258 = vpack.c.b16 %v6330, %v6322
  %v7259 = vpack.c.b16 %v6331, %v6323
  %v7260 = vpack.c.b16 %v6332, %v6324
  %v7261 = vpack.c.b16 %v6333, %v6325
  %v7262 = vpack.c.b16 %v6334, %v6326
  %v7263 = vpack.c.b16 %v6335, %v6327
  %v7264 = vpack.c.b16 %v6336, %v6328
  %v7265 = vpack.c.b16 %v6345, %v6337
  %v7266 = vpack.c.b16 %v6346, %v6338
  %v7267 = vpack.c.b16 %v6347, %v6339
  %v7268 = vpack.c.b16 %v6348, %v6340
  %v7269 = vpack.c.b16 %v6349, %v6341
  %v7270 = vpack.c.b16 %v6350, %v6342
  %v7271 = vpack.c.b16 %v6351, %v6343
  %v7272 = vpack.c.b16 %v6352, %v6344
  %v7273 = vpack.c.b16 %v6361, %v6353
  %v7274 = vpack.c.b16 %v6362, %v6354
  %v7275 = vpack.c.b16 %v6363, %v6355
  %v7276 = vpack.c.b16 %v6364, %v6356
  %v7277 = vpack.c.b16 %v6365, %v6357
  %v7278 = vpack.c.b16 %v6366, %v6358
  %v7279 = vpack.c.b16 %v6367, %v6359
  %v7280 = vpack.c.b16 %v6368, %v6360
  %v7281 = vpack.c.b16 %v6377, %v6369
  %v7282 = vpack.c.b16 %v6378, %v6370
  %v7283 = vpack.c.b16 %v6379, %v6371
  %v7284 = vpack.c.b16 %v6380, %v6372
  %v7285 = vpack.c.b16 %v6381, %v6373
  %v7286 = vpack.c.b16 %v6382, %v6374
  %v7287 = vpack.c.b16 %v6383, %v6375
  %v7288 = vpack.c.b16 %v6384, %v6376
  %v7289 = vpack.c.b16 %v6393, %v6385
  %v7290 = vpack.c.b16 %v6394, %v6386
  %v7291 = vpack.c.b16 %v6395, %v6387
  %v7292 = vpack.c.b16 %v6396, %v6388
  %v7293 = vpack.c.b16 %v6397, %v6389
  %v7294 = vpack.c.b16 %v6398, %v6390
  %v7295 = vpack.c.b16 %v6399, %v6391
  %v7296 = vpack.c.b16 %v6400, %v6392
  %v7297 = vpack.c.b16 %v6409, %v6401
  %v7298 = vpack.c.b16 %v6410, %v6402
  %v7299 = vpack.c.b16 %v6411, %v6403
  %v7300 = vpack.c.b16 %v6412, %v6404
  %v7301 = vpack.c.b16 %v6413, %v6405
  %v7302 = vpack.c.b16 %v6414, %v6406
  %v7303 = vpack.c.b16 %v6415, %v6407
  %v7304 = vpack.c.b16 %v6416, %v6408
  %v7305 = vpack.c.b16 %v6425, %v6417
  %v7306 = vpack.c.b16 %v6426, %v6418
  %v7307 = vpack.c.b16 %v6427, %v6419
  %v7308 = vpack.c.b16 %v6428, %v6420
  %v7309 = vpack.c.b16 %v6429, %v6421
  %v7310 = vpack.c.b16 %v6430, %v6422
  %v7311 = vpack.c.b16 %v6431, %v6423
  %v7312 = vpack.c.b16 %v6432, %v6424
  %v7313 = vpack.c.b16 %v6441, %v6433
  %v7314 = vpack.c.b16 %v6442, %v6434
  %v7315 = vpack.c.b16 %v6443, %v6435
  %v7316 = vpack.c.b16 %v6444, %v6436
  %v7317 = vpack.c.b16 %v6445, %v6437
  %v7318 = vpack.c.b16 %v6446, %v6438
  %v7319 = vpack.c.b16 %v6447, %v6439
  %v7320 = vpack.c.b16 %v6448, %v6440
  %v7321 = vpack.c.b16 %v6457, %v6449
  %v7322 = vpack.c.b16 %v6458, %v6450
  %v7323 = vpack.c.b16 %v6459, %v6451
  %v7324 = vpack.c.b16 %v6460, %v6452
  %v7325 = vpack.c.b16 %v6461, %v6453
  %v7326 = vpack.c.b16 %v6462, %v6454
  %v7327 = vpack.c.b16 %v6463, %v6455
  %v7328 = vpack.c.b16 %v6464, %v6456
  %v7329 = vpack.c.b16 %v6473, %v6465
  %v7330 = vpack.c.b16 %v6474, %v6466
  %v7331 = vpack.c.b16 %v6475, %v6467
  %v7332 = vpack.c.b16 %v6476, %v6468
  %v7333 = vpack.c.b16 %v6477, %v6469
  %v7334 = vpack.c.b16 %v6478, %v6470
  %v7335 = vpack.c.b16 %v6479, %v6471
  %v7336 = vpack.c.b16 %v6480, %v6472
  %v7337 = vpack.c.b16 %v6489, %v6481
  %v7338 = vpack.c.b16 %v6490, %v6482
  %v7339 = vpack.c.b16 %v6491, %v6483
  %v7340 = vpack.c.b16 %v6492, %v6484
  %v7341 = vpack.c.b16 %v6493, %v6485
  %v7342 = vpack.c.b16 %v6494, %v6486
  %v7343 = vpack.c.b16 %v6495, %v6487
  %v7344 = vpack.c.b16 %v6496, %v6488
  %v7345 = vpack.c.b16 %v6505, %v6497
  %v7346 = vpack.c.b16 %v6506, %v6498
  %v7347 = vpack.c.b16 %v6507, %v6499
  %v7348 = vpack.c.b16 %v6508, %v6500
  %v7349 = vpack.c.b16 %v6509, %v6501
  %v7350 = vpack.c.b16 %v6510, %v6502
  %v7351 = vpack.c.b16 %v6511, %v6503
  %v7352 = vpack.c.b16 %v6512, %v6504
  %v7353 = vpack.c.b16 %v6521, %v6513
  %v7354 = vpack.c.b16 %v6522, %v6514
  %v7355 = vpack.c.b16 %v6523, %v6515
  %v7356 = vpack.c.b16 %v6524, %v6516
  %v7357 = vpack.c.b16 %v6525, %v6517
  %v7358 = vpack.c.b16 %v6526, %v6518
  %v7359 = vpack.c.b16 %v6527, %v6519
  %v7360 = vpack.c.b16 %v6528, %v6520
  %v7361 = vpack.c.b16 %v6537, %v6529
  %v7362 = vpack.c.b16 %v6538, %v6530
  %v7363 = vpack.c.b16 %v6539, %v6531
  %v7364 = vpack.c.b16 %v6540, %v6532
  %v7365 = vpack.c.b16 %v6541, %v6533
  %v7366 = vpack.c.b16 %v6542, %v6534
  %v7367 = vpack.c.b16 %v6543, %v6535
  %v7368 = vpack.c.b16 %v6544, %v6536
  %v7369 = vpack.c.b16 %v6553, %v6545
  %v7370 = vpack.c.b16 %v6554, %v6546
  %v7371 = vpack.c.b16 %v6555, %v6547
  %v7372 = vpack.c.b16 %v6556, %v6548
  %v7373 = vpack.c.b16 %v6557, %v6549
  %v7374 = vpack.c.b16 %v6558, %v6550
  %v7375 = vpack.c.b16 %v6559, %v6551
  %v7376 = vpack.c.b16 %v6560, %v6552
  %v7377 = vpack.c.b16 %v6569, %v6561
  %v7378 = vpack.c.b16 %v6570, %v6562
  %v7379 = vpack.c.b16 %v6571, %v6563
  %v7380 = vpack.c.b16 %v6572, %v6564
  %v7381 = vpack.c.b16 %v6573, %v6565
  %v7382 = vpack.c.b16 %v6574, %v6566
  %v7383 = vpack.c.b16 %v6575, %v6567
  %v7384 = vpack.c.b16 %v6576, %v6568
  %v7385 = vpack.c.b16 %v6585, %v6577
  %v7386 = vpack.c.b16 %v6586, %v6578
  %v7387 = vpack.c.b16 %v6587, %v6579
  %v7388 = vpack.c.b16 %v6588, %v6580
  %v7389 = vpack.c.b16 %v6589, %v6581
  %v7390 = vpack.c.b16 %v6590, %v6582
  %v7391 = vpack.c.b16 %v6591, %v6583
  %v7392 = vpack.c.b16 %v6592, %v6584
  %v7393 = vpack.c.b16 %v6601, %v6593
  %v7394 = vpack.c.b16 %v6602, %v6594
  %v7395 = vpack.c.b16 %v6603, %v6595
  %v7396 = vpack.c.b16 %v6604, %v6596
  %v7397 = vpack.c.b16 %v6605, %v6597
  %v7398 = vpack.c.b16 %v6606, %v6598
  %v7399 = vpack.c.b16 %v6607, %v6599
  %v7400 = vpack.c.b16 %v6608, %v6600
  %v7401 = vpack.c.b16 %v6617, %v6609
  %v7402 = vpack.c.b16 %v6618, %v6610
  %v7403 = vpack.c.b16 %v6619, %v6611
  %v7404 = vpack.c.b16 %v6620, %v6612
  %v7405 = vpack.c.b16 %v6621, %v6613
  %v7406 = vpack.c.b16 %v6622, %v6614
  %v7407 = vpack.c.b16 %v6623, %v6615
  %v7408 = vpack.c.b16 %v6624, %v6616
  %v7409 = vpack.c.b16 %v6633, %v6625
  %v7410 = vpack.c.b16 %v6634, %v6626
  %v7411 = vpack.c.b16 %v6635, %v6627
  %v7412 = vpack.c.b16 %v6636, %v6628
  %v7413 = vpack.c.b16 %v6637, %v6629
  %v7414 = vpack.c.b16 %v6638, %v6630
  %v7415 = vpack.c.b16 %v6639, %v6631
  %v7416 = vpack.c.b16 %v6640, %v6632
  %v7417 = vpack.c.b16 %v6649, %v6641
  %v7418 = vpack.c.b16 %v6650, %v6642
  %v7419 = vpack.c.b16 %v6651, %v6643
  %v7420 = vpack.c.b16 %v6652, %v6644
  %v7421 = vpack.c.b16 %v6653, %v6645
  %v7422 = vpack.c.b16 %v6654, %v6646
  %v7423 = vpack.c.b16 %v6655, %v6647
  %v7424 = vpack.c.b16 %v6656, %v6648
  %v7425 = vpack.c.b16 %v6665, %v6657
  %v7426 = vpack.c.b16 %v6666, %v6658
  %v7427 = vpack.c.b16 %v6667, %v6659
  %v7428 = vpack.c.b16 %v6668, %v6660
  %v7429 = vpack.c.b16 %v6669, %v6661
  %v7430 = vpack.c.b16 %v6670, %v6662
  %v7431 = vpack.c.b16 %v6671, %v6663
  %v7432 = vpack.c.b16 %v6672, %v6664
  %v7433 = vpack.c.b16 %v6681, %v6673
  %v7434 = vpack.c.b16 %v6682, %v6674
  %v7435 = vpack.c.b16 %v6683, %v6675
  %v7436 = vpack.c.b16 %v6684, %v6676
  %v7437 = vpack.c.b16 %v6685, %v6677
  %v7438 = vpack.c.b16 %v6686, %v6678
  %v7439 = vpack.c.b16 %v6687, %v6679
  %v7440 = vpack.c.b16 %v6688, %v6680
  %v7441 = vpack.c.b16 %v6697, %v6689
  %v7442 = vpack.c.b16 %v6698, %v6690
  %v7443 = vpack.c.b16 %v6699, %v6691
  %v7444 = vpack.c.b16 %v6700, %v6692
  %v7445 = vpack.c.b16 %v6701, %v6693
  %v7446 = vpack.c.b16 %v6702, %v6694
  %v7447 = vpack.c.b16 %v6703, %v6695
  %v7448 = vpack.c.b16 %v6704, %v6696
  %v7449 = vpack.c.b16 %v6713, %v6705
  %v7450 = vpack.c.b16 %v6714, %v6706
  %v7451 = vpack.c.b16 %v6715, %v6707
  %v7452 = vpack.c.b16 %v6716, %v6708
  %v7453 = vpack.c.b16 %v6717, %v6709
  %v7454 = vpack.c.b16 %v6718, %v6710
  %v7455 = vpack.c.b16 %v6719, %v6711
  %v7456 = vpack.c.b16 %v6720, %v6712
  %v7457 = vpack.c.b16 %v6729, %v6721
  %v7458 = vpack.c.b16 %v6730, %v6722
  %v7459 = vpack.c.b16 %v6731, %v6723
  %v7460 = vpack.c.b16 %v6732, %v6724
  %v7461 = vpack.c.b16 %v6733, %v6725
  %v7462 = vpack.c.b16 %v6734, %v6726
  %v7463 = vpack.c.b16 %v6735, %v6727
  %v7464 = vpack.c.b16 %v6736, %v6728
  %v7465 = vpack.c.b16 %v6745, %v6737
  %v7466 = vpack.c.b16 %v6746, %v6738
  %v7467 = vpack.c.b16 %v6747, %v6739
  %v7468 = vpack.c.b16 %v6748, %v6740
  %v7469 = vpack.c.b16 %v6749, %v6741
  %v7470 = vpack.c.b16 %v6750, %v6742
  %v7471 = vpack.c.b16 %v6751, %v6743
  %v7472 = vpack.c.b16 %v6752, %v6744
  %v7473 = vpack.c.b16 %v6761, %v6753
  %v7474 = vpack.c.b16 %v6762, %v6754
  %v7475 = vpack.c.b16 %v6763, %v6755
  %v7476 = vpack.c.b16 %v6764, %v6756
  %v7477 = vpack.c.b16 %v6765, %v6757
  %v7478 = vpack.c.b16 %v6766, %v6758
  %v7479 = vpack.c.b16 %v6767, %v6759
  %v7480 = vpack.c.b16 %v6768, %v6760
  %v7481 = vpack.c.b16 %v6777, %v6769
  %v7482 = vpack.c.b16 %v6778, %v6770
  %v7483 = vpack.c.b16 %v6779, %v6771
  %v7484 = vpack.c.b16 %v6780, %v6772
  %v7485 = vpack.c.b16 %v6781, %v6773
  %v7486 = vpack.c.b16 %v6782, %v6774
  %v7487 = vpack.c.b16 %v6783, %v6775
  %v7488 = vpack.c.b16 %v6784, %v6776
  %v7489 = vpack.c.b16 %v6793, %v6785
  %v7490 = vpack.c.b16 %v6794, %v6786
  %v7491 = vpack.c.b16 %v6795, %v6787
  %v7492 = vpack.c.b16 %v6796, %v6788
  %v7493 = vpack.c.b16 %v6797, %v6789
  %v7494 = vpack.c.b16 %v6798, %v6790
  %v7495 = vpack.c.b16 %v6799, %v6791
  %v7496 = vpack.c.b16 %v6800, %v6792
  %v7497 = vpack.c.b16 %v6809, %v6801
  %v7498 = vpack.c.b16 %v6810, %v6802
  %v7499 = vpack.c.b16 %v6811, %v6803
  %v7500 = vpack.c.b16 %v6812, %v6804
  %v7501 = vpack.c.b16 %v6813, %v6805
  %v7502 = vpack.c.b16 %v6814, %v6806
  %v7503 = vpack.c.b16 %v6815, %v6807
  %v7504 = vpack.c.b16 %v6816, %v6808
  %v7505 = vpack.c.b16 %v6825, %v6817
  %v7506 = vpack.c.b16 %v6826, %v6818
  %v7507 = vpack.c.b16 %v6827, %v6819
  %v7508 = vpack.c.b16 %v6828, %v6820
  %v7509 = vpack.c.b16 %v6829, %v6821
  %v7510 = vpack.c.b16 %v6830, %v6822
  %v7511 = vpack.c.b16 %v6831, %v6823
  %v7512 = vpack.c.b16 %v6832, %v6824
  %v7513 = vpack.c.b16 %v6841, %v6833
  %v7514 = vpack.c.b16 %v6842, %v6834
  %v7515 = vpack.c.b16 %v6843, %v6835
  %v7516 = vpack.c.b16 %v6844, %v6836
  %v7517 = vpack.c.b16 %v6845, %v6837
  %v7518 = vpack.c.b16 %v6846, %v6838
  %v7519 = vpack.c.b16 %v6847, %v6839
  %v7520 = vpack.c.b16 %v6848, %v6840
  %v7521 = vpack.c.b16 %v6857, %v6849
  %v7522 = vpack.c.b16 %v6858, %v6850
  %v7523 = vpack.c.b16 %v6859, %v6851
  %v7524 = vpack.c.b16 %v6860, %v6852
  %v7525 = vpack.c.b16 %v6861, %v6853
  %v7526 = vpack.c.b16 %v6862, %v6854
  %v7527 = vpack.c.b16 %v6863, %v6855
  %v7528 = vpack.c.b16 %v6864, %v6856
  %v7529 = vpack.c.b16 %v6873, %v6865
  %v7530 = vpack.c.b16 %v6874, %v6866
  %v7531 = vpack.c.b16 %v6875, %v6867
  %v7532 = vpack.c.b16 %v6876, %v6868
  %v7533 = vpack.c.b16 %v6877, %v6869
  %v7534 = vpack.c.b16 %v6878, %v6870
  %v7535 = vpack.c.b16 %v6879, %v6871
  %v7536 = vpack.c.b16 %v6880, %v6872
  %v7537 = vpack.c.b16 %v6889, %v6881
  %v7538 = vpack.c.b16 %v6890, %v6882
  %v7539 = vpack.c.b16 %v6891, %v6883
  %v7540 = vpack.c.b16 %v6892, %v6884
  %v7541 = vpack.c.b16 %v6893, %v6885
  %v7542 = vpack.c.b16 %v6894, %v6886
  %v7543 = vpack.c.b16 %v6895, %v6887
  %v7544 = vpack.c.b16 %v6896, %v6888
  %v7545 = vpack.c.b16 %v6905, %v6897
  %v7546 = vpack.c.b16 %v6906, %v6898
  %v7547 = vpack.c.b16 %v6907, %v6899
  %v7548 = vpack.c.b16 %v6908, %v6900
  %v7549 = vpack.c.b16 %v6909, %v6901
  %v7550 = vpack.c.b16 %v6910, %v6902
  %v7551 = vpack.c.b16 %v6911, %v6903
  %v7552 = vpack.c.b16 %v6912, %v6904
  %v7553 = vpack.c.b16 %v6921, %v6913
  %v7554 = vpack.c.b16 %v6922, %v6914
  %v7555 = vpack.c.b16 %v6923, %v6915
  %v7556 = vpack.c.b16 %v6924, %v6916
  %v7557 = vpack.c.b16 %v6925, %v6917
  %v7558 = vpack.c.b16 %v6926, %v6918
  %v7559 = vpack.c.b16 %v6927, %v6919
  %v7560 = vpack.c.b16 %v6928, %v6920
  %v7561 = vpack.c.b16 %v6937, %v6929
  %v7562 = vpack.c.b16 %v6938, %v6930
  %v7563 = vpack.c.b16 %v6939, %v6931
  %v7564 = vpack.c.b16 %v6940, %v6932
  %v7565 = vpack.c.b16 %v6941, %v6933
  %v7566 = vpack.c.b16 %v6942, %v6934
  %v7567 = vpack.c.b16 %v6943, %v6935
  %v7568 = vpack.c.b16 %v6944, %v6936
  %v7569 = vpack.c.b16 %v6953, %v6945
  %v7570 = vpack.c.b16 %v6954, %v6946
  %v7571 = vpack.c.b16 %v6955, %v6947
  %v7572 = vpack.c.b16 %v6956, %v6948
  %v7573 = vpack.c.b16 %v6957, %v6949
  %v7574 = vpack.c.b16 %v6958, %v6950
  %v7575 = vpack.c.b16 %v6959, %v6951
  %v7576 = vpack.c.b16 %v6960, %v6952
  %v7577 = vpack.c.b16 %v6969, %v6961
  %v7578 = vpack.c.b16 %v6970, %v6962
  %v7579 = vpack.c.b16 %v6971, %v6963
  %v7580 = vpack.c.b16 %v6972, %v6964
  %v7581 = vpack.c.b16 %v6973, %v6965
  %v7582 = vpack.c.b16 %v6974, %v6966
  %v7583 = vpack.c.b16 %v6975, %v6967
  %v7584 = vpack.c.b16 %v6976, %v6968
  %v7585 = vpack.c.b16 %v6985, %v6977
  %v7586 = vpack.c.b16 %v6986, %v6978
  %v7587 = vpack.c.b16 %v6987, %v6979
  %v7588 = vpack.c.b16 %v6988, %v6980
  %v7589 = vpack.c.b16 %v6989, %v6981
  %v7590 = vpack.c.b16 %v6990, %v6982
  %v7591 = vpack.c.b16 %v6991, %v6983
  %v7592 = vpack.c.b16 %v6992, %v6984
  %v7593 = vpack.c.b16 %v7001, %v6993
  %v7594 = vpack.c.b16 %v7002, %v6994
  %v7595 = vpack.c.b16 %v7003, %v6995
  %v7596 = vpack.c.b16 %v7004, %v6996
  %v7597 = vpack.c.b16 %v7005, %v6997
  %v7598 = vpack.c.b16 %v7006, %v6998
  %v7599 = vpack.c.b16 %v7007, %v6999
  %v7600 = vpack.c.b16 %v7008, %v7000
  %v7601 = vpack.c.b16 %v7017, %v7009
  %v7602 = vpack.c.b16 %v7018, %v7010
  %v7603 = vpack.c.b16 %v7019, %v7011
  %v7604 = vpack.c.b16 %v7020, %v7012
  %v7605 = vpack.c.b16 %v7021, %v7013
  %v7606 = vpack.c.b16 %v7022, %v7014
  %v7607 = vpack.c.b16 %v7023, %v7015
  %v7608 = vpack.c.b16 %v7024, %v7016
  %v7609 = vpack.c.b16 %v7033, %v7025
  %v7610 = vpack.c.b16 %v7034, %v7026
  %v7611 = vpack.c.b16 %v7035, %v7027
  %v7612 = vpack.c.b16 %v7036, %v7028
  %v7613 = vpack.c.b16 %v7037, %v7029
  %v7614 = vpack.c.b16 %v7038, %v7030
  %v7615 = vpack.c.b16 %v7039, %v7031
  %v7616 = vpack.c.b16 %v7040, %v7032
  %v7617 = vpack.c.b16 %v7049, %v7041
  %v7618 = vpack.c.b16 %v7050, %v7042
  %v7619 = vpack.c.b16 %v7051, %v7043
  %v7620 = vpack.c.b16 %v7052, %v7044
  %v7621 = vpack.c.b16 %v7053, %v7045
  %v7622 = vpack.c.b16 %v7054, %v7046
  %v7623 = vpack.c.b16 %v7055, %v7047
  %v7624 = vpack.c.b16 %v7056, %v7048
  %v7625 = vpack.c.b16 %v7065, %v7057
  %v7626 = vpack.c.b16 %v7066, %v7058
  %v7627 = vpack.c.b16 %v7067, %v7059
  %v7628 = vpack.c.b16 %v7068, %v7060
  %v7629 = vpack.c.b16 %v7069, %v7061
  %v7630 = vpack.c.b16 %v7070, %v7062
  %v7631 = vpack.c.b16 %v7071, %v7063
  %v7632 = vpack.c.b16 %v7072, %v7064
  %v7633 = vpack.c.b16 %v7081, %v7073
  %v7634 = vpack.c.b16 %v7082, %v7074
  %v7635 = vpack.c.b16 %v7083, %v7075
  %v7636 = vpack.c.b16 %v7084, %v7076
  %v7637 = vpack.c.b16 %v7085, %v7077
  %v7638 = vpack.c.b16 %v7086, %v7078
  %v7639 = vpack.c.b16 %v7087, %v7079
  %v7640 = vpack.c.b16 %v7088, %v7080
  %v7641 = vpack.c.b16 %v7097, %v7089
  %v7642 = vpack.c.b16 %v7098, %v7090
  %v7643 = vpack.c.b16 %v7099, %v7091
  %v7644 = vpack.c.b16 %v7100, %v7092
  %v7645 = vpack.c.b16 %v7101, %v7093
  %v7646 = vpack.c.b16 %v7102, %v7094
  %v7647 = vpack.c.b16 %v7103, %v7095
  %v7648 = vpack.c.b16 %v7104, %v7096
  %v7649 = vpack.c.b16 %v7113, %v7105
  %v7650 = vpack.c.b16 %v7114, %v7106
  %v7651 = vpack.c.b16 %v7115, %v7107
  %v7652 = vpack.c.b16 %v7116, %v7108
  %v7653 = vpack.c.b16 %v7117, %v7109
  %v7654 = vpack.c.b16 %v7118, %v7110
  %v7655 = vpack.c.b16 %v7119, %v7111
  %v7656 = vpack.c.b16 %v7120, %v7112
  %v7657 = vpack.c.b16 %v7129, %v7121
  %v7658 = vpack.c.b16 %v7130, %v7122
  %v7659 = vpack.c.b16 %v7131, %v7123
  %v7660 = vpack.c.b16 %v7132, %v7124
  %v7661 = vpack.c.b16 %v7133, %v7125
  %v7662 = vpack.c.b16 %v7134, %v7126
  %v7663 = vpack.c.b16 %v7135, %v7127
  %v7664 = vpack.c.b16 %v7136, %v7128
  %v7665 = vpack.c.b16 %v7145, %v7137
  %v7666 = vpack.c.b16 %v7146, %v7138
  %v7667 = vpack.c.b16 %v7147, %v7139
  %v7668 = vpack.c.b16 %v7148, %v7140
  %v7669 = vpack.c.b16 %v7149, %v7141
  %v7670 = vpack.c.b16 %v7150, %v7142
  %v7671 = vpack.c.b16 %v7151, %v7143
  %v7672 = vpack.c.b16 %v7152, %v7144
  %v7673 = vpack.c.b16 %v7161, %v7153
  %v7674 = vpack.c.b16 %v7162, %v7154
  %v7675 = vpack.c.b16 %v7163, %v7155
  %v7676 = vpack.c.b16 %v7164, %v7156
  %v7677 = vpack.c.b16 %v7165, %v7157
  %v7678 = vpack.c.b16 %v7166, %v7158
  %v7679 = vpack.c.b16 %v7167, %v7159
  %v7680 = vpack.c.b16 %v7168, %v7160
  %8193 = vmatprep.subr.bf16.mxu0 %v7170
  %8194 = vmatpush1.bf16.msra.mxu0 %v7169
  %8195 = vmatprep.subr.bf16.mxu0 %v7178
  %8196 = vmatpush1.bf16.msra.mxu0 %v7177
  %8197 = vmatprep.subr.bf16.mxu0 %v7186
  %8198 = vmatpush1.bf16.msra.mxu0 %v7185
  %8199 = vmatprep.subr.bf16.mxu0 %v7194
  %8200 = vmatpush1.bf16.msra.mxu0 %v7193
  %8201 = vmatprep.subr.bf16.mxu0 %v7202
  %8202 = vmatpush1.bf16.msra.mxu0 %v7201
  %8203 = vmatprep.subr.bf16.mxu0 %v7210
  %8204 = vmatpush1.bf16.msra.mxu0 %v7209
  %8205 = vmatprep.subr.bf16.mxu0 %v7218
  %8206 = vmatpush1.bf16.msra.mxu0 %v7217
  %8207 = vmatprep.subr.bf16.mxu0 %v7226
  %8208 = vmatpush1.bf16.msra.mxu0 %v7225
  %8209 = vmatprep.subr.bf16.mxu0 %v7234
  %8210 = vmatpush1.bf16.msra.mxu0 %v7233
  %8211 = vmatprep.subr.bf16.mxu0 %v7242
  %8212 = vmatpush1.bf16.msra.mxu0 %v7241
  %8213 = vmatprep.subr.bf16.mxu0 %v7250
  %8214 = vmatpush1.bf16.msra.mxu0 %v7249
  %8215 = vmatprep.subr.bf16.mxu0 %v7258
  %8216 = vmatpush1.bf16.msra.mxu0 %v7257
  %8217 = vmatprep.subr.bf16.mxu0 %v7266
  %8218 = vmatpush1.bf16.msra.mxu0 %v7265
  %8219 = vmatprep.subr.bf16.mxu0 %v7274
  %8220 = vmatpush1.bf16.msra.mxu0 %v7273
  %8221 = vmatprep.subr.bf16.mxu0 %v7282
  %8222 = vmatpush1.bf16.msra.mxu0 %v7281
  %8223 = vmatprep.subr.bf16.mxu0 %v7290
  %8224 = vmatpush1.bf16.msra.mxu0 %v7289
  %8225 = vmatprep.mubr.bf16.mxu0 %v5048
  %8226 = vmatmul.mubr.bf16.gmra.mrb[0].mxu0 %v5047
  %v8227 = vpop.f32.mrb[0].mxu0
  %v8228 = vadd.f32 %v5596, %v8227
  %v8229 = vpop.f32.mrb[0].mxu0
  %v8230 = vadd.f32 %v5600, %v8229
  %v8231 = vpop.f32.mrb[0].mxu0
  %v8232 = vadd.f32 %v5596, %v8231
  %v8233 = vpop.f32.mrb[0].mxu0
  %v8234 = vadd.f32 %v5600, %v8233
  %8235 = vmatprep.mubr.bf16.mxu0 %v5056
  %8236 = vmatmul.mubr.bf16.gmra.mrb[0].mxu0 %v5055
  %v8237 = vpop.f32.mrb[0].mxu0
  %v8238 = vadd.f32 %v5596, %v8237
  %v8239 = vpop.f32.mrb[0].mxu0
  %v8240 = vadd.f32 %v5600, %v8239
  %v8241 = vpop.f32.mrb[0].mxu0
  %v8242 = vadd.f32 %v5596, %v8241
  %v8243 = vpop.f32.mrb[0].mxu0
  %v8244 = vadd.f32 %v5600, %v8243
  %8245 = vmatprep.mubr.bf16.mxu0 %v5064
  %8246 = vmatmul.mubr.bf16.gmra.mrb[0].mxu0 %v5063
  %v8247 = vpop.f32.mrb[0].mxu0
  %v8248 = vadd.f32 %v5596, %v8247
  %v8249 = vpop.f32.mrb[0].mxu0
  %v8250 = vadd.f32 %v5600, %v8249
  %v8251 = vpop.f32.mrb[0].mxu0
  %v8252 = vadd.f32 %v5596, %v8251
  %v8253 = vpop.f32.mrb[0].mxu0
  %v8254 = vadd.f32 %v5600, %v8253
  %8255 = vmatprep.mubr.bf16.mxu0 %v5072
  %8256 = vmatmul.mubr.bf16.gmra.mrb[0].mxu0 %v5071
  %v8257 = vpop.f32.mrb[0].mxu0
  %v8258 = vadd.f32 %v5596, %v8257
  %v8259 = vpop.f32.mrb[0].mxu0
  %v8260 = vadd.f32 %v5600, %v8259
  %v8261 = vpop.f32.mrb[0].mxu0
  %v8262 = vadd.f32 %v5596, %v8261
  %v8263 = vpop.f32.mrb[0].mxu0
  %v8264 = vadd.f32 %v5600, %v8263
  %8265 = vdwg.mxu0
  %8266 = vmatprep.subr.bf16.mxu0 %v7298
  %8267 = vmatpush1.bf16.msra.mxu0 %v7297
  %8268 = vmatprep.subr.bf16.mxu0 %v7306
  %8269 = vmatpush1.bf16.msra.mxu0 %v7305
  %8270 = vmatprep.subr.bf16.mxu0 %v7314
  %8271 = vmatpush1.bf16.msra.mxu0 %v7313
  %8272 = vmatprep.subr.bf16.mxu0 %v7322
  %8273 = vmatpush1.bf16.msra.mxu0 %v7321
  %8274 = vmatprep.subr.bf16.mxu0 %v7330
  %8275 = vmatpush1.bf16.msra.mxu0 %v7329
  %8276 = vmatprep.subr.bf16.mxu0 %v7338
  %8277 = vmatpush1.bf16.msra.mxu0 %v7337
  %8278 = vmatprep.subr.bf16.mxu0 %v7346
  %8279 = vmatpush1.bf16.msra.mxu0 %v7345
  %8280 = vmatprep.subr.bf16.mxu0 %v7354
  %8281 = vmatpush1.bf16.msra.mxu0 %v7353
  %8282 = vmatprep.subr.bf16.mxu0 %v7362
  %8283 = vmatpush1.bf16.msra.mxu0 %v7361
  %8284 = vmatprep.subr.bf16.mxu0 %v7370
  %8285 = vmatpush1.bf16.msra.mxu0 %v7369
  %8286 = vmatprep.subr.bf16.mxu0 %v7378
  %8287 = vmatpush1.bf16.msra.mxu0 %v7377
  %8288 = vmatprep.subr.bf16.mxu0 %v7386
  %8289 = vmatpush1.bf16.msra.mxu0 %v7385
  %8290 = vmatprep.subr.bf16.mxu0 %v7394
  %8291 = vmatpush1.bf16.msra.mxu0 %v7393
  %8292 = vmatprep.subr.bf16.mxu0 %v7402
  %8293 = vmatpush1.bf16.msra.mxu0 %v7401
  %8294 = vmatprep.subr.bf16.mxu0 %v7410
  %8295 = vmatpush1.bf16.msra.mxu0 %v7409
  %8296 = vmatprep.subr.bf16.mxu0 %v7418
  %8297 = vmatpush1.bf16.msra.mxu0 %v7417
  %8298 = vmatprep.mubr.bf16.mxu0 %v5050
  %8299 = vmatmul.mubr.bf16.gmra.mrb[0].mxu0 %v5049
  %v8300 = vpop.f32.mrb[0].mxu0
  %v8301 = vadd.f32 %v8228, %v8300
  %v8302 = vpop.f32.mrb[0].mxu0
  %v8303 = vadd.f32 %v8230, %v8302
  %v8304 = vpop.f32.mrb[0].mxu0
  %v8305 = vadd.f32 %v8232, %v8304
  %v8306 = vpop.f32.mrb[0].mxu0
  %v8307 = vadd.f32 %v8234, %v8306
  %8308 = vmatprep.mubr.bf16.mxu0 %v5058
  %8309 = vmatmul.mubr.bf16.gmra.mrb[0].mxu0 %v5057
  %v8310 = vpop.f32.mrb[0].mxu0
  %v8311 = vadd.f32 %v8238, %v8310
  %v8312 = vpop.f32.mrb[0].mxu0
  %v8313 = vadd.f32 %v8240, %v8312
  %v8314 = vpop.f32.mrb[0].mxu0
  %v8315 = vadd.f32 %v8242, %v8314
  %v8316 = vpop.f32.mrb[0].mxu0
  %v8317 = vadd.f32 %v8244, %v8316
  %8318 = vmatprep.mubr.bf16.mxu0 %v5066
  %8319 = vmatmul.mubr.bf16.gmra.mrb[0].mxu0 %v5065
  %v8320 = vpop.f32.mrb[0].mxu0
  %v8321 = vadd.f32 %v8248, %v8320
  %v8322 = vpop.f32.mrb[0].mxu0
  %v8323 = vadd.f32 %v8250, %v8322
  %v8324 = vpop.f32.mrb[0].mxu0
  %v8325 = vadd.f32 %v8252, %v8324
  %v8326 = vpop.f32.mrb[0].mxu0
  %v8327 = vadd.f32 %v8254, %v8326
  %8328 = vmatprep.mubr.bf16.mxu0 %v5074
  %8329 = vmatmul.mubr.bf16.gmra.mrb[0].mxu0 %v5073
  %v8330 = vpop.f32.mrb[0].mxu0
  %v8331 = vadd.f32 %v8258, %v8330
  %v8332 = vpop.f32.mrb[0].mxu0
  %v8333 = vadd.f32 %v8260, %v8332
  %v8334 = vpop.f32.mrb[0].mxu0
  %v8335 = vadd.f32 %v8262, %v8334
  %v8336 = vpop.f32.mrb[0].mxu0
  %v8337 = vadd.f32 %v8264, %v8336
  %8338 = vdwg.mxu0
  %8339 = vmatprep.subr.bf16.mxu0 %v7426
  %8340 = vmatpush1.bf16.msra.mxu0 %v7425
  %8341 = vmatprep.subr.bf16.mxu0 %v7434
  %8342 = vmatpush1.bf16.msra.mxu0 %v7433
  %8343 = vmatprep.subr.bf16.mxu0 %v7442
  %8344 = vmatpush1.bf16.msra.mxu0 %v7441
  %8345 = vmatprep.subr.bf16.mxu0 %v7450
  %8346 = vmatpush1.bf16.msra.mxu0 %v7449
  %8347 = vmatprep.subr.bf16.mxu0 %v7458
  %8348 = vmatpush1.bf16.msra.mxu0 %v7457
  %8349 = vmatprep.subr.bf16.mxu0 %v7466
  %8350 = vmatpush1.bf16.msra.mxu0 %v7465
  %8351 = vmatprep.subr.bf16.mxu0 %v7474
  %8352 = vmatpush1.bf16.msra.mxu0 %v7473
  %8353 = vmatprep.subr.bf16.mxu0 %v7482
  %8354 = vmatpush1.bf16.msra.mxu0 %v7481
  %8355 = vmatprep.subr.bf16.mxu0 %v7490
  %8356 = vmatpush1.bf16.msra.mxu0 %v7489
  %8357 = vmatprep.subr.bf16.mxu0 %v7498
  %8358 = vmatpush1.bf16.msra.mxu0 %v7497
  %8359 = vmatprep.subr.bf16.mxu0 %v7506
  %8360 = vmatpush1.bf16.msra.mxu0 %v7505
  %8361 = vmatprep.subr.bf16.mxu0 %v7514
  %8362 = vmatpush1.bf16.msra.mxu0 %v7513
  %8363 = vmatprep.subr.bf16.mxu0 %v7522
  %8364 = vmatpush1.bf16.msra.mxu0 %v7521
  %8365 = vmatprep.subr.bf16.mxu0 %v7530
  %8366 = vmatpush1.bf16.msra.mxu0 %v7529
  %8367 = vmatprep.subr.bf16.mxu0 %v7538
  %8368 = vmatpush1.bf16.msra.mxu0 %v7537
  %8369 = vmatprep.subr.bf16.mxu0 %v7546
  %8370 = vmatpush1.bf16.msra.mxu0 %v7545
  %8371 = vmatprep.mubr.bf16.mxu0 %v5052
  %8372 = vmatmul.mubr.bf16.gmra.mrb[0].mxu0 %v5051
  %v8373 = vpop.f32.mrb[0].mxu0
  %v8374 = vadd.f32 %v8301, %v8373
  %v8375 = vpop.f32.mrb[0].mxu0
  %v8376 = vadd.f32 %v8303, %v8375
  %v8377 = vpop.f32.mrb[0].mxu0
  %v8378 = vadd.f32 %v8305, %v8377
  %v8379 = vpop.f32.mrb[0].mxu0
  %v8380 = vadd.f32 %v8307, %v8379
  %8381 = vmatprep.mubr.bf16.mxu0 %v5060
  %8382 = vmatmul.mubr.bf16.gmra.mrb[0].mxu0 %v5059
  %v8383 = vpop.f32.mrb[0].mxu0
  %v8384 = vadd.f32 %v8311, %v8383
  %v8385 = vpop.f32.mrb[0].mxu0
  %v8386 = vadd.f32 %v8313, %v8385
  %v8387 = vpop.f32.mrb[0].mxu0
  %v8388 = vadd.f32 %v8315, %v8387
  %v8389 = vpop.f32.mrb[0].mxu0
  %v8390 = vadd.f32 %v8317, %v8389
  %8391 = vmatprep.mubr.bf16.mxu0 %v5068
  %8392 = vmatmul.mubr.bf16.gmra.mrb[0].mxu0 %v5067
  %v8393 = vpop.f32.mrb[0].mxu0
  %v8394 = vadd.f32 %v8321, %v8393
  %v8395 = vpop.f32.mrb[0].mxu0
  %v8396 = vadd.f32 %v8323, %v8395
  %v8397 = vpop.f32.mrb[0].mxu0
  %v8398 = vadd.f32 %v8325, %v8397
  %v8399 = vpop.f32.mrb[0].mxu0
  %v8400 = vadd.f32 %v8327, %v8399
  %8401 = vmatprep.mubr.bf16.mxu0 %v5076
  %8402 = vmatmul.mubr.bf16.gmra.mrb[0].mxu0 %v5075
  %v8403 = vpop.f32.mrb[0].mxu0
  %v8404 = vadd.f32 %v8331, %v8403
  %v8405 = vpop.f32.mrb[0].mxu0
  %v8406 = vadd.f32 %v8333, %v8405
  %v8407 = vpop.f32.mrb[0].mxu0
  %v8408 = vadd.f32 %v8335, %v8407
  %v8409 = vpop.f32.mrb[0].mxu0
  %v8410 = vadd.f32 %v8337, %v8409
  %8411 = vdwg.mxu0
  %8412 = vmatprep.subr.bf16.mxu0 %v7554
  %8413 = vmatpush1.bf16.msra.mxu0 %v7553
  %8414 = vmatprep.subr.bf16.mxu0 %v7562
  %8415 = vmatpush1.bf16.msra.mxu0 %v7561
  %8416 = vmatprep.subr.bf16.mxu0 %v7570
  %8417 = vmatpush1.bf16.msra.mxu0 %v7569
  %8418 = vmatprep.subr.bf16.mxu0 %v7578
  %8419 = vmatpush1.bf16.msra.mxu0 %v7577
  %8420 = vmatprep.subr.bf16.mxu0 %v7586
  %8421 = vmatpush1.bf16.msra.mxu0 %v7585
  %8422 = vmatprep.subr.bf16.mxu0 %v7594
  %8423 = vmatpush1.bf16.msra.mxu0 %v7593
  %8424 = vmatprep.subr.bf16.mxu0 %v7602
  %8425 = vmatpush1.bf16.msra.mxu0 %v7601
  %8426 = vmatprep.subr.bf16.mxu0 %v7610
  %8427 = vmatpush1.bf16.msra.mxu0 %v7609
  %8428 = vmatprep.subr.bf16.mxu0 %v7618
  %8429 = vmatpush1.bf16.msra.mxu0 %v7617
  %8430 = vmatprep.subr.bf16.mxu0 %v7626
  %8431 = vmatpush1.bf16.msra.mxu0 %v7625
  %8432 = vmatprep.subr.bf16.mxu0 %v7634
  %8433 = vmatpush1.bf16.msra.mxu0 %v7633
  %8434 = vmatprep.subr.bf16.mxu0 %v7642
  %8435 = vmatpush1.bf16.msra.mxu0 %v7641
  %8436 = vmatprep.subr.bf16.mxu0 %v7650
  %8437 = vmatpush1.bf16.msra.mxu0 %v7649
  %8438 = vmatprep.subr.bf16.mxu0 %v7658
  %8439 = vmatpush1.bf16.msra.mxu0 %v7657
  %8440 = vmatprep.subr.bf16.mxu0 %v7666
  %8441 = vmatpush1.bf16.msra.mxu0 %v7665
  %8442 = vmatprep.subr.bf16.mxu0 %v7674
  %8443 = vmatpush1.bf16.msra.mxu0 %v7673
  %8444 = vmatprep.mubr.bf16.mxu0 %v5054
  %8445 = vmatmul.mubr.bf16.gmra.mrb[0].mxu0 %v5053
  %v8446 = vpop.f32.mrb[0].mxu0
  %v8447 = vadd.f32 %v8374, %v8446
  %v8448 = vpop.f32.mrb[0].mxu0
  %v8449 = vadd.f32 %v8376, %v8448
  %v8450 = vpop.f32.mrb[0].mxu0
  %v8451 = vadd.f32 %v8378, %v8450
  %v8452 = vpop.f32.mrb[0].mxu0
  %v8453 = vadd.f32 %v8380, %v8452
  %8454 = vmatprep.mubr.bf16.mxu0 %v5062
  %8455 = vmatmul.mubr.bf16.gmra.mrb[0].mxu0 %v5061
  %v8456 = vpop.f32.mrb[0].mxu0
  %v8457 = vadd.f32 %v8384, %v8456
  %v8458 = vpop.f32.mrb[0].mxu0
  %v8459 = vadd.f32 %v8386, %v8458
  %v8460 = vpop.f32.mrb[0].mxu0
  %v8461 = vadd.f32 %v8388, %v8460
  %v8462 = vpop.f32.mrb[0].mxu0
  %v8463 = vadd.f32 %v8390, %v8462
  %8464 = vmatprep.mubr.bf16.mxu0 %v5070
  %8465 = vmatmul.mubr.bf16.gmra.mrb[0].mxu0 %v5069
  %v8466 = vpop.f32.mrb[0].mxu0
  %v8467 = vadd.f32 %v8394, %v8466
  %v8468 = vpop.f32.mrb[0].mxu0
  %v8469 = vadd.f32 %v8396, %v8468
  %v8470 = vpop.f32.mrb[0].mxu0
  %v8471 = vadd.f32 %v8398, %v8470
  %v8472 = vpop.f32.mrb[0].mxu0
  %v8473 = vadd.f32 %v8400, %v8472
  %8474 = vmatprep.mubr.bf16.mxu0 %v5078
  %8475 = vmatmul.mubr.bf16.gmra.mrb[0].mxu0 %v5077
  %v8476 = vpop.f32.mrb[0].mxu0
  %v8477 = vadd.f32 %v8404, %v8476
  %v8478 = vpop.f32.mrb[0].mxu0
  %v8479 = vadd.f32 %v8406, %v8478
  %v8480 = vpop.f32.mrb[0].mxu0
  %v8481 = vadd.f32 %v8408, %v8480
  %v8482 = vpop.f32.mrb[0].mxu0
  %v8483 = vadd.f32 %v8410, %v8482
  %8484 = vdwg.mxu0
  %8485 = vmatprep.subr.bf16.mxu0 %v7172
  %8486 = vmatpush1.bf16.msra.mxu0 %v7171
  %8487 = vmatprep.subr.bf16.mxu0 %v7180
  %8488 = vmatpush1.bf16.msra.mxu0 %v7179
  %8489 = vmatprep.subr.bf16.mxu0 %v7188
  %8490 = vmatpush1.bf16.msra.mxu0 %v7187
  %8491 = vmatprep.subr.bf16.mxu0 %v7196
  %8492 = vmatpush1.bf16.msra.mxu0 %v7195
  %8493 = vmatprep.subr.bf16.mxu0 %v7204
  %8494 = vmatpush1.bf16.msra.mxu0 %v7203
  %8495 = vmatprep.subr.bf16.mxu0 %v7212
  %8496 = vmatpush1.bf16.msra.mxu0 %v7211
  %8497 = vmatprep.subr.bf16.mxu0 %v7220
  %8498 = vmatpush1.bf16.msra.mxu0 %v7219
  %8499 = vmatprep.subr.bf16.mxu0 %v7228
  %8500 = vmatpush1.bf16.msra.mxu0 %v7227
  %8501 = vmatprep.subr.bf16.mxu0 %v7236
  %8502 = vmatpush1.bf16.msra.mxu0 %v7235
  %8503 = vmatprep.subr.bf16.mxu0 %v7244
  %8504 = vmatpush1.bf16.msra.mxu0 %v7243
  %8505 = vmatprep.subr.bf16.mxu0 %v7252
  %8506 = vmatpush1.bf16.msra.mxu0 %v7251
  %8507 = vmatprep.subr.bf16.mxu0 %v7260
  %8508 = vmatpush1.bf16.msra.mxu0 %v7259
  %8509 = vmatprep.subr.bf16.mxu0 %v7268
  %8510 = vmatpush1.bf16.msra.mxu0 %v7267
  %8511 = vmatprep.subr.bf16.mxu0 %v7276
  %8512 = vmatpush1.bf16.msra.mxu0 %v7275
  %8513 = vmatprep.subr.bf16.mxu0 %v7284
  %8514 = vmatpush1.bf16.msra.mxu0 %v7283
  %8515 = vmatprep.subr.bf16.mxu0 %v7292
  %8516 = vmatpush1.bf16.msra.mxu0 %v7291
  %8517 = vmatprep.mubr.bf16.mxu0 %v5048
  %8518 = vmatmul.mubr.bf16.gmra.mrb[0].mxu0 %v5047
  %v8519 = vpop.f32.mrb[0].mxu0
  %v8520 = vadd.f32 %v5604, %v8519
  %v8521 = vpop.f32.mrb[0].mxu0
  %v8522 = vadd.f32 %v5608, %v8521
  %v8523 = vpop.f32.mrb[0].mxu0
  %v8524 = vadd.f32 %v5604, %v8523
  %v8525 = vpop.f32.mrb[0].mxu0
  %v8526 = vadd.f32 %v5608, %v8525
  %8527 = vmatprep.mubr.bf16.mxu0 %v5056
  %8528 = vmatmul.mubr.bf16.gmra.mrb[0].mxu0 %v5055
  %v8529 = vpop.f32.mrb[0].mxu0
  %v8530 = vadd.f32 %v5604, %v8529
  %v8531 = vpop.f32.mrb[0].mxu0
  %v8532 = vadd.f32 %v5608, %v8531
  %v8533 = vpop.f32.mrb[0].mxu0
  %v8534 = vadd.f32 %v5604, %v8533
  %v8535 = vpop.f32.mrb[0].mxu0
  %v8536 = vadd.f32 %v5608, %v8535
  %8537 = vmatprep.mubr.bf16.mxu0 %v5064
  %8538 = vmatmul.mubr.bf16.gmra.mrb[0].mxu0 %v5063
  %v8539 = vpop.f32.mrb[0].mxu0
  %v8540 = vadd.f32 %v5604, %v8539
  %v8541 = vpop.f32.mrb[0].mxu0
  %v8542 = vadd.f32 %v5608, %v8541
  %v8543 = vpop.f32.mrb[0].mxu0
  %v8544 = vadd.f32 %v5604, %v8543
  %v8545 = vpop.f32.mrb[0].mxu0
  %v8546 = vadd.f32 %v5608, %v8545
  %8547 = vmatprep.mubr.bf16.mxu0 %v5072
  %8548 = vmatmul.mubr.bf16.gmra.mrb[0].mxu0 %v5071
  %v8549 = vpop.f32.mrb[0].mxu0
  %v8550 = vadd.f32 %v5604, %v8549
  %v8551 = vpop.f32.mrb[0].mxu0
  %v8552 = vadd.f32 %v5608, %v8551
  %v8553 = vpop.f32.mrb[0].mxu0
  %v8554 = vadd.f32 %v5604, %v8553
  %v8555 = vpop.f32.mrb[0].mxu0
  %v8556 = vadd.f32 %v5608, %v8555
  %8557 = vdwg.mxu0
  %8558 = vmatprep.subr.bf16.mxu0 %v7300
  %8559 = vmatpush1.bf16.msra.mxu0 %v7299
  %8560 = vmatprep.subr.bf16.mxu0 %v7308
  %8561 = vmatpush1.bf16.msra.mxu0 %v7307
  %8562 = vmatprep.subr.bf16.mxu0 %v7316
  %8563 = vmatpush1.bf16.msra.mxu0 %v7315
  %8564 = vmatprep.subr.bf16.mxu0 %v7324
  %8565 = vmatpush1.bf16.msra.mxu0 %v7323
  %8566 = vmatprep.subr.bf16.mxu0 %v7332
  %8567 = vmatpush1.bf16.msra.mxu0 %v7331
  %8568 = vmatprep.subr.bf16.mxu0 %v7340
  %8569 = vmatpush1.bf16.msra.mxu0 %v7339
  %8570 = vmatprep.subr.bf16.mxu0 %v7348
  %8571 = vmatpush1.bf16.msra.mxu0 %v7347
  %8572 = vmatprep.subr.bf16.mxu0 %v7356
  %8573 = vmatpush1.bf16.msra.mxu0 %v7355
  %8574 = vmatprep.subr.bf16.mxu0 %v7364
  %8575 = vmatpush1.bf16.msra.mxu0 %v7363
  %8576 = vmatprep.subr.bf16.mxu0 %v7372
  %8577 = vmatpush1.bf16.msra.mxu0 %v7371
  %8578 = vmatprep.subr.bf16.mxu0 %v7380
  %8579 = vmatpush1.bf16.msra.mxu0 %v7379
  %8580 = vmatprep.subr.bf16.mxu0 %v7388
  %8581 = vmatpush1.bf16.msra.mxu0 %v7387
  %8582 = vmatprep.subr.bf16.mxu0 %v7396
  %8583 = vmatpush1.bf16.msra.mxu0 %v7395
  %8584 = vmatprep.subr.bf16.mxu0 %v7404
  %8585 = vmatpush1.bf16.msra.mxu0 %v7403
  %8586 = vmatprep.subr.bf16.mxu0 %v7412
  %8587 = vmatpush1.bf16.msra.mxu0 %v7411
  %8588 = vmatprep.subr.bf16.mxu0 %v7420
  %8589 = vmatpush1.bf16.msra.mxu0 %v7419
  %8590 = vmatprep.mubr.bf16.mxu0 %v5050
  %8591 = vmatmul.mubr.bf16.gmra.mrb[0].mxu0 %v5049
  %v8592 = vpop.f32.mrb[0].mxu0
  %v8593 = vadd.f32 %v8520, %v8592
  %v8594 = vpop.f32.mrb[0].mxu0
  %v8595 = vadd.f32 %v8522, %v8594
  %v8596 = vpop.f32.mrb[0].mxu0
  %v8597 = vadd.f32 %v8524, %v8596
  %v8598 = vpop.f32.mrb[0].mxu0
  %v8599 = vadd.f32 %v8526, %v8598
  %8600 = vmatprep.mubr.bf16.mxu0 %v5058
  %8601 = vmatmul.mubr.bf16.gmra.mrb[0].mxu0 %v5057
  %v8602 = vpop.f32.mrb[0].mxu0
  %v8603 = vadd.f32 %v8530, %v8602
  %v8604 = vpop.f32.mrb[0].mxu0
  %v8605 = vadd.f32 %v8532, %v8604
  %v8606 = vpop.f32.mrb[0].mxu0
  %v8607 = vadd.f32 %v8534, %v8606
  %v8608 = vpop.f32.mrb[0].mxu0
  %v8609 = vadd.f32 %v8536, %v8608
  %8610 = vmatprep.mubr.bf16.mxu0 %v5066
  %8611 = vmatmul.mubr.bf16.gmra.mrb[0].mxu0 %v5065
  %v8612 = vpop.f32.mrb[0].mxu0
  %v8613 = vadd.f32 %v8540, %v8612
  %v8614 = vpop.f32.mrb[0].mxu0
  %v8615 = vadd.f32 %v8542, %v8614
  %v8616 = vpop.f32.mrb[0].mxu0
  %v8617 = vadd.f32 %v8544, %v8616
  %v8618 = vpop.f32.mrb[0].mxu0
  %v8619 = vadd.f32 %v8546, %v8618
  %8620 = vmatprep.mubr.bf16.mxu0 %v5074
  %8621 = vmatmul.mubr.bf16.gmra.mrb[0].mxu0 %v5073
  %v8622 = vpop.f32.mrb[0].mxu0
  %v8623 = vadd.f32 %v8550, %v8622
  %v8624 = vpop.f32.mrb[0].mxu0
  %v8625 = vadd.f32 %v8552, %v8624
  %v8626 = vpop.f32.mrb[0].mxu0
  %v8627 = vadd.f32 %v8554, %v8626
  %v8628 = vpop.f32.mrb[0].mxu0
  %v8629 = vadd.f32 %v8556, %v8628
  %8630 = vdwg.mxu0
  %8631 = vmatprep.subr.bf16.mxu0 %v7428
  %8632 = vmatpush1.bf16.msra.mxu0 %v7427
  %8633 = vmatprep.subr.bf16.mxu0 %v7436
  %8634 = vmatpush1.bf16.msra.mxu0 %v7435
  %8635 = vmatprep.subr.bf16.mxu0 %v7444
  %8636 = vmatpush1.bf16.msra.mxu0 %v7443
  %8637 = vmatprep.subr.bf16.mxu0 %v7452
  %8638 = vmatpush1.bf16.msra.mxu0 %v7451
  %8639 = vmatprep.subr.bf16.mxu0 %v7460
  %8640 = vmatpush1.bf16.msra.mxu0 %v7459
  %8641 = vmatprep.subr.bf16.mxu0 %v7468
  %8642 = vmatpush1.bf16.msra.mxu0 %v7467
  %8643 = vmatprep.subr.bf16.mxu0 %v7476
  %8644 = vmatpush1.bf16.msra.mxu0 %v7475
  %8645 = vmatprep.subr.bf16.mxu0 %v7484
  %8646 = vmatpush1.bf16.msra.mxu0 %v7483
  %8647 = vmatprep.subr.bf16.mxu0 %v7492
  %8648 = vmatpush1.bf16.msra.mxu0 %v7491
  %8649 = vmatprep.subr.bf16.mxu0 %v7500
  %8650 = vmatpush1.bf16.msra.mxu0 %v7499
  %8651 = vmatprep.subr.bf16.mxu0 %v7508
  %8652 = vmatpush1.bf16.msra.mxu0 %v7507
  %8653 = vmatprep.subr.bf16.mxu0 %v7516
  %8654 = vmatpush1.bf16.msra.mxu0 %v7515
  %8655 = vmatprep.subr.bf16.mxu0 %v7524
  %8656 = vmatpush1.bf16.msra.mxu0 %v7523
  %8657 = vmatprep.subr.bf16.mxu0 %v7532
  %8658 = vmatpush1.bf16.msra.mxu0 %v7531
  %8659 = vmatprep.subr.bf16.mxu0 %v7540
  %8660 = vmatpush1.bf16.msra.mxu0 %v7539
  %8661 = vmatprep.subr.bf16.mxu0 %v7548
  %8662 = vmatpush1.bf16.msra.mxu0 %v7547
  %8663 = vmatprep.mubr.bf16.mxu0 %v5052
  %8664 = vmatmul.mubr.bf16.gmra.mrb[0].mxu0 %v5051
  %v8665 = vpop.f32.mrb[0].mxu0
  %v8666 = vadd.f32 %v8593, %v8665
  %v8667 = vpop.f32.mrb[0].mxu0
  %v8668 = vadd.f32 %v8595, %v8667
  %v8669 = vpop.f32.mrb[0].mxu0
  %v8670 = vadd.f32 %v8597, %v8669
  %v8671 = vpop.f32.mrb[0].mxu0
  %v8672 = vadd.f32 %v8599, %v8671
  %8673 = vmatprep.mubr.bf16.mxu0 %v5060
  %8674 = vmatmul.mubr.bf16.gmra.mrb[0].mxu0 %v5059
  %v8675 = vpop.f32.mrb[0].mxu0
  %v8676 = vadd.f32 %v8603, %v8675
  %v8677 = vpop.f32.mrb[0].mxu0
  %v8678 = vadd.f32 %v8605, %v8677
  %v8679 = vpop.f32.mrb[0].mxu0
  %v8680 = vadd.f32 %v8607, %v8679
  %v8681 = vpop.f32.mrb[0].mxu0
  %v8682 = vadd.f32 %v8609, %v8681
  %8683 = vmatprep.mubr.bf16.mxu0 %v5068
  %8684 = vmatmul.mubr.bf16.gmra.mrb[0].mxu0 %v5067
  %v8685 = vpop.f32.mrb[0].mxu0
  %v8686 = vadd.f32 %v8613, %v8685
  %v8687 = vpop.f32.mrb[0].mxu0
  %v8688 = vadd.f32 %v8615, %v8687
  %v8689 = vpop.f32.mrb[0].mxu0
  %v8690 = vadd.f32 %v8617, %v8689
  %v8691 = vpop.f32.mrb[0].mxu0
  %v8692 = vadd.f32 %v8619, %v8691
  %8693 = vmatprep.mubr.bf16.mxu0 %v5076
  %8694 = vmatmul.mubr.bf16.gmra.mrb[0].mxu0 %v5075
  %v8695 = vpop.f32.mrb[0].mxu0
  %v8696 = vadd.f32 %v8623, %v8695
  %v8697 = vpop.f32.mrb[0].mxu0
  %v8698 = vadd.f32 %v8625, %v8697
  %v8699 = vpop.f32.mrb[0].mxu0
  %v8700 = vadd.f32 %v8627, %v8699
  %v8701 = vpop.f32.mrb[0].mxu0
  %v8702 = vadd.f32 %v8629, %v8701
  %8703 = vdwg.mxu0
  %8704 = vmatprep.subr.bf16.mxu0 %v7556
  %8705 = vmatpush1.bf16.msra.mxu0 %v7555
  %8706 = vmatprep.subr.bf16.mxu0 %v7564
  %8707 = vmatpush1.bf16.msra.mxu0 %v7563
  %8708 = vmatprep.subr.bf16.mxu0 %v7572
  %8709 = vmatpush1.bf16.msra.mxu0 %v7571
  %8710 = vmatprep.subr.bf16.mxu0 %v7580
  %8711 = vmatpush1.bf16.msra.mxu0 %v7579
  %8712 = vmatprep.subr.bf16.mxu0 %v7588
  %8713 = vmatpush1.bf16.msra.mxu0 %v7587
  %8714 = vmatprep.subr.bf16.mxu0 %v7596
  %8715 = vmatpush1.bf16.msra.mxu0 %v7595
  %8716 = vmatprep.subr.bf16.mxu0 %v7604
  %8717 = vmatpush1.bf16.msra.mxu0 %v7603
  %8718 = vmatprep.subr.bf16.mxu0 %v7612
  %8719 = vmatpush1.bf16.msra.mxu0 %v7611
  %8720 = vmatprep.subr.bf16.mxu0 %v7620
  %8721 = vmatpush1.bf16.msra.mxu0 %v7619
  %8722 = vmatprep.subr.bf16.mxu0 %v7628
  %8723 = vmatpush1.bf16.msra.mxu0 %v7627
  %8724 = vmatprep.subr.bf16.mxu0 %v7636
  %8725 = vmatpush1.bf16.msra.mxu0 %v7635
  %8726 = vmatprep.subr.bf16.mxu0 %v7644
  %8727 = vmatpush1.bf16.msra.mxu0 %v7643
  %8728 = vmatprep.subr.bf16.mxu0 %v7652
  %8729 = vmatpush1.bf16.msra.mxu0 %v7651
  %8730 = vmatprep.subr.bf16.mxu0 %v7660
  %8731 = vmatpush1.bf16.msra.mxu0 %v7659
  %8732 = vmatprep.subr.bf16.mxu0 %v7668
  %8733 = vmatpush1.bf16.msra.mxu0 %v7667
  %8734 = vmatprep.subr.bf16.mxu0 %v7676
  %8735 = vmatpush1.bf16.msra.mxu0 %v7675
  %8736 = vmatprep.mubr.bf16.mxu0 %v5054
  %8737 = vmatmul.mubr.bf16.gmra.mrb[0].mxu0 %v5053
  %v8738 = vpop.f32.mrb[0].mxu0
  %v8739 = vadd.f32 %v8666, %v8738
  %v8740 = vpop.f32.mrb[0].mxu0
  %v8741 = vadd.f32 %v8668, %v8740
  %v8742 = vpop.f32.mrb[0].mxu0
  %v8743 = vadd.f32 %v8670, %v8742
  %v8744 = vpop.f32.mrb[0].mxu0
  %v8745 = vadd.f32 %v8672, %v8744
  %8746 = vmatprep.mubr.bf16.mxu0 %v5062
  %8747 = vmatmul.mubr.bf16.gmra.mrb[0].mxu0 %v5061
  %v8748 = vpop.f32.mrb[0].mxu0
  %v8749 = vadd.f32 %v8676, %v8748
  %v8750 = vpop.f32.mrb[0].mxu0
  %v8751 = vadd.f32 %v8678, %v8750
  %v8752 = vpop.f32.mrb[0].mxu0
  %v8753 = vadd.f32 %v8680, %v8752
  %v8754 = vpop.f32.mrb[0].mxu0
  %v8755 = vadd.f32 %v8682, %v8754
  %8756 = vmatprep.mubr.bf16.mxu0 %v5070
  %8757 = vmatmul.mubr.bf16.gmra.mrb[0].mxu0 %v5069
  %v8758 = vpop.f32.mrb[0].mxu0
  %v8759 = vadd.f32 %v8686, %v8758
  %v8760 = vpop.f32.mrb[0].mxu0
  %v8761 = vadd.f32 %v8688, %v8760
  %v8762 = vpop.f32.mrb[0].mxu0
  %v8763 = vadd.f32 %v8690, %v8762
  %v8764 = vpop.f32.mrb[0].mxu0
  %v8765 = vadd.f32 %v8692, %v8764
  %8766 = vmatprep.mubr.bf16.mxu0 %v5078
  %8767 = vmatmul.mubr.bf16.gmra.mrb[0].mxu0 %v5077
  %v8768 = vpop.f32.mrb[0].mxu0
  %v8769 = vadd.f32 %v8696, %v8768
  %v8770 = vpop.f32.mrb[0].mxu0
  %v8771 = vadd.f32 %v8698, %v8770
  %v8772 = vpop.f32.mrb[0].mxu0
  %v8773 = vadd.f32 %v8700, %v8772
  %v8774 = vpop.f32.mrb[0].mxu0
  %v8775 = vadd.f32 %v8702, %v8774
  %8776 = vdwg.mxu0
  %8777 = vmatprep.subr.bf16.mxu0 %v7174
  %8778 = vmatpush1.bf16.msra.mxu0 %v7173
  %8779 = vmatprep.subr.bf16.mxu0 %v7182
  %8780 = vmatpush1.bf16.msra.mxu0 %v7181
  %8781 = vmatprep.subr.bf16.mxu0 %v7190
  %8782 = vmatpush1.bf16.msra.mxu0 %v7189
  %8783 = vmatprep.subr.bf16.mxu0 %v7198
  %8784 = vmatpush1.bf16.msra.mxu0 %v7197
  %8785 = vmatprep.subr.bf16.mxu0 %v7206
  %8786 = vmatpush1.bf16.msra.mxu0 %v7205
  %8787 = vmatprep.subr.bf16.mxu0 %v7214
  %8788 = vmatpush1.bf16.msra.mxu0 %v7213
  %8789 = vmatprep.subr.bf16.mxu0 %v7222
  %8790 = vmatpush1.bf16.msra.mxu0 %v7221
  %8791 = vmatprep.subr.bf16.mxu0 %v7230
  %8792 = vmatpush1.bf16.msra.mxu0 %v7229
  %8793 = vmatprep.subr.bf16.mxu0 %v7238
  %8794 = vmatpush1.bf16.msra.mxu0 %v7237
  %8795 = vmatprep.subr.bf16.mxu0 %v7246
  %8796 = vmatpush1.bf16.msra.mxu0 %v7245
  %8797 = vmatprep.subr.bf16.mxu0 %v7254
  %8798 = vmatpush1.bf16.msra.mxu0 %v7253
  %8799 = vmatprep.subr.bf16.mxu0 %v7262
  %8800 = vmatpush1.bf16.msra.mxu0 %v7261
  %8801 = vmatprep.subr.bf16.mxu0 %v7270
  %8802 = vmatpush1.bf16.msra.mxu0 %v7269
  %8803 = vmatprep.subr.bf16.mxu0 %v7278
  %8804 = vmatpush1.bf16.msra.mxu0 %v7277
  %8805 = vmatprep.subr.bf16.mxu0 %v7286
  %8806 = vmatpush1.bf16.msra.mxu0 %v7285
  %8807 = vmatprep.subr.bf16.mxu0 %v7294
  %8808 = vmatpush1.bf16.msra.mxu0 %v7293
  %8809 = vmatprep.mubr.bf16.mxu0 %v5048
  %8810 = vmatmul.mubr.bf16.gmra.mrb[0].mxu0 %v5047
  %v8811 = vpop.f32.mrb[0].mxu0
  %v8812 = vadd.f32 %v5612, %v8811
  %v8813 = vpop.f32.mrb[0].mxu0
  %v8814 = vadd.f32 %v5616, %v8813
  %v8815 = vpop.f32.mrb[0].mxu0
  %v8816 = vadd.f32 %v5612, %v8815
  %v8817 = vpop.f32.mrb[0].mxu0
  %v8818 = vadd.f32 %v5616, %v8817
  %8819 = vmatprep.mubr.bf16.mxu0 %v5056
  %8820 = vmatmul.mubr.bf16.gmra.mrb[0].mxu0 %v5055
  %v8821 = vpop.f32.mrb[0].mxu0
  %v8822 = vadd.f32 %v5612, %v8821
  %v8823 = vpop.f32.mrb[0].mxu0
  %v8824 = vadd.f32 %v5616, %v8823
  %v8825 = vpop.f32.mrb[0].mxu0
  %v8826 = vadd.f32 %v5612, %v8825
  %v8827 = vpop.f32.mrb[0].mxu0
  %v8828 = vadd.f32 %v5616, %v8827
  %8829 = vmatprep.mubr.bf16.mxu0 %v5064
  %8830 = vmatmul.mubr.bf16.gmra.mrb[0].mxu0 %v5063
  %v8831 = vpop.f32.mrb[0].mxu0
  %v8832 = vadd.f32 %v5612, %v8831
  %v8833 = vpop.f32.mrb[0].mxu0
  %v8834 = vadd.f32 %v5616, %v8833
  %v8835 = vpop.f32.mrb[0].mxu0
  %v8836 = vadd.f32 %v5612, %v8835
  %v8837 = vpop.f32.mrb[0].mxu0
  %v8838 = vadd.f32 %v5616, %v8837
  %8839 = vmatprep.mubr.bf16.mxu0 %v5072
  %8840 = vmatmul.mubr.bf16.gmra.mrb[0].mxu0 %v5071
  %v8841 = vpop.f32.mrb[0].mxu0
  %v8842 = vadd.f32 %v5612, %v8841
  %v8843 = vpop.f32.mrb[0].mxu0
  %v8844 = vadd.f32 %v5616, %v8843
  %v8845 = vpop.f32.mrb[0].mxu0
  %v8846 = vadd.f32 %v5612, %v8845
  %v8847 = vpop.f32.mrb[0].mxu0
  %v8848 = vadd.f32 %v5616, %v8847
  %8849 = vdwg.mxu0
  %8850 = vmatprep.subr.bf16.mxu0 %v7302
  %8851 = vmatpush1.bf16.msra.mxu0 %v7301
  %8852 = vmatprep.subr.bf16.mxu0 %v7310
  %8853 = vmatpush1.bf16.msra.mxu0 %v7309
  %8854 = vmatprep.subr.bf16.mxu0 %v7318
  %8855 = vmatpush1.bf16.msra.mxu0 %v7317
  %8856 = vmatprep.subr.bf16.mxu0 %v7326
  %8857 = vmatpush1.bf16.msra.mxu0 %v7325
  %8858 = vmatprep.subr.bf16.mxu0 %v7334
  %8859 = vmatpush1.bf16.msra.mxu0 %v7333
  %8860 = vmatprep.subr.bf16.mxu0 %v7342
  %8861 = vmatpush1.bf16.msra.mxu0 %v7341
  %8862 = vmatprep.subr.bf16.mxu0 %v7350
  %8863 = vmatpush1.bf16.msra.mxu0 %v7349
  %8864 = vmatprep.subr.bf16.mxu0 %v7358
  %8865 = vmatpush1.bf16.msra.mxu0 %v7357
  %8866 = vmatprep.subr.bf16.mxu0 %v7366
  %8867 = vmatpush1.bf16.msra.mxu0 %v7365
  %8868 = vmatprep.subr.bf16.mxu0 %v7374
  %8869 = vmatpush1.bf16.msra.mxu0 %v7373
  %8870 = vmatprep.subr.bf16.mxu0 %v7382
  %8871 = vmatpush1.bf16.msra.mxu0 %v7381
  %8872 = vmatprep.subr.bf16.mxu0 %v7390
  %8873 = vmatpush1.bf16.msra.mxu0 %v7389
  %8874 = vmatprep.subr.bf16.mxu0 %v7398
  %8875 = vmatpush1.bf16.msra.mxu0 %v7397
  %8876 = vmatprep.subr.bf16.mxu0 %v7406
  %8877 = vmatpush1.bf16.msra.mxu0 %v7405
  %8878 = vmatprep.subr.bf16.mxu0 %v7414
  %8879 = vmatpush1.bf16.msra.mxu0 %v7413
  %8880 = vmatprep.subr.bf16.mxu0 %v7422
  %8881 = vmatpush1.bf16.msra.mxu0 %v7421
  %8882 = vmatprep.mubr.bf16.mxu0 %v5050
  %8883 = vmatmul.mubr.bf16.gmra.mrb[0].mxu0 %v5049
  %v8884 = vpop.f32.mrb[0].mxu0
  %v8885 = vadd.f32 %v8812, %v8884
  %v8886 = vpop.f32.mrb[0].mxu0
  %v8887 = vadd.f32 %v8814, %v8886
  %v8888 = vpop.f32.mrb[0].mxu0
  %v8889 = vadd.f32 %v8816, %v8888
  %v8890 = vpop.f32.mrb[0].mxu0
  %v8891 = vadd.f32 %v8818, %v8890
  %8892 = vmatprep.mubr.bf16.mxu0 %v5058
  %8893 = vmatmul.mubr.bf16.gmra.mrb[0].mxu0 %v5057
  %v8894 = vpop.f32.mrb[0].mxu0
  %v8895 = vadd.f32 %v8822, %v8894
  %v8896 = vpop.f32.mrb[0].mxu0
  %v8897 = vadd.f32 %v8824, %v8896
  %v8898 = vpop.f32.mrb[0].mxu0
  %v8899 = vadd.f32 %v8826, %v8898
  %v8900 = vpop.f32.mrb[0].mxu0
  %v8901 = vadd.f32 %v8828, %v8900
  %8902 = vmatprep.mubr.bf16.mxu0 %v5066
  %8903 = vmatmul.mubr.bf16.gmra.mrb[0].mxu0 %v5065
  %v8904 = vpop.f32.mrb[0].mxu0
  %v8905 = vadd.f32 %v8832, %v8904
  %v8906 = vpop.f32.mrb[0].mxu0
  %v8907 = vadd.f32 %v8834, %v8906
  %v8908 = vpop.f32.mrb[0].mxu0
  %v8909 = vadd.f32 %v8836, %v8908
  %v8910 = vpop.f32.mrb[0].mxu0
  %v8911 = vadd.f32 %v8838, %v8910
  %8912 = vmatprep.mubr.bf16.mxu0 %v5074
  %8913 = vmatmul.mubr.bf16.gmra.mrb[0].mxu0 %v5073
  %v8914 = vpop.f32.mrb[0].mxu0
  %v8915 = vadd.f32 %v8842, %v8914
  %v8916 = vpop.f32.mrb[0].mxu0
  %v8917 = vadd.f32 %v8844, %v8916
  %v8918 = vpop.f32.mrb[0].mxu0
  %v8919 = vadd.f32 %v8846, %v8918
  %v8920 = vpop.f32.mrb[0].mxu0
  %v8921 = vadd.f32 %v8848, %v8920
  %8922 = vdwg.mxu0
  %8923 = vmatprep.subr.bf16.mxu0 %v7430
  %8924 = vmatpush1.bf16.msra.mxu0 %v7429
  %8925 = vmatprep.subr.bf16.mxu0 %v7438
  %8926 = vmatpush1.bf16.msra.mxu0 %v7437
  %8927 = vmatprep.subr.bf16.mxu0 %v7446
  %8928 = vmatpush1.bf16.msra.mxu0 %v7445
  %8929 = vmatprep.subr.bf16.mxu0 %v7454
  %8930 = vmatpush1.bf16.msra.mxu0 %v7453
  %8931 = vmatprep.subr.bf16.mxu0 %v7462
  %8932 = vmatpush1.bf16.msra.mxu0 %v7461
  %8933 = vmatprep.subr.bf16.mxu0 %v7470
  %8934 = vmatpush1.bf16.msra.mxu0 %v7469
  %8935 = vmatprep.subr.bf16.mxu0 %v7478
  %8936 = vmatpush1.bf16.msra.mxu0 %v7477
  %8937 = vmatprep.subr.bf16.mxu0 %v7486
  %8938 = vmatpush1.bf16.msra.mxu0 %v7485
  %8939 = vmatprep.subr.bf16.mxu0 %v7494
  %8940 = vmatpush1.bf16.msra.mxu0 %v7493
  %8941 = vmatprep.subr.bf16.mxu0 %v7502
  %8942 = vmatpush1.bf16.msra.mxu0 %v7501
  %8943 = vmatprep.subr.bf16.mxu0 %v7510
  %8944 = vmatpush1.bf16.msra.mxu0 %v7509
  %8945 = vmatprep.subr.bf16.mxu0 %v7518
  %8946 = vmatpush1.bf16.msra.mxu0 %v7517
  %8947 = vmatprep.subr.bf16.mxu0 %v7526
  %8948 = vmatpush1.bf16.msra.mxu0 %v7525
  %8949 = vmatprep.subr.bf16.mxu0 %v7534
  %8950 = vmatpush1.bf16.msra.mxu0 %v7533
  %8951 = vmatprep.subr.bf16.mxu0 %v7542
  %8952 = vmatpush1.bf16.msra.mxu0 %v7541
  %8953 = vmatprep.subr.bf16.mxu0 %v7550
  %8954 = vmatpush1.bf16.msra.mxu0 %v7549
  %8955 = vmatprep.mubr.bf16.mxu0 %v5052
  %8956 = vmatmul.mubr.bf16.gmra.mrb[0].mxu0 %v5051
  %v8957 = vpop.f32.mrb[0].mxu0
  %v8958 = vadd.f32 %v8885, %v8957
  %v8959 = vpop.f32.mrb[0].mxu0
  %v8960 = vadd.f32 %v8887, %v8959
  %v8961 = vpop.f32.mrb[0].mxu0
  %v8962 = vadd.f32 %v8889, %v8961
  %v8963 = vpop.f32.mrb[0].mxu0
  %v8964 = vadd.f32 %v8891, %v8963
  %8965 = vmatprep.mubr.bf16.mxu0 %v5060
  %8966 = vmatmul.mubr.bf16.gmra.mrb[0].mxu0 %v5059
  %v8967 = vpop.f32.mrb[0].mxu0
  %v8968 = vadd.f32 %v8895, %v8967
  %v8969 = vpop.f32.mrb[0].mxu0
  %v8970 = vadd.f32 %v8897, %v8969
  %v8971 = vpop.f32.mrb[0].mxu0
  %v8972 = vadd.f32 %v8899, %v8971
  %v8973 = vpop.f32.mrb[0].mxu0
  %v8974 = vadd.f32 %v8901, %v8973
  %8975 = vmatprep.mubr.bf16.mxu0 %v5068
  %8976 = vmatmul.mubr.bf16.gmra.mrb[0].mxu0 %v5067
  %v8977 = vpop.f32.mrb[0].mxu0
  %v8978 = vadd.f32 %v8905, %v8977
  %v8979 = vpop.f32.mrb[0].mxu0
  %v8980 = vadd.f32 %v8907, %v8979
  %v8981 = vpop.f32.mrb[0].mxu0
  %v8982 = vadd.f32 %v8909, %v8981
  %v8983 = vpop.f32.mrb[0].mxu0
  %v8984 = vadd.f32 %v8911, %v8983
  %8985 = vmatprep.mubr.bf16.mxu0 %v5076
  %8986 = vmatmul.mubr.bf16.gmra.mrb[0].mxu0 %v5075
  %v8987 = vpop.f32.mrb[0].mxu0
  %v8988 = vadd.f32 %v8915, %v8987
  %v8989 = vpop.f32.mrb[0].mxu0
  %v8990 = vadd.f32 %v8917, %v8989
  %v8991 = vpop.f32.mrb[0].mxu0
  %v8992 = vadd.f32 %v8919, %v8991
  %v8993 = vpop.f32.mrb[0].mxu0
  %v8994 = vadd.f32 %v8921, %v8993
  %8995 = vdwg.mxu0
  %8996 = vmatprep.subr.bf16.mxu0 %v7558
  %8997 = vmatpush1.bf16.msra.mxu0 %v7557
  %8998 = vmatprep.subr.bf16.mxu0 %v7566
  %8999 = vmatpush1.bf16.msra.mxu0 %v7565
  %9000 = vmatprep.subr.bf16.mxu0 %v7574
  %9001 = vmatpush1.bf16.msra.mxu0 %v7573
  %9002 = vmatprep.subr.bf16.mxu0 %v7582
  %9003 = vmatpush1.bf16.msra.mxu0 %v7581
  %9004 = vmatprep.subr.bf16.mxu0 %v7590
  %9005 = vmatpush1.bf16.msra.mxu0 %v7589
  %9006 = vmatprep.subr.bf16.mxu0 %v7598
  %9007 = vmatpush1.bf16.msra.mxu0 %v7597
  %9008 = vmatprep.subr.bf16.mxu0 %v7606
  %9009 = vmatpush1.bf16.msra.mxu0 %v7605
  %9010 = vmatprep.subr.bf16.mxu0 %v7614
  %9011 = vmatpush1.bf16.msra.mxu0 %v7613
  %9012 = vmatprep.subr.bf16.mxu0 %v7622
  %9013 = vmatpush1.bf16.msra.mxu0 %v7621
  %9014 = vmatprep.subr.bf16.mxu0 %v7630
  %9015 = vmatpush1.bf16.msra.mxu0 %v7629
  %9016 = vmatprep.subr.bf16.mxu0 %v7638
  %9017 = vmatpush1.bf16.msra.mxu0 %v7637
  %9018 = vmatprep.subr.bf16.mxu0 %v7646
  %9019 = vmatpush1.bf16.msra.mxu0 %v7645
  %9020 = vmatprep.subr.bf16.mxu0 %v7654
  %9021 = vmatpush1.bf16.msra.mxu0 %v7653
  %9022 = vmatprep.subr.bf16.mxu0 %v7662
  %9023 = vmatpush1.bf16.msra.mxu0 %v7661
  %9024 = vmatprep.subr.bf16.mxu0 %v7670
  %9025 = vmatpush1.bf16.msra.mxu0 %v7669
  %9026 = vmatprep.subr.bf16.mxu0 %v7678
  %9027 = vmatpush1.bf16.msra.mxu0 %v7677
  %9028 = vmatprep.mubr.bf16.mxu0 %v5054
  %9029 = vmatmul.mubr.bf16.gmra.mrb[0].mxu0 %v5053
  %v9030 = vpop.f32.mrb[0].mxu0
  %v9031 = vadd.f32 %v8958, %v9030
  %v9032 = vpop.f32.mrb[0].mxu0
  %v9033 = vadd.f32 %v8960, %v9032
  %v9034 = vpop.f32.mrb[0].mxu0
  %v9035 = vadd.f32 %v8962, %v9034
  %v9036 = vpop.f32.mrb[0].mxu0
  %v9037 = vadd.f32 %v8964, %v9036
  %9038 = vmatprep.mubr.bf16.mxu0 %v5062
  %9039 = vmatmul.mubr.bf16.gmra.mrb[0].mxu0 %v5061
  %v9040 = vpop.f32.mrb[0].mxu0
  %v9041 = vadd.f32 %v8968, %v9040
  %v9042 = vpop.f32.mrb[0].mxu0
  %v9043 = vadd.f32 %v8970, %v9042
  %v9044 = vpop.f32.mrb[0].mxu0
  %v9045 = vadd.f32 %v8972, %v9044
  %v9046 = vpop.f32.mrb[0].mxu0
  %v9047 = vadd.f32 %v8974, %v9046
  %9048 = vmatprep.mubr.bf16.mxu0 %v5070
  %9049 = vmatmul.mubr.bf16.gmra.mrb[0].mxu0 %v5069
  %v9050 = vpop.f32.mrb[0].mxu0
  %v9051 = vadd.f32 %v8978, %v9050
  %v9052 = vpop.f32.mrb[0].mxu0
  %v9053 = vadd.f32 %v8980, %v9052
  %v9054 = vpop.f32.mrb[0].mxu0
  %v9055 = vadd.f32 %v8982, %v9054
  %v9056 = vpop.f32.mrb[0].mxu0
  %v9057 = vadd.f32 %v8984, %v9056
  %9058 = vmatprep.mubr.bf16.mxu0 %v5078
  %9059 = vmatmul.mubr.bf16.gmra.mrb[0].mxu0 %v5077
  %v9060 = vpop.f32.mrb[0].mxu0
  %v9061 = vadd.f32 %v8988, %v9060
  %v9062 = vpop.f32.mrb[0].mxu0
  %v9063 = vadd.f32 %v8990, %v9062
  %v9064 = vpop.f32.mrb[0].mxu0
  %v9065 = vadd.f32 %v8992, %v9064
  %v9066 = vpop.f32.mrb[0].mxu0
  %v9067 = vadd.f32 %v8994, %v9066
  %9068 = vdwg.mxu0
  %9069 = vmatprep.subr.bf16.mxu0 %v7176
  %9070 = vmatpush1.bf16.msra.mxu0 %v7175
  %9071 = vmatprep.subr.bf16.mxu0 %v7184
  %9072 = vmatpush1.bf16.msra.mxu0 %v7183
  %9073 = vmatprep.subr.bf16.mxu0 %v7192
  %9074 = vmatpush1.bf16.msra.mxu0 %v7191
  %9075 = vmatprep.subr.bf16.mxu0 %v7200
  %9076 = vmatpush1.bf16.msra.mxu0 %v7199
  %9077 = vmatprep.subr.bf16.mxu0 %v7208
  %9078 = vmatpush1.bf16.msra.mxu0 %v7207
  %9079 = vmatprep.subr.bf16.mxu0 %v7216
  %9080 = vmatpush1.bf16.msra.mxu0 %v7215
  %9081 = vmatprep.subr.bf16.mxu0 %v7224
  %9082 = vmatpush1.bf16.msra.mxu0 %v7223
  %9083 = vmatprep.subr.bf16.mxu0 %v7232
  %9084 = vmatpush1.bf16.msra.mxu0 %v7231
  %9085 = vmatprep.subr.bf16.mxu0 %v7240
  %9086 = vmatpush1.bf16.msra.mxu0 %v7239
  %9087 = vmatprep.subr.bf16.mxu0 %v7248
  %9088 = vmatpush1.bf16.msra.mxu0 %v7247
  %9089 = vmatprep.subr.bf16.mxu0 %v7256
  %9090 = vmatpush1.bf16.msra.mxu0 %v7255
  %9091 = vmatprep.subr.bf16.mxu0 %v7264
  %9092 = vmatpush1.bf16.msra.mxu0 %v7263
  %9093 = vmatprep.subr.bf16.mxu0 %v7272
  %9094 = vmatpush1.bf16.msra.mxu0 %v7271
  %9095 = vmatprep.subr.bf16.mxu0 %v7280
  %9096 = vmatpush1.bf16.msra.mxu0 %v7279
  %9097 = vmatprep.subr.bf16.mxu0 %v7288
  %9098 = vmatpush1.bf16.msra.mxu0 %v7287
  %9099 = vmatprep.subr.bf16.mxu0 %v7296
  %9100 = vmatpush1.bf16.msra.mxu0 %v7295
  %9101 = vmatprep.mubr.bf16.mxu0 %v5048
  %9102 = vmatmul.mubr.bf16.gmra.mrb[0].mxu0 %v5047
  %v9103 = vpop.f32.mrb[0].mxu0
  %v9104 = vadd.f32 %v5620, %v9103
  %v9105 = vpop.f32.mrb[0].mxu0
  %v9106 = vadd.f32 %v5624, %v9105
  %v9107 = vpop.f32.mrb[0].mxu0
  %v9108 = vadd.f32 %v5620, %v9107
  %v9109 = vpop.f32.mrb[0].mxu0
  %v9110 = vadd.f32 %v5624, %v9109
  %9111 = vmatprep.mubr.bf16.mxu0 %v5056
  %9112 = vmatmul.mubr.bf16.gmra.mrb[0].mxu0 %v5055
  %v9113 = vpop.f32.mrb[0].mxu0
  %v9114 = vadd.f32 %v5620, %v9113
  %v9115 = vpop.f32.mrb[0].mxu0
  %v9116 = vadd.f32 %v5624, %v9115
  %v9117 = vpop.f32.mrb[0].mxu0
  %v9118 = vadd.f32 %v5620, %v9117
  %v9119 = vpop.f32.mrb[0].mxu0
  %v9120 = vadd.f32 %v5624, %v9119
  %9121 = vmatprep.mubr.bf16.mxu0 %v5064
  %9122 = vmatmul.mubr.bf16.gmra.mrb[0].mxu0 %v5063
  %v9123 = vpop.f32.mrb[0].mxu0
  %v9124 = vadd.f32 %v5620, %v9123
  %v9125 = vpop.f32.mrb[0].mxu0
  %v9126 = vadd.f32 %v5624, %v9125
  %v9127 = vpop.f32.mrb[0].mxu0
  %v9128 = vadd.f32 %v5620, %v9127
  %v9129 = vpop.f32.mrb[0].mxu0
  %v9130 = vadd.f32 %v5624, %v9129
  %9131 = vmatprep.mubr.bf16.mxu0 %v5072
  %9132 = vmatmul.mubr.bf16.gmra.mrb[0].mxu0 %v5071
  %v9133 = vpop.f32.mrb[0].mxu0
  %v9134 = vadd.f32 %v5620, %v9133
  %v9135 = vpop.f32.mrb[0].mxu0
  %v9136 = vadd.f32 %v5624, %v9135
  %v9137 = vpop.f32.mrb[0].mxu0
  %v9138 = vadd.f32 %v5620, %v9137
  %v9139 = vpop.f32.mrb[0].mxu0
  %v9140 = vadd.f32 %v5624, %v9139
  %9141 = vdwg.mxu0
  %9142 = vmatprep.subr.bf16.mxu0 %v7304
  %9143 = vmatpush1.bf16.msra.mxu0 %v7303
  %9144 = vmatprep.subr.bf16.mxu0 %v7312
  %9145 = vmatpush1.bf16.msra.mxu0 %v7311
  %9146 = vmatprep.subr.bf16.mxu0 %v7320
  %9147 = vmatpush1.bf16.msra.mxu0 %v7319
  %9148 = vmatprep.subr.bf16.mxu0 %v7328
  %9149 = vmatpush1.bf16.msra.mxu0 %v7327
  %9150 = vmatprep.subr.bf16.mxu0 %v7336
  %9151 = vmatpush1.bf16.msra.mxu0 %v7335
  %9152 = vmatprep.subr.bf16.mxu0 %v7344
  %9153 = vmatpush1.bf16.msra.mxu0 %v7343
  %9154 = vmatprep.subr.bf16.mxu0 %v7352
  %9155 = vmatpush1.bf16.msra.mxu0 %v7351
  %9156 = vmatprep.subr.bf16.mxu0 %v7360
  %9157 = vmatpush1.bf16.msra.mxu0 %v7359
  %9158 = vmatprep.subr.bf16.mxu0 %v7368
  %9159 = vmatpush1.bf16.msra.mxu0 %v7367
  %9160 = vmatprep.subr.bf16.mxu0 %v7376
  %9161 = vmatpush1.bf16.msra.mxu0 %v7375
  %9162 = vmatprep.subr.bf16.mxu0 %v7384
  %9163 = vmatpush1.bf16.msra.mxu0 %v7383
  %9164 = vmatprep.subr.bf16.mxu0 %v7392
  %9165 = vmatpush1.bf16.msra.mxu0 %v7391
  %9166 = vmatprep.subr.bf16.mxu0 %v7400
  %9167 = vmatpush1.bf16.msra.mxu0 %v7399
  %9168 = vmatprep.subr.bf16.mxu0 %v7408
  %9169 = vmatpush1.bf16.msra.mxu0 %v7407
  %9170 = vmatprep.subr.bf16.mxu0 %v7416
  %9171 = vmatpush1.bf16.msra.mxu0 %v7415
  %9172 = vmatprep.subr.bf16.mxu0 %v7424
  %9173 = vmatpush1.bf16.msra.mxu0 %v7423
  %9174 = vmatprep.mubr.bf16.mxu0 %v5050
  %9175 = vmatmul.mubr.bf16.gmra.mrb[0].mxu0 %v5049
  %v9176 = vpop.f32.mrb[0].mxu0
  %v9177 = vadd.f32 %v9104, %v9176
  %v9178 = vpop.f32.mrb[0].mxu0
  %v9179 = vadd.f32 %v9106, %v9178
  %v9180 = vpop.f32.mrb[0].mxu0
  %v9181 = vadd.f32 %v9108, %v9180
  %v9182 = vpop.f32.mrb[0].mxu0
  %v9183 = vadd.f32 %v9110, %v9182
  %9184 = vmatprep.mubr.bf16.mxu0 %v5058
  %9185 = vmatmul.mubr.bf16.gmra.mrb[0].mxu0 %v5057
  %v9186 = vpop.f32.mrb[0].mxu0
  %v9187 = vadd.f32 %v9114, %v9186
  %v9188 = vpop.f32.mrb[0].mxu0
  %v9189 = vadd.f32 %v9116, %v9188
  %v9190 = vpop.f32.mrb[0].mxu0
  %v9191 = vadd.f32 %v9118, %v9190
  %v9192 = vpop.f32.mrb[0].mxu0
  %v9193 = vadd.f32 %v9120, %v9192
  %9194 = vmatprep.mubr.bf16.mxu0 %v5066
  %9195 = vmatmul.mubr.bf16.gmra.mrb[0].mxu0 %v5065
  %v9196 = vpop.f32.mrb[0].mxu0
  %v9197 = vadd.f32 %v9124, %v9196
  %v9198 = vpop.f32.mrb[0].mxu0
  %v9199 = vadd.f32 %v9126, %v9198
  %v9200 = vpop.f32.mrb[0].mxu0
  %v9201 = vadd.f32 %v9128, %v9200
  %v9202 = vpop.f32.mrb[0].mxu0
  %v9203 = vadd.f32 %v9130, %v9202
  %9204 = vmatprep.mubr.bf16.mxu0 %v5074
  %9205 = vmatmul.mubr.bf16.gmra.mrb[0].mxu0 %v5073
  %v9206 = vpop.f32.mrb[0].mxu0
  %v9207 = vadd.f32 %v9134, %v9206
  %v9208 = vpop.f32.mrb[0].mxu0
  %v9209 = vadd.f32 %v9136, %v9208
  %v9210 = vpop.f32.mrb[0].mxu0
  %v9211 = vadd.f32 %v9138, %v9210
  %v9212 = vpop.f32.mrb[0].mxu0
  %v9213 = vadd.f32 %v9140, %v9212
  %9214 = vdwg.mxu0
  %9215 = vmatprep.subr.bf16.mxu0 %v7432
  %9216 = vmatpush1.bf16.msra.mxu0 %v7431
  %9217 = vmatprep.subr.bf16.mxu0 %v7440
  %9218 = vmatpush1.bf16.msra.mxu0 %v7439
  %9219 = vmatprep.subr.bf16.mxu0 %v7448
  %9220 = vmatpush1.bf16.msra.mxu0 %v7447
  %9221 = vmatprep.subr.bf16.mxu0 %v7456
  %9222 = vmatpush1.bf16.msra.mxu0 %v7455
  %9223 = vmatprep.subr.bf16.mxu0 %v7464
  %9224 = vmatpush1.bf16.msra.mxu0 %v7463
  %9225 = vmatprep.subr.bf16.mxu0 %v7472
  %9226 = vmatpush1.bf16.msra.mxu0 %v7471
  %9227 = vmatprep.subr.bf16.mxu0 %v7480
  %9228 = vmatpush1.bf16.msra.mxu0 %v7479
  %9229 = vmatprep.subr.bf16.mxu0 %v7488
  %9230 = vmatpush1.bf16.msra.mxu0 %v7487
  %9231 = vmatprep.subr.bf16.mxu0 %v7496
  %9232 = vmatpush1.bf16.msra.mxu0 %v7495
  %9233 = vmatprep.subr.bf16.mxu0 %v7504
  %9234 = vmatpush1.bf16.msra.mxu0 %v7503
  %9235 = vmatprep.subr.bf16.mxu0 %v7512
  %9236 = vmatpush1.bf16.msra.mxu0 %v7511
  %9237 = vmatprep.subr.bf16.mxu0 %v7520
  %9238 = vmatpush1.bf16.msra.mxu0 %v7519
  %9239 = vmatprep.subr.bf16.mxu0 %v7528
  %9240 = vmatpush1.bf16.msra.mxu0 %v7527
  %9241 = vmatprep.subr.bf16.mxu0 %v7536
  %9242 = vmatpush1.bf16.msra.mxu0 %v7535
  %9243 = vmatprep.subr.bf16.mxu0 %v7544
  %9244 = vmatpush1.bf16.msra.mxu0 %v7543
  %9245 = vmatprep.subr.bf16.mxu0 %v7552
  %9246 = vmatpush1.bf16.msra.mxu0 %v7551
  %9247 = vmatprep.mubr.bf16.mxu0 %v5052
  %9248 = vmatmul.mubr.bf16.gmra.mrb[0].mxu0 %v5051
  %v9249 = vpop.f32.mrb[0].mxu0
  %v9250 = vadd.f32 %v9177, %v9249
  %v9251 = vpop.f32.mrb[0].mxu0
  %v9252 = vadd.f32 %v9179, %v9251
  %v9253 = vpop.f32.mrb[0].mxu0
  %v9254 = vadd.f32 %v9181, %v9253
  %v9255 = vpop.f32.mrb[0].mxu0
  %v9256 = vadd.f32 %v9183, %v9255
  %9257 = vmatprep.mubr.bf16.mxu0 %v5060
  %9258 = vmatmul.mubr.bf16.gmra.mrb[0].mxu0 %v5059
  %v9259 = vpop.f32.mrb[0].mxu0
  %v9260 = vadd.f32 %v9187, %v9259
  %v9261 = vpop.f32.mrb[0].mxu0
  %v9262 = vadd.f32 %v9189, %v9261
  %v9263 = vpop.f32.mrb[0].mxu0
  %v9264 = vadd.f32 %v9191, %v9263
  %v9265 = vpop.f32.mrb[0].mxu0
  %v9266 = vadd.f32 %v9193, %v9265
  %9267 = vmatprep.mubr.bf16.mxu0 %v5068
  %9268 = vmatmul.mubr.bf16.gmra.mrb[0].mxu0 %v5067
  %v9269 = vpop.f32.mrb[0].mxu0
  %v9270 = vadd.f32 %v9197, %v9269
  %v9271 = vpop.f32.mrb[0].mxu0
  %v9272 = vadd.f32 %v9199, %v9271
  %v9273 = vpop.f32.mrb[0].mxu0
  %v9274 = vadd.f32 %v9201, %v9273
  %v9275 = vpop.f32.mrb[0].mxu0
  %v9276 = vadd.f32 %v9203, %v9275
  %9277 = vmatprep.mubr.bf16.mxu0 %v5076
  %9278 = vmatmul.mubr.bf16.gmra.mrb[0].mxu0 %v5075
  %v9279 = vpop.f32.mrb[0].mxu0
  %v9280 = vadd.f32 %v9207, %v9279
  %v9281 = vpop.f32.mrb[0].mxu0
  %v9282 = vadd.f32 %v9209, %v9281
  %v9283 = vpop.f32.mrb[0].mxu0
  %v9284 = vadd.f32 %v9211, %v9283
  %v9285 = vpop.f32.mrb[0].mxu0
  %v9286 = vadd.f32 %v9213, %v9285
  %9287 = vdwg.mxu0
  %9288 = vmatprep.subr.bf16.mxu0 %v7560
  %9289 = vmatpush1.bf16.msra.mxu0 %v7559
  %9290 = vmatprep.subr.bf16.mxu0 %v7568
  %9291 = vmatpush1.bf16.msra.mxu0 %v7567
  %9292 = vmatprep.subr.bf16.mxu0 %v7576
  %9293 = vmatpush1.bf16.msra.mxu0 %v7575
  %9294 = vmatprep.subr.bf16.mxu0 %v7584
  %9295 = vmatpush1.bf16.msra.mxu0 %v7583
  %9296 = vmatprep.subr.bf16.mxu0 %v7592
  %9297 = vmatpush1.bf16.msra.mxu0 %v7591
  %9298 = vmatprep.subr.bf16.mxu0 %v7600
  %9299 = vmatpush1.bf16.msra.mxu0 %v7599
  %9300 = vmatprep.subr.bf16.mxu0 %v7608
  %9301 = vmatpush1.bf16.msra.mxu0 %v7607
  %9302 = vmatprep.subr.bf16.mxu0 %v7616
  %9303 = vmatpush1.bf16.msra.mxu0 %v7615
  %9304 = vmatprep.subr.bf16.mxu0 %v7624
  %9305 = vmatpush1.bf16.msra.mxu0 %v7623
  %9306 = vmatprep.subr.bf16.mxu0 %v7632
  %9307 = vmatpush1.bf16.msra.mxu0 %v7631
  %9308 = vmatprep.subr.bf16.mxu0 %v7640
  %9309 = vmatpush1.bf16.msra.mxu0 %v7639
  %9310 = vmatprep.subr.bf16.mxu0 %v7648
  %9311 = vmatpush1.bf16.msra.mxu0 %v7647
  %9312 = vmatprep.subr.bf16.mxu0 %v7656
  %9313 = vmatpush1.bf16.msra.mxu0 %v7655
  %9314 = vmatprep.subr.bf16.mxu0 %v7664
  %9315 = vmatpush1.bf16.msra.mxu0 %v7663
  %9316 = vmatprep.subr.bf16.mxu0 %v7672
  %9317 = vmatpush1.bf16.msra.mxu0 %v7671
  %9318 = vmatprep.subr.bf16.mxu0 %v7680
  %9319 = vmatpush1.bf16.msra.mxu0 %v7679
  %9320 = vmatprep.mubr.bf16.mxu0 %v5054
  %9321 = vmatmul.mubr.bf16.gmra.mrb[0].mxu0 %v5053
  %v9322 = vpop.f32.mrb[0].mxu0
  %v9323 = vadd.f32 %v9250, %v9322
  %v9324 = vpop.f32.mrb[0].mxu0
  %v9325 = vadd.f32 %v9252, %v9324
  %v9326 = vpop.f32.mrb[0].mxu0
  %v9327 = vadd.f32 %v9254, %v9326
  %v9328 = vpop.f32.mrb[0].mxu0
  %v9329 = vadd.f32 %v9256, %v9328
  %9330 = vmatprep.mubr.bf16.mxu0 %v5062
  %9331 = vmatmul.mubr.bf16.gmra.mrb[0].mxu0 %v5061
  %v9332 = vpop.f32.mrb[0].mxu0
  %v9333 = vadd.f32 %v9260, %v9332
  %v9334 = vpop.f32.mrb[0].mxu0
  %v9335 = vadd.f32 %v9262, %v9334
  %v9336 = vpop.f32.mrb[0].mxu0
  %v9337 = vadd.f32 %v9264, %v9336
  %v9338 = vpop.f32.mrb[0].mxu0
  %v9339 = vadd.f32 %v9266, %v9338
  %9340 = vmatprep.mubr.bf16.mxu0 %v5070
  %9341 = vmatmul.mubr.bf16.gmra.mrb[0].mxu0 %v5069
  %v9342 = vpop.f32.mrb[0].mxu0
  %v9343 = vadd.f32 %v9270, %v9342
  %v9344 = vpop.f32.mrb[0].mxu0
  %v9345 = vadd.f32 %v9272, %v9344
  %v9346 = vpop.f32.mrb[0].mxu0
  %v9347 = vadd.f32 %v9274, %v9346
  %v9348 = vpop.f32.mrb[0].mxu0
  %v9349 = vadd.f32 %v9276, %v9348
  %9350 = vmatprep.mubr.bf16.mxu0 %v5078
  %9351 = vmatmul.mubr.bf16.gmra.mrb[0].mxu0 %v5077
  %v9352 = vpop.f32.mrb[0].mxu0
  %v9353 = vadd.f32 %v9280, %v9352
  %v9354 = vpop.f32.mrb[0].mxu0
  %v9355 = vadd.f32 %v9282, %v9354
  %v9356 = vpop.f32.mrb[0].mxu0
  %v9357 = vadd.f32 %v9284, %v9356
  %v9358 = vpop.f32.mrb[0].mxu0
  %v9359 = vadd.f32 %v9286, %v9358
  %9360 = vdwg.mxu0
  %v9361 = vadd.f32 %v8447, %v8449
  %v9362 = vadd.f32 %v9361, %v8739
  %v9363 = vadd.f32 %v9362, %v8741
  %v9364 = vadd.f32 %v9363, %v9031
  %v9365 = vadd.f32 %v9364, %v9033
  %v9366 = vadd.f32 %v9365, %v9323
  %v9367 = vadd.f32 %v9366, %v9325
  %9368 = vadd.xlane.f32.xlu0 %v9367
  %v9369 = vpop.xlane.xlu0 %9368
  %v9370 = vadd.f32 %v8451, %v8453
  %v9371 = vadd.f32 %v9370, %v8743
  %v9372 = vadd.f32 %v9371, %v8745
  %v9373 = vadd.f32 %v9372, %v9035
  %v9374 = vadd.f32 %v9373, %v9037
  %v9375 = vadd.f32 %v9374, %v9327
  %v9376 = vadd.f32 %v9375, %v9329
  %9377 = vadd.xlane.f32.xlu0 %v9376
  %v9378 = vpop.xlane.xlu0 %9377
  %v9379 = vadd.f32 %v8457, %v8459
  %v9380 = vadd.f32 %v9379, %v8749
  %v9381 = vadd.f32 %v9380, %v8751
  %v9382 = vadd.f32 %v9381, %v9041
  %v9383 = vadd.f32 %v9382, %v9043
  %v9384 = vadd.f32 %v9383, %v9333
  %v9385 = vadd.f32 %v9384, %v9335
  %9386 = vadd.xlane.f32.xlu0 %v9385
  %v9387 = vpop.xlane.xlu0 %9386
  %v9388 = vadd.f32 %v8461, %v8463
  %v9389 = vadd.f32 %v9388, %v8753
  %v9390 = vadd.f32 %v9389, %v8755
  %v9391 = vadd.f32 %v9390, %v9045
  %v9392 = vadd.f32 %v9391, %v9047
  %v9393 = vadd.f32 %v9392, %v9337
  %v9394 = vadd.f32 %v9393, %v9339
  %9395 = vadd.xlane.f32.xlu0 %v9394
  %v9396 = vpop.xlane.xlu0 %9395
  %v9397 = vadd.f32 %v8467, %v8469
  %v9398 = vadd.f32 %v9397, %v8759
  %v9399 = vadd.f32 %v9398, %v8761
  %v9400 = vadd.f32 %v9399, %v9051
  %v9401 = vadd.f32 %v9400, %v9053
  %v9402 = vadd.f32 %v9401, %v9343
  %v9403 = vadd.f32 %v9402, %v9345
  %9404 = vadd.xlane.f32.xlu0 %v9403
  %v9405 = vpop.xlane.xlu0 %9404
  %v9406 = vadd.f32 %v8471, %v8473
  %v9407 = vadd.f32 %v9406, %v8763
  %v9408 = vadd.f32 %v9407, %v8765
  %v9409 = vadd.f32 %v9408, %v9055
  %v9410 = vadd.f32 %v9409, %v9057
  %v9411 = vadd.f32 %v9410, %v9347
  %v9412 = vadd.f32 %v9411, %v9349
  %9413 = vadd.xlane.f32.xlu0 %v9412
  %v9414 = vpop.xlane.xlu0 %9413
  %v9415 = vadd.f32 %v8477, %v8479
  %v9416 = vadd.f32 %v9415, %v8769
  %v9417 = vadd.f32 %v9416, %v8771
  %v9418 = vadd.f32 %v9417, %v9061
  %v9419 = vadd.f32 %v9418, %v9063
  %v9420 = vadd.f32 %v9419, %v9353
  %v9421 = vadd.f32 %v9420, %v9355
  %9422 = vadd.xlane.f32.xlu0 %v9421
  %v9423 = vpop.xlane.xlu0 %9422
  %v9424 = vadd.f32 %v8481, %v8483
  %v9425 = vadd.f32 %v9424, %v8773
  %v9426 = vadd.f32 %v9425, %v8775
  %v9427 = vadd.f32 %v9426, %v9065
  %v9428 = vadd.f32 %v9427, %v9067
  %v9429 = vadd.f32 %v9428, %v9357
  %v9430 = vadd.f32 %v9429, %v9359
  %9431 = vadd.xlane.f32.xlu0 %v9430
  %v9432 = vpop.xlane.xlu0 %9431
  %v9433 = vrcp.pop 1024.0
  %v9434 = vmul.f32 %v9369, %v9433
  %v9435 = vmul.f32 %v9378, %v9433
  %v9436 = vmul.f32 %v9387, %v9433
  %v9437 = vmul.f32 %v9396, %v9433
  %v9438 = vmul.f32 %v9405, %v9433
  %v9439 = vmul.f32 %v9414, %v9433
  %v9440 = vmul.f32 %v9423, %v9433
  %v9441 = vmul.f32 %v9432, %v9433
  %v9442 = vmul.f32 %v8447, %v8447
  %v9443 = vmul.f32 %v8449, %v8449
  %v9444 = vmul.f32 %v8739, %v8739
  %v9445 = vmul.f32 %v8741, %v8741
  %v9446 = vmul.f32 %v9031, %v9031
  %v9447 = vmul.f32 %v9033, %v9033
  %v9448 = vmul.f32 %v9323, %v9323
  %v9449 = vmul.f32 %v9325, %v9325
  %v9450 = vmul.f32 %v8451, %v8451
  %v9451 = vmul.f32 %v8453, %v8453
  %v9452 = vmul.f32 %v8743, %v8743
  %v9453 = vmul.f32 %v8745, %v8745
  %v9454 = vmul.f32 %v9035, %v9035
  %v9455 = vmul.f32 %v9037, %v9037
  %v9456 = vmul.f32 %v9327, %v9327
  %v9457 = vmul.f32 %v9329, %v9329
  %v9458 = vmul.f32 %v8457, %v8457
  %v9459 = vmul.f32 %v8459, %v8459
  %v9460 = vmul.f32 %v8749, %v8749
  %v9461 = vmul.f32 %v8751, %v8751
  %v9462 = vmul.f32 %v9041, %v9041
  %v9463 = vmul.f32 %v9043, %v9043
  %v9464 = vmul.f32 %v9333, %v9333
  %v9465 = vmul.f32 %v9335, %v9335
  %v9466 = vmul.f32 %v8461, %v8461
  %v9467 = vmul.f32 %v8463, %v8463
  %v9468 = vmul.f32 %v8753, %v8753
  %v9469 = vmul.f32 %v8755, %v8755
  %v9470 = vmul.f32 %v9045, %v9045
  %v9471 = vmul.f32 %v9047, %v9047
  %v9472 = vmul.f32 %v9337, %v9337
  %v9473 = vmul.f32 %v9339, %v9339
  %v9474 = vmul.f32 %v8467, %v8467
  %v9475 = vmul.f32 %v8469, %v8469
  %v9476 = vmul.f32 %v8759, %v8759
  %v9477 = vmul.f32 %v8761, %v8761
  %v9478 = vmul.f32 %v9051, %v9051
  %v9479 = vmul.f32 %v9053, %v9053
  %v9480 = vmul.f32 %v9343, %v9343
  %v9481 = vmul.f32 %v9345, %v9345
  %v9482 = vmul.f32 %v8471, %v8471
  %v9483 = vmul.f32 %v8473, %v8473
  %v9484 = vmul.f32 %v8763, %v8763
  %v9485 = vmul.f32 %v8765, %v8765
  %v9486 = vmul.f32 %v9055, %v9055
  %v9487 = vmul.f32 %v9057, %v9057
  %v9488 = vmul.f32 %v9347, %v9347
  %v9489 = vmul.f32 %v9349, %v9349
  %v9490 = vmul.f32 %v8477, %v8477
  %v9491 = vmul.f32 %v8479, %v8479
  %v9492 = vmul.f32 %v8769, %v8769
  %v9493 = vmul.f32 %v8771, %v8771
  %v9494 = vmul.f32 %v9061, %v9061
  %v9495 = vmul.f32 %v9063, %v9063
  %v9496 = vmul.f32 %v9353, %v9353
  %v9497 = vmul.f32 %v9355, %v9355
  %v9498 = vmul.f32 %v8481, %v8481
  %v9499 = vmul.f32 %v8483, %v8483
  %v9500 = vmul.f32 %v8773, %v8773
  %v9501 = vmul.f32 %v8775, %v8775
  %v9502 = vmul.f32 %v9065, %v9065
  %v9503 = vmul.f32 %v9067, %v9067
  %v9504 = vmul.f32 %v9357, %v9357
  %v9505 = vmul.f32 %v9359, %v9359
  %v9506 = vadd.f32 %v9442, %v9443
  %v9507 = vadd.f32 %v9506, %v9444
  %v9508 = vadd.f32 %v9507, %v9445
  %v9509 = vadd.f32 %v9508, %v9446
  %v9510 = vadd.f32 %v9509, %v9447
  %v9511 = vadd.f32 %v9510, %v9448
  %v9512 = vadd.f32 %v9511, %v9449
  %9513 = vadd.xlane.f32.xlu0 %v9512
  %v9514 = vpop.xlane.xlu0 %9513
  %v9515 = vadd.f32 %v9450, %v9451
  %v9516 = vadd.f32 %v9515, %v9452
  %v9517 = vadd.f32 %v9516, %v9453
  %v9518 = vadd.f32 %v9517, %v9454
  %v9519 = vadd.f32 %v9518, %v9455
  %v9520 = vadd.f32 %v9519, %v9456
  %v9521 = vadd.f32 %v9520, %v9457
  %9522 = vadd.xlane.f32.xlu0 %v9521
  %v9523 = vpop.xlane.xlu0 %9522
  %v9524 = vadd.f32 %v9458, %v9459
  %v9525 = vadd.f32 %v9524, %v9460
  %v9526 = vadd.f32 %v9525, %v9461
  %v9527 = vadd.f32 %v9526, %v9462
  %v9528 = vadd.f32 %v9527, %v9463
  %v9529 = vadd.f32 %v9528, %v9464
  %v9530 = vadd.f32 %v9529, %v9465
  %9531 = vadd.xlane.f32.xlu0 %v9530
  %v9532 = vpop.xlane.xlu0 %9531
  %v9533 = vadd.f32 %v9466, %v9467
  %v9534 = vadd.f32 %v9533, %v9468
  %v9535 = vadd.f32 %v9534, %v9469
  %v9536 = vadd.f32 %v9535, %v9470
  %v9537 = vadd.f32 %v9536, %v9471
  %v9538 = vadd.f32 %v9537, %v9472
  %v9539 = vadd.f32 %v9538, %v9473
  %9540 = vadd.xlane.f32.xlu0 %v9539
  %v9541 = vpop.xlane.xlu0 %9540
  %v9542 = vadd.f32 %v9474, %v9475
  %v9543 = vadd.f32 %v9542, %v9476
  %v9544 = vadd.f32 %v9543, %v9477
  %v9545 = vadd.f32 %v9544, %v9478
  %v9546 = vadd.f32 %v9545, %v9479
  %v9547 = vadd.f32 %v9546, %v9480
  %v9548 = vadd.f32 %v9547, %v9481
  %9549 = vadd.xlane.f32.xlu0 %v9548
  %v9550 = vpop.xlane.xlu0 %9549
  %v9551 = vadd.f32 %v9482, %v9483
  %v9552 = vadd.f32 %v9551, %v9484
  %v9553 = vadd.f32 %v9552, %v9485
  %v9554 = vadd.f32 %v9553, %v9486
  %v9555 = vadd.f32 %v9554, %v9487
  %v9556 = vadd.f32 %v9555, %v9488
  %v9557 = vadd.f32 %v9556, %v9489
  %9558 = vadd.xlane.f32.xlu0 %v9557
  %v9559 = vpop.xlane.xlu0 %9558
  %v9560 = vadd.f32 %v9490, %v9491
  %v9561 = vadd.f32 %v9560, %v9492
  %v9562 = vadd.f32 %v9561, %v9493
  %v9563 = vadd.f32 %v9562, %v9494
  %v9564 = vadd.f32 %v9563, %v9495
  %v9565 = vadd.f32 %v9564, %v9496
  %v9566 = vadd.f32 %v9565, %v9497
  %9567 = vadd.xlane.f32.xlu0 %v9566
  %v9568 = vpop.xlane.xlu0 %9567
  %v9569 = vadd.f32 %v9498, %v9499
  %v9570 = vadd.f32 %v9569, %v9500
  %v9571 = vadd.f32 %v9570, %v9501
  %v9572 = vadd.f32 %v9571, %v9502
  %v9573 = vadd.f32 %v9572, %v9503
  %v9574 = vadd.f32 %v9573, %v9504
  %v9575 = vadd.f32 %v9574, %v9505
  %9576 = vadd.xlane.f32.xlu0 %v9575
  %v9577 = vpop.xlane.xlu0 %9576
  %v9578 = vmul.f32 %v9514, %v9433
  %v9579 = vmul.f32 %v9523, %v9433
  %v9580 = vmul.f32 %v9532, %v9433
  %v9581 = vmul.f32 %v9541, %v9433
  %v9582 = vmul.f32 %v9550, %v9433
  %v9583 = vmul.f32 %v9559, %v9433
  %v9584 = vmul.f32 %v9568, %v9433
  %v9585 = vmul.f32 %v9577, %v9433
  %v9586 = vmul.f32 %v9434, %v9434
  %v9587 = vmul.f32 %v9435, %v9435
  %v9588 = vmul.f32 %v9436, %v9436
  %v9589 = vmul.f32 %v9437, %v9437
  %v9590 = vmul.f32 %v9438, %v9438
  %v9591 = vmul.f32 %v9439, %v9439
  %v9592 = vmul.f32 %v9440, %v9440
  %v9593 = vmul.f32 %v9441, %v9441
  %v9594 = vsub.f32 %v9578, %v9586
  %v9595 = vsub.f32 %v9579, %v9587
  %v9596 = vsub.f32 %v9580, %v9588
  %v9597 = vsub.f32 %v9581, %v9589
  %v9598 = vsub.f32 %v9582, %v9590
  %v9599 = vsub.f32 %v9583, %v9591
  %v9600 = vsub.f32 %v9584, %v9592
  %v9601 = vsub.f32 %v9585, %v9593
  %v9602 = vsub.f32 %v8447, %v9434
  %v9603 = vsub.f32 %v8449, %v9434
  %v9604 = vsub.f32 %v8739, %v9434
  %v9605 = vsub.f32 %v8741, %v9434
  %v9606 = vsub.f32 %v9031, %v9434
  %v9607 = vsub.f32 %v9033, %v9434
  %v9608 = vsub.f32 %v9323, %v9434
  %v9609 = vsub.f32 %v9325, %v9434
  %v9610 = vsub.f32 %v8451, %v9435
  %v9611 = vsub.f32 %v8453, %v9435
  %v9612 = vsub.f32 %v8743, %v9435
  %v9613 = vsub.f32 %v8745, %v9435
  %v9614 = vsub.f32 %v9035, %v9435
  %v9615 = vsub.f32 %v9037, %v9435
  %v9616 = vsub.f32 %v9327, %v9435
  %v9617 = vsub.f32 %v9329, %v9435
  %v9618 = vsub.f32 %v8457, %v9436
  %v9619 = vsub.f32 %v8459, %v9436
  %v9620 = vsub.f32 %v8749, %v9436
  %v9621 = vsub.f32 %v8751, %v9436
  %v9622 = vsub.f32 %v9041, %v9436
  %v9623 = vsub.f32 %v9043, %v9436
  %v9624 = vsub.f32 %v9333, %v9436
  %v9625 = vsub.f32 %v9335, %v9436
  %v9626 = vsub.f32 %v8461, %v9437
  %v9627 = vsub.f32 %v8463, %v9437
  %v9628 = vsub.f32 %v8753, %v9437
  %v9629 = vsub.f32 %v8755, %v9437
  %v9630 = vsub.f32 %v9045, %v9437
  %v9631 = vsub.f32 %v9047, %v9437
  %v9632 = vsub.f32 %v9337, %v9437
  %v9633 = vsub.f32 %v9339, %v9437
  %v9634 = vsub.f32 %v8467, %v9438
  %v9635 = vsub.f32 %v8469, %v9438
  %v9636 = vsub.f32 %v8759, %v9438
  %v9637 = vsub.f32 %v8761, %v9438
  %v9638 = vsub.f32 %v9051, %v9438
  %v9639 = vsub.f32 %v9053, %v9438
  %v9640 = vsub.f32 %v9343, %v9438
  %v9641 = vsub.f32 %v9345, %v9438
  %v9642 = vsub.f32 %v8471, %v9439
  %v9643 = vsub.f32 %v8473, %v9439
  %v9644 = vsub.f32 %v8763, %v9439
  %v9645 = vsub.f32 %v8765, %v9439
  %v9646 = vsub.f32 %v9055, %v9439
  %v9647 = vsub.f32 %v9057, %v9439
  %v9648 = vsub.f32 %v9347, %v9439
  %v9649 = vsub.f32 %v9349, %v9439
  %v9650 = vsub.f32 %v8477, %v9440
  %v9651 = vsub.f32 %v8479, %v9440
  %v9652 = vsub.f32 %v8769, %v9440
  %v9653 = vsub.f32 %v8771, %v9440
  %v9654 = vsub.f32 %v9061, %v9440
  %v9655 = vsub.f32 %v9063, %v9440
  %v9656 = vsub.f32 %v9353, %v9440
  %v9657 = vsub.f32 %v9355, %v9440
  %v9658 = vsub.f32 %v8481, %v9441
  %v9659 = vsub.f32 %v8483, %v9441
  %v9660 = vsub.f32 %v8773, %v9441
  %v9661 = vsub.f32 %v8775, %v9441
  %v9662 = vsub.f32 %v9065, %v9441
  %v9663 = vsub.f32 %v9067, %v9441
  %v9664 = vsub.f32 %v9357, %v9441
  %v9665 = vsub.f32 %v9359, %v9441
  %v9666 = vadd.f32 %v9594, 1e-05
  %v9667 = vadd.f32 %v9595, 1e-05
  %v9668 = vadd.f32 %v9596, 1e-05
  %v9669 = vadd.f32 %v9597, 1e-05
  %v9670 = vadd.f32 %v9598, 1e-05
  %v9671 = vadd.f32 %v9599, 1e-05
  %v9672 = vadd.f32 %v9600, 1e-05
  %v9673 = vadd.f32 %v9601, 1e-05
  %v9674 = vrsqrt.pop %v9666
  %v9675 = vrsqrt.pop %v9667
  %v9676 = vrsqrt.pop %v9668
  %v9677 = vrsqrt.pop %v9669
  %v9678 = vrsqrt.pop %v9670
  %v9679 = vrsqrt.pop %v9671
  %v9680 = vrsqrt.pop %v9672
  %v9681 = vrsqrt.pop %v9673
  %v9682 = vmul.f32 %v9602, %v9674
  %v9683 = vmul.f32 %v9603, %v9674
  %v9684 = vmul.f32 %v9604, %v9674
  %v9685 = vmul.f32 %v9605, %v9674
  %v9686 = vmul.f32 %v9606, %v9674
  %v9687 = vmul.f32 %v9607, %v9674
  %v9688 = vmul.f32 %v9608, %v9674
  %v9689 = vmul.f32 %v9609, %v9674
  %v9690 = vmul.f32 %v9610, %v9675
  %v9691 = vmul.f32 %v9611, %v9675
  %v9692 = vmul.f32 %v9612, %v9675
  %v9693 = vmul.f32 %v9613, %v9675
  %v9694 = vmul.f32 %v9614, %v9675
  %v9695 = vmul.f32 %v9615, %v9675
  %v9696 = vmul.f32 %v9616, %v9675
  %v9697 = vmul.f32 %v9617, %v9675
  %v9698 = vmul.f32 %v9618, %v9676
  %v9699 = vmul.f32 %v9619, %v9676
  %v9700 = vmul.f32 %v9620, %v9676
  %v9701 = vmul.f32 %v9621, %v9676
  %v9702 = vmul.f32 %v9622, %v9676
  %v9703 = vmul.f32 %v9623, %v9676
  %v9704 = vmul.f32 %v9624, %v9676
  %v9705 = vmul.f32 %v9625, %v9676
  %v9706 = vmul.f32 %v9626, %v9677
  %v9707 = vmul.f32 %v9627, %v9677
  %v9708 = vmul.f32 %v9628, %v9677
  %v9709 = vmul.f32 %v9629, %v9677
  %v9710 = vmul.f32 %v9630, %v9677
  %v9711 = vmul.f32 %v9631, %v9677
  %v9712 = vmul.f32 %v9632, %v9677
  %v9713 = vmul.f32 %v9633, %v9677
  %v9714 = vmul.f32 %v9634, %v9678
  %v9715 = vmul.f32 %v9635, %v9678
  %v9716 = vmul.f32 %v9636, %v9678
  %v9717 = vmul.f32 %v9637, %v9678
  %v9718 = vmul.f32 %v9638, %v9678
  %v9719 = vmul.f32 %v9639, %v9678
  %v9720 = vmul.f32 %v9640, %v9678
  %v9721 = vmul.f32 %v9641, %v9678
  %v9722 = vmul.f32 %v9642, %v9679
  %v9723 = vmul.f32 %v9643, %v9679
  %v9724 = vmul.f32 %v9644, %v9679
  %v9725 = vmul.f32 %v9645, %v9679
  %v9726 = vmul.f32 %v9646, %v9679
  %v9727 = vmul.f32 %v9647, %v9679
  %v9728 = vmul.f32 %v9648, %v9679
  %v9729 = vmul.f32 %v9649, %v9679
  %v9730 = vmul.f32 %v9650, %v9680
  %v9731 = vmul.f32 %v9651, %v9680
  %v9732 = vmul.f32 %v9652, %v9680
  %v9733 = vmul.f32 %v9653, %v9680
  %v9734 = vmul.f32 %v9654, %v9680
  %v9735 = vmul.f32 %v9655, %v9680
  %v9736 = vmul.f32 %v9656, %v9680
  %v9737 = vmul.f32 %v9657, %v9680
  %v9738 = vmul.f32 %v9658, %v9681
  %v9739 = vmul.f32 %v9659, %v9681
  %v9740 = vmul.f32 %v9660, %v9681
  %v9741 = vmul.f32 %v9661, %v9681
  %v9742 = vmul.f32 %v9662, %v9681
  %v9743 = vmul.f32 %v9663, %v9681
  %v9744 = vmul.f32 %v9664, %v9681
  %v9745 = vmul.f32 %v9665, %v9681
  %v9746 = vld [vmem:[%s6] sm:$0xff]
  %v9748 = vlaneseq
  %v9749 = vshrl.u32 %v9748, 7
  %v9750 = vsub.s32 0, %v9749
  %v9751 = vrot.slane %v9746, %v9750
  %v9752 = vlaneseq
  %v9753 = vshrl.u32 %v9752, 7
  %v9754 = vsub.s32 1, %v9753
  %v9755 = vrot.slane %v9746, %v9754
  %v9756 = vlaneseq
  %v9757 = vshrl.u32 %v9756, 7
  %v9758 = vsub.s32 2, %v9757
  %v9759 = vrot.slane %v9746, %v9758
  %v9760 = vlaneseq
  %v9761 = vshrl.u32 %v9760, 7
  %v9762 = vsub.s32 3, %v9761
  %v9763 = vrot.slane %v9746, %v9762
  %v9764 = vlaneseq
  %v9765 = vshrl.u32 %v9764, 7
  %v9766 = vsub.s32 4, %v9765
  %v9767 = vrot.slane %v9746, %v9766
  %v9768 = vlaneseq
  %v9769 = vshrl.u32 %v9768, 7
  %v9770 = vsub.s32 5, %v9769
  %v9771 = vrot.slane %v9746, %v9770
  %v9772 = vlaneseq
  %v9773 = vshrl.u32 %v9772, 7
  %v9774 = vsub.s32 6, %v9773
  %v9775 = vrot.slane %v9746, %v9774
  %v9776 = vlaneseq
  %v9777 = vshrl.u32 %v9776, 7
  %v9778 = vsub.s32 7, %v9777
  %v9779 = vrot.slane %v9746, %v9778
  %v9788 = vmul.f32 %v9682, %v9751
  %v9789 = vmul.f32 %v9683, %v9755
  %v9790 = vmul.f32 %v9684, %v9759
  %v9791 = vmul.f32 %v9685, %v9763
  %v9792 = vmul.f32 %v9686, %v9767
  %v9793 = vmul.f32 %v9687, %v9771
  %v9794 = vmul.f32 %v9688, %v9775
  %v9795 = vmul.f32 %v9689, %v9779
  %v9796 = vmul.f32 %v9690, %v9751
  %v9797 = vmul.f32 %v9691, %v9755
  %v9798 = vmul.f32 %v9692, %v9759
  %v9799 = vmul.f32 %v9693, %v9763
  %v9800 = vmul.f32 %v9694, %v9767
  %v9801 = vmul.f32 %v9695, %v9771
  %v9802 = vmul.f32 %v9696, %v9775
  %v9803 = vmul.f32 %v9697, %v9779
  %v9804 = vmul.f32 %v9698, %v9751
  %v9805 = vmul.f32 %v9699, %v9755
  %v9806 = vmul.f32 %v9700, %v9759
  %v9807 = vmul.f32 %v9701, %v9763
  %v9808 = vmul.f32 %v9702, %v9767
  %v9809 = vmul.f32 %v9703, %v9771
  %v9810 = vmul.f32 %v9704, %v9775
  %v9811 = vmul.f32 %v9705, %v9779
  %v9812 = vmul.f32 %v9706, %v9751
  %v9813 = vmul.f32 %v9707, %v9755
  %v9814 = vmul.f32 %v9708, %v9759
  %v9815 = vmul.f32 %v9709, %v9763
  %v9816 = vmul.f32 %v9710, %v9767
  %v9817 = vmul.f32 %v9711, %v9771
  %v9818 = vmul.f32 %v9712, %v9775
  %v9819 = vmul.f32 %v9713, %v9779
  %v9820 = vmul.f32 %v9714, %v9751
  %v9821 = vmul.f32 %v9715, %v9755
  %v9822 = vmul.f32 %v9716, %v9759
  %v9823 = vmul.f32 %v9717, %v9763
  %v9824 = vmul.f32 %v9718, %v9767
  %v9825 = vmul.f32 %v9719, %v9771
  %v9826 = vmul.f32 %v9720, %v9775
  %v9827 = vmul.f32 %v9721, %v9779
  %v9828 = vmul.f32 %v9722, %v9751
  %v9829 = vmul.f32 %v9723, %v9755
  %v9830 = vmul.f32 %v9724, %v9759
  %v9831 = vmul.f32 %v9725, %v9763
  %v9832 = vmul.f32 %v9726, %v9767
  %v9833 = vmul.f32 %v9727, %v9771
  %v9834 = vmul.f32 %v9728, %v9775
  %v9835 = vmul.f32 %v9729, %v9779
  %v9836 = vmul.f32 %v9730, %v9751
  %v9837 = vmul.f32 %v9731, %v9755
  %v9838 = vmul.f32 %v9732, %v9759
  %v9839 = vmul.f32 %v9733, %v9763
  %v9840 = vmul.f32 %v9734, %v9767
  %v9841 = vmul.f32 %v9735, %v9771
  %v9842 = vmul.f32 %v9736, %v9775
  %v9843 = vmul.f32 %v9737, %v9779
  %v9844 = vmul.f32 %v9738, %v9751
  %v9845 = vmul.f32 %v9739, %v9755
  %v9846 = vmul.f32 %v9740, %v9759
  %v9847 = vmul.f32 %v9741, %v9763
  %v9848 = vmul.f32 %v9742, %v9767
  %v9849 = vmul.f32 %v9743, %v9771
  %v9850 = vmul.f32 %v9744, %v9775
  %v9851 = vmul.f32 %v9745, %v9779
  %v9852 = vld [vmem:[%s7] sm:$0xff]
  %v9854 = vlaneseq
  %v9855 = vshrl.u32 %v9854, 7
  %v9856 = vsub.s32 0, %v9855
  %v9857 = vrot.slane %v9852, %v9856
  %v9858 = vlaneseq
  %v9859 = vshrl.u32 %v9858, 7
  %v9860 = vsub.s32 1, %v9859
  %v9861 = vrot.slane %v9852, %v9860
  %v9862 = vlaneseq
  %v9863 = vshrl.u32 %v9862, 7
  %v9864 = vsub.s32 2, %v9863
  %v9865 = vrot.slane %v9852, %v9864
  %v9866 = vlaneseq
  %v9867 = vshrl.u32 %v9866, 7
  %v9868 = vsub.s32 3, %v9867
  %v9869 = vrot.slane %v9852, %v9868
  %v9870 = vlaneseq
  %v9871 = vshrl.u32 %v9870, 7
  %v9872 = vsub.s32 4, %v9871
  %v9873 = vrot.slane %v9852, %v9872
  %v9874 = vlaneseq
  %v9875 = vshrl.u32 %v9874, 7
  %v9876 = vsub.s32 5, %v9875
  %v9877 = vrot.slane %v9852, %v9876
  %v9878 = vlaneseq
  %v9879 = vshrl.u32 %v9878, 7
  %v9880 = vsub.s32 6, %v9879
  %v9881 = vrot.slane %v9852, %v9880
  %v9882 = vlaneseq
  %v9883 = vshrl.u32 %v9882, 7
  %v9884 = vsub.s32 7, %v9883
  %v9885 = vrot.slane %v9852, %v9884
  %v9894 = vadd.f32 %v9788, %v9857
  %v9895 = vadd.f32 %v9789, %v9861
  %v9896 = vadd.f32 %v9790, %v9865
  %v9897 = vadd.f32 %v9791, %v9869
  %v9898 = vadd.f32 %v9792, %v9873
  %v9899 = vadd.f32 %v9793, %v9877
  %v9900 = vadd.f32 %v9794, %v9881
  %v9901 = vadd.f32 %v9795, %v9885
  %v9902 = vadd.f32 %v9796, %v9857
  %v9903 = vadd.f32 %v9797, %v9861
  %v9904 = vadd.f32 %v9798, %v9865
  %v9905 = vadd.f32 %v9799, %v9869
  %v9906 = vadd.f32 %v9800, %v9873
  %v9907 = vadd.f32 %v9801, %v9877
  %v9908 = vadd.f32 %v9802, %v9881
  %v9909 = vadd.f32 %v9803, %v9885
  %v9910 = vadd.f32 %v9804, %v9857
  %v9911 = vadd.f32 %v9805, %v9861
  %v9912 = vadd.f32 %v9806, %v9865
  %v9913 = vadd.f32 %v9807, %v9869
  %v9914 = vadd.f32 %v9808, %v9873
  %v9915 = vadd.f32 %v9809, %v9877
  %v9916 = vadd.f32 %v9810, %v9881
  %v9917 = vadd.f32 %v9811, %v9885
  %v9918 = vadd.f32 %v9812, %v9857
  %v9919 = vadd.f32 %v9813, %v9861
  %v9920 = vadd.f32 %v9814, %v9865
  %v9921 = vadd.f32 %v9815, %v9869
  %v9922 = vadd.f32 %v9816, %v9873
  %v9923 = vadd.f32 %v9817, %v9877
  %v9924 = vadd.f32 %v9818, %v9881
  %v9925 = vadd.f32 %v9819, %v9885
  %v9926 = vadd.f32 %v9820, %v9857
  %v9927 = vadd.f32 %v9821, %v9861
  %v9928 = vadd.f32 %v9822, %v9865
  %v9929 = vadd.f32 %v9823, %v9869
  %v9930 = vadd.f32 %v9824, %v9873
  %v9931 = vadd.f32 %v9825, %v9877
  %v9932 = vadd.f32 %v9826, %v9881
  %v9933 = vadd.f32 %v9827, %v9885
  %v9934 = vadd.f32 %v9828, %v9857
  %v9935 = vadd.f32 %v9829, %v9861
  %v9936 = vadd.f32 %v9830, %v9865
  %v9937 = vadd.f32 %v9831, %v9869
  %v9938 = vadd.f32 %v9832, %v9873
  %v9939 = vadd.f32 %v9833, %v9877
  %v9940 = vadd.f32 %v9834, %v9881
  %v9941 = vadd.f32 %v9835, %v9885
  %v9942 = vadd.f32 %v9836, %v9857
  %v9943 = vadd.f32 %v9837, %v9861
  %v9944 = vadd.f32 %v9838, %v9865
  %v9945 = vadd.f32 %v9839, %v9869
  %v9946 = vadd.f32 %v9840, %v9873
  %v9947 = vadd.f32 %v9841, %v9877
  %v9948 = vadd.f32 %v9842, %v9881
  %v9949 = vadd.f32 %v9843, %v9885
  %v9950 = vadd.f32 %v9844, %v9857
  %v9951 = vadd.f32 %v9845, %v9861
  %v9952 = vadd.f32 %v9846, %v9865
  %v9953 = vadd.f32 %v9847, %v9869
  %v9954 = vadd.f32 %v9848, %v9873
  %v9955 = vadd.f32 %v9849, %v9877
  %v9956 = vadd.f32 %v9850, %v9881
  %v9957 = vadd.f32 %v9851, %v9885
  %v9958 = vmax.f32 %v9894, 0.0
  %v9959 = vmax.f32 %v9895, 0.0
  %v9960 = vmax.f32 %v9896, 0.0
  %v9961 = vmax.f32 %v9897, 0.0
  %v9962 = vmax.f32 %v9898, 0.0
  %v9963 = vmax.f32 %v9899, 0.0
  %v9964 = vmax.f32 %v9900, 0.0
  %v9965 = vmax.f32 %v9901, 0.0
  %v9966 = vmax.f32 %v9902, 0.0
  %v9967 = vmax.f32 %v9903, 0.0
  %v9968 = vmax.f32 %v9904, 0.0
  %v9969 = vmax.f32 %v9905, 0.0
  %v9970 = vmax.f32 %v9906, 0.0
  %v9971 = vmax.f32 %v9907, 0.0
  %v9972 = vmax.f32 %v9908, 0.0
  %v9973 = vmax.f32 %v9909, 0.0
  %v9974 = vmax.f32 %v9910, 0.0
  %v9975 = vmax.f32 %v9911, 0.0
  %v9976 = vmax.f32 %v9912, 0.0
  %v9977 = vmax.f32 %v9913, 0.0
  %v9978 = vmax.f32 %v9914, 0.0
  %v9979 = vmax.f32 %v9915, 0.0
  %v9980 = vmax.f32 %v9916, 0.0
  %v9981 = vmax.f32 %v9917, 0.0
  %v9982 = vmax.f32 %v9918, 0.0
  %v9983 = vmax.f32 %v9919, 0.0
  %v9984 = vmax.f32 %v9920, 0.0
  %v9985 = vmax.f32 %v9921, 0.0
  %v9986 = vmax.f32 %v9922, 0.0
  %v9987 = vmax.f32 %v9923, 0.0
  %v9988 = vmax.f32 %v9924, 0.0
  %v9989 = vmax.f32 %v9925, 0.0
  %v9990 = vmax.f32 %v9926, 0.0
  %v9991 = vmax.f32 %v9927, 0.0
  %v9992 = vmax.f32 %v9928, 0.0
  %v9993 = vmax.f32 %v9929, 0.0
  %v9994 = vmax.f32 %v9930, 0.0
  %v9995 = vmax.f32 %v9931, 0.0
  %v9996 = vmax.f32 %v9932, 0.0
  %v9997 = vmax.f32 %v9933, 0.0
  %v9998 = vmax.f32 %v9934, 0.0
  %v9999 = vmax.f32 %v9935, 0.0
  %v10000 = vmax.f32 %v9936, 0.0
  %v10001 = vmax.f32 %v9937, 0.0
  %v10002 = vmax.f32 %v9938, 0.0
  %v10003 = vmax.f32 %v9939, 0.0
  %v10004 = vmax.f32 %v9940, 0.0
  %v10005 = vmax.f32 %v9941, 0.0
  %v10006 = vmax.f32 %v9942, 0.0
  %v10007 = vmax.f32 %v9943, 0.0
  %v10008 = vmax.f32 %v9944, 0.0
  %v10009 = vmax.f32 %v9945, 0.0
  %v10010 = vmax.f32 %v9946, 0.0
  %v10011 = vmax.f32 %v9947, 0.0
  %v10012 = vmax.f32 %v9948, 0.0
  %v10013 = vmax.f32 %v9949, 0.0
  %v10014 = vmax.f32 %v9950, 0.0
  %v10015 = vmax.f32 %v9951, 0.0
  %v10016 = vmax.f32 %v9952, 0.0
  %v10017 = vmax.f32 %v9953, 0.0
  %v10018 = vmax.f32 %v9954, 0.0
  %v10019 = vmax.f32 %v9955, 0.0
  %v10020 = vmax.f32 %v9956, 0.0
  %v10021 = vmax.f32 %v9957, 0.0
  %v10022 = vmax.f32 %v9958, %v9966
  %v10023 = vmax.f32 %v10022, %v9974
  %v10024 = vmax.f32 %v10023, %v9982
  %v10025 = vmax.f32 %v10024, %v9990
  %v10026 = vmax.f32 %v10025, %v9998
  %v10027 = vmax.f32 %v10026, %v10006
  %v10028 = vmax.f32 %v10027, %v10014
  %v10029 = vmax.f32 %v9959, %v9967
  %v10030 = vmax.f32 %v10029, %v9975
  %v10031 = vmax.f32 %v10030, %v9983
  %v10032 = vmax.f32 %v10031, %v9991
  %v10033 = vmax.f32 %v10032, %v9999
  %v10034 = vmax.f32 %v10033, %v10007
  %v10035 = vmax.f32 %v10034, %v10015
  %v10036 = vmax.f32 %v9960, %v9968
  %v10037 = vmax.f32 %v10036, %v9976
  %v10038 = vmax.f32 %v10037, %v9984
  %v10039 = vmax.f32 %v10038, %v9992
  %v10040 = vmax.f32 %v10039, %v10000
  %v10041 = vmax.f32 %v10040, %v10008
  %v10042 = vmax.f32 %v10041, %v10016
  %v10043 = vmax.f32 %v9961, %v9969
  %v10044 = vmax.f32 %v10043, %v9977
  %v10045 = vmax.f32 %v10044, %v9985
  %v10046 = vmax.f32 %v10045, %v9993
  %v10047 = vmax.f32 %v10046, %v10001
  %v10048 = vmax.f32 %v10047, %v10009
  %v10049 = vmax.f32 %v10048, %v10017
  %v10050 = vmax.f32 %v9962, %v9970
  %v10051 = vmax.f32 %v10050, %v9978
  %v10052 = vmax.f32 %v10051, %v9986
  %v10053 = vmax.f32 %v10052, %v9994
  %v10054 = vmax.f32 %v10053, %v10002
  %v10055 = vmax.f32 %v10054, %v10010
  %v10056 = vmax.f32 %v10055, %v10018
  %v10057 = vmax.f32 %v9963, %v9971
  %v10058 = vmax.f32 %v10057, %v9979
  %v10059 = vmax.f32 %v10058, %v9987
  %v10060 = vmax.f32 %v10059, %v9995
  %v10061 = vmax.f32 %v10060, %v10003
  %v10062 = vmax.f32 %v10061, %v10011
  %v10063 = vmax.f32 %v10062, %v10019
  %v10064 = vmax.f32 %v9964, %v9972
  %v10065 = vmax.f32 %v10064, %v9980
  %v10066 = vmax.f32 %v10065, %v9988
  %v10067 = vmax.f32 %v10066, %v9996
  %v10068 = vmax.f32 %v10067, %v10004
  %v10069 = vmax.f32 %v10068, %v10012
  %v10070 = vmax.f32 %v10069, %v10020
  %v10071 = vmax.f32 %v9965, %v9973
  %v10072 = vmax.f32 %v10071, %v9981
  %v10073 = vmax.f32 %v10072, %v9989
  %v10074 = vmax.f32 %v10073, %v9997
  %v10075 = vmax.f32 %v10074, %v10005
  %v10076 = vmax.f32 %v10075, %v10013
  %v10077 = vmax.f32 %v10076, %v10021
  %v10078 = vld [vmem:[%s8] sm:$0xff]
  %v10079 = vld [vmem:[%s8 + $0x8] sm:$0xff]
  %v10080 = vld [vmem:[%s8 + $0x10] sm:$0xff]
  %v10081 = vld [vmem:[%s8 + $0x18] sm:$0xff]
  %v10082 = vld [vmem:[%s8 + $0x20] sm:$0xff]
  %v10083 = vld [vmem:[%s8 + $0x28] sm:$0xff]
  %v10084 = vld [vmem:[%s8 + $0x30] sm:$0xff]
  %v10085 = vld [vmem:[%s8 + $0x38] sm:$0xff]
  %v10086 = vmax.f32 %v10078, %v10028
  %v10087 = vmax.f32 %v10079, %v10035
  %v10088 = vmax.f32 %v10080, %v10042
  %v10089 = vmax.f32 %v10081, %v10049
  %v10090 = vmax.f32 %v10082, %v10056
  %v10091 = vmax.f32 %v10083, %v10063
  %v10092 = vmax.f32 %v10084, %v10070
  %v10093 = vmax.f32 %v10085, %v10077
  %10094 = vst [vmem:[%s8] sm:$0xff] %v10086
  %10095 = vst [vmem:[%s8 + $0x8] sm:$0xff] %v10087
  %10096 = vst [vmem:[%s8 + $0x10] sm:$0xff] %v10088
  %10097 = vst [vmem:[%s8 + $0x18] sm:$0xff] %v10089
  %10098 = vst [vmem:[%s8 + $0x20] sm:$0xff] %v10090
  %10099 = vst [vmem:[%s8 + $0x28] sm:$0xff] %v10091
  %10100 = vst [vmem:[%s8 + $0x30] sm:$0xff] %v10092
  %10101 = vst [vmem:[%s8 + $0x38] sm:$0xff] %v10093
  // Predicated region
  $region38: #{memory_select_forward.1} parent=0 // pred_check
    _
  $region39: #{memory_select_forward.1} parent=0 // pred_check_branch
    %10103 = sbr.rel (0) target = $region41
  $region40: #{memory_select_forward.1} parent=0 // pred_region
    _
  $region41: #{memory_select_forward.1} parent=0 // pred_fallthru
    _
  // Predicated region
  $region42: #{memory_select_forward.1} parent=0 // pred_check
    _
  $region43: #{memory_select_forward.1} parent=0 // pred_check_branch
    %10105 = sbr.rel (0) target = $region45
  $region44: #{memory_select_forward.1} parent=0 // pred_region
    _
  $region45: #{memory_select_forward.1} parent=0 // pred_fallthru
    _

</llo_original>
